<compile_context>
chip_gen: v6e
topology: v6e:2x2x1
jax: 0.10.0
libtpu: 0.0.40
codegen_flags: <defaults>
</compile_context>

<pallas_src>
import functools

import jax
import jax.numpy as jnp
from jax.experimental import pallas as pl
from jax.experimental.pallas import tpu as pltpu


INPUT_SIZE = 832
HIDDEN_SIZES = (512, 256)
OUTPUT_SIZE = 20480


# ---------------------------------------------------------------------------
# Kernel
# ---------------------------------------------------------------------------
def _fused_qnet_kernel(x_ref, w1_ref, b1_ref, w2_ref, b2_ref, w3_ref, b3_ref,
                       o_ref):
    # x : (B, 832)        f32  (resident: index_map constant)
    # w1: (832, 512)      f32  (resident)
    # w2: (512, 256)      f32  (resident)
    # w3: (256, tile_n)   bf16 (streamed contiguous tile; leading dim squeezed)
    # b1: (1, 512) f32, b2: (1, 256) f32 (resident), b3: (1, tile_n) f32 (streamed)
    h1 = jnp.dot(x_ref[...], w1_ref[...], preferred_element_type=jnp.float32)
    h1 = jnp.maximum(h1 + b1_ref[...], 0.0)

    h2 = jnp.dot(h1, w2_ref[...], preferred_element_type=jnp.float32)
    h2 = jnp.maximum(h2 + b2_ref[...], 0.0)

    y = jnp.dot(h2.astype(jnp.bfloat16), w3_ref[...],
                preferred_element_type=jnp.float32)
    o_ref[...] = (y + b3_ref[...]).astype(o_ref.dtype)


# ---------------------------------------------------------------------------
# Wrapper
# ---------------------------------------------------------------------------
def qnetwork_pallas(packed, x):
    """Fused forward pass: relu(relu(x@w1+b1)@w2+b2)@w3+b3.

    `packed` must come from pack_qnetwork_params (w3 pre-blocked + bf16).
    """
    w1, b1 = packed["w1"], packed["b1"]
    w2, b2 = packed["w2"], packed["b2"]
    w3, b3 = packed["w3"], packed["b3"]

    B, K = x.shape
    H1 = w1.shape[1]
    H2 = w2.shape[1]
    nt, H2w, tile_n = w3.shape          # w3 stored as (num_tiles, H2, tile_n)
    N = nt * tile_n
    assert w1.shape[0] == K and w2.shape[0] == H1 and H2w == H2
    assert b3.shape == (1, N)

    return pl.pallas_call(
        _fused_qnet_kernel,
        out_shape=jax.ShapeDtypeStruct((B, N), jnp.float32),
        grid_spec=pltpu.PrefetchScalarGridSpec(
            num_scalar_prefetch=0,
            grid=(nt,),
            in_specs=[
                pl.BlockSpec((B, K), lambda j: (0, 0)),            # x   (resident)
                pl.BlockSpec((K, H1), lambda j: (0, 0)),           # w1  (resident)
                pl.BlockSpec((1, H1), lambda j: (0, 0)),           # b1  (resident)
                pl.BlockSpec((H1, H2), lambda j: (0, 0)),          # w2  (resident)
                pl.BlockSpec((1, H2), lambda j: (0, 0)),           # b2  (resident)
                pl.BlockSpec((None, H2, tile_n), lambda j: (j, 0, 0)),  # w3 tile
                pl.BlockSpec((1, tile_n), lambda j: (0, j)),       # b3 tile
            ],
            out_specs=pl.BlockSpec((B, tile_n), lambda j: (0, j)),
        ),
        compiler_params=pltpu.CompilerParams(
            # lets v7x shard the 4 tiles over its 2 TensorCores
            dimension_semantics=("parallel",),
            # footprint ~11 MiB (v7x, tile_n=5120) / ~17 MiB (v5e/v6e, 10240);
            # explicit limit because v5e's default scoped VMEM is only 16 MiB.
            vmem_limit_bytes=40 * 1024 * 1024,
        ),
    )(x, w1, b1, w2, b2, w3, b3)


@jax.jit
def qnetwork_forward(packed_params, x):
    return qnetwork_pallas(packed_params, x)


# ---------------------------------------------------------------------------
# Params: PyTorch-style init (f32 master weights) + kernel packing
# ---------------------------------------------------------------------------
def init_qnetwork_params(key, input_size=INPUT_SIZE, hidden_sizes=HIDDEN_SIZES,
                         output_size=OUTPUT_SIZE):
    """PyTorch nn.Linear default init: U(-1/sqrt(fan_in), +1/sqrt(fan_in)).

    Weights stored (in, out) in float32 (master copy, matches the f32 model).
    """
    sizes = [input_size, hidden_sizes[0], hidden_sizes[1], output_size]
    params = {}
    for i in range(3):
        fan_in, fan_out = sizes[i], sizes[i + 1]
        key, kw, kb = jax.random.split(key, 3)
        bound = 1.0 / (fan_in ** 0.5)
        params[f"w{i+1}"] = jax.random.uniform(
            kw, (fan_in, fan_out), dtype=jnp.float32, minval=-bound, maxval=bound)
        params[f"b{i+1}"] = jax.random.uniform(
            kb, (fan_out,), dtype=jnp.float32, minval=-bound, maxval=bound)
    return params


def _pick_tile_n():
    """Generation-specific output tiling (see perf notes at top of file)."""
    try:
        kind = jax.devices()[0].device_kind.lower()
    except Exception:
        return 5120
    if "v7" in kind or "tpu7" in kind:
        return 5120      # grid=4 -> 2 pipelined tiles per v7x TensorCore
    return 10240         # single-TC v5e / v6e: 2 big steps, minimal overhead


def pack_qnetwork_params(params, tile_n):
    """Layout transform done ONCE at init time (not per forward call):

    * w3 -> bfloat16 and pre-blocked to (N // tile_n, H2, tile_n) so every
      streamed tile is one contiguous HBM slab.
    * biases reshaped to (1, n) rows for the kernel.
    * w1 / w2 stay float32 for parity with the reference model.
    """
    H2, N = params["w3"].shape
    assert N % tile_n == 0, (N, tile_n)
    nt = N // tile_n
    w3_blocked = (params["w3"].astype(jnp.bfloat16)
                  .reshape(H2, nt, tile_n)
                  .transpose(1, 0, 2))            # (nt, H2, tile_n), contiguous blocks
    return {
        "w1": params["w1"], "b1": params["b1"].reshape(1, -1),
        "w2": params["w2"], "b2": params["b2"].reshape(1, -1),
        "w3": w3_blocked,   "b3": params["b3"].reshape(1, -1),
    }


# ---------------------------------------------------------------------------
# Pure-f32 JAX reference (mirrors the PyTorch module exactly)
# ---------------------------------------------------------------------------
def qnetwork_reference(params, x):
    h1 = jnp.maximum(jnp.dot(x, params["w1"]) + params["b1"], 0.0)
    h2 = jnp.maximum(jnp.dot(h1, params["w2"]) + params["b2"], 0.0)
    return jnp.dot(h2, params["w3"]) + params["b3"]


# ---------------------------------------------------------------------------
if __name__ == "__main__":
    key = jax.random.PRNGKey(0)
    kp, kx = jax.random.split(key)

    tile_n = _pick_tile_n()
    params = init_qnetwork_params(kp)                   # f32 master params
    packed = pack_qnetwork_params(params, tile_n)       # kernel layout

    batch = 2   # caller-side note: larger batches (8-256) are ~free (weight-stream bound)
    x = jax.random.normal(kx, (batch, INPUT_SIZE), dtype=jnp.float32)

    y = jax.block_until_ready(qnetwork_forward(packed, x))

    assert y.shape == (batch, OUTPUT_SIZE), y.shape
    assert y.dtype == jnp.float32

    # numerical sanity check against the full-f32 reference (only w3 is bf16)
    y_ref = qnetwork_reference(params, x)
    max_err = float(jnp.max(jnp.abs(y - y_ref)))
    assert jnp.allclose(y, y_ref, atol=2e-2, rtol=2e-2), max_err

    print("KERNEL_OK")
</pallas_src>

<mosaic_0001>
module attributes {stable_mosaic.version = 11 : i64} {
  func.func @_fused_qnet_kernel(%arg0: i32, %arg1: memref<2x832xf32, #tpu.memory_space<vmem>>, %arg2: memref<832x512xf32, #tpu.memory_space<vmem>>, %arg3: memref<1x512xf32, #tpu.memory_space<vmem>>, %arg4: memref<512x256xf32, #tpu.memory_space<vmem>>, %arg5: memref<1x256xf32, #tpu.memory_space<vmem>>, %arg6: memref<1x256x10240xbf16, #tpu.memory_space<vmem>>, %arg7: memref<1x10240xf32, #tpu.memory_space<vmem>>, %arg8: memref<2x10240xf32, #tpu.memory_space<vmem>>) attributes {dimension_semantics = [#tpu.dimension_semantics<parallel>], iteration_bounds = array<i64: 2>, scalar_prefetch = 0 : i64, scratch_operands = 0 : i64, tpu.core_type = #tpu.core_type<tc>, window_params = [{pipeline_mode = #tpu.pipeline_mode<synchronous>, transform_indices = @transform_0, window_bounds = array<i64: 2, 832>}, {pipeline_mode = #tpu.pipeline_mode<synchronous>, transform_indices = @transform_1, window_bounds = array<i64: 832, 512>}, {pipeline_mode = #tpu.pipeline_mode<synchronous>, transform_indices = @transform_2, window_bounds = array<i64: 1, 512>}, {pipeline_mode = #tpu.pipeline_mode<synchronous>, transform_indices = @transform_3, window_bounds = array<i64: 512, 256>}, {pipeline_mode = #tpu.pipeline_mode<synchronous>, transform_indices = @transform_4, window_bounds = array<i64: 1, 256>}, {transform_indices = @transform_5, window_bounds = array<i64: 1, 256, 10240>}, {transform_indices = @transform_6, window_bounds = array<i64: 1, 10240>}, {transform_indices = @transform_7, window_bounds = array<i64: 2, 10240>}]} {
    %c0 = arith.constant 0 : index
    %c0_0 = arith.constant 0 : index
    %0 = vector.load %arg1[%c0, %c0_0] : memref<2x832xf32, #tpu.memory_space<vmem>>, vector<2x832xf32>
    %c0_1 = arith.constant 0 : index
    %c0_2 = arith.constant 0 : index
    %1 = vector.load %arg2[%c0_1, %c0_2] : memref<832x512xf32, #tpu.memory_space<vmem>>, vector<832x512xf32>
    %cst = arith.constant dense<0.000000e+00> : vector<2x512xf32>
    %2 = tpu.matmul %0, %1, %cst {dimension_numbers = #tpu.dot_dimension_numbers<[1], [0], [0], [1], [0, 0, 1, 1], [], []>} : vector<2x832xf32>, vector<832x512xf32>, vector<2x512xf32> -> vector<2x512xf32>
    %c0_3 = arith.constant 0 : index
    %c0_4 = arith.constant 0 : index
    %3 = vector.load %arg3[%c0_3, %c0_4] : memref<1x512xf32, #tpu.memory_space<vmem>>, vector<1x512xf32>
    %4 = vector.broadcast %3 : vector<1x512xf32> to vector<2x512xf32>
    %5 = arith.addf %2, %4 : vector<2x512xf32>
    %cst_5 = arith.constant 0.000000e+00 : f32
    %6 = vector.broadcast %cst_5 : f32 to vector<2x512xf32>
    %7 = arith.maximumf %5, %6 : vector<2x512xf32>
    %c0_6 = arith.constant 0 : index
    %c0_7 = arith.constant 0 : index
    %8 = vector.load %arg4[%c0_6, %c0_7] : memref<512x256xf32, #tpu.memory_space<vmem>>, vector<512x256xf32>
    %cst_8 = arith.constant dense<0.000000e+00> : vector<2x256xf32>
    %9 = tpu.matmul %7, %8, %cst_8 {dimension_numbers = #tpu.dot_dimension_numbers<[1], [0], [0], [1], [0, 0, 1, 1], [], []>} : vector<2x512xf32>, vector<512x256xf32>, vector<2x256xf32> -> vector<2x256xf32>
    %c0_9 = arith.constant 0 : index
    %c0_10 = arith.constant 0 : index
    %10 = vector.load %arg5[%c0_9, %c0_10] : memref<1x256xf32, #tpu.memory_space<vmem>>, vector<1x256xf32>
    %11 = vector.broadcast %10 : vector<1x256xf32> to vector<2x256xf32>
    %12 = arith.addf %9, %11 : vector<2x256xf32>
    %cst_11 = arith.constant 0.000000e+00 : f32
    %13 = vector.broadcast %cst_11 : f32 to vector<2x256xf32>
    %14 = arith.maximumf %12, %13 : vector<2x256xf32>
    %15 = arith.truncf %14 : vector<2x256xf32> to vector<2x256xbf16>
    %c0_12 = arith.constant 0 : index
    %c0_13 = arith.constant 0 : index
    %c0_14 = arith.constant 0 : index
    %16 = vector.load %arg6[%c0_12, %c0_13, %c0_14] : memref<1x256x10240xbf16, #tpu.memory_space<vmem>>, vector<1x256x10240xbf16>
    %17 = vector.shape_cast %16 : vector<1x256x10240xbf16> to vector<256x10240xbf16>
    %cst_15 = arith.constant dense<0.000000e+00> : vector<2x10240xf32>
    %18 = tpu.matmul %15, %17, %cst_15 {dimension_numbers = #tpu.dot_dimension_numbers<[1], [0], [0], [1], [0, 0, 1, 1], [], []>} : vector<2x256xbf16>, vector<256x10240xbf16>, vector<2x10240xf32> -> vector<2x10240xf32>
    %c0_16 = arith.constant 0 : index
    %c0_17 = arith.constant 0 : index
    %19 = vector.load %arg7[%c0_16, %c0_17] : memref<1x10240xf32, #tpu.memory_space<vmem>>, vector<1x10240xf32>
    %20 = vector.broadcast %19 : vector<1x10240xf32> to vector<2x10240xf32>
    %21 = arith.addf %18, %20 : vector<2x10240xf32>
    %c0_18 = arith.constant 0 : index
    %c0_19 = arith.constant 0 : index
    %22 = vector.load %arg8[%c0_18, %c0_19] : memref<2x10240xf32, #tpu.memory_space<vmem>>, vector<2x10240xf32>
    tpu.vector_store %arg8[%c0_18, %c0_19], %21 {strides = array<i32>} : memref<2x10240xf32, #tpu.memory_space<vmem>>, vector<2x10240xf32>,
    return
  }
  func.func @transform_0(%arg0: i32) -> (i32, i32) {
    %c0_i32 = arith.constant 0 : i32
    %c0_i32_0 = arith.constant 0 : i32
    %c0_i32_1 = arith.constant 0 : i32
    return %c0_i32, %c0_i32_0 : i32, i32
  }
  func.func @transform_1(%arg0: i32) -> (i32, i32) {
    %c0_i32 = arith.constant 0 : i32
    %c0_i32_0 = arith.constant 0 : i32
    %c0_i32_1 = arith.constant 0 : i32
    return %c0_i32, %c0_i32_0 : i32, i32
  }
  func.func @transform_2(%arg0: i32) -> (i32, i32) {
    %c0_i32 = arith.constant 0 : i32
    %c0_i32_0 = arith.constant 0 : i32
    %c0_i32_1 = arith.constant 0 : i32
    return %c0_i32, %c0_i32_0 : i32, i32
  }
  func.func @transform_3(%arg0: i32) -> (i32, i32) {
    %c0_i32 = arith.constant 0 : i32
    %c0_i32_0 = arith.constant 0 : i32
    %c0_i32_1 = arith.constant 0 : i32
    return %c0_i32, %c0_i32_0 : i32, i32
  }
  func.func @transform_4(%arg0: i32) -> (i32, i32) {
    %c0_i32 = arith.constant 0 : i32
    %c0_i32_0 = arith.constant 0 : i32
    %c0_i32_1 = arith.constant 0 : i32
    return %c0_i32, %c0_i32_0 : i32, i32
  }
  func.func @transform_5(%arg0: i32) -> (i32, i32, i32) {
    %c0_i32 = arith.constant 0 : i32
    %c0_i32_0 = arith.constant 0 : i32
    %c0_i32_1 = arith.constant 0 : i32
    return %arg0, %c0_i32, %c0_i32_0 : i32, i32, i32
  }
  func.func @transform_6(%arg0: i32) -> (i32, i32) {
    %c0_i32 = arith.constant 0 : i32
    %c0_i32_0 = arith.constant 0 : i32
    return %c0_i32, %arg0 : i32, i32
  }
  func.func @transform_7(%arg0: i32) -> (i32, i32) {
    %c0_i32 = arith.constant 0 : i32
    %c0_i32_0 = arith.constant 0 : i32
    return %c0_i32, %arg0 : i32, i32
  }
}

</mosaic_0001>

<llo_original>
// kernel: qnetwork_forward.1
$region0: #{qnetwork_forward.1}
  #allocation0 [shape = 'u32[]', space=smem, size = 0x4, offset = 0x4, fixed_abs, tag = 'smem constant byte address 0x4 - core index']
  #allocation1 [shape = 'u32[144,128]{1,0:T(1,128)}', space=vmem, size = 0x12000, scoped, tag = 'internal scratch']
  %s0 = inlined_call_operand.hbm [shape: f32[2,832], index: 0, kind: input, shape index: {}]
  %s1 = inlined_call_operand.hbm [shape: f32[832,512], index: 1, kind: input, shape index: {}]
  %s2 = inlined_call_operand.hbm [shape: f32[1,512], index: 2, kind: input, shape index: {}]
  %s3 = inlined_call_operand.hbm [shape: f32[512,256], index: 3, kind: input, shape index: {}]
  %s4 = inlined_call_operand.hbm [shape: f32[1,256], index: 4, kind: input, shape index: {}]
  %s5 = inlined_call_operand.hbm [shape: bf16[2,256,10240], index: 5, kind: input, shape index: {}]
  %s6 = inlined_call_operand.hbm [shape: f32[1,20480], index: 6, kind: input, shape index: {}]
  %s7 = inlined_call_operand.hbm [shape: f32[2,20480], index: 7, kind: output, shape index: {}]
  %s8 = sld [smem:[#allocation0]]
  $region89: #{qnetwork_forward.1} parent=0
    _
  %s10 = ssub.s32 1, %s8
  %s11 = scalar_select 0, %s10, %s8
  $region1: #{qnetwork_forward.1} parent=0
    #allocation2 [shape = 'u8[7168]{0}', space=vmem, size = 0x1c00, scoped, tag = 'input window, operand 0, single buffered']
    #allocation3 [shape = 's32[2]{0}', space=sflag, size = 0x8, scoped, tag = 'scoped memory for qnetwork_forward.1']
    #allocation4 [shape = 's32[2]{0}', space=sflag, size = 0x8, scoped, tag = 'scoped memory for qnetwork_forward.1']
    #allocation5 [shape = 'u8[1703936]{0}', space=vmem, size = 0x1a0000, scoped, tag = 'input window, operand 1, single buffered']
    #allocation6 [shape = 's32[1]{0}', space=sflag, size = 0x4, scoped, tag = 'scoped memory for qnetwork_forward.1']
    #allocation7 [shape = 'u8[2048]{0}', space=vmem, size = 0x800, scoped, tag = 'input window, operand 2, single buffered']
    #allocation8 [shape = 'u8[524288]{0}', space=vmem, size = 0x80000, scoped, tag = 'input window, operand 3, single buffered']
    #allocation9 [shape = 's32[1]{0}', space=sflag, size = 0x4, scoped, tag = 'scoped memory for qnetwork_forward.1']
    #allocation10 [shape = 'u8[1024]{0}', space=vmem, size = 0x400, scoped, tag = 'input window, operand 4, single buffered']
    #allocation11 [shape = 'u8[10485760]{0}', space=vmem, size = 0xa00000, scoped, tag = 'input window, operand 5']
    #allocation12 [shape = 's32[2]{0}', space=sflag, size = 0x8, scoped, tag = 'scoped memory for qnetwork_forward.1']
    #allocation13 [shape = 'u8[81920]{0}', space=vmem, size = 0x14000, scoped, tag = 'input window, operand 6']
    #allocation14 [shape = 'u8[163840]{0}', space=vmem, size = 0x28000, scoped, tag = 'output window, operand 0']
    %12 = vsyncpa [#allocation3], 0
    %13 = vsyncpa [#allocation6], 0
    %14 = vsyncpa [#allocation9], 0
    %15 = vsyncpa [#allocation12], 0
    %s16 = scalar_lea.sflag [#allocation12], 1
    %17 = vsyncpa %s16, 0
    %18 = vsyncpa [#allocation4], 0
    %s19 = scalar_lea.sflag [#allocation4], 1
    %20 = vsyncpa %s19, 0
    loop: start=0, step=1, limit=4
    $region2: #{qnetwork_forward.1} parent=1 // loop_pre_header
      _
    $region3: #{qnetwork_forward.1} parent=1 // loop_header
      %s22 = sphi 0, %s26
      %p23 = scmp.ge.s32.totalorder %s22, 4
      %s30 = sphi 0, %s30
      %s32 = sphi 0, %s30
      %s33 = sphi 0, %s32
      %s47 = sphi 0, %s33
      %s51 = sphi 0, %s51
      %s53 = sphi 0, %s51
      %s54 = sphi 0, %s53
      %s68 = sphi 0, %s54
      %s72 = sphi 0, %s72
      %s74 = sphi 0, %s72
      %s75 = sphi 0, %s74
      %s89 = sphi 0, %s75
      %s93 = sphi 0, %s93
      %s95 = sphi 0, %s93
      %s96 = sphi 0, %s95
      %s110 = sphi 0, %s96
      %s114 = sphi 0, %s114
      %s116 = sphi 0, %s114
      %s117 = sphi 0, %s116
      %s131 = sphi 0, %s117
      %s137 = sphi 0, %s139
      %s140 = sphi 0, %s137
      %s141 = sphi 0, %s140
      %s157 = sphi 0, %s141
      %s163 = sphi 0, %s165
      %s166 = sphi 0, %s163
      %s167 = sphi 0, %s166
      %s183 = sphi 0, %s167
      %s189 = sphi 0, %s191
      %s192 = sphi 0, %s189
      %s193 = sphi 0, %s192
      %s209 = sphi 0, %s193
    $region4: #{qnetwork_forward.1} parent=1 // loop_header_branch
      %25 = sbr.rel (%p23) target = $region8
    $region5: #{qnetwork_forward.1} parent=1 // loop_body
      %s27 = ssub.s32 %s22, 1
      %s28 = ssub.s32 %s22, 2
      %s29 = sadd.s32 %s22, 1
      %s31 = sadd.s32 %s30, 1
      %p34 = scmp.eq.s32.totalorder %s22, 1
      %p35 = scmp.ne.s32.totalorder %s30, %s32
      %p36 = scmp.eq.s32.totalorder %s22, 0
      %p37 = por %p35, %p36
      %p38 = scmp.ne.s32.totalorder %s30, %s32
      %p39 = scmp.eq.s32.totalorder %s27, 1
      %p40 = por %p38, %p39
      %p41 = scmp.ne.s32.totalorder %s32, %s33
      %p42 = scmp.eq.s32.totalorder %s27, 0
      %p43 = por %p41, %p42
      %p44 = scmp.ne.s32.totalorder %s32, %s33
      %p45 = scmp.eq.s32.totalorder %s28, 1
      %p46 = por %p44, %p45
      %p48 = scmp.ne.s32.totalorder %s33, %s47
      %p49 = scmp.eq.s32.totalorder %s28, 0
      %p50 = por %p48, %p49
      %s52 = sadd.s32 %s51, 1
      %p55 = scmp.eq.s32.totalorder %s22, 1
      %p56 = scmp.ne.s32.totalorder %s51, %s53
      %p57 = scmp.eq.s32.totalorder %s22, 0
      %p58 = por %p56, %p57
      %p59 = scmp.ne.s32.totalorder %s51, %s53
      %p60 = scmp.eq.s32.totalorder %s27, 1
      %p61 = por %p59, %p60
      %p62 = scmp.ne.s32.totalorder %s53, %s54
      %p63 = scmp.eq.s32.totalorder %s27, 0
      %p64 = por %p62, %p63
      %p65 = scmp.ne.s32.totalorder %s53, %s54
      %p66 = scmp.eq.s32.totalorder %s28, 1
      %p67 = por %p65, %p66
      %p69 = scmp.ne.s32.totalorder %s54, %s68
      %p70 = scmp.eq.s32.totalorder %s28, 0
      %p71 = por %p69, %p70
      %s73 = sadd.s32 %s72, 1
      %p76 = scmp.eq.s32.totalorder %s22, 1
      %p77 = scmp.ne.s32.totalorder %s72, %s74
      %p78 = scmp.eq.s32.totalorder %s22, 0
      %p79 = por %p77, %p78
      %p80 = scmp.ne.s32.totalorder %s72, %s74
      %p81 = scmp.eq.s32.totalorder %s27, 1
      %p82 = por %p80, %p81
      %p83 = scmp.ne.s32.totalorder %s74, %s75
      %p84 = scmp.eq.s32.totalorder %s27, 0
      %p85 = por %p83, %p84
      %p86 = scmp.ne.s32.totalorder %s74, %s75
      %p87 = scmp.eq.s32.totalorder %s28, 1
      %p88 = por %p86, %p87
      %p90 = scmp.ne.s32.totalorder %s75, %s89
      %p91 = scmp.eq.s32.totalorder %s28, 0
      %p92 = por %p90, %p91
      %s94 = sadd.s32 %s93, 1
      %p97 = scmp.eq.s32.totalorder %s22, 1
      %p98 = scmp.ne.s32.totalorder %s93, %s95
      %p99 = scmp.eq.s32.totalorder %s22, 0
      %p100 = por %p98, %p99
      %p101 = scmp.ne.s32.totalorder %s93, %s95
      %p102 = scmp.eq.s32.totalorder %s27, 1
      %p103 = por %p101, %p102
      %p104 = scmp.ne.s32.totalorder %s95, %s96
      %p105 = scmp.eq.s32.totalorder %s27, 0
      %p106 = por %p104, %p105
      %p107 = scmp.ne.s32.totalorder %s95, %s96
      %p108 = scmp.eq.s32.totalorder %s28, 1
      %p109 = por %p107, %p108
      %p111 = scmp.ne.s32.totalorder %s96, %s110
      %p112 = scmp.eq.s32.totalorder %s28, 0
      %p113 = por %p111, %p112
      %s115 = sadd.s32 %s114, 1
      %p118 = scmp.eq.s32.totalorder %s22, 1
      %p119 = scmp.ne.s32.totalorder %s114, %s116
      %p120 = scmp.eq.s32.totalorder %s22, 0
      %p121 = por %p119, %p120
      %p122 = scmp.ne.s32.totalorder %s114, %s116
      %p123 = scmp.eq.s32.totalorder %s27, 1
      %p124 = por %p122, %p123
      %p125 = scmp.ne.s32.totalorder %s116, %s117
      %p126 = scmp.eq.s32.totalorder %s27, 0
      %p127 = por %p125, %p126
      %p128 = scmp.ne.s32.totalorder %s116, %s117
      %p129 = scmp.eq.s32.totalorder %s28, 1
      %p130 = por %p128, %p129
      %p132 = scmp.ne.s32.totalorder %s117, %s131
      %p133 = scmp.eq.s32.totalorder %s28, 0
      %p134 = por %p132, %p133
      %s135 = ssub.s32 %s22, %s29
      %p136 = scmp.eq.s32.totalorder %s135, 0
      %s138 = sadd.s32 %s137, 1
      %s139 = scalar_select %p136, %s137, %s138
      %p142 = pneg %p136
      %p143 = scmp.eq.s32.totalorder %s22, 1
      %p144 = por %p142, %p143
      %p145 = scmp.ne.s32.totalorder %s137, %s140
      %p146 = scmp.eq.s32.totalorder %s22, 0
      %p147 = por %p145, %p146
      %p148 = scmp.ne.s32.totalorder %s137, %s140
      %p149 = scmp.eq.s32.totalorder %s27, 1
      %p150 = por %p148, %p149
      %p151 = scmp.ne.s32.totalorder %s140, %s141
      %p152 = scmp.eq.s32.totalorder %s27, 0
      %p153 = por %p151, %p152
      %p154 = scmp.ne.s32.totalorder %s140, %s141
      %p155 = scmp.eq.s32.totalorder %s28, 1
      %p156 = por %p154, %p155
      %p158 = scmp.ne.s32.totalorder %s141, %s157
      %p159 = scmp.eq.s32.totalorder %s28, 0
      %p160 = por %p158, %p159
      %s161 = ssub.s32 %s22, %s29
      %p162 = scmp.eq.s32.totalorder %s161, 0
      %s164 = sadd.s32 %s163, 1
      %s165 = scalar_select %p162, %s163, %s164
      %p168 = pneg %p162
      %p169 = scmp.eq.s32.totalorder %s22, 1
      %p170 = por %p168, %p169
      %p171 = scmp.ne.s32.totalorder %s163, %s166
      %p172 = scmp.eq.s32.totalorder %s22, 0
      %p173 = por %p171, %p172
      %p174 = scmp.ne.s32.totalorder %s163, %s166
      %p175 = scmp.eq.s32.totalorder %s27, 1
      %p176 = por %p174, %p175
      %p177 = scmp.ne.s32.totalorder %s166, %s167
      %p178 = scmp.eq.s32.totalorder %s27, 0
      %p179 = por %p177, %p178
      %p180 = scmp.ne.s32.totalorder %s166, %s167
      %p181 = scmp.eq.s32.totalorder %s28, 1
      %p182 = por %p180, %p181
      %p184 = scmp.ne.s32.totalorder %s167, %s183
      %p185 = scmp.eq.s32.totalorder %s28, 0
      %p186 = por %p184, %p185
      %s187 = ssub.s32 %s22, %s29
      %p188 = scmp.eq.s32.totalorder %s187, 0
      %s190 = sadd.s32 %s189, 1
      %s191 = scalar_select %p188, %s189, %s190
      %p194 = pneg %p188
      %p195 = scmp.eq.s32.totalorder %s22, 1
      %p196 = por %p194, %p195
      %p197 = scmp.ne.s32.totalorder %s189, %s192
      %p198 = scmp.eq.s32.totalorder %s22, 0
      %p199 = por %p197, %p198
      %p200 = scmp.ne.s32.totalorder %s189, %s192
      %p201 = scmp.eq.s32.totalorder %s27, 1
      %p202 = por %p200, %p201
      %p203 = scmp.ne.s32.totalorder %s192, %s193
      %p204 = scmp.eq.s32.totalorder %s27, 0
      %p205 = por %p203, %p204
      %p206 = scmp.ne.s32.totalorder %s192, %s193
      %p207 = scmp.eq.s32.totalorder %s28, 1
      %p208 = por %p206, %p207
      %p210 = scmp.ne.s32.totalorder %s193, %s209
      %p211 = scmp.eq.s32.totalorder %s28, 0
      %p212 = por %p210, %p211
      %p213 = scmp.le.s32.totalorder 1, %s22
      %p214 = scmp.lt.s32.totalorder %s22, 3
      %p215 = pnand %p213, %p214
      %p216 = pneg %p215
      // Predicated region
      $region9: #{qnetwork_forward.1} parent=5 // pred_check
        _
      $region10: #{qnetwork_forward.1} parent=5 // pred_check_branch
        %218 = sbr.rel (%p215) target = $region12
      $region11: #{qnetwork_forward.1} parent=5 // pred_region
        %s219 = ssub.s32 %s22, 1
        // Predicated region
        $region13: #{qnetwork_forward.1} parent=11 // pred_check
          %p220 = pneg %p43
        $region14: #{qnetwork_forward.1} parent=11 // pred_check_branch
          %222 = sbr.rel (%p220) target = $region16
        $region15: #{qnetwork_forward.1} parent=11 // pred_region
          %s224 = ssub.s32 224, 224
          %225 = vsyncadd [#allocation3], %s224
          %s227 = sshll.u32 [#allocation2], 4
          %s228 = int_to_ptr.vmem [resolvable:$true] %s227
          %230 = dma.hbm_to_vmem [thread:$0]  %s0, 224, %s228, [#allocation3]
        $region16: #{qnetwork_forward.1} parent=11 // pred_fallthru
          _
        // Predicated region
        $region17: #{qnetwork_forward.1} parent=11 // pred_check
          %p231 = pneg %p64
        $region18: #{qnetwork_forward.1} parent=11 // pred_check_branch
          %233 = sbr.rel (%p231) target = $region20
        $region19: #{qnetwork_forward.1} parent=11 // pred_region
          %s235 = ssub.s32 53248, 53248
          %236 = vsyncadd [#allocation6], %s235
          %s237 = sshll.u32 [#allocation5], 4
          %s238 = int_to_ptr.vmem [resolvable:$true] %s237
          %243 = dma.hbm_to_vmem [thread:$0]  %s1, 53248, %s238, [#allocation6], 512, 512, 32
        $region20: #{qnetwork_forward.1} parent=11 // pred_fallthru
          _
        // Predicated region
        $region21: #{qnetwork_forward.1} parent=11 // pred_check
          %p244 = pneg %p85
        $region22: #{qnetwork_forward.1} parent=11 // pred_check_branch
          %246 = sbr.rel (%p244) target = $region24
        $region23: #{qnetwork_forward.1} parent=11 // pred_region
          %s248 = ssub.s32 64, 64
          %249 = vsyncadd [#allocation6], %s248
          %s251 = sshll.u32 [#allocation7], 4
          %s252 = int_to_ptr.vmem [resolvable:$true] %s251
          %254 = dma.hbm_to_vmem [thread:$0]  %s2, 64, %s252, [#allocation6]
        $region24: #{qnetwork_forward.1} parent=11 // pred_fallthru
          _
        // Predicated region
        $region25: #{qnetwork_forward.1} parent=11 // pred_check
          %p255 = pneg %p106
        $region26: #{qnetwork_forward.1} parent=11 // pred_check_branch
          %257 = sbr.rel (%p255) target = $region28
        $region27: #{qnetwork_forward.1} parent=11 // pred_region
          %s259 = ssub.s32 16384, 16384
          %260 = vsyncadd [#allocation9], %s259
          %s261 = sshll.u32 [#allocation8], 4
          %s262 = int_to_ptr.vmem [resolvable:$true] %s261
          %267 = dma.hbm_to_vmem [thread:$0]  %s3, 16384, %s262, [#allocation9], 256, 256, 16
        $region28: #{qnetwork_forward.1} parent=11 // pred_fallthru
          _
        // Predicated region
        $region29: #{qnetwork_forward.1} parent=11 // pred_check
          %p268 = pneg %p127
        $region30: #{qnetwork_forward.1} parent=11 // pred_check_branch
          %270 = sbr.rel (%p268) target = $region32
        $region31: #{qnetwork_forward.1} parent=11 // pred_region
          %s272 = ssub.s32 32, 32
          %273 = vsyncadd [#allocation9], %s272
          %s275 = sshll.u32 [#allocation10], 4
          %s276 = int_to_ptr.vmem [resolvable:$true] %s275
          %278 = dma.hbm_to_vmem [thread:$0]  %s4, 32, %s276, [#allocation9]
        $region32: #{qnetwork_forward.1} parent=11 // pred_fallthru
          _
      $region12: #{qnetwork_forward.1} parent=5 // pred_fallthru
        _
      %p279 = scmp.lt.s32.totalorder %s22, 2
      // Predicated region
      $region33: #{qnetwork_forward.1} parent=5 // pred_check
        %p280 = pneg %p279
      $region34: #{qnetwork_forward.1} parent=5 // pred_check_branch
        %282 = sbr.rel (%p280) target = $region36
      $region35: #{qnetwork_forward.1} parent=5 // pred_region
        // Predicated region
        $region37: #{qnetwork_forward.1} parent=35 // pred_check
          %p283 = pneg %p147
        $region38: #{qnetwork_forward.1} parent=35 // pred_check_branch
          %285 = sbr.rel (%p283) target = $region40
        $region39: #{qnetwork_forward.1} parent=35 // pred_region
          %s286 = sand.u32 %s22, 1
          %s287 = scalar_lea.sflag [#allocation12], %s286
          %s288 = sand.u32 %s137, 1
          %s289 = smul.addr %s288, 10240
          %s290 = scalar_lea.vmem [#allocation11], %s289
          %s292 = ssub.s32 163840, 163840
          %293 = vsyncadd %s287, %s292
          %s294 = smul.addr %s22, 2560
          %s295 = smul.addr %s294, 64
          %s296 = scalar_lea.hbm %s5, %s295
          %s297 = sshll.u32 %s290, 4
          %s298 = int_to_ptr.vmem [resolvable:$true] %s297
          %303 = dma.hbm_to_vmem [thread:$0]  %s296, 163840, %s298, %s287, 5120, 5120, 320
        $region40: #{qnetwork_forward.1} parent=35 // pred_fallthru
          _
        // Predicated region
        $region41: #{qnetwork_forward.1} parent=35 // pred_check
          %p304 = pneg %p173
        $region42: #{qnetwork_forward.1} parent=35 // pred_check_branch
          %306 = sbr.rel (%p304) target = $region44
        $region43: #{qnetwork_forward.1} parent=35 // pred_region
          %s307 = sand.u32 %s22, 1
          %s308 = scalar_lea.sflag [#allocation12], %s307
          %s309 = sand.u32 %s163, 1
          %s310 = smul.addr %s309, 80
          %s311 = scalar_lea.vmem [#allocation13], %s310
          %s312 = smul.u32 80, %s22
          %s314 = ssub.s32 1280, 1280
          %315 = vsyncadd %s308, %s314
          %s316 = smul.addr %s312, 16
          %s317 = scalar_lea.hbm %s6, %s316
          %s319 = sshll.u32 %s311, 4
          %s320 = int_to_ptr.vmem [resolvable:$true] %s319
          %322 = dma.hbm_to_vmem [thread:$0]  %s317, 1280, %s320, %s308
        $region44: #{qnetwork_forward.1} parent=35 // pred_fallthru
          _
      $region36: #{qnetwork_forward.1} parent=5 // pred_fallthru
        _
      %p323 = scmp.le.s32.totalorder 1, %s22
      %p324 = scmp.lt.s32.totalorder %s22, 3
      %p325 = pnand %p323, %p324
      %p326 = pneg %p325
      // Predicated region
      $region45: #{qnetwork_forward.1} parent=5 // pred_check
        _
      $region46: #{qnetwork_forward.1} parent=5 // pred_check_branch
        %328 = sbr.rel (%p325) target = $region48
      $region47: #{qnetwork_forward.1} parent=5 // pred_region
        %s329 = ssub.s32 %s22, 1
        // Predicated region
        $region49: #{qnetwork_forward.1} parent=47 // pred_check
          %p330 = pneg %p43
        $region50: #{qnetwork_forward.1} parent=47 // pred_check_branch
          %332 = sbr.rel (%p330) target = $region52
        $region51: #{qnetwork_forward.1} parent=47 // pred_region
          %333 = dma.done [#allocation3], 224
        $region52: #{qnetwork_forward.1} parent=47 // pred_fallthru
          _
        // Predicated region
        $region53: #{qnetwork_forward.1} parent=47 // pred_check
          %p334 = pneg %p64
        $region54: #{qnetwork_forward.1} parent=47 // pred_check_branch
          %336 = sbr.rel (%p334) target = $region56
        $region55: #{qnetwork_forward.1} parent=47 // pred_region
          %337 = dma.done [#allocation6], 53248
        $region56: #{qnetwork_forward.1} parent=47 // pred_fallthru
          _
        // Predicated region
        $region57: #{qnetwork_forward.1} parent=47 // pred_check
          %p338 = pneg %p85
        $region58: #{qnetwork_forward.1} parent=47 // pred_check_branch
          %340 = sbr.rel (%p338) target = $region60
        $region59: #{qnetwork_forward.1} parent=47 // pred_region
          %341 = dma.done [#allocation6], 64
        $region60: #{qnetwork_forward.1} parent=47 // pred_fallthru
          _
        // Predicated region
        $region61: #{qnetwork_forward.1} parent=47 // pred_check
          %p342 = pneg %p106
        $region62: #{qnetwork_forward.1} parent=47 // pred_check_branch
          %344 = sbr.rel (%p342) target = $region64
        $region63: #{qnetwork_forward.1} parent=47 // pred_region
          %345 = dma.done [#allocation9], 16384
        $region64: #{qnetwork_forward.1} parent=47 // pred_fallthru
          _
        // Predicated region
        $region65: #{qnetwork_forward.1} parent=47 // pred_check
          %p346 = pneg %p127
        $region66: #{qnetwork_forward.1} parent=47 // pred_check_branch
          %348 = sbr.rel (%p346) target = $region68
        $region67: #{qnetwork_forward.1} parent=47 // pred_region
          %349 = dma.done [#allocation9], 32
        $region68: #{qnetwork_forward.1} parent=47 // pred_fallthru
          _
        %s350 = sand.u32 %s27, 1
        %s351 = scalar_lea.sflag [#allocation12], %s350
        %s352 = sand.u32 %s140, 1
        %s353 = smul.addr %s352, 10240
        %s354 = scalar_lea.vmem [#allocation11], %s353
        // Predicated region
        $region69: #{qnetwork_forward.1} parent=47 // pred_check
          %p355 = pneg %p153
        $region70: #{qnetwork_forward.1} parent=47 // pred_check_branch
          %357 = sbr.rel (%p355) target = $region72
        $region71: #{qnetwork_forward.1} parent=47 // pred_region
          %358 = dma.done %s351, 163840
        $region72: #{qnetwork_forward.1} parent=47 // pred_fallthru
          _
        %s359 = sand.u32 %s27, 1
        %s360 = scalar_lea.sflag [#allocation12], %s359
        %s361 = sand.u32 %s166, 1
        %s362 = smul.addr %s361, 80
        %s363 = scalar_lea.vmem [#allocation13], %s362
        // Predicated region
        $region73: #{qnetwork_forward.1} parent=47 // pred_check
          %p364 = pneg %p179
        $region74: #{qnetwork_forward.1} parent=47 // pred_check_branch
          %366 = sbr.rel (%p364) target = $region76
        $region75: #{qnetwork_forward.1} parent=47 // pred_region
          %367 = dma.done %s360, 1280
        $region76: #{qnetwork_forward.1} parent=47 // pred_fallthru
          _
        %p368 = pneg %p43
        %p369 = pneg %p40
        %p370 = pneg %p64
        %p371 = pneg %p61
        %p372 = pneg %p85
        %p373 = pneg %p82
        %p374 = pneg %p106
        %p375 = pneg %p103
        %p376 = pneg %p127
        %p377 = pneg %p124
        %s378 = sand.u32 %s27, 1
        %s379 = scalar_lea.sflag [#allocation12], %s378
        %s380 = sand.u32 %s140, 1
        %s381 = smul.addr %s380, 10240
        %s382 = scalar_lea.vmem [#allocation11], %s381
        %p383 = pneg %p153
        %p384 = pneg %p150
        %s385 = sand.u32 %s27, 1
        %s386 = scalar_lea.sflag [#allocation12], %s385
        %s387 = sand.u32 %s166, 1
        %s388 = smul.addr %s387, 80
        %s389 = scalar_lea.vmem [#allocation13], %s388
        %p390 = pneg %p179
        %p391 = pneg %p176
        %p392 = pneg %p205
        %p393 = pneg %p202
        %s394 = sand.u32 %s192, 1
        %s395 = scalar_lea.sflag [#allocation4], %s394
        %s396 = sand.u32 %s192, 1
        %s397 = smul.addr %s396, 160
        %s398 = scalar_lea.vmem [#allocation14], %s397
        %s399 = smul.u32 80, %s27
        %s400 = smul.u32 80, %s27
        %v401 = vld [vmem:[#allocation2] sm:$0xff]
        %v402 = vld [vmem:[#allocation2 + $0x8] sm:$0x3f]
        %v403 = vld [vmem:[#allocation5] sm:$0xff]
        %v404 = vld [vmem:[#allocation5 + $0x8] sm:$0xff]
        %v405 = vld [vmem:[#allocation5 + $0x10] sm:$0xff]
        %v406 = vld [vmem:[#allocation5 + $0x18] sm:$0xff]
        %v407 = vld [vmem:[#allocation5 + $0x20] sm:$0xff]
        %v408 = vld [vmem:[#allocation5 + $0x28] sm:$0xff]
        %v409 = vld [vmem:[#allocation5 + $0x30] sm:$0xff]
        %v410 = vld [vmem:[#allocation5 + $0x38] sm:$0xff]
        %v411 = vld [vmem:[#allocation5 + $0x40] sm:$0xff]
        %v412 = vld [vmem:[#allocation5 + $0x48] sm:$0xff]
        %v413 = vld [vmem:[#allocation5 + $0x50] sm:$0xff]
        %v414 = vld [vmem:[#allocation5 + $0x58] sm:$0xff]
        %v415 = vld [vmem:[#allocation5 + $0x60] sm:$0xff]
        %v416 = vld [vmem:[#allocation5 + $0x68] sm:$0xff]
        %v417 = vld [vmem:[#allocation5 + $0x70] sm:$0xff]
        %v418 = vld [vmem:[#allocation5 + $0x78] sm:$0xff]
        %v419 = vld [vmem:[#allocation5 + $0x80] sm:$0xff]
        %v420 = vld [vmem:[#allocation5 + $0x88] sm:$0xff]
        %v421 = vld [vmem:[#allocation5 + $0x90] sm:$0xff]
        %v422 = vld [vmem:[#allocation5 + $0x98] sm:$0xff]
        %v423 = vld [vmem:[#allocation5 + $0xa0] sm:$0xff]
        %v424 = vld [vmem:[#allocation5 + $0xa8] sm:$0xff]
        %v425 = vld [vmem:[#allocation5 + $0xb0] sm:$0xff]
        %v426 = vld [vmem:[#allocation5 + $0xb8] sm:$0xff]
        %v427 = vld [vmem:[#allocation5 + $0xc0] sm:$0xff]
        %v428 = vld [vmem:[#allocation5 + $0xc8] sm:$0xff]
        %v429 = vld [vmem:[#allocation5 + $0xd0] sm:$0xff]
        %v430 = vld [vmem:[#allocation5 + $0xd8] sm:$0xff]
        %v431 = vld [vmem:[#allocation5 + $0xe0] sm:$0xff]
        %v432 = vld [vmem:[#allocation5 + $0xe8] sm:$0xff]
        %v433 = vld [vmem:[#allocation5 + $0xf0] sm:$0xff]
        %v434 = vld [vmem:[#allocation5 + $0xf8] sm:$0xff]
        %v435 = vld [vmem:[#allocation5 + $0x100] sm:$0xff]
        %v436 = vld [vmem:[#allocation5 + $0x108] sm:$0xff]
        %v437 = vld [vmem:[#allocation5 + $0x110] sm:$0xff]
        %v438 = vld [vmem:[#allocation5 + $0x118] sm:$0xff]
        %v439 = vld [vmem:[#allocation5 + $0x120] sm:$0xff]
        %v440 = vld [vmem:[#allocation5 + $0x128] sm:$0xff]
        %v441 = vld [vmem:[#allocation5 + $0x130] sm:$0xff]
        %v442 = vld [vmem:[#allocation5 + $0x138] sm:$0xff]
        %v443 = vld [vmem:[#allocation5 + $0x140] sm:$0xff]
        %v444 = vld [vmem:[#allocation5 + $0x148] sm:$0xff]
        %v445 = vld [vmem:[#allocation5 + $0x150] sm:$0xff]
        %v446 = vld [vmem:[#allocation5 + $0x158] sm:$0xff]
        %v447 = vld [vmem:[#allocation5 + $0x160] sm:$0xff]
        %v448 = vld [vmem:[#allocation5 + $0x168] sm:$0xff]
        %v449 = vld [vmem:[#allocation5 + $0x170] sm:$0xff]
        %v450 = vld [vmem:[#allocation5 + $0x178] sm:$0xff]
        %v451 = vld [vmem:[#allocation5 + $0x180] sm:$0xff]
        %v452 = vld [vmem:[#allocation5 + $0x188] sm:$0xff]
        %v453 = vld [vmem:[#allocation5 + $0x190] sm:$0xff]
        %v454 = vld [vmem:[#allocation5 + $0x198] sm:$0xff]
        %v455 = vld [vmem:[#allocation5 + $0x1a0] sm:$0xff]
        %v456 = vld [vmem:[#allocation5 + $0x1a8] sm:$0xff]
        %v457 = vld [vmem:[#allocation5 + $0x1b0] sm:$0xff]
        %v458 = vld [vmem:[#allocation5 + $0x1b8] sm:$0xff]
        %v459 = vld [vmem:[#allocation5 + $0x1c0] sm:$0xff]
        %v460 = vld [vmem:[#allocation5 + $0x1c8] sm:$0xff]
        %v461 = vld [vmem:[#allocation5 + $0x1d0] sm:$0xff]
        %v462 = vld [vmem:[#allocation5 + $0x1d8] sm:$0xff]
        %v463 = vld [vmem:[#allocation5 + $0x1e0] sm:$0xff]
        %v464 = vld [vmem:[#allocation5 + $0x1e8] sm:$0xff]
        %v465 = vld [vmem:[#allocation5 + $0x1f0] sm:$0xff]
        %v466 = vld [vmem:[#allocation5 + $0x1f8] sm:$0xff]
        %v467 = vld [vmem:[#allocation5 + $0x200] sm:$0xff]
        %v468 = vld [vmem:[#allocation5 + $0x208] sm:$0xff]
        %v469 = vld [vmem:[#allocation5 + $0x210] sm:$0xff]
        %v470 = vld [vmem:[#allocation5 + $0x218] sm:$0xff]
        %v471 = vld [vmem:[#allocation5 + $0x220] sm:$0xff]
        %v472 = vld [vmem:[#allocation5 + $0x228] sm:$0xff]
        %v473 = vld [vmem:[#allocation5 + $0x230] sm:$0xff]
        %v474 = vld [vmem:[#allocation5 + $0x238] sm:$0xff]
        %v475 = vld [vmem:[#allocation5 + $0x240] sm:$0xff]
        %v476 = vld [vmem:[#allocation5 + $0x248] sm:$0xff]
        %v477 = vld [vmem:[#allocation5 + $0x250] sm:$0xff]
        %v478 = vld [vmem:[#allocation5 + $0x258] sm:$0xff]
        %v479 = vld [vmem:[#allocation5 + $0x260] sm:$0xff]
        %v480 = vld [vmem:[#allocation5 + $0x268] sm:$0xff]
        %v481 = vld [vmem:[#allocation5 + $0x270] sm:$0xff]
        %v482 = vld [vmem:[#allocation5 + $0x278] sm:$0xff]
        %v483 = vld [vmem:[#allocation5 + $0x280] sm:$0xff]
        %v484 = vld [vmem:[#allocation5 + $0x288] sm:$0xff]
        %v485 = vld [vmem:[#allocation5 + $0x290] sm:$0xff]
        %v486 = vld [vmem:[#allocation5 + $0x298] sm:$0xff]
        %v487 = vld [vmem:[#allocation5 + $0x2a0] sm:$0xff]
        %v488 = vld [vmem:[#allocation5 + $0x2a8] sm:$0xff]
        %v489 = vld [vmem:[#allocation5 + $0x2b0] sm:$0xff]
        %v490 = vld [vmem:[#allocation5 + $0x2b8] sm:$0xff]
        %v491 = vld [vmem:[#allocation5 + $0x2c0] sm:$0xff]
        %v492 = vld [vmem:[#allocation5 + $0x2c8] sm:$0xff]
        %v493 = vld [vmem:[#allocation5 + $0x2d0] sm:$0xff]
        %v494 = vld [vmem:[#allocation5 + $0x2d8] sm:$0xff]
        %v495 = vld [vmem:[#allocation5 + $0x2e0] sm:$0xff]
        %v496 = vld [vmem:[#allocation5 + $0x2e8] sm:$0xff]
        %v497 = vld [vmem:[#allocation5 + $0x2f0] sm:$0xff]
        %v498 = vld [vmem:[#allocation5 + $0x2f8] sm:$0xff]
        %v499 = vld [vmem:[#allocation5 + $0x300] sm:$0xff]
        %v500 = vld [vmem:[#allocation5 + $0x308] sm:$0xff]
        %v501 = vld [vmem:[#allocation5 + $0x310] sm:$0xff]
        %v502 = vld [vmem:[#allocation5 + $0x318] sm:$0xff]
        %v503 = vld [vmem:[#allocation5 + $0x320] sm:$0xff]
        %v504 = vld [vmem:[#allocation5 + $0x328] sm:$0xff]
        %v505 = vld [vmem:[#allocation5 + $0x330] sm:$0xff]
        %v506 = vld [vmem:[#allocation5 + $0x338] sm:$0xff]
        %v507 = vld [vmem:[#allocation5 + $0x340] sm:$0xff]
        %v508 = vld [vmem:[#allocation5 + $0x348] sm:$0xff]
        %v509 = vld [vmem:[#allocation5 + $0x350] sm:$0xff]
        %v510 = vld [vmem:[#allocation5 + $0x358] sm:$0xff]
        %v511 = vld [vmem:[#allocation5 + $0x360] sm:$0xff]
        %v512 = vld [vmem:[#allocation5 + $0x368] sm:$0xff]
        %v513 = vld [vmem:[#allocation5 + $0x370] sm:$0xff]
        %v514 = vld [vmem:[#allocation5 + $0x378] sm:$0xff]
        %v515 = vld [vmem:[#allocation5 + $0x380] sm:$0xff]
        %v516 = vld [vmem:[#allocation5 + $0x388] sm:$0xff]
        %v517 = vld [vmem:[#allocation5 + $0x390] sm:$0xff]
        %v518 = vld [vmem:[#allocation5 + $0x398] sm:$0xff]
        %v519 = vld [vmem:[#allocation5 + $0x3a0] sm:$0xff]
        %v520 = vld [vmem:[#allocation5 + $0x3a8] sm:$0xff]
        %v521 = vld [vmem:[#allocation5 + $0x3b0] sm:$0xff]
        %v522 = vld [vmem:[#allocation5 + $0x3b8] sm:$0xff]
        %v523 = vld [vmem:[#allocation5 + $0x3c0] sm:$0xff]
        %v524 = vld [vmem:[#allocation5 + $0x3c8] sm:$0xff]
        %v525 = vld [vmem:[#allocation5 + $0x3d0] sm:$0xff]
        %v526 = vld [vmem:[#allocation5 + $0x3d8] sm:$0xff]
        %v527 = vld [vmem:[#allocation5 + $0x3e0] sm:$0xff]
        %v528 = vld [vmem:[#allocation5 + $0x3e8] sm:$0xff]
        %v529 = vld [vmem:[#allocation5 + $0x3f0] sm:$0xff]
        %v530 = vld [vmem:[#allocation5 + $0x3f8] sm:$0xff]
        %v531 = vld [vmem:[#allocation5 + $0x400] sm:$0xff]
        %v532 = vld [vmem:[#allocation5 + $0x408] sm:$0xff]
        %v533 = vld [vmem:[#allocation5 + $0x410] sm:$0xff]
        %v534 = vld [vmem:[#allocation5 + $0x418] sm:$0xff]
        %v535 = vld [vmem:[#allocation5 + $0x420] sm:$0xff]
        %v536 = vld [vmem:[#allocation5 + $0x428] sm:$0xff]
        %v537 = vld [vmem:[#allocation5 + $0x430] sm:$0xff]
        %v538 = vld [vmem:[#allocation5 + $0x438] sm:$0xff]
        %v539 = vld [vmem:[#allocation5 + $0x440] sm:$0xff]
        %v540 = vld [vmem:[#allocation5 + $0x448] sm:$0xff]
        %v541 = vld [vmem:[#allocation5 + $0x450] sm:$0xff]
        %v542 = vld [vmem:[#allocation5 + $0x458] sm:$0xff]
        %v543 = vld [vmem:[#allocation5 + $0x460] sm:$0xff]
        %v544 = vld [vmem:[#allocation5 + $0x468] sm:$0xff]
        %v545 = vld [vmem:[#allocation5 + $0x470] sm:$0xff]
        %v546 = vld [vmem:[#allocation5 + $0x478] sm:$0xff]
        %v547 = vld [vmem:[#allocation5 + $0x480] sm:$0xff]
        %v548 = vld [vmem:[#allocation5 + $0x488] sm:$0xff]
        %v549 = vld [vmem:[#allocation5 + $0x490] sm:$0xff]
        %v550 = vld [vmem:[#allocation5 + $0x498] sm:$0xff]
        %v551 = vld [vmem:[#allocation5 + $0x4a0] sm:$0xff]
        %v552 = vld [vmem:[#allocation5 + $0x4a8] sm:$0xff]
        %v553 = vld [vmem:[#allocation5 + $0x4b0] sm:$0xff]
        %v554 = vld [vmem:[#allocation5 + $0x4b8] sm:$0xff]
        %v555 = vld [vmem:[#allocation5 + $0x4c0] sm:$0xff]
        %v556 = vld [vmem:[#allocation5 + $0x4c8] sm:$0xff]
        %v557 = vld [vmem:[#allocation5 + $0x4d0] sm:$0xff]
        %v558 = vld [vmem:[#allocation5 + $0x4d8] sm:$0xff]
        %v559 = vld [vmem:[#allocation5 + $0x4e0] sm:$0xff]
        %v560 = vld [vmem:[#allocation5 + $0x4e8] sm:$0xff]
        %v561 = vld [vmem:[#allocation5 + $0x4f0] sm:$0xff]
        %v562 = vld [vmem:[#allocation5 + $0x4f8] sm:$0xff]
        %v563 = vld [vmem:[#allocation5 + $0x500] sm:$0xff]
        %v564 = vld [vmem:[#allocation5 + $0x508] sm:$0xff]
        %v565 = vld [vmem:[#allocation5 + $0x510] sm:$0xff]
        %v566 = vld [vmem:[#allocation5 + $0x518] sm:$0xff]
        %v567 = vld [vmem:[#allocation5 + $0x520] sm:$0xff]
        %v568 = vld [vmem:[#allocation5 + $0x528] sm:$0xff]
        %v569 = vld [vmem:[#allocation5 + $0x530] sm:$0xff]
        %v570 = vld [vmem:[#allocation5 + $0x538] sm:$0xff]
        %v571 = vld [vmem:[#allocation5 + $0x540] sm:$0xff]
        %v572 = vld [vmem:[#allocation5 + $0x548] sm:$0xff]
        %v573 = vld [vmem:[#allocation5 + $0x550] sm:$0xff]
        %v574 = vld [vmem:[#allocation5 + $0x558] sm:$0xff]
        %v575 = vld [vmem:[#allocation5 + $0x560] sm:$0xff]
        %v576 = vld [vmem:[#allocation5 + $0x568] sm:$0xff]
        %v577 = vld [vmem:[#allocation5 + $0x570] sm:$0xff]
        %v578 = vld [vmem:[#allocation5 + $0x578] sm:$0xff]
        %v579 = vld [vmem:[#allocation5 + $0x580] sm:$0xff]
        %v580 = vld [vmem:[#allocation5 + $0x588] sm:$0xff]
        %v581 = vld [vmem:[#allocation5 + $0x590] sm:$0xff]
        %v582 = vld [vmem:[#allocation5 + $0x598] sm:$0xff]
        %v583 = vld [vmem:[#allocation5 + $0x5a0] sm:$0xff]
        %v584 = vld [vmem:[#allocation5 + $0x5a8] sm:$0xff]
        %v585 = vld [vmem:[#allocation5 + $0x5b0] sm:$0xff]
        %v586 = vld [vmem:[#allocation5 + $0x5b8] sm:$0xff]
        %v587 = vld [vmem:[#allocation5 + $0x5c0] sm:$0xff]
        %v588 = vld [vmem:[#allocation5 + $0x5c8] sm:$0xff]
        %v589 = vld [vmem:[#allocation5 + $0x5d0] sm:$0xff]
        %v590 = vld [vmem:[#allocation5 + $0x5d8] sm:$0xff]
        %v591 = vld [vmem:[#allocation5 + $0x5e0] sm:$0xff]
        %v592 = vld [vmem:[#allocation5 + $0x5e8] sm:$0xff]
        %v593 = vld [vmem:[#allocation5 + $0x5f0] sm:$0xff]
        %v594 = vld [vmem:[#allocation5 + $0x5f8] sm:$0xff]
        %v595 = vld [vmem:[#allocation5 + $0x600] sm:$0xff]
        %v596 = vld [vmem:[#allocation5 + $0x608] sm:$0xff]
        %v597 = vld [vmem:[#allocation5 + $0x610] sm:$0xff]
        %v598 = vld [vmem:[#allocation5 + $0x618] sm:$0xff]
        %v599 = vld [vmem:[#allocation5 + $0x620] sm:$0xff]
        %v600 = vld [vmem:[#allocation5 + $0x628] sm:$0xff]
        %v601 = vld [vmem:[#allocation5 + $0x630] sm:$0xff]
        %v602 = vld [vmem:[#allocation5 + $0x638] sm:$0xff]
        %v603 = vld [vmem:[#allocation5 + $0x640] sm:$0xff]
        %v604 = vld [vmem:[#allocation5 + $0x648] sm:$0xff]
        %v605 = vld [vmem:[#allocation5 + $0x650] sm:$0xff]
        %v606 = vld [vmem:[#allocation5 + $0x658] sm:$0xff]
        %v607 = vld [vmem:[#allocation5 + $0x660] sm:$0xff]
        %v608 = vld [vmem:[#allocation5 + $0x668] sm:$0xff]
        %v609 = vld [vmem:[#allocation5 + $0x670] sm:$0xff]
        %v610 = vld [vmem:[#allocation5 + $0x678] sm:$0xff]
        %v611 = vld [vmem:[#allocation5 + $0x680] sm:$0xff]
        %v612 = vld [vmem:[#allocation5 + $0x688] sm:$0xff]
        %v613 = vld [vmem:[#allocation5 + $0x690] sm:$0xff]
        %v614 = vld [vmem:[#allocation5 + $0x698] sm:$0xff]
        %v615 = vld [vmem:[#allocation5 + $0x6a0] sm:$0xff]
        %v616 = vld [vmem:[#allocation5 + $0x6a8] sm:$0xff]
        %v617 = vld [vmem:[#allocation5 + $0x6b0] sm:$0xff]
        %v618 = vld [vmem:[#allocation5 + $0x6b8] sm:$0xff]
        %v619 = vld [vmem:[#allocation5 + $0x6c0] sm:$0xff]
        %v620 = vld [vmem:[#allocation5 + $0x6c8] sm:$0xff]
        %v621 = vld [vmem:[#allocation5 + $0x6d0] sm:$0xff]
        %v622 = vld [vmem:[#allocation5 + $0x6d8] sm:$0xff]
        %v623 = vld [vmem:[#allocation5 + $0x6e0] sm:$0xff]
        %v624 = vld [vmem:[#allocation5 + $0x6e8] sm:$0xff]
        %v625 = vld [vmem:[#allocation5 + $0x6f0] sm:$0xff]
        %v626 = vld [vmem:[#allocation5 + $0x6f8] sm:$0xff]
        %v627 = vld [vmem:[#allocation5 + $0x700] sm:$0xff]
        %v628 = vld [vmem:[#allocation5 + $0x708] sm:$0xff]
        %v629 = vld [vmem:[#allocation5 + $0x710] sm:$0xff]
        %v630 = vld [vmem:[#allocation5 + $0x718] sm:$0xff]
        %v631 = vld [vmem:[#allocation5 + $0x720] sm:$0xff]
        %v632 = vld [vmem:[#allocation5 + $0x728] sm:$0xff]
        %v633 = vld [vmem:[#allocation5 + $0x730] sm:$0xff]
        %v634 = vld [vmem:[#allocation5 + $0x738] sm:$0xff]
        %v635 = vld [vmem:[#allocation5 + $0x740] sm:$0xff]
        %v636 = vld [vmem:[#allocation5 + $0x748] sm:$0xff]
        %v637 = vld [vmem:[#allocation5 + $0x750] sm:$0xff]
        %v638 = vld [vmem:[#allocation5 + $0x758] sm:$0xff]
        %v639 = vld [vmem:[#allocation5 + $0x760] sm:$0xff]
        %v640 = vld [vmem:[#allocation5 + $0x768] sm:$0xff]
        %v641 = vld [vmem:[#allocation5 + $0x770] sm:$0xff]
        %v642 = vld [vmem:[#allocation5 + $0x778] sm:$0xff]
        %v643 = vld [vmem:[#allocation5 + $0x780] sm:$0xff]
        %v644 = vld [vmem:[#allocation5 + $0x788] sm:$0xff]
        %v645 = vld [vmem:[#allocation5 + $0x790] sm:$0xff]
        %v646 = vld [vmem:[#allocation5 + $0x798] sm:$0xff]
        %v647 = vld [vmem:[#allocation5 + $0x7a0] sm:$0xff]
        %v648 = vld [vmem:[#allocation5 + $0x7a8] sm:$0xff]
        %v649 = vld [vmem:[#allocation5 + $0x7b0] sm:$0xff]
        %v650 = vld [vmem:[#allocation5 + $0x7b8] sm:$0xff]
        %v651 = vld [vmem:[#allocation5 + $0x7c0] sm:$0xff]
        %v652 = vld [vmem:[#allocation5 + $0x7c8] sm:$0xff]
        %v653 = vld [vmem:[#allocation5 + $0x7d0] sm:$0xff]
        %v654 = vld [vmem:[#allocation5 + $0x7d8] sm:$0xff]
        %v655 = vld [vmem:[#allocation5 + $0x7e0] sm:$0xff]
        %v656 = vld [vmem:[#allocation5 + $0x7e8] sm:$0xff]
        %v657 = vld [vmem:[#allocation5 + $0x7f0] sm:$0xff]
        %v658 = vld [vmem:[#allocation5 + $0x7f8] sm:$0xff]
        %v659 = vld [vmem:[#allocation5 + $0x800] sm:$0xff]
        %v660 = vld [vmem:[#allocation5 + $0x808] sm:$0xff]
        %v661 = vld [vmem:[#allocation5 + $0x810] sm:$0xff]
        %v662 = vld [vmem:[#allocation5 + $0x818] sm:$0xff]
        %v663 = vld [vmem:[#allocation5 + $0x820] sm:$0xff]
        %v664 = vld [vmem:[#allocation5 + $0x828] sm:$0xff]
        %v665 = vld [vmem:[#allocation5 + $0x830] sm:$0xff]
        %v666 = vld [vmem:[#allocation5 + $0x838] sm:$0xff]
        %v667 = vld [vmem:[#allocation5 + $0x840] sm:$0xff]
        %v668 = vld [vmem:[#allocation5 + $0x848] sm:$0xff]
        %v669 = vld [vmem:[#allocation5 + $0x850] sm:$0xff]
        %v670 = vld [vmem:[#allocation5 + $0x858] sm:$0xff]
        %v671 = vld [vmem:[#allocation5 + $0x860] sm:$0xff]
        %v672 = vld [vmem:[#allocation5 + $0x868] sm:$0xff]
        %v673 = vld [vmem:[#allocation5 + $0x870] sm:$0xff]
        %v674 = vld [vmem:[#allocation5 + $0x878] sm:$0xff]
        %v675 = vld [vmem:[#allocation5 + $0x880] sm:$0xff]
        %v676 = vld [vmem:[#allocation5 + $0x888] sm:$0xff]
        %v677 = vld [vmem:[#allocation5 + $0x890] sm:$0xff]
        %v678 = vld [vmem:[#allocation5 + $0x898] sm:$0xff]
        %v679 = vld [vmem:[#allocation5 + $0x8a0] sm:$0xff]
        %v680 = vld [vmem:[#allocation5 + $0x8a8] sm:$0xff]
        %v681 = vld [vmem:[#allocation5 + $0x8b0] sm:$0xff]
        %v682 = vld [vmem:[#allocation5 + $0x8b8] sm:$0xff]
        %v683 = vld [vmem:[#allocation5 + $0x8c0] sm:$0xff]
        %v684 = vld [vmem:[#allocation5 + $0x8c8] sm:$0xff]
        %v685 = vld [vmem:[#allocation5 + $0x8d0] sm:$0xff]
        %v686 = vld [vmem:[#allocation5 + $0x8d8] sm:$0xff]
        %v687 = vld [vmem:[#allocation5 + $0x8e0] sm:$0xff]
        %v688 = vld [vmem:[#allocation5 + $0x8e8] sm:$0xff]
        %v689 = vld [vmem:[#allocation5 + $0x8f0] sm:$0xff]
        %v690 = vld [vmem:[#allocation5 + $0x8f8] sm:$0xff]
        %v691 = vld [vmem:[#allocation5 + $0x900] sm:$0xff]
        %v692 = vld [vmem:[#allocation5 + $0x908] sm:$0xff]
        %v693 = vld [vmem:[#allocation5 + $0x910] sm:$0xff]
        %v694 = vld [vmem:[#allocation5 + $0x918] sm:$0xff]
        %v695 = vld [vmem:[#allocation5 + $0x920] sm:$0xff]
        %v696 = vld [vmem:[#allocation5 + $0x928] sm:$0xff]
        %v697 = vld [vmem:[#allocation5 + $0x930] sm:$0xff]
        %v698 = vld [vmem:[#allocation5 + $0x938] sm:$0xff]
        %v699 = vld [vmem:[#allocation5 + $0x940] sm:$0xff]
        %v700 = vld [vmem:[#allocation5 + $0x948] sm:$0xff]
        %v701 = vld [vmem:[#allocation5 + $0x950] sm:$0xff]
        %v702 = vld [vmem:[#allocation5 + $0x958] sm:$0xff]
        %v703 = vld [vmem:[#allocation5 + $0x960] sm:$0xff]
        %v704 = vld [vmem:[#allocation5 + $0x968] sm:$0xff]
        %v705 = vld [vmem:[#allocation5 + $0x970] sm:$0xff]
        %v706 = vld [vmem:[#allocation5 + $0x978] sm:$0xff]
        %v707 = vld [vmem:[#allocation5 + $0x980] sm:$0xff]
        %v708 = vld [vmem:[#allocation5 + $0x988] sm:$0xff]
        %v709 = vld [vmem:[#allocation5 + $0x990] sm:$0xff]
        %v710 = vld [vmem:[#allocation5 + $0x998] sm:$0xff]
        %v711 = vld [vmem:[#allocation5 + $0x9a0] sm:$0xff]
        %v712 = vld [vmem:[#allocation5 + $0x9a8] sm:$0xff]
        %v713 = vld [vmem:[#allocation5 + $0x9b0] sm:$0xff]
        %v714 = vld [vmem:[#allocation5 + $0x9b8] sm:$0xff]
        %v715 = vld [vmem:[#allocation5 + $0x9c0] sm:$0xff]
        %v716 = vld [vmem:[#allocation5 + $0x9c8] sm:$0xff]
        %v717 = vld [vmem:[#allocation5 + $0x9d0] sm:$0xff]
        %v718 = vld [vmem:[#allocation5 + $0x9d8] sm:$0xff]
        %v719 = vld [vmem:[#allocation5 + $0x9e0] sm:$0xff]
        %v720 = vld [vmem:[#allocation5 + $0x9e8] sm:$0xff]
        %v721 = vld [vmem:[#allocation5 + $0x9f0] sm:$0xff]
        %v722 = vld [vmem:[#allocation5 + $0x9f8] sm:$0xff]
        %v723 = vld [vmem:[#allocation5 + $0xa00] sm:$0xff]
        %v724 = vld [vmem:[#allocation5 + $0xa08] sm:$0xff]
        %v725 = vld [vmem:[#allocation5 + $0xa10] sm:$0xff]
        %v726 = vld [vmem:[#allocation5 + $0xa18] sm:$0xff]
        %v727 = vld [vmem:[#allocation5 + $0xa20] sm:$0xff]
        %v728 = vld [vmem:[#allocation5 + $0xa28] sm:$0xff]
        %v729 = vld [vmem:[#allocation5 + $0xa30] sm:$0xff]
        %v730 = vld [vmem:[#allocation5 + $0xa38] sm:$0xff]
        %v731 = vld [vmem:[#allocation5 + $0xa40] sm:$0xff]
        %v732 = vld [vmem:[#allocation5 + $0xa48] sm:$0xff]
        %v733 = vld [vmem:[#allocation5 + $0xa50] sm:$0xff]
        %v734 = vld [vmem:[#allocation5 + $0xa58] sm:$0xff]
        %v735 = vld [vmem:[#allocation5 + $0xa60] sm:$0xff]
        %v736 = vld [vmem:[#allocation5 + $0xa68] sm:$0xff]
        %v737 = vld [vmem:[#allocation5 + $0xa70] sm:$0xff]
        %v738 = vld [vmem:[#allocation5 + $0xa78] sm:$0xff]
        %v739 = vld [vmem:[#allocation5 + $0xa80] sm:$0xff]
        %v740 = vld [vmem:[#allocation5 + $0xa88] sm:$0xff]
        %v741 = vld [vmem:[#allocation5 + $0xa90] sm:$0xff]
        %v742 = vld [vmem:[#allocation5 + $0xa98] sm:$0xff]
        %v743 = vld [vmem:[#allocation5 + $0xaa0] sm:$0xff]
        %v744 = vld [vmem:[#allocation5 + $0xaa8] sm:$0xff]
        %v745 = vld [vmem:[#allocation5 + $0xab0] sm:$0xff]
        %v746 = vld [vmem:[#allocation5 + $0xab8] sm:$0xff]
        %v747 = vld [vmem:[#allocation5 + $0xac0] sm:$0xff]
        %v748 = vld [vmem:[#allocation5 + $0xac8] sm:$0xff]
        %v749 = vld [vmem:[#allocation5 + $0xad0] sm:$0xff]
        %v750 = vld [vmem:[#allocation5 + $0xad8] sm:$0xff]
        %v751 = vld [vmem:[#allocation5 + $0xae0] sm:$0xff]
        %v752 = vld [vmem:[#allocation5 + $0xae8] sm:$0xff]
        %v753 = vld [vmem:[#allocation5 + $0xaf0] sm:$0xff]
        %v754 = vld [vmem:[#allocation5 + $0xaf8] sm:$0xff]
        %v755 = vld [vmem:[#allocation5 + $0xb00] sm:$0xff]
        %v756 = vld [vmem:[#allocation5 + $0xb08] sm:$0xff]
        %v757 = vld [vmem:[#allocation5 + $0xb10] sm:$0xff]
        %v758 = vld [vmem:[#allocation5 + $0xb18] sm:$0xff]
        %v759 = vld [vmem:[#allocation5 + $0xb20] sm:$0xff]
        %v760 = vld [vmem:[#allocation5 + $0xb28] sm:$0xff]
        %v761 = vld [vmem:[#allocation5 + $0xb30] sm:$0xff]
        %v762 = vld [vmem:[#allocation5 + $0xb38] sm:$0xff]
        %v763 = vld [vmem:[#allocation5 + $0xb40] sm:$0xff]
        %v764 = vld [vmem:[#allocation5 + $0xb48] sm:$0xff]
        %v765 = vld [vmem:[#allocation5 + $0xb50] sm:$0xff]
        %v766 = vld [vmem:[#allocation5 + $0xb58] sm:$0xff]
        %v767 = vld [vmem:[#allocation5 + $0xb60] sm:$0xff]
        %v768 = vld [vmem:[#allocation5 + $0xb68] sm:$0xff]
        %v769 = vld [vmem:[#allocation5 + $0xb70] sm:$0xff]
        %v770 = vld [vmem:[#allocation5 + $0xb78] sm:$0xff]
        %v771 = vld [vmem:[#allocation5 + $0xb80] sm:$0xff]
        %v772 = vld [vmem:[#allocation5 + $0xb88] sm:$0xff]
        %v773 = vld [vmem:[#allocation5 + $0xb90] sm:$0xff]
        %v774 = vld [vmem:[#allocation5 + $0xb98] sm:$0xff]
        %v775 = vld [vmem:[#allocation5 + $0xba0] sm:$0xff]
        %v776 = vld [vmem:[#allocation5 + $0xba8] sm:$0xff]
        %v777 = vld [vmem:[#allocation5 + $0xbb0] sm:$0xff]
        %v778 = vld [vmem:[#allocation5 + $0xbb8] sm:$0xff]
        %v779 = vld [vmem:[#allocation5 + $0xbc0] sm:$0xff]
        %v780 = vld [vmem:[#allocation5 + $0xbc8] sm:$0xff]
        %v781 = vld [vmem:[#allocation5 + $0xbd0] sm:$0xff]
        %v782 = vld [vmem:[#allocation5 + $0xbd8] sm:$0xff]
        %v783 = vld [vmem:[#allocation5 + $0xbe0] sm:$0xff]
        %v784 = vld [vmem:[#allocation5 + $0xbe8] sm:$0xff]
        %v785 = vld [vmem:[#allocation5 + $0xbf0] sm:$0xff]
        %v786 = vld [vmem:[#allocation5 + $0xbf8] sm:$0xff]
        %v787 = vld [vmem:[#allocation5 + $0xc00] sm:$0xff]
        %v788 = vld [vmem:[#allocation5 + $0xc08] sm:$0xff]
        %v789 = vld [vmem:[#allocation5 + $0xc10] sm:$0xff]
        %v790 = vld [vmem:[#allocation5 + $0xc18] sm:$0xff]
        %v791 = vld [vmem:[#allocation5 + $0xc20] sm:$0xff]
        %v792 = vld [vmem:[#allocation5 + $0xc28] sm:$0xff]
        %v793 = vld [vmem:[#allocation5 + $0xc30] sm:$0xff]
        %v794 = vld [vmem:[#allocation5 + $0xc38] sm:$0xff]
        %v795 = vld [vmem:[#allocation5 + $0xc40] sm:$0xff]
        %v796 = vld [vmem:[#allocation5 + $0xc48] sm:$0xff]
        %v797 = vld [vmem:[#allocation5 + $0xc50] sm:$0xff]
        %v798 = vld [vmem:[#allocation5 + $0xc58] sm:$0xff]
        %v799 = vld [vmem:[#allocation5 + $0xc60] sm:$0xff]
        %v800 = vld [vmem:[#allocation5 + $0xc68] sm:$0xff]
        %v801 = vld [vmem:[#allocation5 + $0xc70] sm:$0xff]
        %v802 = vld [vmem:[#allocation5 + $0xc78] sm:$0xff]
        %v803 = vld [vmem:[#allocation5 + $0xc80] sm:$0xff]
        %v804 = vld [vmem:[#allocation5 + $0xc88] sm:$0xff]
        %v805 = vld [vmem:[#allocation5 + $0xc90] sm:$0xff]
        %v806 = vld [vmem:[#allocation5 + $0xc98] sm:$0xff]
        %v807 = vld [vmem:[#allocation5 + $0xca0] sm:$0xff]
        %v808 = vld [vmem:[#allocation5 + $0xca8] sm:$0xff]
        %v809 = vld [vmem:[#allocation5 + $0xcb0] sm:$0xff]
        %v810 = vld [vmem:[#allocation5 + $0xcb8] sm:$0xff]
        %v811 = vld [vmem:[#allocation5 + $0xcc0] sm:$0xff]
        %v812 = vld [vmem:[#allocation5 + $0xcc8] sm:$0xff]
        %v813 = vld [vmem:[#allocation5 + $0xcd0] sm:$0xff]
        %v814 = vld [vmem:[#allocation5 + $0xcd8] sm:$0xff]
        %v815 = vld [vmem:[#allocation5 + $0xce0] sm:$0xff]
        %v816 = vld [vmem:[#allocation5 + $0xce8] sm:$0xff]
        %v817 = vld [vmem:[#allocation5 + $0xcf0] sm:$0xff]
        %v818 = vld [vmem:[#allocation5 + $0xcf8] sm:$0xff]
        %v819 = vld [vmem:[#allocation7] sm:$0xf]
        %v821 = vlaneseq
        %v822 = vshrl.u32 %v821, 7
        %v823 = vsub.s32 0, %v822
        %v824 = vrot.slane %v819, %v823
        %v825 = vlaneseq
        %v826 = vshrl.u32 %v825, 7
        %v827 = vsub.s32 1, %v826
        %v828 = vrot.slane %v819, %v827
        %v829 = vlaneseq
        %v830 = vshrl.u32 %v829, 7
        %v831 = vsub.s32 2, %v830
        %v832 = vrot.slane %v819, %v831
        %v833 = vlaneseq
        %v834 = vshrl.u32 %v833, 7
        %v835 = vsub.s32 3, %v834
        %v836 = vrot.slane %v819, %v835
        %v843 = vcombine.high %v401, %v401
        %v845 = vunpack.c.l.s4 1983009808
        %v846 = vunpack.c.0.s8 %v845
        %v847 = vlaneseq
        %v848 = vshrl.u32 %v847, 7
        %v849 = vsub.s32 %v846, %v848
        %v850 = vrot.slane %v401, %v849
        %v852 = vunpack.c.l.s4 1983009808
        %v853 = vunpack.c.0.s8 %v852
        %v854 = vlaneseq
        %v855 = vshrl.u32 %v854, 7
        %v856 = vsub.s32 %v853, %v855
        %v857 = vrot.slane %v843, %v856
        %v858 = vcombine.high %v850, %v850
        %v859 = vcombine.high %v857, %v857
        %v860 = vcombine.high %v402, %v402
        %v862 = vunpack.c.l.s4 1983009808
        %v863 = vunpack.c.0.s8 %v862
        %v864 = vlaneseq
        %v865 = vshrl.u32 %v864, 7
        %v866 = vsub.s32 %v863, %v865
        %v867 = vrot.slane %v402, %v866
        %v869 = vunpack.c.l.s4 1983009808
        %v870 = vunpack.c.0.s8 %v869
        %v871 = vlaneseq
        %v872 = vshrl.u32 %v871, 7
        %v873 = vsub.s32 %v870, %v872
        %v874 = vrot.slane %v860, %v873
        %v875 = vcombine.high %v867, %v867
        %vm882 = vcmask 523264
        %v883 = vsel %vm882, %v874, 0
        %885 = vmatprep.subr.mxu0 %v464
        %886 = vmatpush1.msra.mxu0 %v463
        %887 = vmatprep.subr.mxu0 %v460
        %888 = vmatpush1.msra.mxu0 %v459
        %889 = vmatprep.subr.mxu0 %v456
        %890 = vmatpush1.msra.mxu0 %v455
        %891 = vmatprep.subr.mxu0 %v452
        %892 = vmatpush1.msra.mxu0 %v451
        %893 = vmatprep.subr.mxu0 %v448
        %894 = vmatpush1.msra.mxu0 %v447
        %895 = vmatprep.subr.mxu0 %v444
        %896 = vmatpush1.msra.mxu0 %v443
        %897 = vmatprep.subr.mxu0 %v440
        %898 = vmatpush1.msra.mxu0 %v439
        %899 = vmatprep.subr.mxu0 %v436
        %900 = vmatpush1.msra.mxu0 %v435
        %901 = vmatprep.subr.mxu0 %v432
        %902 = vmatpush1.msra.mxu0 %v431
        %903 = vmatprep.subr.mxu0 %v428
        %904 = vmatpush1.msra.mxu0 %v427
        %905 = vmatprep.subr.mxu0 %v424
        %906 = vmatpush1.msra.mxu0 %v423
        %907 = vmatprep.subr.mxu0 %v420
        %908 = vmatpush1.msra.mxu0 %v419
        %909 = vmatprep.subr.mxu0 %v416
        %910 = vmatpush1.msra.mxu0 %v415
        %911 = vmatprep.subr.mxu0 %v412
        %912 = vmatpush1.msra.mxu0 %v411
        %913 = vmatprep.subr.mxu0 %v408
        %914 = vmatpush1.msra.mxu0 %v407
        %915 = vmatprep.subr.mxu0 %v404
        %916 = vmatpush1.msra.mxu0 %v403
        %917 = vmatprep.subr.mxu0 %v528
        %918 = vmatpush2.msra.mxu0 %v527
        %919 = vmatprep.subr.mxu0 %v524
        %920 = vmatpush2.msra.mxu0 %v523
        %921 = vmatprep.subr.mxu0 %v520
        %922 = vmatpush2.msra.mxu0 %v519
        %923 = vmatprep.subr.mxu0 %v516
        %924 = vmatpush2.msra.mxu0 %v515
        %925 = vmatprep.subr.mxu0 %v512
        %926 = vmatpush2.msra.mxu0 %v511
        %927 = vmatprep.subr.mxu0 %v508
        %928 = vmatpush2.msra.mxu0 %v507
        %929 = vmatprep.subr.mxu0 %v504
        %930 = vmatpush2.msra.mxu0 %v503
        %931 = vmatprep.subr.mxu0 %v500
        %932 = vmatpush2.msra.mxu0 %v499
        %933 = vmatprep.subr.mxu0 %v496
        %934 = vmatpush2.msra.mxu0 %v495
        %935 = vmatprep.subr.mxu0 %v492
        %936 = vmatpush2.msra.mxu0 %v491
        %937 = vmatprep.subr.mxu0 %v488
        %938 = vmatpush2.msra.mxu0 %v487
        %939 = vmatprep.subr.mxu0 %v484
        %940 = vmatpush2.msra.mxu0 %v483
        %941 = vmatprep.subr.mxu0 %v480
        %942 = vmatpush2.msra.mxu0 %v479
        %943 = vmatprep.subr.mxu0 %v476
        %944 = vmatpush2.msra.mxu0 %v475
        %945 = vmatprep.subr.mxu0 %v472
        %946 = vmatpush2.msra.mxu0 %v471
        %947 = vmatprep.subr.mxu0 %v468
        %948 = vmatpush2.msra.mxu0 %v467
        %949 = vmatprep.mubr.f32.mxu0 %v858
        %950 = vmatmul.mubr.f32.gmra.mxu0 %v850
        %v951 = vpop.f32.mrf.mxu0
        %v952 = vadd.f32 %v824, %v951
        %v953 = vpop.f32.mrf.mxu0
        %v954 = vadd.f32 %v828, %v953
        %955 = vdwg.mxu0
        %956 = vmatprep.subr.mxu0 %v592
        %957 = vmatpush1.msra.mxu0 %v591
        %958 = vmatprep.subr.mxu0 %v588
        %959 = vmatpush1.msra.mxu0 %v587
        %960 = vmatprep.subr.mxu0 %v584
        %961 = vmatpush1.msra.mxu0 %v583
        %962 = vmatprep.subr.mxu0 %v580
        %963 = vmatpush1.msra.mxu0 %v579
        %964 = vmatprep.subr.mxu0 %v576
        %965 = vmatpush1.msra.mxu0 %v575
        %966 = vmatprep.subr.mxu0 %v572
        %967 = vmatpush1.msra.mxu0 %v571
        %968 = vmatprep.subr.mxu0 %v568
        %969 = vmatpush1.msra.mxu0 %v567
        %970 = vmatprep.subr.mxu0 %v564
        %971 = vmatpush1.msra.mxu0 %v563
        %972 = vmatprep.subr.mxu0 %v560
        %973 = vmatpush1.msra.mxu0 %v559
        %974 = vmatprep.subr.mxu0 %v556
        %975 = vmatpush1.msra.mxu0 %v555
        %976 = vmatprep.subr.mxu0 %v552
        %977 = vmatpush1.msra.mxu0 %v551
        %978 = vmatprep.subr.mxu0 %v548
        %979 = vmatpush1.msra.mxu0 %v547
        %980 = vmatprep.subr.mxu0 %v544
        %981 = vmatpush1.msra.mxu0 %v543
        %982 = vmatprep.subr.mxu0 %v540
        %983 = vmatpush1.msra.mxu0 %v539
        %984 = vmatprep.subr.mxu0 %v536
        %985 = vmatpush1.msra.mxu0 %v535
        %986 = vmatprep.subr.mxu0 %v532
        %987 = vmatpush1.msra.mxu0 %v531
        %988 = vmatprep.subr.mxu0 %v656
        %989 = vmatpush2.msra.mxu0 %v655
        %990 = vmatprep.subr.mxu0 %v652
        %991 = vmatpush2.msra.mxu0 %v651
        %992 = vmatprep.subr.mxu0 %v648
        %993 = vmatpush2.msra.mxu0 %v647
        %994 = vmatprep.subr.mxu0 %v644
        %995 = vmatpush2.msra.mxu0 %v643
        %996 = vmatprep.subr.mxu0 %v640
        %997 = vmatpush2.msra.mxu0 %v639
        %998 = vmatprep.subr.mxu0 %v636
        %999 = vmatpush2.msra.mxu0 %v635
        %1000 = vmatprep.subr.mxu0 %v632
        %1001 = vmatpush2.msra.mxu0 %v631
        %1002 = vmatprep.subr.mxu0 %v628
        %1003 = vmatpush2.msra.mxu0 %v627
        %1004 = vmatprep.subr.mxu0 %v624
        %1005 = vmatpush2.msra.mxu0 %v623
        %1006 = vmatprep.subr.mxu0 %v620
        %1007 = vmatpush2.msra.mxu0 %v619
        %1008 = vmatprep.subr.mxu0 %v616
        %1009 = vmatpush2.msra.mxu0 %v615
        %1010 = vmatprep.subr.mxu0 %v612
        %1011 = vmatpush2.msra.mxu0 %v611
        %1012 = vmatprep.subr.mxu0 %v608
        %1013 = vmatpush2.msra.mxu0 %v607
        %1014 = vmatprep.subr.mxu0 %v604
        %1015 = vmatpush2.msra.mxu0 %v603
        %1016 = vmatprep.subr.mxu0 %v600
        %1017 = vmatpush2.msra.mxu0 %v599
        %1018 = vmatprep.subr.mxu0 %v596
        %1019 = vmatpush2.msra.mxu0 %v595
        %1020 = vmatprep.mubr.f32.mxu0 %v859
        %1021 = vmatmul.mubr.f32.gmra.mxu0 %v857
        %v1022 = vpop.f32.mrf.mxu0
        %v1023 = vadd.f32 %v952, %v1022
        %v1024 = vpop.f32.mrf.mxu0
        %v1025 = vadd.f32 %v954, %v1024
        %1026 = vdwg.mxu0
        %1027 = vmatprep.subr.mxu0 %v720
        %1028 = vmatpush1.msra.mxu0 %v719
        %1029 = vmatprep.subr.mxu0 %v716
        %1030 = vmatpush1.msra.mxu0 %v715
        %1031 = vmatprep.subr.mxu0 %v712
        %1032 = vmatpush1.msra.mxu0 %v711
        %1033 = vmatprep.subr.mxu0 %v708
        %1034 = vmatpush1.msra.mxu0 %v707
        %1035 = vmatprep.subr.mxu0 %v704
        %1036 = vmatpush1.msra.mxu0 %v703
        %1037 = vmatprep.subr.mxu0 %v700
        %1038 = vmatpush1.msra.mxu0 %v699
        %1039 = vmatprep.subr.mxu0 %v696
        %1040 = vmatpush1.msra.mxu0 %v695
        %1041 = vmatprep.subr.mxu0 %v692
        %1042 = vmatpush1.msra.mxu0 %v691
        %1043 = vmatprep.subr.mxu0 %v688
        %1044 = vmatpush1.msra.mxu0 %v687
        %1045 = vmatprep.subr.mxu0 %v684
        %1046 = vmatpush1.msra.mxu0 %v683
        %1047 = vmatprep.subr.mxu0 %v680
        %1048 = vmatpush1.msra.mxu0 %v679
        %1049 = vmatprep.subr.mxu0 %v676
        %1050 = vmatpush1.msra.mxu0 %v675
        %1051 = vmatprep.subr.mxu0 %v672
        %1052 = vmatpush1.msra.mxu0 %v671
        %1053 = vmatprep.subr.mxu0 %v668
        %1054 = vmatpush1.msra.mxu0 %v667
        %1055 = vmatprep.subr.mxu0 %v664
        %1056 = vmatpush1.msra.mxu0 %v663
        %1057 = vmatprep.subr.mxu0 %v660
        %1058 = vmatpush1.msra.mxu0 %v659
        %1059 = vmatprep.subr.mxu0 %v784
        %1060 = vmatpush2.msra.mxu0 %v783
        %1061 = vmatprep.subr.mxu0 %v780
        %1062 = vmatpush2.msra.mxu0 %v779
        %1063 = vmatprep.subr.mxu0 %v776
        %1064 = vmatpush2.msra.mxu0 %v775
        %1065 = vmatprep.subr.mxu0 %v772
        %1066 = vmatpush2.msra.mxu0 %v771
        %1067 = vmatprep.subr.mxu0 %v768
        %1068 = vmatpush2.msra.mxu0 %v767
        %1069 = vmatprep.subr.mxu0 %v764
        %1070 = vmatpush2.msra.mxu0 %v763
        %1071 = vmatprep.subr.mxu0 %v760
        %1072 = vmatpush2.msra.mxu0 %v759
        %1073 = vmatprep.subr.mxu0 %v756
        %1074 = vmatpush2.msra.mxu0 %v755
        %1075 = vmatprep.subr.mxu0 %v752
        %1076 = vmatpush2.msra.mxu0 %v751
        %1077 = vmatprep.subr.mxu0 %v748
        %1078 = vmatpush2.msra.mxu0 %v747
        %1079 = vmatprep.subr.mxu0 %v744
        %1080 = vmatpush2.msra.mxu0 %v743
        %1081 = vmatprep.subr.mxu0 %v740
        %1082 = vmatpush2.msra.mxu0 %v739
        %1083 = vmatprep.subr.mxu0 %v736
        %1084 = vmatpush2.msra.mxu0 %v735
        %1085 = vmatprep.subr.mxu0 %v732
        %1086 = vmatpush2.msra.mxu0 %v731
        %1087 = vmatprep.subr.mxu0 %v728
        %1088 = vmatpush2.msra.mxu0 %v727
        %1089 = vmatprep.subr.mxu0 %v724
        %1090 = vmatpush2.msra.mxu0 %v723
        %1091 = vmatprep.mubr.f32.mxu0 %v875
        %1092 = vmatmul.mubr.f32.gmra.mxu0 %v867
        %v1093 = vpop.f32.mrf.mxu0
        %v1094 = vadd.f32 %v1023, %v1093
        %v1095 = vpop.f32.mrf.mxu0
        %v1096 = vadd.f32 %v1025, %v1095
        %1097 = vdwg.mxu0
        %1098 = vmatprep.subr.mxu0 0.0
        %1099 = vmatpush1.msra.mxu0 0.0
        %1100 = vmatprep.subr.mxu0 0.0
        %1101 = vmatpush1.msra.mxu0 0.0
        %1102 = vmatprep.subr.mxu0 0.0
        %1103 = vmatpush1.msra.mxu0 0.0
        %1104 = vmatprep.subr.mxu0 0.0
        %1105 = vmatpush1.msra.mxu0 0.0
        %1106 = vmatprep.subr.mxu0 0.0
        %1107 = vmatpush1.msra.mxu0 0.0
        %1108 = vmatprep.subr.mxu0 0.0
        %1109 = vmatpush1.msra.mxu0 0.0
        %1110 = vmatprep.subr.mxu0 0.0
        %1111 = vmatpush1.msra.mxu0 0.0
        %1112 = vmatprep.subr.mxu0 0.0
        %1113 = vmatpush1.msra.mxu0 0.0
        %1114 = vmatprep.subr.mxu0 %v816
        %1115 = vmatpush1.msra.mxu0 %v815
        %1116 = vmatprep.subr.mxu0 %v812
        %1117 = vmatpush1.msra.mxu0 %v811
        %1118 = vmatprep.subr.mxu0 %v808
        %1119 = vmatpush1.msra.mxu0 %v807
        %1120 = vmatprep.subr.mxu0 %v804
        %1121 = vmatpush1.msra.mxu0 %v803
        %1122 = vmatprep.subr.mxu0 %v800
        %1123 = vmatpush1.msra.mxu0 %v799
        %1124 = vmatprep.subr.mxu0 %v796
        %1125 = vmatpush1.msra.mxu0 %v795
        %1126 = vmatprep.subr.mxu0 %v792
        %1127 = vmatpush1.msra.mxu0 %v791
        %1128 = vmatprep.subr.mxu0 %v788
        %1129 = vmatpush1.msra.mxu0 %v787
        %1130 = vmatprep.subr.mxu0 0.0
        %1131 = vmatpush2.msra.mxu0 0.0
        %1132 = vmatprep.subr.mxu0 0.0
        %1133 = vmatpush2.msra.mxu0 0.0
        %1134 = vmatprep.subr.mxu0 0.0
        %1135 = vmatpush2.msra.mxu0 0.0
        %1136 = vmatprep.subr.mxu0 0.0
        %1137 = vmatpush2.msra.mxu0 0.0
        %1138 = vmatprep.subr.mxu0 0.0
        %1139 = vmatpush2.msra.mxu0 0.0
        %1140 = vmatprep.subr.mxu0 0.0
        %1141 = vmatpush2.msra.mxu0 0.0
        %1142 = vmatprep.subr.mxu0 0.0
        %1143 = vmatpush2.msra.mxu0 0.0
        %1144 = vmatprep.subr.mxu0 0.0
        %1145 = vmatpush2.msra.mxu0 0.0
        %1146 = vmatprep.subr.mxu0 0.0
        %1147 = vmatpush2.msra.mxu0 0.0
        %1148 = vmatprep.subr.mxu0 0.0
        %1149 = vmatpush2.msra.mxu0 0.0
        %1150 = vmatprep.subr.mxu0 0.0
        %1151 = vmatpush2.msra.mxu0 0.0
        %1152 = vmatprep.subr.mxu0 0.0
        %1153 = vmatpush2.msra.mxu0 0.0
        %1154 = vmatprep.subr.mxu0 0.0
        %1155 = vmatpush2.msra.mxu0 0.0
        %1156 = vmatprep.subr.mxu0 0.0
        %1157 = vmatpush2.msra.mxu0 0.0
        %1158 = vmatprep.subr.mxu0 0.0
        %1159 = vmatpush2.msra.mxu0 0.0
        %1160 = vmatprep.subr.mxu0 0.0
        %1161 = vmatpush2.msra.mxu0 0.0
        %1162 = vmatprep.mubr.f32.mxu0 0.0
        %1163 = vmatmul.mubr.f32.gmra.mxu0 %v883
        %v1164 = vpop.f32.mrf.mxu0
        %v1165 = vadd.f32 %v1094, %v1164
        %v1166 = vpop.f32.mrf.mxu0
        %v1167 = vadd.f32 %v1096, %v1166
        %1168 = vdwg.mxu0
        %1169 = vmatprep.subr.mxu0 %v466
        %1170 = vmatpush1.msra.mxu0 %v465
        %1171 = vmatprep.subr.mxu0 %v462
        %1172 = vmatpush1.msra.mxu0 %v461
        %1173 = vmatprep.subr.mxu0 %v458
        %1174 = vmatpush1.msra.mxu0 %v457
        %1175 = vmatprep.subr.mxu0 %v454
        %1176 = vmatpush1.msra.mxu0 %v453
        %1177 = vmatprep.subr.mxu0 %v450
        %1178 = vmatpush1.msra.mxu0 %v449
        %1179 = vmatprep.subr.mxu0 %v446
        %1180 = vmatpush1.msra.mxu0 %v445
        %1181 = vmatprep.subr.mxu0 %v442
        %1182 = vmatpush1.msra.mxu0 %v441
        %1183 = vmatprep.subr.mxu0 %v438
        %1184 = vmatpush1.msra.mxu0 %v437
        %1185 = vmatprep.subr.mxu0 %v434
        %1186 = vmatpush1.msra.mxu0 %v433
        %1187 = vmatprep.subr.mxu0 %v430
        %1188 = vmatpush1.msra.mxu0 %v429
        %1189 = vmatprep.subr.mxu0 %v426
        %1190 = vmatpush1.msra.mxu0 %v425
        %1191 = vmatprep.subr.mxu0 %v422
        %1192 = vmatpush1.msra.mxu0 %v421
        %1193 = vmatprep.subr.mxu0 %v418
        %1194 = vmatpush1.msra.mxu0 %v417
        %1195 = vmatprep.subr.mxu0 %v414
        %1196 = vmatpush1.msra.mxu0 %v413
        %1197 = vmatprep.subr.mxu0 %v410
        %1198 = vmatpush1.msra.mxu0 %v409
        %1199 = vmatprep.subr.mxu0 %v406
        %1200 = vmatpush1.msra.mxu0 %v405
        %1201 = vmatprep.subr.mxu0 %v530
        %1202 = vmatpush2.msra.mxu0 %v529
        %1203 = vmatprep.subr.mxu0 %v526
        %1204 = vmatpush2.msra.mxu0 %v525
        %1205 = vmatprep.subr.mxu0 %v522
        %1206 = vmatpush2.msra.mxu0 %v521
        %1207 = vmatprep.subr.mxu0 %v518
        %1208 = vmatpush2.msra.mxu0 %v517
        %1209 = vmatprep.subr.mxu0 %v514
        %1210 = vmatpush2.msra.mxu0 %v513
        %1211 = vmatprep.subr.mxu0 %v510
        %1212 = vmatpush2.msra.mxu0 %v509
        %1213 = vmatprep.subr.mxu0 %v506
        %1214 = vmatpush2.msra.mxu0 %v505
        %1215 = vmatprep.subr.mxu0 %v502
        %1216 = vmatpush2.msra.mxu0 %v501
        %1217 = vmatprep.subr.mxu0 %v498
        %1218 = vmatpush2.msra.mxu0 %v497
        %1219 = vmatprep.subr.mxu0 %v494
        %1220 = vmatpush2.msra.mxu0 %v493
        %1221 = vmatprep.subr.mxu0 %v490
        %1222 = vmatpush2.msra.mxu0 %v489
        %1223 = vmatprep.subr.mxu0 %v486
        %1224 = vmatpush2.msra.mxu0 %v485
        %1225 = vmatprep.subr.mxu0 %v482
        %1226 = vmatpush2.msra.mxu0 %v481
        %1227 = vmatprep.subr.mxu0 %v478
        %1228 = vmatpush2.msra.mxu0 %v477
        %1229 = vmatprep.subr.mxu0 %v474
        %1230 = vmatpush2.msra.mxu0 %v473
        %1231 = vmatprep.subr.mxu0 %v470
        %1232 = vmatpush2.msra.mxu0 %v469
        %1233 = vmatprep.mubr.f32.mxu0 %v858
        %1234 = vmatmul.mubr.f32.gmra.mxu0 %v850
        %v1235 = vpop.f32.mrf.mxu0
        %v1236 = vadd.f32 %v832, %v1235
        %v1237 = vpop.f32.mrf.mxu0
        %v1238 = vadd.f32 %v836, %v1237
        %1239 = vdwg.mxu0
        %1240 = vmatprep.subr.mxu0 %v594
        %1241 = vmatpush1.msra.mxu0 %v593
        %1242 = vmatprep.subr.mxu0 %v590
        %1243 = vmatpush1.msra.mxu0 %v589
        %1244 = vmatprep.subr.mxu0 %v586
        %1245 = vmatpush1.msra.mxu0 %v585
        %1246 = vmatprep.subr.mxu0 %v582
        %1247 = vmatpush1.msra.mxu0 %v581
        %1248 = vmatprep.subr.mxu0 %v578
        %1249 = vmatpush1.msra.mxu0 %v577
        %1250 = vmatprep.subr.mxu0 %v574
        %1251 = vmatpush1.msra.mxu0 %v573
        %1252 = vmatprep.subr.mxu0 %v570
        %1253 = vmatpush1.msra.mxu0 %v569
        %1254 = vmatprep.subr.mxu0 %v566
        %1255 = vmatpush1.msra.mxu0 %v565
        %1256 = vmatprep.subr.mxu0 %v562
        %1257 = vmatpush1.msra.mxu0 %v561
        %1258 = vmatprep.subr.mxu0 %v558
        %1259 = vmatpush1.msra.mxu0 %v557
        %1260 = vmatprep.subr.mxu0 %v554
        %1261 = vmatpush1.msra.mxu0 %v553
        %1262 = vmatprep.subr.mxu0 %v550
        %1263 = vmatpush1.msra.mxu0 %v549
        %1264 = vmatprep.subr.mxu0 %v546
        %1265 = vmatpush1.msra.mxu0 %v545
        %1266 = vmatprep.subr.mxu0 %v542
        %1267 = vmatpush1.msra.mxu0 %v541
        %1268 = vmatprep.subr.mxu0 %v538
        %1269 = vmatpush1.msra.mxu0 %v537
        %1270 = vmatprep.subr.mxu0 %v534
        %1271 = vmatpush1.msra.mxu0 %v533
        %1272 = vmatprep.subr.mxu0 %v658
        %1273 = vmatpush2.msra.mxu0 %v657
        %1274 = vmatprep.subr.mxu0 %v654
        %1275 = vmatpush2.msra.mxu0 %v653
        %1276 = vmatprep.subr.mxu0 %v650
        %1277 = vmatpush2.msra.mxu0 %v649
        %1278 = vmatprep.subr.mxu0 %v646
        %1279 = vmatpush2.msra.mxu0 %v645
        %1280 = vmatprep.subr.mxu0 %v642
        %1281 = vmatpush2.msra.mxu0 %v641
        %1282 = vmatprep.subr.mxu0 %v638
        %1283 = vmatpush2.msra.mxu0 %v637
        %1284 = vmatprep.subr.mxu0 %v634
        %1285 = vmatpush2.msra.mxu0 %v633
        %1286 = vmatprep.subr.mxu0 %v630
        %1287 = vmatpush2.msra.mxu0 %v629
        %1288 = vmatprep.subr.mxu0 %v626
        %1289 = vmatpush2.msra.mxu0 %v625
        %1290 = vmatprep.subr.mxu0 %v622
        %1291 = vmatpush2.msra.mxu0 %v621
        %1292 = vmatprep.subr.mxu0 %v618
        %1293 = vmatpush2.msra.mxu0 %v617
        %1294 = vmatprep.subr.mxu0 %v614
        %1295 = vmatpush2.msra.mxu0 %v613
        %1296 = vmatprep.subr.mxu0 %v610
        %1297 = vmatpush2.msra.mxu0 %v609
        %1298 = vmatprep.subr.mxu0 %v606
        %1299 = vmatpush2.msra.mxu0 %v605
        %1300 = vmatprep.subr.mxu0 %v602
        %1301 = vmatpush2.msra.mxu0 %v601
        %1302 = vmatprep.subr.mxu0 %v598
        %1303 = vmatpush2.msra.mxu0 %v597
        %1304 = vmatprep.mubr.f32.mxu0 %v859
        %1305 = vmatmul.mubr.f32.gmra.mxu0 %v857
        %v1306 = vpop.f32.mrf.mxu0
        %v1307 = vadd.f32 %v1236, %v1306
        %v1308 = vpop.f32.mrf.mxu0
        %v1309 = vadd.f32 %v1238, %v1308
        %1310 = vdwg.mxu0
        %1311 = vmatprep.subr.mxu0 %v722
        %1312 = vmatpush1.msra.mxu0 %v721
        %1313 = vmatprep.subr.mxu0 %v718
        %1314 = vmatpush1.msra.mxu0 %v717
        %1315 = vmatprep.subr.mxu0 %v714
        %1316 = vmatpush1.msra.mxu0 %v713
        %1317 = vmatprep.subr.mxu0 %v710
        %1318 = vmatpush1.msra.mxu0 %v709
        %1319 = vmatprep.subr.mxu0 %v706
        %1320 = vmatpush1.msra.mxu0 %v705
        %1321 = vmatprep.subr.mxu0 %v702
        %1322 = vmatpush1.msra.mxu0 %v701
        %1323 = vmatprep.subr.mxu0 %v698
        %1324 = vmatpush1.msra.mxu0 %v697
        %1325 = vmatprep.subr.mxu0 %v694
        %1326 = vmatpush1.msra.mxu0 %v693
        %1327 = vmatprep.subr.mxu0 %v690
        %1328 = vmatpush1.msra.mxu0 %v689
        %1329 = vmatprep.subr.mxu0 %v686
        %1330 = vmatpush1.msra.mxu0 %v685
        %1331 = vmatprep.subr.mxu0 %v682
        %1332 = vmatpush1.msra.mxu0 %v681
        %1333 = vmatprep.subr.mxu0 %v678
        %1334 = vmatpush1.msra.mxu0 %v677
        %1335 = vmatprep.subr.mxu0 %v674
        %1336 = vmatpush1.msra.mxu0 %v673
        %1337 = vmatprep.subr.mxu0 %v670
        %1338 = vmatpush1.msra.mxu0 %v669
        %1339 = vmatprep.subr.mxu0 %v666
        %1340 = vmatpush1.msra.mxu0 %v665
        %1341 = vmatprep.subr.mxu0 %v662
        %1342 = vmatpush1.msra.mxu0 %v661
        %1343 = vmatprep.subr.mxu0 %v786
        %1344 = vmatpush2.msra.mxu0 %v785
        %1345 = vmatprep.subr.mxu0 %v782
        %1346 = vmatpush2.msra.mxu0 %v781
        %1347 = vmatprep.subr.mxu0 %v778
        %1348 = vmatpush2.msra.mxu0 %v777
        %1349 = vmatprep.subr.mxu0 %v774
        %1350 = vmatpush2.msra.mxu0 %v773
        %1351 = vmatprep.subr.mxu0 %v770
        %1352 = vmatpush2.msra.mxu0 %v769
        %1353 = vmatprep.subr.mxu0 %v766
        %1354 = vmatpush2.msra.mxu0 %v765
        %1355 = vmatprep.subr.mxu0 %v762
        %1356 = vmatpush2.msra.mxu0 %v761
        %1357 = vmatprep.subr.mxu0 %v758
        %1358 = vmatpush2.msra.mxu0 %v757
        %1359 = vmatprep.subr.mxu0 %v754
        %1360 = vmatpush2.msra.mxu0 %v753
        %1361 = vmatprep.subr.mxu0 %v750
        %1362 = vmatpush2.msra.mxu0 %v749
        %1363 = vmatprep.subr.mxu0 %v746
        %1364 = vmatpush2.msra.mxu0 %v745
        %1365 = vmatprep.subr.mxu0 %v742
        %1366 = vmatpush2.msra.mxu0 %v741
        %1367 = vmatprep.subr.mxu0 %v738
        %1368 = vmatpush2.msra.mxu0 %v737
        %1369 = vmatprep.subr.mxu0 %v734
        %1370 = vmatpush2.msra.mxu0 %v733
        %1371 = vmatprep.subr.mxu0 %v730
        %1372 = vmatpush2.msra.mxu0 %v729
        %1373 = vmatprep.subr.mxu0 %v726
        %1374 = vmatpush2.msra.mxu0 %v725
        %1375 = vmatprep.mubr.f32.mxu0 %v875
        %1376 = vmatmul.mubr.f32.gmra.mxu0 %v867
        %v1377 = vpop.f32.mrf.mxu0
        %v1378 = vadd.f32 %v1307, %v1377
        %v1379 = vpop.f32.mrf.mxu0
        %v1380 = vadd.f32 %v1309, %v1379
        %1381 = vdwg.mxu0
        %1382 = vmatprep.subr.mxu0 0.0
        %1383 = vmatpush1.msra.mxu0 0.0
        %1384 = vmatprep.subr.mxu0 0.0
        %1385 = vmatpush1.msra.mxu0 0.0
        %1386 = vmatprep.subr.mxu0 0.0
        %1387 = vmatpush1.msra.mxu0 0.0
        %1388 = vmatprep.subr.mxu0 0.0
        %1389 = vmatpush1.msra.mxu0 0.0
        %1390 = vmatprep.subr.mxu0 0.0
        %1391 = vmatpush1.msra.mxu0 0.0
        %1392 = vmatprep.subr.mxu0 0.0
        %1393 = vmatpush1.msra.mxu0 0.0
        %1394 = vmatprep.subr.mxu0 0.0
        %1395 = vmatpush1.msra.mxu0 0.0
        %1396 = vmatprep.subr.mxu0 0.0
        %1397 = vmatpush1.msra.mxu0 0.0
        %1398 = vmatprep.subr.mxu0 %v818
        %1399 = vmatpush1.msra.mxu0 %v817
        %1400 = vmatprep.subr.mxu0 %v814
        %1401 = vmatpush1.msra.mxu0 %v813
        %1402 = vmatprep.subr.mxu0 %v810
        %1403 = vmatpush1.msra.mxu0 %v809
        %1404 = vmatprep.subr.mxu0 %v806
        %1405 = vmatpush1.msra.mxu0 %v805
        %1406 = vmatprep.subr.mxu0 %v802
        %1407 = vmatpush1.msra.mxu0 %v801
        %1408 = vmatprep.subr.mxu0 %v798
        %1409 = vmatpush1.msra.mxu0 %v797
        %1410 = vmatprep.subr.mxu0 %v794
        %1411 = vmatpush1.msra.mxu0 %v793
        %1412 = vmatprep.subr.mxu0 %v790
        %1413 = vmatpush1.msra.mxu0 %v789
        %1414 = vmatprep.subr.mxu0 0.0
        %1415 = vmatpush2.msra.mxu0 0.0
        %1416 = vmatprep.subr.mxu0 0.0
        %1417 = vmatpush2.msra.mxu0 0.0
        %1418 = vmatprep.subr.mxu0 0.0
        %1419 = vmatpush2.msra.mxu0 0.0
        %1420 = vmatprep.subr.mxu0 0.0
        %1421 = vmatpush2.msra.mxu0 0.0
        %1422 = vmatprep.subr.mxu0 0.0
        %1423 = vmatpush2.msra.mxu0 0.0
        %1424 = vmatprep.subr.mxu0 0.0
        %1425 = vmatpush2.msra.mxu0 0.0
        %1426 = vmatprep.subr.mxu0 0.0
        %1427 = vmatpush2.msra.mxu0 0.0
        %1428 = vmatprep.subr.mxu0 0.0
        %1429 = vmatpush2.msra.mxu0 0.0
        %1430 = vmatprep.subr.mxu0 0.0
        %1431 = vmatpush2.msra.mxu0 0.0
        %1432 = vmatprep.subr.mxu0 0.0
        %1433 = vmatpush2.msra.mxu0 0.0
        %1434 = vmatprep.subr.mxu0 0.0
        %1435 = vmatpush2.msra.mxu0 0.0
        %1436 = vmatprep.subr.mxu0 0.0
        %1437 = vmatpush2.msra.mxu0 0.0
        %1438 = vmatprep.subr.mxu0 0.0
        %1439 = vmatpush2.msra.mxu0 0.0
        %1440 = vmatprep.subr.mxu0 0.0
        %1441 = vmatpush2.msra.mxu0 0.0
        %1442 = vmatprep.subr.mxu0 0.0
        %1443 = vmatpush2.msra.mxu0 0.0
        %1444 = vmatprep.subr.mxu0 0.0
        %1445 = vmatpush2.msra.mxu0 0.0
        %1446 = vmatprep.mubr.f32.mxu0 0.0
        %1447 = vmatmul.mubr.f32.gmra.mxu0 %v883
        %v1448 = vpop.f32.mrf.mxu0
        %v1449 = vadd.f32 %v1378, %v1448
        %v1450 = vpop.f32.mrf.mxu0
        %v1451 = vadd.f32 %v1380, %v1450
        %1452 = vdwg.mxu0
        %v1453 = vmax.f32 %v1165, 0.0
        %v1454 = vmax.f32 %v1167, 0.0
        %v1455 = vmax.f32 %v1449, 0.0
        %v1456 = vmax.f32 %v1451, 0.0
        %v1457 = vld [vmem:[#allocation8] sm:$0xff]
        %v1458 = vld [vmem:[#allocation8 + $0x8] sm:$0xff]
        %v1459 = vld [vmem:[#allocation8 + $0x10] sm:$0xff]
        %v1460 = vld [vmem:[#allocation8 + $0x18] sm:$0xff]
        %v1461 = vld [vmem:[#allocation8 + $0x20] sm:$0xff]
        %v1462 = vld [vmem:[#allocation8 + $0x28] sm:$0xff]
        %v1463 = vld [vmem:[#allocation8 + $0x30] sm:$0xff]
        %v1464 = vld [vmem:[#allocation8 + $0x38] sm:$0xff]
        %v1465 = vld [vmem:[#allocation8 + $0x40] sm:$0xff]
        %v1466 = vld [vmem:[#allocation8 + $0x48] sm:$0xff]
        %v1467 = vld [vmem:[#allocation8 + $0x50] sm:$0xff]
        %v1468 = vld [vmem:[#allocation8 + $0x58] sm:$0xff]
        %v1469 = vld [vmem:[#allocation8 + $0x60] sm:$0xff]
        %v1470 = vld [vmem:[#allocation8 + $0x68] sm:$0xff]
        %v1471 = vld [vmem:[#allocation8 + $0x70] sm:$0xff]
        %v1472 = vld [vmem:[#allocation8 + $0x78] sm:$0xff]
        %v1473 = vld [vmem:[#allocation8 + $0x80] sm:$0xff]
        %v1474 = vld [vmem:[#allocation8 + $0x88] sm:$0xff]
        %v1475 = vld [vmem:[#allocation8 + $0x90] sm:$0xff]
        %v1476 = vld [vmem:[#allocation8 + $0x98] sm:$0xff]
        %v1477 = vld [vmem:[#allocation8 + $0xa0] sm:$0xff]
        %v1478 = vld [vmem:[#allocation8 + $0xa8] sm:$0xff]
        %v1479 = vld [vmem:[#allocation8 + $0xb0] sm:$0xff]
        %v1480 = vld [vmem:[#allocation8 + $0xb8] sm:$0xff]
        %v1481 = vld [vmem:[#allocation8 + $0xc0] sm:$0xff]
        %v1482 = vld [vmem:[#allocation8 + $0xc8] sm:$0xff]
        %v1483 = vld [vmem:[#allocation8 + $0xd0] sm:$0xff]
        %v1484 = vld [vmem:[#allocation8 + $0xd8] sm:$0xff]
        %v1485 = vld [vmem:[#allocation8 + $0xe0] sm:$0xff]
        %v1486 = vld [vmem:[#allocation8 + $0xe8] sm:$0xff]
        %v1487 = vld [vmem:[#allocation8 + $0xf0] sm:$0xff]
        %v1488 = vld [vmem:[#allocation8 + $0xf8] sm:$0xff]
        %v1489 = vld [vmem:[#allocation8 + $0x100] sm:$0xff]
        %v1490 = vld [vmem:[#allocation8 + $0x108] sm:$0xff]
        %v1491 = vld [vmem:[#allocation8 + $0x110] sm:$0xff]
        %v1492 = vld [vmem:[#allocation8 + $0x118] sm:$0xff]
        %v1493 = vld [vmem:[#allocation8 + $0x120] sm:$0xff]
        %v1494 = vld [vmem:[#allocation8 + $0x128] sm:$0xff]
        %v1495 = vld [vmem:[#allocation8 + $0x130] sm:$0xff]
        %v1496 = vld [vmem:[#allocation8 + $0x138] sm:$0xff]
        %v1497 = vld [vmem:[#allocation8 + $0x140] sm:$0xff]
        %v1498 = vld [vmem:[#allocation8 + $0x148] sm:$0xff]
        %v1499 = vld [vmem:[#allocation8 + $0x150] sm:$0xff]
        %v1500 = vld [vmem:[#allocation8 + $0x158] sm:$0xff]
        %v1501 = vld [vmem:[#allocation8 + $0x160] sm:$0xff]
        %v1502 = vld [vmem:[#allocation8 + $0x168] sm:$0xff]
        %v1503 = vld [vmem:[#allocation8 + $0x170] sm:$0xff]
        %v1504 = vld [vmem:[#allocation8 + $0x178] sm:$0xff]
        %v1505 = vld [vmem:[#allocation8 + $0x180] sm:$0xff]
        %v1506 = vld [vmem:[#allocation8 + $0x188] sm:$0xff]
        %v1507 = vld [vmem:[#allocation8 + $0x190] sm:$0xff]
        %v1508 = vld [vmem:[#allocation8 + $0x198] sm:$0xff]
        %v1509 = vld [vmem:[#allocation8 + $0x1a0] sm:$0xff]
        %v1510 = vld [vmem:[#allocation8 + $0x1a8] sm:$0xff]
        %v1511 = vld [vmem:[#allocation8 + $0x1b0] sm:$0xff]
        %v1512 = vld [vmem:[#allocation8 + $0x1b8] sm:$0xff]
        %v1513 = vld [vmem:[#allocation8 + $0x1c0] sm:$0xff]
        %v1514 = vld [vmem:[#allocation8 + $0x1c8] sm:$0xff]
        %v1515 = vld [vmem:[#allocation8 + $0x1d0] sm:$0xff]
        %v1516 = vld [vmem:[#allocation8 + $0x1d8] sm:$0xff]
        %v1517 = vld [vmem:[#allocation8 + $0x1e0] sm:$0xff]
        %v1518 = vld [vmem:[#allocation8 + $0x1e8] sm:$0xff]
        %v1519 = vld [vmem:[#allocation8 + $0x1f0] sm:$0xff]
        %v1520 = vld [vmem:[#allocation8 + $0x1f8] sm:$0xff]
        %v1521 = vld [vmem:[#allocation8 + $0x200] sm:$0xff]
        %v1522 = vld [vmem:[#allocation8 + $0x208] sm:$0xff]
        %v1523 = vld [vmem:[#allocation8 + $0x210] sm:$0xff]
        %v1524 = vld [vmem:[#allocation8 + $0x218] sm:$0xff]
        %v1525 = vld [vmem:[#allocation8 + $0x220] sm:$0xff]
        %v1526 = vld [vmem:[#allocation8 + $0x228] sm:$0xff]
        %v1527 = vld [vmem:[#allocation8 + $0x230] sm:$0xff]
        %v1528 = vld [vmem:[#allocation8 + $0x238] sm:$0xff]
        %v1529 = vld [vmem:[#allocation8 + $0x240] sm:$0xff]
        %v1530 = vld [vmem:[#allocation8 + $0x248] sm:$0xff]
        %v1531 = vld [vmem:[#allocation8 + $0x250] sm:$0xff]
        %v1532 = vld [vmem:[#allocation8 + $0x258] sm:$0xff]
        %v1533 = vld [vmem:[#allocation8 + $0x260] sm:$0xff]
        %v1534 = vld [vmem:[#allocation8 + $0x268] sm:$0xff]
        %v1535 = vld [vmem:[#allocation8 + $0x270] sm:$0xff]
        %v1536 = vld [vmem:[#allocation8 + $0x278] sm:$0xff]
        %v1537 = vld [vmem:[#allocation8 + $0x280] sm:$0xff]
        %v1538 = vld [vmem:[#allocation8 + $0x288] sm:$0xff]
        %v1539 = vld [vmem:[#allocation8 + $0x290] sm:$0xff]
        %v1540 = vld [vmem:[#allocation8 + $0x298] sm:$0xff]
        %v1541 = vld [vmem:[#allocation8 + $0x2a0] sm:$0xff]
        %v1542 = vld [vmem:[#allocation8 + $0x2a8] sm:$0xff]
        %v1543 = vld [vmem:[#allocation8 + $0x2b0] sm:$0xff]
        %v1544 = vld [vmem:[#allocation8 + $0x2b8] sm:$0xff]
        %v1545 = vld [vmem:[#allocation8 + $0x2c0] sm:$0xff]
        %v1546 = vld [vmem:[#allocation8 + $0x2c8] sm:$0xff]
        %v1547 = vld [vmem:[#allocation8 + $0x2d0] sm:$0xff]
        %v1548 = vld [vmem:[#allocation8 + $0x2d8] sm:$0xff]
        %v1549 = vld [vmem:[#allocation8 + $0x2e0] sm:$0xff]
        %v1550 = vld [vmem:[#allocation8 + $0x2e8] sm:$0xff]
        %v1551 = vld [vmem:[#allocation8 + $0x2f0] sm:$0xff]
        %v1552 = vld [vmem:[#allocation8 + $0x2f8] sm:$0xff]
        %v1553 = vld [vmem:[#allocation8 + $0x300] sm:$0xff]
        %v1554 = vld [vmem:[#allocation8 + $0x308] sm:$0xff]
        %v1555 = vld [vmem:[#allocation8 + $0x310] sm:$0xff]
        %v1556 = vld [vmem:[#allocation8 + $0x318] sm:$0xff]
        %v1557 = vld [vmem:[#allocation8 + $0x320] sm:$0xff]
        %v1558 = vld [vmem:[#allocation8 + $0x328] sm:$0xff]
        %v1559 = vld [vmem:[#allocation8 + $0x330] sm:$0xff]
        %v1560 = vld [vmem:[#allocation8 + $0x338] sm:$0xff]
        %v1561 = vld [vmem:[#allocation8 + $0x340] sm:$0xff]
        %v1562 = vld [vmem:[#allocation8 + $0x348] sm:$0xff]
        %v1563 = vld [vmem:[#allocation8 + $0x350] sm:$0xff]
        %v1564 = vld [vmem:[#allocation8 + $0x358] sm:$0xff]
        %v1565 = vld [vmem:[#allocation8 + $0x360] sm:$0xff]
        %v1566 = vld [vmem:[#allocation8 + $0x368] sm:$0xff]
        %v1567 = vld [vmem:[#allocation8 + $0x370] sm:$0xff]
        %v1568 = vld [vmem:[#allocation8 + $0x378] sm:$0xff]
        %v1569 = vld [vmem:[#allocation8 + $0x380] sm:$0xff]
        %v1570 = vld [vmem:[#allocation8 + $0x388] sm:$0xff]
        %v1571 = vld [vmem:[#allocation8 + $0x390] sm:$0xff]
        %v1572 = vld [vmem:[#allocation8 + $0x398] sm:$0xff]
        %v1573 = vld [vmem:[#allocation8 + $0x3a0] sm:$0xff]
        %v1574 = vld [vmem:[#allocation8 + $0x3a8] sm:$0xff]
        %v1575 = vld [vmem:[#allocation8 + $0x3b0] sm:$0xff]
        %v1576 = vld [vmem:[#allocation8 + $0x3b8] sm:$0xff]
        %v1577 = vld [vmem:[#allocation8 + $0x3c0] sm:$0xff]
        %v1578 = vld [vmem:[#allocation8 + $0x3c8] sm:$0xff]
        %v1579 = vld [vmem:[#allocation8 + $0x3d0] sm:$0xff]
        %v1580 = vld [vmem:[#allocation8 + $0x3d8] sm:$0xff]
        %v1581 = vld [vmem:[#allocation8 + $0x3e0] sm:$0xff]
        %v1582 = vld [vmem:[#allocation8 + $0x3e8] sm:$0xff]
        %v1583 = vld [vmem:[#allocation8 + $0x3f0] sm:$0xff]
        %v1584 = vld [vmem:[#allocation8 + $0x3f8] sm:$0xff]
        %v1585 = vld [vmem:[#allocation10] sm:$0x3]
        %v1587 = vlaneseq
        %v1588 = vshrl.u32 %v1587, 7
        %v1589 = vsub.s32 0, %v1588
        %v1590 = vrot.slane %v1585, %v1589
        %v1591 = vlaneseq
        %v1592 = vshrl.u32 %v1591, 7
        %v1593 = vsub.s32 1, %v1592
        %v1594 = vrot.slane %v1585, %v1593
        %1597 = vmatprep.subr.mxu0 %v1488
        %1598 = vmatpush1.msra.mxu0 %v1487
        %1599 = vmatprep.subr.mxu0 %v1486
        %1600 = vmatpush1.msra.mxu0 %v1485
        %1601 = vmatprep.subr.mxu0 %v1484
        %1602 = vmatpush1.msra.mxu0 %v1483
        %1603 = vmatprep.subr.mxu0 %v1482
        %1604 = vmatpush1.msra.mxu0 %v1481
        %1605 = vmatprep.subr.mxu0 %v1480
        %1606 = vmatpush1.msra.mxu0 %v1479
        %1607 = vmatprep.subr.mxu0 %v1478
        %1608 = vmatpush1.msra.mxu0 %v1477
        %1609 = vmatprep.subr.mxu0 %v1476
        %1610 = vmatpush1.msra.mxu0 %v1475
        %1611 = vmatprep.subr.mxu0 %v1474
        %1612 = vmatpush1.msra.mxu0 %v1473
        %1613 = vmatprep.subr.mxu0 %v1472
        %1614 = vmatpush1.msra.mxu0 %v1471
        %1615 = vmatprep.subr.mxu0 %v1470
        %1616 = vmatpush1.msra.mxu0 %v1469
        %1617 = vmatprep.subr.mxu0 %v1468
        %1618 = vmatpush1.msra.mxu0 %v1467
        %1619 = vmatprep.subr.mxu0 %v1466
        %1620 = vmatpush1.msra.mxu0 %v1465
        %1621 = vmatprep.subr.mxu0 %v1464
        %1622 = vmatpush1.msra.mxu0 %v1463
        %1623 = vmatprep.subr.mxu0 %v1462
        %1624 = vmatpush1.msra.mxu0 %v1461
        %1625 = vmatprep.subr.mxu0 %v1460
        %1626 = vmatpush1.msra.mxu0 %v1459
        %1627 = vmatprep.subr.mxu0 %v1458
        %1628 = vmatpush1.msra.mxu0 %v1457
        %1629 = vmatprep.subr.mxu0 %v1520
        %1630 = vmatpush2.msra.mxu0 %v1519
        %1631 = vmatprep.subr.mxu0 %v1518
        %1632 = vmatpush2.msra.mxu0 %v1517
        %1633 = vmatprep.subr.mxu0 %v1516
        %1634 = vmatpush2.msra.mxu0 %v1515
        %1635 = vmatprep.subr.mxu0 %v1514
        %1636 = vmatpush2.msra.mxu0 %v1513
        %1637 = vmatprep.subr.mxu0 %v1512
        %1638 = vmatpush2.msra.mxu0 %v1511
        %1639 = vmatprep.subr.mxu0 %v1510
        %1640 = vmatpush2.msra.mxu0 %v1509
        %1641 = vmatprep.subr.mxu0 %v1508
        %1642 = vmatpush2.msra.mxu0 %v1507
        %1643 = vmatprep.subr.mxu0 %v1506
        %1644 = vmatpush2.msra.mxu0 %v1505
        %1645 = vmatprep.subr.mxu0 %v1504
        %1646 = vmatpush2.msra.mxu0 %v1503
        %1647 = vmatprep.subr.mxu0 %v1502
        %1648 = vmatpush2.msra.mxu0 %v1501
        %1649 = vmatprep.subr.mxu0 %v1500
        %1650 = vmatpush2.msra.mxu0 %v1499
        %1651 = vmatprep.subr.mxu0 %v1498
        %1652 = vmatpush2.msra.mxu0 %v1497
        %1653 = vmatprep.subr.mxu0 %v1496
        %1654 = vmatpush2.msra.mxu0 %v1495
        %1655 = vmatprep.subr.mxu0 %v1494
        %1656 = vmatpush2.msra.mxu0 %v1493
        %1657 = vmatprep.subr.mxu0 %v1492
        %1658 = vmatpush2.msra.mxu0 %v1491
        %1659 = vmatprep.subr.mxu0 %v1490
        %1660 = vmatpush2.msra.mxu0 %v1489
        %1661 = vmatprep.mubr.f32.mxu0 %v1454
        %1662 = vmatmul.mubr.f32.gmra.mxu0 %v1453
        %v1663 = vpop.f32.mrf.mxu0
        %v1664 = vadd.f32 %v1590, %v1663
        %v1665 = vpop.f32.mrf.mxu0
        %v1666 = vadd.f32 %v1594, %v1665
        %1667 = vdwg.mxu0
        %1668 = vmatprep.subr.mxu0 %v1552
        %1669 = vmatpush1.msra.mxu0 %v1551
        %1670 = vmatprep.subr.mxu0 %v1550
        %1671 = vmatpush1.msra.mxu0 %v1549
        %1672 = vmatprep.subr.mxu0 %v1548
        %1673 = vmatpush1.msra.mxu0 %v1547
        %1674 = vmatprep.subr.mxu0 %v1546
        %1675 = vmatpush1.msra.mxu0 %v1545
        %1676 = vmatprep.subr.mxu0 %v1544
        %1677 = vmatpush1.msra.mxu0 %v1543
        %1678 = vmatprep.subr.mxu0 %v1542
        %1679 = vmatpush1.msra.mxu0 %v1541
        %1680 = vmatprep.subr.mxu0 %v1540
        %1681 = vmatpush1.msra.mxu0 %v1539
        %1682 = vmatprep.subr.mxu0 %v1538
        %1683 = vmatpush1.msra.mxu0 %v1537
        %1684 = vmatprep.subr.mxu0 %v1536
        %1685 = vmatpush1.msra.mxu0 %v1535
        %1686 = vmatprep.subr.mxu0 %v1534
        %1687 = vmatpush1.msra.mxu0 %v1533
        %1688 = vmatprep.subr.mxu0 %v1532
        %1689 = vmatpush1.msra.mxu0 %v1531
        %1690 = vmatprep.subr.mxu0 %v1530
        %1691 = vmatpush1.msra.mxu0 %v1529
        %1692 = vmatprep.subr.mxu0 %v1528
        %1693 = vmatpush1.msra.mxu0 %v1527
        %1694 = vmatprep.subr.mxu0 %v1526
        %1695 = vmatpush1.msra.mxu0 %v1525
        %1696 = vmatprep.subr.mxu0 %v1524
        %1697 = vmatpush1.msra.mxu0 %v1523
        %1698 = vmatprep.subr.mxu0 %v1522
        %1699 = vmatpush1.msra.mxu0 %v1521
        %1700 = vmatprep.subr.mxu0 %v1584
        %1701 = vmatpush2.msra.mxu0 %v1583
        %1702 = vmatprep.subr.mxu0 %v1582
        %1703 = vmatpush2.msra.mxu0 %v1581
        %1704 = vmatprep.subr.mxu0 %v1580
        %1705 = vmatpush2.msra.mxu0 %v1579
        %1706 = vmatprep.subr.mxu0 %v1578
        %1707 = vmatpush2.msra.mxu0 %v1577
        %1708 = vmatprep.subr.mxu0 %v1576
        %1709 = vmatpush2.msra.mxu0 %v1575
        %1710 = vmatprep.subr.mxu0 %v1574
        %1711 = vmatpush2.msra.mxu0 %v1573
        %1712 = vmatprep.subr.mxu0 %v1572
        %1713 = vmatpush2.msra.mxu0 %v1571
        %1714 = vmatprep.subr.mxu0 %v1570
        %1715 = vmatpush2.msra.mxu0 %v1569
        %1716 = vmatprep.subr.mxu0 %v1568
        %1717 = vmatpush2.msra.mxu0 %v1567
        %1718 = vmatprep.subr.mxu0 %v1566
        %1719 = vmatpush2.msra.mxu0 %v1565
        %1720 = vmatprep.subr.mxu0 %v1564
        %1721 = vmatpush2.msra.mxu0 %v1563
        %1722 = vmatprep.subr.mxu0 %v1562
        %1723 = vmatpush2.msra.mxu0 %v1561
        %1724 = vmatprep.subr.mxu0 %v1560
        %1725 = vmatpush2.msra.mxu0 %v1559
        %1726 = vmatprep.subr.mxu0 %v1558
        %1727 = vmatpush2.msra.mxu0 %v1557
        %1728 = vmatprep.subr.mxu0 %v1556
        %1729 = vmatpush2.msra.mxu0 %v1555
        %1730 = vmatprep.subr.mxu0 %v1554
        %1731 = vmatpush2.msra.mxu0 %v1553
        %1732 = vmatprep.mubr.f32.mxu0 %v1456
        %1733 = vmatmul.mubr.f32.gmra.mxu0 %v1455
        %v1734 = vpop.f32.mrf.mxu0
        %v1735 = vadd.f32 %v1664, %v1734
        %v1736 = vpop.f32.mrf.mxu0
        %v1737 = vadd.f32 %v1666, %v1736
        %1738 = vdwg.mxu0
        %v1739 = vmax.f32 %v1735, 0.0
        %v1740 = vmax.f32 %v1737, 0.0
        %v1741 = vpack.c.bf16 %v1739, %v1739
        %v1742 = vpack.c.bf16 %v1740, %v1740
        %v1743 = vld [vmem:[%s354] sm:$0xff]
        %v1744 = vld [vmem:[%s354 + $0x8] sm:$0xff]
        %v1745 = vld [vmem:[%s354 + $0x10] sm:$0xff]
        %v1746 = vld [vmem:[%s354 + $0x18] sm:$0xff]
        %v1747 = vld [vmem:[%s354 + $0x20] sm:$0xff]
        %v1748 = vld [vmem:[%s354 + $0x28] sm:$0xff]
        %v1749 = vld [vmem:[%s354 + $0x30] sm:$0xff]
        %v1750 = vld [vmem:[%s354 + $0x38] sm:$0xff]
        %v1751 = vld [vmem:[%s354 + $0x40] sm:$0xff]
        %v1752 = vld [vmem:[%s354 + $0x48] sm:$0xff]
        %v1753 = vld [vmem:[%s354 + $0x50] sm:$0xff]
        %v1754 = vld [vmem:[%s354 + $0x58] sm:$0xff]
        %v1755 = vld [vmem:[%s354 + $0x60] sm:$0xff]
        %v1756 = vld [vmem:[%s354 + $0x68] sm:$0xff]
        %v1757 = vld [vmem:[%s354 + $0x70] sm:$0xff]
        %v1758 = vld [vmem:[%s354 + $0x78] sm:$0xff]
        %v1759 = vld [vmem:[%s354 + $0x80] sm:$0xff]
        %v1760 = vld [vmem:[%s354 + $0x88] sm:$0xff]
        %v1761 = vld [vmem:[%s354 + $0x90] sm:$0xff]
        %v1762 = vld [vmem:[%s354 + $0x98] sm:$0xff]
        %v1763 = vld [vmem:[%s354 + $0xa0] sm:$0xff]
        %v1764 = vld [vmem:[%s354 + $0xa8] sm:$0xff]
        %v1765 = vld [vmem:[%s354 + $0xb0] sm:$0xff]
        %v1766 = vld [vmem:[%s354 + $0xb8] sm:$0xff]
        %v1767 = vld [vmem:[%s354 + $0xc0] sm:$0xff]
        %v1768 = vld [vmem:[%s354 + $0xc8] sm:$0xff]
        %v1769 = vld [vmem:[%s354 + $0xd0] sm:$0xff]
        %v1770 = vld [vmem:[%s354 + $0xd8] sm:$0xff]
        %v1771 = vld [vmem:[%s354 + $0xe0] sm:$0xff]
        %v1772 = vld [vmem:[%s354 + $0xe8] sm:$0xff]
        %v1773 = vld [vmem:[%s354 + $0xf0] sm:$0xff]
        %v1774 = vld [vmem:[%s354 + $0xf8] sm:$0xff]
        %v1775 = vld [vmem:[%s354 + $0x100] sm:$0xff]
        %v1776 = vld [vmem:[%s354 + $0x108] sm:$0xff]
        %v1777 = vld [vmem:[%s354 + $0x110] sm:$0xff]
        %v1778 = vld [vmem:[%s354 + $0x118] sm:$0xff]
        %v1779 = vld [vmem:[%s354 + $0x120] sm:$0xff]
        %v1780 = vld [vmem:[%s354 + $0x128] sm:$0xff]
        %v1781 = vld [vmem:[%s354 + $0x130] sm:$0xff]
        %v1782 = vld [vmem:[%s354 + $0x138] sm:$0xff]
        %v1783 = vld [vmem:[%s354 + $0x140] sm:$0xff]
        %v1784 = vld [vmem:[%s354 + $0x148] sm:$0xff]
        %v1785 = vld [vmem:[%s354 + $0x150] sm:$0xff]
        %v1786 = vld [vmem:[%s354 + $0x158] sm:$0xff]
        %v1787 = vld [vmem:[%s354 + $0x160] sm:$0xff]
        %v1788 = vld [vmem:[%s354 + $0x168] sm:$0xff]
        %v1789 = vld [vmem:[%s354 + $0x170] sm:$0xff]
        %v1790 = vld [vmem:[%s354 + $0x178] sm:$0xff]
        %v1791 = vld [vmem:[%s354 + $0x180] sm:$0xff]
        %v1792 = vld [vmem:[%s354 + $0x188] sm:$0xff]
        %v1793 = vld [vmem:[%s354 + $0x190] sm:$0xff]
        %v1794 = vld [vmem:[%s354 + $0x198] sm:$0xff]
        %v1795 = vld [vmem:[%s354 + $0x1a0] sm:$0xff]
        %v1796 = vld [vmem:[%s354 + $0x1a8] sm:$0xff]
        %v1797 = vld [vmem:[%s354 + $0x1b0] sm:$0xff]
        %v1798 = vld [vmem:[%s354 + $0x1b8] sm:$0xff]
        %v1799 = vld [vmem:[%s354 + $0x1c0] sm:$0xff]
        %v1800 = vld [vmem:[%s354 + $0x1c8] sm:$0xff]
        %v1801 = vld [vmem:[%s354 + $0x1d0] sm:$0xff]
        %v1802 = vld [vmem:[%s354 + $0x1d8] sm:$0xff]
        %v1803 = vld [vmem:[%s354 + $0x1e0] sm:$0xff]
        %v1804 = vld [vmem:[%s354 + $0x1e8] sm:$0xff]
        %v1805 = vld [vmem:[%s354 + $0x1f0] sm:$0xff]
        %v1806 = vld [vmem:[%s354 + $0x1f8] sm:$0xff]
        %v1807 = vld [vmem:[%s354 + $0x200] sm:$0xff]
        %v1808 = vld [vmem:[%s354 + $0x208] sm:$0xff]
        %v1809 = vld [vmem:[%s354 + $0x210] sm:$0xff]
        %v1810 = vld [vmem:[%s354 + $0x218] sm:$0xff]
        %v1811 = vld [vmem:[%s354 + $0x220] sm:$0xff]
        %v1812 = vld [vmem:[%s354 + $0x228] sm:$0xff]
        %v1813 = vld [vmem:[%s354 + $0x230] sm:$0xff]
        %v1814 = vld [vmem:[%s354 + $0x238] sm:$0xff]
        %v1815 = vld [vmem:[%s354 + $0x240] sm:$0xff]
        %v1816 = vld [vmem:[%s354 + $0x248] sm:$0xff]
        %v1817 = vld [vmem:[%s354 + $0x250] sm:$0xff]
        %v1818 = vld [vmem:[%s354 + $0x258] sm:$0xff]
        %v1819 = vld [vmem:[%s354 + $0x260] sm:$0xff]
        %v1820 = vld [vmem:[%s354 + $0x268] sm:$0xff]
        %v1821 = vld [vmem:[%s354 + $0x270] sm:$0xff]
        %v1822 = vld [vmem:[%s354 + $0x278] sm:$0xff]
        %v1823 = vld [vmem:[%s354 + $0x280] sm:$0xff]
        %v1824 = vld [vmem:[%s354 + $0x288] sm:$0xff]
        %v1825 = vld [vmem:[%s354 + $0x290] sm:$0xff]
        %v1826 = vld [vmem:[%s354 + $0x298] sm:$0xff]
        %v1827 = vld [vmem:[%s354 + $0x2a0] sm:$0xff]
        %v1828 = vld [vmem:[%s354 + $0x2a8] sm:$0xff]
        %v1829 = vld [vmem:[%s354 + $0x2b0] sm:$0xff]
        %v1830 = vld [vmem:[%s354 + $0x2b8] sm:$0xff]
        %v1831 = vld [vmem:[%s354 + $0x2c0] sm:$0xff]
        %v1832 = vld [vmem:[%s354 + $0x2c8] sm:$0xff]
        %v1833 = vld [vmem:[%s354 + $0x2d0] sm:$0xff]
        %v1834 = vld [vmem:[%s354 + $0x2d8] sm:$0xff]
        %v1835 = vld [vmem:[%s354 + $0x2e0] sm:$0xff]
        %v1836 = vld [vmem:[%s354 + $0x2e8] sm:$0xff]
        %v1837 = vld [vmem:[%s354 + $0x2f0] sm:$0xff]
        %v1838 = vld [vmem:[%s354 + $0x2f8] sm:$0xff]
        %v1839 = vld [vmem:[%s354 + $0x300] sm:$0xff]
        %v1840 = vld [vmem:[%s354 + $0x308] sm:$0xff]
        %v1841 = vld [vmem:[%s354 + $0x310] sm:$0xff]
        %v1842 = vld [vmem:[%s354 + $0x318] sm:$0xff]
        %v1843 = vld [vmem:[%s354 + $0x320] sm:$0xff]
        %v1844 = vld [vmem:[%s354 + $0x328] sm:$0xff]
        %v1845 = vld [vmem:[%s354 + $0x330] sm:$0xff]
        %v1846 = vld [vmem:[%s354 + $0x338] sm:$0xff]
        %v1847 = vld [vmem:[%s354 + $0x340] sm:$0xff]
        %v1848 = vld [vmem:[%s354 + $0x348] sm:$0xff]
        %v1849 = vld [vmem:[%s354 + $0x350] sm:$0xff]
        %v1850 = vld [vmem:[%s354 + $0x358] sm:$0xff]
        %v1851 = vld [vmem:[%s354 + $0x360] sm:$0xff]
        %v1852 = vld [vmem:[%s354 + $0x368] sm:$0xff]
        %v1853 = vld [vmem:[%s354 + $0x370] sm:$0xff]
        %v1854 = vld [vmem:[%s354 + $0x378] sm:$0xff]
        %v1855 = vld [vmem:[%s354 + $0x380] sm:$0xff]
        %v1856 = vld [vmem:[%s354 + $0x388] sm:$0xff]
        %v1857 = vld [vmem:[%s354 + $0x390] sm:$0xff]
        %v1858 = vld [vmem:[%s354 + $0x398] sm:$0xff]
        %v1859 = vld [vmem:[%s354 + $0x3a0] sm:$0xff]
        %v1860 = vld [vmem:[%s354 + $0x3a8] sm:$0xff]
        %v1861 = vld [vmem:[%s354 + $0x3b0] sm:$0xff]
        %v1862 = vld [vmem:[%s354 + $0x3b8] sm:$0xff]
        %v1863 = vld [vmem:[%s354 + $0x3c0] sm:$0xff]
        %v1864 = vld [vmem:[%s354 + $0x3c8] sm:$0xff]
        %v1865 = vld [vmem:[%s354 + $0x3d0] sm:$0xff]
        %v1866 = vld [vmem:[%s354 + $0x3d8] sm:$0xff]
        %v1867 = vld [vmem:[%s354 + $0x3e0] sm:$0xff]
        %v1868 = vld [vmem:[%s354 + $0x3e8] sm:$0xff]
        %v1869 = vld [vmem:[%s354 + $0x3f0] sm:$0xff]
        %v1870 = vld [vmem:[%s354 + $0x3f8] sm:$0xff]
        %v1871 = vld [vmem:[%s354 + $0x400] sm:$0xff]
        %v1872 = vld [vmem:[%s354 + $0x408] sm:$0xff]
        %v1873 = vld [vmem:[%s354 + $0x410] sm:$0xff]
        %v1874 = vld [vmem:[%s354 + $0x418] sm:$0xff]
        %v1875 = vld [vmem:[%s354 + $0x420] sm:$0xff]
        %v1876 = vld [vmem:[%s354 + $0x428] sm:$0xff]
        %v1877 = vld [vmem:[%s354 + $0x430] sm:$0xff]
        %v1878 = vld [vmem:[%s354 + $0x438] sm:$0xff]
        %v1879 = vld [vmem:[%s354 + $0x440] sm:$0xff]
        %v1880 = vld [vmem:[%s354 + $0x448] sm:$0xff]
        %v1881 = vld [vmem:[%s354 + $0x450] sm:$0xff]
        %v1882 = vld [vmem:[%s354 + $0x458] sm:$0xff]
        %v1883 = vld [vmem:[%s354 + $0x460] sm:$0xff]
        %v1884 = vld [vmem:[%s354 + $0x468] sm:$0xff]
        %v1885 = vld [vmem:[%s354 + $0x470] sm:$0xff]
        %v1886 = vld [vmem:[%s354 + $0x478] sm:$0xff]
        %v1887 = vld [vmem:[%s354 + $0x480] sm:$0xff]
        %v1888 = vld [vmem:[%s354 + $0x488] sm:$0xff]
        %v1889 = vld [vmem:[%s354 + $0x490] sm:$0xff]
        %v1890 = vld [vmem:[%s354 + $0x498] sm:$0xff]
        %v1891 = vld [vmem:[%s354 + $0x4a0] sm:$0xff]
        %v1892 = vld [vmem:[%s354 + $0x4a8] sm:$0xff]
        %v1893 = vld [vmem:[%s354 + $0x4b0] sm:$0xff]
        %v1894 = vld [vmem:[%s354 + $0x4b8] sm:$0xff]
        %v1895 = vld [vmem:[%s354 + $0x4c0] sm:$0xff]
        %v1896 = vld [vmem:[%s354 + $0x4c8] sm:$0xff]
        %v1897 = vld [vmem:[%s354 + $0x4d0] sm:$0xff]
        %v1898 = vld [vmem:[%s354 + $0x4d8] sm:$0xff]
        %v1899 = vld [vmem:[%s354 + $0x4e0] sm:$0xff]
        %v1900 = vld [vmem:[%s354 + $0x4e8] sm:$0xff]
        %v1901 = vld [vmem:[%s354 + $0x4f0] sm:$0xff]
        %v1902 = vld [vmem:[%s354 + $0x4f8] sm:$0xff]
        %v1903 = vld [vmem:[%s354 + $0x500] sm:$0xff]
        %v1904 = vld [vmem:[%s354 + $0x508] sm:$0xff]
        %v1905 = vld [vmem:[%s354 + $0x510] sm:$0xff]
        %v1906 = vld [vmem:[%s354 + $0x518] sm:$0xff]
        %v1907 = vld [vmem:[%s354 + $0x520] sm:$0xff]
        %v1908 = vld [vmem:[%s354 + $0x528] sm:$0xff]
        %v1909 = vld [vmem:[%s354 + $0x530] sm:$0xff]
        %v1910 = vld [vmem:[%s354 + $0x538] sm:$0xff]
        %v1911 = vld [vmem:[%s354 + $0x540] sm:$0xff]
        %v1912 = vld [vmem:[%s354 + $0x548] sm:$0xff]
        %v1913 = vld [vmem:[%s354 + $0x550] sm:$0xff]
        %v1914 = vld [vmem:[%s354 + $0x558] sm:$0xff]
        %v1915 = vld [vmem:[%s354 + $0x560] sm:$0xff]
        %v1916 = vld [vmem:[%s354 + $0x568] sm:$0xff]
        %v1917 = vld [vmem:[%s354 + $0x570] sm:$0xff]
        %v1918 = vld [vmem:[%s354 + $0x578] sm:$0xff]
        %v1919 = vld [vmem:[%s354 + $0x580] sm:$0xff]
        %v1920 = vld [vmem:[%s354 + $0x588] sm:$0xff]
        %v1921 = vld [vmem:[%s354 + $0x590] sm:$0xff]
        %v1922 = vld [vmem:[%s354 + $0x598] sm:$0xff]
        %v1923 = vld [vmem:[%s354 + $0x5a0] sm:$0xff]
        %v1924 = vld [vmem:[%s354 + $0x5a8] sm:$0xff]
        %v1925 = vld [vmem:[%s354 + $0x5b0] sm:$0xff]
        %v1926 = vld [vmem:[%s354 + $0x5b8] sm:$0xff]
        %v1927 = vld [vmem:[%s354 + $0x5c0] sm:$0xff]
        %v1928 = vld [vmem:[%s354 + $0x5c8] sm:$0xff]
        %v1929 = vld [vmem:[%s354 + $0x5d0] sm:$0xff]
        %v1930 = vld [vmem:[%s354 + $0x5d8] sm:$0xff]
        %v1931 = vld [vmem:[%s354 + $0x5e0] sm:$0xff]
        %v1932 = vld [vmem:[%s354 + $0x5e8] sm:$0xff]
        %v1933 = vld [vmem:[%s354 + $0x5f0] sm:$0xff]
        %v1934 = vld [vmem:[%s354 + $0x5f8] sm:$0xff]
        %v1935 = vld [vmem:[%s354 + $0x600] sm:$0xff]
        %v1936 = vld [vmem:[%s354 + $0x608] sm:$0xff]
        %v1937 = vld [vmem:[%s354 + $0x610] sm:$0xff]
        %v1938 = vld [vmem:[%s354 + $0x618] sm:$0xff]
        %v1939 = vld [vmem:[%s354 + $0x620] sm:$0xff]
        %v1940 = vld [vmem:[%s354 + $0x628] sm:$0xff]
        %v1941 = vld [vmem:[%s354 + $0x630] sm:$0xff]
        %v1942 = vld [vmem:[%s354 + $0x638] sm:$0xff]
        %v1943 = vld [vmem:[%s354 + $0x640] sm:$0xff]
        %v1944 = vld [vmem:[%s354 + $0x648] sm:$0xff]
        %v1945 = vld [vmem:[%s354 + $0x650] sm:$0xff]
        %v1946 = vld [vmem:[%s354 + $0x658] sm:$0xff]
        %v1947 = vld [vmem:[%s354 + $0x660] sm:$0xff]
        %v1948 = vld [vmem:[%s354 + $0x668] sm:$0xff]
        %v1949 = vld [vmem:[%s354 + $0x670] sm:$0xff]
        %v1950 = vld [vmem:[%s354 + $0x678] sm:$0xff]
        %v1951 = vld [vmem:[%s354 + $0x680] sm:$0xff]
        %v1952 = vld [vmem:[%s354 + $0x688] sm:$0xff]
        %v1953 = vld [vmem:[%s354 + $0x690] sm:$0xff]
        %v1954 = vld [vmem:[%s354 + $0x698] sm:$0xff]
        %v1955 = vld [vmem:[%s354 + $0x6a0] sm:$0xff]
        %v1956 = vld [vmem:[%s354 + $0x6a8] sm:$0xff]
        %v1957 = vld [vmem:[%s354 + $0x6b0] sm:$0xff]
        %v1958 = vld [vmem:[%s354 + $0x6b8] sm:$0xff]
        %v1959 = vld [vmem:[%s354 + $0x6c0] sm:$0xff]
        %v1960 = vld [vmem:[%s354 + $0x6c8] sm:$0xff]
        %v1961 = vld [vmem:[%s354 + $0x6d0] sm:$0xff]
        %v1962 = vld [vmem:[%s354 + $0x6d8] sm:$0xff]
        %v1963 = vld [vmem:[%s354 + $0x6e0] sm:$0xff]
        %v1964 = vld [vmem:[%s354 + $0x6e8] sm:$0xff]
        %v1965 = vld [vmem:[%s354 + $0x6f0] sm:$0xff]
        %v1966 = vld [vmem:[%s354 + $0x6f8] sm:$0xff]
        %v1967 = vld [vmem:[%s354 + $0x700] sm:$0xff]
        %v1968 = vld [vmem:[%s354 + $0x708] sm:$0xff]
        %v1969 = vld [vmem:[%s354 + $0x710] sm:$0xff]
        %v1970 = vld [vmem:[%s354 + $0x718] sm:$0xff]
        %v1971 = vld [vmem:[%s354 + $0x720] sm:$0xff]
        %v1972 = vld [vmem:[%s354 + $0x728] sm:$0xff]
        %v1973 = vld [vmem:[%s354 + $0x730] sm:$0xff]
        %v1974 = vld [vmem:[%s354 + $0x738] sm:$0xff]
        %v1975 = vld [vmem:[%s354 + $0x740] sm:$0xff]
        %v1976 = vld [vmem:[%s354 + $0x748] sm:$0xff]
        %v1977 = vld [vmem:[%s354 + $0x750] sm:$0xff]
        %v1978 = vld [vmem:[%s354 + $0x758] sm:$0xff]
        %v1979 = vld [vmem:[%s354 + $0x760] sm:$0xff]
        %v1980 = vld [vmem:[%s354 + $0x768] sm:$0xff]
        %v1981 = vld [vmem:[%s354 + $0x770] sm:$0xff]
        %v1982 = vld [vmem:[%s354 + $0x778] sm:$0xff]
        %v1983 = vld [vmem:[%s354 + $0x780] sm:$0xff]
        %v1984 = vld [vmem:[%s354 + $0x788] sm:$0xff]
        %v1985 = vld [vmem:[%s354 + $0x790] sm:$0xff]
        %v1986 = vld [vmem:[%s354 + $0x798] sm:$0xff]
        %v1987 = vld [vmem:[%s354 + $0x7a0] sm:$0xff]
        %v1988 = vld [vmem:[%s354 + $0x7a8] sm:$0xff]
        %v1989 = vld [vmem:[%s354 + $0x7b0] sm:$0xff]
        %v1990 = vld [vmem:[%s354 + $0x7b8] sm:$0xff]
        %v1991 = vld [vmem:[%s354 + $0x7c0] sm:$0xff]
        %v1992 = vld [vmem:[%s354 + $0x7c8] sm:$0xff]
        %v1993 = vld [vmem:[%s354 + $0x7d0] sm:$0xff]
        %v1994 = vld [vmem:[%s354 + $0x7d8] sm:$0xff]
        %v1995 = vld [vmem:[%s354 + $0x7e0] sm:$0xff]
        %v1996 = vld [vmem:[%s354 + $0x7e8] sm:$0xff]
        %v1997 = vld [vmem:[%s354 + $0x7f0] sm:$0xff]
        %v1998 = vld [vmem:[%s354 + $0x7f8] sm:$0xff]
        %v1999 = vld [vmem:[%s354 + $0x800] sm:$0xff]
        %v2000 = vld [vmem:[%s354 + $0x808] sm:$0xff]
        %v2001 = vld [vmem:[%s354 + $0x810] sm:$0xff]
        %v2002 = vld [vmem:[%s354 + $0x818] sm:$0xff]
        %v2003 = vld [vmem:[%s354 + $0x820] sm:$0xff]
        %v2004 = vld [vmem:[%s354 + $0x828] sm:$0xff]
        %v2005 = vld [vmem:[%s354 + $0x830] sm:$0xff]
        %v2006 = vld [vmem:[%s354 + $0x838] sm:$0xff]
        %v2007 = vld [vmem:[%s354 + $0x840] sm:$0xff]
        %v2008 = vld [vmem:[%s354 + $0x848] sm:$0xff]
        %v2009 = vld [vmem:[%s354 + $0x850] sm:$0xff]
        %v2010 = vld [vmem:[%s354 + $0x858] sm:$0xff]
        %v2011 = vld [vmem:[%s354 + $0x860] sm:$0xff]
        %v2012 = vld [vmem:[%s354 + $0x868] sm:$0xff]
        %v2013 = vld [vmem:[%s354 + $0x870] sm:$0xff]
        %v2014 = vld [vmem:[%s354 + $0x878] sm:$0xff]
        %v2015 = vld [vmem:[%s354 + $0x880] sm:$0xff]
        %v2016 = vld [vmem:[%s354 + $0x888] sm:$0xff]
        %v2017 = vld [vmem:[%s354 + $0x890] sm:$0xff]
        %v2018 = vld [vmem:[%s354 + $0x898] sm:$0xff]
        %v2019 = vld [vmem:[%s354 + $0x8a0] sm:$0xff]
        %v2020 = vld [vmem:[%s354 + $0x8a8] sm:$0xff]
        %v2021 = vld [vmem:[%s354 + $0x8b0] sm:$0xff]
        %v2022 = vld [vmem:[%s354 + $0x8b8] sm:$0xff]
        %v2023 = vld [vmem:[%s354 + $0x8c0] sm:$0xff]
        %v2024 = vld [vmem:[%s354 + $0x8c8] sm:$0xff]
        %v2025 = vld [vmem:[%s354 + $0x8d0] sm:$0xff]
        %v2026 = vld [vmem:[%s354 + $0x8d8] sm:$0xff]
        %v2027 = vld [vmem:[%s354 + $0x8e0] sm:$0xff]
        %v2028 = vld [vmem:[%s354 + $0x8e8] sm:$0xff]
        %v2029 = vld [vmem:[%s354 + $0x8f0] sm:$0xff]
        %v2030 = vld [vmem:[%s354 + $0x8f8] sm:$0xff]
        %v2031 = vld [vmem:[%s354 + $0x900] sm:$0xff]
        %v2032 = vld [vmem:[%s354 + $0x908] sm:$0xff]
        %v2033 = vld [vmem:[%s354 + $0x910] sm:$0xff]
        %v2034 = vld [vmem:[%s354 + $0x918] sm:$0xff]
        %v2035 = vld [vmem:[%s354 + $0x920] sm:$0xff]
        %v2036 = vld [vmem:[%s354 + $0x928] sm:$0xff]
        %v2037 = vld [vmem:[%s354 + $0x930] sm:$0xff]
        %v2038 = vld [vmem:[%s354 + $0x938] sm:$0xff]
        %v2039 = vld [vmem:[%s354 + $0x940] sm:$0xff]
        %v2040 = vld [vmem:[%s354 + $0x948] sm:$0xff]
        %v2041 = vld [vmem:[%s354 + $0x950] sm:$0xff]
        %v2042 = vld [vmem:[%s354 + $0x958] sm:$0xff]
        %v2043 = vld [vmem:[%s354 + $0x960] sm:$0xff]
        %v2044 = vld [vmem:[%s354 + $0x968] sm:$0xff]
        %v2045 = vld [vmem:[%s354 + $0x970] sm:$0xff]
        %v2046 = vld [vmem:[%s354 + $0x978] sm:$0xff]
        %v2047 = vld [vmem:[%s354 + $0x980] sm:$0xff]
        %v2048 = vld [vmem:[%s354 + $0x988] sm:$0xff]
        %v2049 = vld [vmem:[%s354 + $0x990] sm:$0xff]
        %v2050 = vld [vmem:[%s354 + $0x998] sm:$0xff]
        %v2051 = vld [vmem:[%s354 + $0x9a0] sm:$0xff]
        %v2052 = vld [vmem:[%s354 + $0x9a8] sm:$0xff]
        %v2053 = vld [vmem:[%s354 + $0x9b0] sm:$0xff]
        %v2054 = vld [vmem:[%s354 + $0x9b8] sm:$0xff]
        %v2055 = vld [vmem:[%s354 + $0x9c0] sm:$0xff]
        %v2056 = vld [vmem:[%s354 + $0x9c8] sm:$0xff]
        %v2057 = vld [vmem:[%s354 + $0x9d0] sm:$0xff]
        %v2058 = vld [vmem:[%s354 + $0x9d8] sm:$0xff]
        %v2059 = vld [vmem:[%s354 + $0x9e0] sm:$0xff]
        %v2060 = vld [vmem:[%s354 + $0x9e8] sm:$0xff]
        %v2061 = vld [vmem:[%s354 + $0x9f0] sm:$0xff]
        %v2062 = vld [vmem:[%s354 + $0x9f8] sm:$0xff]
        %v2063 = vld [vmem:[%s354 + $0xa00] sm:$0xff]
        %v2064 = vld [vmem:[%s354 + $0xa08] sm:$0xff]
        %v2065 = vld [vmem:[%s354 + $0xa10] sm:$0xff]
        %v2066 = vld [vmem:[%s354 + $0xa18] sm:$0xff]
        %v2067 = vld [vmem:[%s354 + $0xa20] sm:$0xff]
        %v2068 = vld [vmem:[%s354 + $0xa28] sm:$0xff]
        %v2069 = vld [vmem:[%s354 + $0xa30] sm:$0xff]
        %v2070 = vld [vmem:[%s354 + $0xa38] sm:$0xff]
        %v2071 = vld [vmem:[%s354 + $0xa40] sm:$0xff]
        %v2072 = vld [vmem:[%s354 + $0xa48] sm:$0xff]
        %v2073 = vld [vmem:[%s354 + $0xa50] sm:$0xff]
        %v2074 = vld [vmem:[%s354 + $0xa58] sm:$0xff]
        %v2075 = vld [vmem:[%s354 + $0xa60] sm:$0xff]
        %v2076 = vld [vmem:[%s354 + $0xa68] sm:$0xff]
        %v2077 = vld [vmem:[%s354 + $0xa70] sm:$0xff]
        %v2078 = vld [vmem:[%s354 + $0xa78] sm:$0xff]
        %v2079 = vld [vmem:[%s354 + $0xa80] sm:$0xff]
        %v2080 = vld [vmem:[%s354 + $0xa88] sm:$0xff]
        %v2081 = vld [vmem:[%s354 + $0xa90] sm:$0xff]
        %v2082 = vld [vmem:[%s354 + $0xa98] sm:$0xff]
        %v2083 = vld [vmem:[%s354 + $0xaa0] sm:$0xff]
        %v2084 = vld [vmem:[%s354 + $0xaa8] sm:$0xff]
        %v2085 = vld [vmem:[%s354 + $0xab0] sm:$0xff]
        %v2086 = vld [vmem:[%s354 + $0xab8] sm:$0xff]
        %v2087 = vld [vmem:[%s354 + $0xac0] sm:$0xff]
        %v2088 = vld [vmem:[%s354 + $0xac8] sm:$0xff]
        %v2089 = vld [vmem:[%s354 + $0xad0] sm:$0xff]
        %v2090 = vld [vmem:[%s354 + $0xad8] sm:$0xff]
        %v2091 = vld [vmem:[%s354 + $0xae0] sm:$0xff]
        %v2092 = vld [vmem:[%s354 + $0xae8] sm:$0xff]
        %v2093 = vld [vmem:[%s354 + $0xaf0] sm:$0xff]
        %v2094 = vld [vmem:[%s354 + $0xaf8] sm:$0xff]
        %v2095 = vld [vmem:[%s354 + $0xb00] sm:$0xff]
        %v2096 = vld [vmem:[%s354 + $0xb08] sm:$0xff]
        %v2097 = vld [vmem:[%s354 + $0xb10] sm:$0xff]
        %v2098 = vld [vmem:[%s354 + $0xb18] sm:$0xff]
        %v2099 = vld [vmem:[%s354 + $0xb20] sm:$0xff]
        %v2100 = vld [vmem:[%s354 + $0xb28] sm:$0xff]
        %v2101 = vld [vmem:[%s354 + $0xb30] sm:$0xff]
        %v2102 = vld [vmem:[%s354 + $0xb38] sm:$0xff]
        %v2103 = vld [vmem:[%s354 + $0xb40] sm:$0xff]
        %v2104 = vld [vmem:[%s354 + $0xb48] sm:$0xff]
        %v2105 = vld [vmem:[%s354 + $0xb50] sm:$0xff]
        %v2106 = vld [vmem:[%s354 + $0xb58] sm:$0xff]
        %v2107 = vld [vmem:[%s354 + $0xb60] sm:$0xff]
        %v2108 = vld [vmem:[%s354 + $0xb68] sm:$0xff]
        %v2109 = vld [vmem:[%s354 + $0xb70] sm:$0xff]
        %v2110 = vld [vmem:[%s354 + $0xb78] sm:$0xff]
        %v2111 = vld [vmem:[%s354 + $0xb80] sm:$0xff]
        %v2112 = vld [vmem:[%s354 + $0xb88] sm:$0xff]
        %v2113 = vld [vmem:[%s354 + $0xb90] sm:$0xff]
        %v2114 = vld [vmem:[%s354 + $0xb98] sm:$0xff]
        %v2115 = vld [vmem:[%s354 + $0xba0] sm:$0xff]
        %v2116 = vld [vmem:[%s354 + $0xba8] sm:$0xff]
        %v2117 = vld [vmem:[%s354 + $0xbb0] sm:$0xff]
        %v2118 = vld [vmem:[%s354 + $0xbb8] sm:$0xff]
        %v2119 = vld [vmem:[%s354 + $0xbc0] sm:$0xff]
        %v2120 = vld [vmem:[%s354 + $0xbc8] sm:$0xff]
        %v2121 = vld [vmem:[%s354 + $0xbd0] sm:$0xff]
        %v2122 = vld [vmem:[%s354 + $0xbd8] sm:$0xff]
        %v2123 = vld [vmem:[%s354 + $0xbe0] sm:$0xff]
        %v2124 = vld [vmem:[%s354 + $0xbe8] sm:$0xff]
        %v2125 = vld [vmem:[%s354 + $0xbf0] sm:$0xff]
        %v2126 = vld [vmem:[%s354 + $0xbf8] sm:$0xff]
        %v2127 = vld [vmem:[%s354 + $0xc00] sm:$0xff]
        %v2128 = vld [vmem:[%s354 + $0xc08] sm:$0xff]
        %v2129 = vld [vmem:[%s354 + $0xc10] sm:$0xff]
        %v2130 = vld [vmem:[%s354 + $0xc18] sm:$0xff]
        %v2131 = vld [vmem:[%s354 + $0xc20] sm:$0xff]
        %v2132 = vld [vmem:[%s354 + $0xc28] sm:$0xff]
        %v2133 = vld [vmem:[%s354 + $0xc30] sm:$0xff]
        %v2134 = vld [vmem:[%s354 + $0xc38] sm:$0xff]
        %v2135 = vld [vmem:[%s354 + $0xc40] sm:$0xff]
        %v2136 = vld [vmem:[%s354 + $0xc48] sm:$0xff]
        %v2137 = vld [vmem:[%s354 + $0xc50] sm:$0xff]
        %v2138 = vld [vmem:[%s354 + $0xc58] sm:$0xff]
        %v2139 = vld [vmem:[%s354 + $0xc60] sm:$0xff]
        %v2140 = vld [vmem:[%s354 + $0xc68] sm:$0xff]
        %v2141 = vld [vmem:[%s354 + $0xc70] sm:$0xff]
        %v2142 = vld [vmem:[%s354 + $0xc78] sm:$0xff]
        %v2143 = vld [vmem:[%s354 + $0xc80] sm:$0xff]
        %v2144 = vld [vmem:[%s354 + $0xc88] sm:$0xff]
        %v2145 = vld [vmem:[%s354 + $0xc90] sm:$0xff]
        %v2146 = vld [vmem:[%s354 + $0xc98] sm:$0xff]
        %v2147 = vld [vmem:[%s354 + $0xca0] sm:$0xff]
        %v2148 = vld [vmem:[%s354 + $0xca8] sm:$0xff]
        %v2149 = vld [vmem:[%s354 + $0xcb0] sm:$0xff]
        %v2150 = vld [vmem:[%s354 + $0xcb8] sm:$0xff]
        %v2151 = vld [vmem:[%s354 + $0xcc0] sm:$0xff]
        %v2152 = vld [vmem:[%s354 + $0xcc8] sm:$0xff]
        %v2153 = vld [vmem:[%s354 + $0xcd0] sm:$0xff]
        %v2154 = vld [vmem:[%s354 + $0xcd8] sm:$0xff]
        %v2155 = vld [vmem:[%s354 + $0xce0] sm:$0xff]
        %v2156 = vld [vmem:[%s354 + $0xce8] sm:$0xff]
        %v2157 = vld [vmem:[%s354 + $0xcf0] sm:$0xff]
        %v2158 = vld [vmem:[%s354 + $0xcf8] sm:$0xff]
        %v2159 = vld [vmem:[%s354 + $0xd00] sm:$0xff]
        %v2160 = vld [vmem:[%s354 + $0xd08] sm:$0xff]
        %v2161 = vld [vmem:[%s354 + $0xd10] sm:$0xff]
        %v2162 = vld [vmem:[%s354 + $0xd18] sm:$0xff]
        %v2163 = vld [vmem:[%s354 + $0xd20] sm:$0xff]
        %v2164 = vld [vmem:[%s354 + $0xd28] sm:$0xff]
        %v2165 = vld [vmem:[%s354 + $0xd30] sm:$0xff]
        %v2166 = vld [vmem:[%s354 + $0xd38] sm:$0xff]
        %v2167 = vld [vmem:[%s354 + $0xd40] sm:$0xff]
        %v2168 = vld [vmem:[%s354 + $0xd48] sm:$0xff]
        %v2169 = vld [vmem:[%s354 + $0xd50] sm:$0xff]
        %v2170 = vld [vmem:[%s354 + $0xd58] sm:$0xff]
        %v2171 = vld [vmem:[%s354 + $0xd60] sm:$0xff]
        %v2172 = vld [vmem:[%s354 + $0xd68] sm:$0xff]
        %v2173 = vld [vmem:[%s354 + $0xd70] sm:$0xff]
        %v2174 = vld [vmem:[%s354 + $0xd78] sm:$0xff]
        %v2175 = vld [vmem:[%s354 + $0xd80] sm:$0xff]
        %v2176 = vld [vmem:[%s354 + $0xd88] sm:$0xff]
        %v2177 = vld [vmem:[%s354 + $0xd90] sm:$0xff]
        %v2178 = vld [vmem:[%s354 + $0xd98] sm:$0xff]
        %v2179 = vld [vmem:[%s354 + $0xda0] sm:$0xff]
        %v2180 = vld [vmem:[%s354 + $0xda8] sm:$0xff]
        %v2181 = vld [vmem:[%s354 + $0xdb0] sm:$0xff]
        %v2182 = vld [vmem:[%s354 + $0xdb8] sm:$0xff]
        %v2183 = vld [vmem:[%s354 + $0xdc0] sm:$0xff]
        %v2184 = vld [vmem:[%s354 + $0xdc8] sm:$0xff]
        %v2185 = vld [vmem:[%s354 + $0xdd0] sm:$0xff]
        %v2186 = vld [vmem:[%s354 + $0xdd8] sm:$0xff]
        %v2187 = vld [vmem:[%s354 + $0xde0] sm:$0xff]
        %v2188 = vld [vmem:[%s354 + $0xde8] sm:$0xff]
        %v2189 = vld [vmem:[%s354 + $0xdf0] sm:$0xff]
        %v2190 = vld [vmem:[%s354 + $0xdf8] sm:$0xff]
        %v2191 = vld [vmem:[%s354 + $0xe00] sm:$0xff]
        %v2192 = vld [vmem:[%s354 + $0xe08] sm:$0xff]
        %v2193 = vld [vmem:[%s354 + $0xe10] sm:$0xff]
        %v2194 = vld [vmem:[%s354 + $0xe18] sm:$0xff]
        %v2195 = vld [vmem:[%s354 + $0xe20] sm:$0xff]
        %v2196 = vld [vmem:[%s354 + $0xe28] sm:$0xff]
        %v2197 = vld [vmem:[%s354 + $0xe30] sm:$0xff]
        %v2198 = vld [vmem:[%s354 + $0xe38] sm:$0xff]
        %v2199 = vld [vmem:[%s354 + $0xe40] sm:$0xff]
        %v2200 = vld [vmem:[%s354 + $0xe48] sm:$0xff]
        %v2201 = vld [vmem:[%s354 + $0xe50] sm:$0xff]
        %v2202 = vld [vmem:[%s354 + $0xe58] sm:$0xff]
        %v2203 = vld [vmem:[%s354 + $0xe60] sm:$0xff]
        %v2204 = vld [vmem:[%s354 + $0xe68] sm:$0xff]
        %v2205 = vld [vmem:[%s354 + $0xe70] sm:$0xff]
        %v2206 = vld [vmem:[%s354 + $0xe78] sm:$0xff]
        %v2207 = vld [vmem:[%s354 + $0xe80] sm:$0xff]
        %v2208 = vld [vmem:[%s354 + $0xe88] sm:$0xff]
        %v2209 = vld [vmem:[%s354 + $0xe90] sm:$0xff]
        %v2210 = vld [vmem:[%s354 + $0xe98] sm:$0xff]
        %v2211 = vld [vmem:[%s354 + $0xea0] sm:$0xff]
        %v2212 = vld [vmem:[%s354 + $0xea8] sm:$0xff]
        %v2213 = vld [vmem:[%s354 + $0xeb0] sm:$0xff]
        %v2214 = vld [vmem:[%s354 + $0xeb8] sm:$0xff]
        %v2215 = vld [vmem:[%s354 + $0xec0] sm:$0xff]
        %v2216 = vld [vmem:[%s354 + $0xec8] sm:$0xff]
        %v2217 = vld [vmem:[%s354 + $0xed0] sm:$0xff]
        %v2218 = vld [vmem:[%s354 + $0xed8] sm:$0xff]
        %v2219 = vld [vmem:[%s354 + $0xee0] sm:$0xff]
        %v2220 = vld [vmem:[%s354 + $0xee8] sm:$0xff]
        %v2221 = vld [vmem:[%s354 + $0xef0] sm:$0xff]
        %v2222 = vld [vmem:[%s354 + $0xef8] sm:$0xff]
        %v2223 = vld [vmem:[%s354 + $0xf00] sm:$0xff]
        %v2224 = vld [vmem:[%s354 + $0xf08] sm:$0xff]
        %v2225 = vld [vmem:[%s354 + $0xf10] sm:$0xff]
        %v2226 = vld [vmem:[%s354 + $0xf18] sm:$0xff]
        %v2227 = vld [vmem:[%s354 + $0xf20] sm:$0xff]
        %v2228 = vld [vmem:[%s354 + $0xf28] sm:$0xff]
        %v2229 = vld [vmem:[%s354 + $0xf30] sm:$0xff]
        %v2230 = vld [vmem:[%s354 + $0xf38] sm:$0xff]
        %v2231 = vld [vmem:[%s354 + $0xf40] sm:$0xff]
        %v2232 = vld [vmem:[%s354 + $0xf48] sm:$0xff]
        %v2233 = vld [vmem:[%s354 + $0xf50] sm:$0xff]
        %v2234 = vld [vmem:[%s354 + $0xf58] sm:$0xff]
        %v2235 = vld [vmem:[%s354 + $0xf60] sm:$0xff]
        %v2236 = vld [vmem:[%s354 + $0xf68] sm:$0xff]
        %v2237 = vld [vmem:[%s354 + $0xf70] sm:$0xff]
        %v2238 = vld [vmem:[%s354 + $0xf78] sm:$0xff]
        %v2239 = vld [vmem:[%s354 + $0xf80] sm:$0xff]
        %v2240 = vld [vmem:[%s354 + $0xf88] sm:$0xff]
        %v2241 = vld [vmem:[%s354 + $0xf90] sm:$0xff]
        %v2242 = vld [vmem:[%s354 + $0xf98] sm:$0xff]
        %v2243 = vld [vmem:[%s354 + $0xfa0] sm:$0xff]
        %v2244 = vld [vmem:[%s354 + $0xfa8] sm:$0xff]
        %v2245 = vld [vmem:[%s354 + $0xfb0] sm:$0xff]
        %v2246 = vld [vmem:[%s354 + $0xfb8] sm:$0xff]
        %v2247 = vld [vmem:[%s354 + $0xfc0] sm:$0xff]
        %v2248 = vld [vmem:[%s354 + $0xfc8] sm:$0xff]
        %v2249 = vld [vmem:[%s354 + $0xfd0] sm:$0xff]
        %v2250 = vld [vmem:[%s354 + $0xfd8] sm:$0xff]
        %v2251 = vld [vmem:[%s354 + $0xfe0] sm:$0xff]
        %v2252 = vld [vmem:[%s354 + $0xfe8] sm:$0xff]
        %v2253 = vld [vmem:[%s354 + $0xff0] sm:$0xff]
        %v2254 = vld [vmem:[%s354 + $0xff8] sm:$0xff]
        %v2255 = vld [vmem:[%s354 + $0x1000] sm:$0xff]
        %v2256 = vld [vmem:[%s354 + $0x1008] sm:$0xff]
        %v2257 = vld [vmem:[%s354 + $0x1010] sm:$0xff]
        %v2258 = vld [vmem:[%s354 + $0x1018] sm:$0xff]
        %v2259 = vld [vmem:[%s354 + $0x1020] sm:$0xff]
        %v2260 = vld [vmem:[%s354 + $0x1028] sm:$0xff]
        %v2261 = vld [vmem:[%s354 + $0x1030] sm:$0xff]
        %v2262 = vld [vmem:[%s354 + $0x1038] sm:$0xff]
        %v2263 = vld [vmem:[%s354 + $0x1040] sm:$0xff]
        %v2264 = vld [vmem:[%s354 + $0x1048] sm:$0xff]
        %v2265 = vld [vmem:[%s354 + $0x1050] sm:$0xff]
        %v2266 = vld [vmem:[%s354 + $0x1058] sm:$0xff]
        %v2267 = vld [vmem:[%s354 + $0x1060] sm:$0xff]
        %v2268 = vld [vmem:[%s354 + $0x1068] sm:$0xff]
        %v2269 = vld [vmem:[%s354 + $0x1070] sm:$0xff]
        %v2270 = vld [vmem:[%s354 + $0x1078] sm:$0xff]
        %v2271 = vld [vmem:[%s354 + $0x1080] sm:$0xff]
        %v2272 = vld [vmem:[%s354 + $0x1088] sm:$0xff]
        %v2273 = vld [vmem:[%s354 + $0x1090] sm:$0xff]
        %v2274 = vld [vmem:[%s354 + $0x1098] sm:$0xff]
        %v2275 = vld [vmem:[%s354 + $0x10a0] sm:$0xff]
        %v2276 = vld [vmem:[%s354 + $0x10a8] sm:$0xff]
        %v2277 = vld [vmem:[%s354 + $0x10b0] sm:$0xff]
        %v2278 = vld [vmem:[%s354 + $0x10b8] sm:$0xff]
        %v2279 = vld [vmem:[%s354 + $0x10c0] sm:$0xff]
        %v2280 = vld [vmem:[%s354 + $0x10c8] sm:$0xff]
        %v2281 = vld [vmem:[%s354 + $0x10d0] sm:$0xff]
        %v2282 = vld [vmem:[%s354 + $0x10d8] sm:$0xff]
        %v2283 = vld [vmem:[%s354 + $0x10e0] sm:$0xff]
        %v2284 = vld [vmem:[%s354 + $0x10e8] sm:$0xff]
        %v2285 = vld [vmem:[%s354 + $0x10f0] sm:$0xff]
        %v2286 = vld [vmem:[%s354 + $0x10f8] sm:$0xff]
        %v2287 = vld [vmem:[%s354 + $0x1100] sm:$0xff]
        %v2288 = vld [vmem:[%s354 + $0x1108] sm:$0xff]
        %v2289 = vld [vmem:[%s354 + $0x1110] sm:$0xff]
        %v2290 = vld [vmem:[%s354 + $0x1118] sm:$0xff]
        %v2291 = vld [vmem:[%s354 + $0x1120] sm:$0xff]
        %v2292 = vld [vmem:[%s354 + $0x1128] sm:$0xff]
        %v2293 = vld [vmem:[%s354 + $0x1130] sm:$0xff]
        %v2294 = vld [vmem:[%s354 + $0x1138] sm:$0xff]
        %v2295 = vld [vmem:[%s354 + $0x1140] sm:$0xff]
        %v2296 = vld [vmem:[%s354 + $0x1148] sm:$0xff]
        %v2297 = vld [vmem:[%s354 + $0x1150] sm:$0xff]
        %v2298 = vld [vmem:[%s354 + $0x1158] sm:$0xff]
        %v2299 = vld [vmem:[%s354 + $0x1160] sm:$0xff]
        %v2300 = vld [vmem:[%s354 + $0x1168] sm:$0xff]
        %v2301 = vld [vmem:[%s354 + $0x1170] sm:$0xff]
        %v2302 = vld [vmem:[%s354 + $0x1178] sm:$0xff]
        %v2303 = vld [vmem:[%s354 + $0x1180] sm:$0xff]
        %v2304 = vld [vmem:[%s354 + $0x1188] sm:$0xff]
        %v2305 = vld [vmem:[%s354 + $0x1190] sm:$0xff]
        %v2306 = vld [vmem:[%s354 + $0x1198] sm:$0xff]
        %v2307 = vld [vmem:[%s354 + $0x11a0] sm:$0xff]
        %v2308 = vld [vmem:[%s354 + $0x11a8] sm:$0xff]
        %v2309 = vld [vmem:[%s354 + $0x11b0] sm:$0xff]
        %v2310 = vld [vmem:[%s354 + $0x11b8] sm:$0xff]
        %v2311 = vld [vmem:[%s354 + $0x11c0] sm:$0xff]
        %v2312 = vld [vmem:[%s354 + $0x11c8] sm:$0xff]
        %v2313 = vld [vmem:[%s354 + $0x11d0] sm:$0xff]
        %v2314 = vld [vmem:[%s354 + $0x11d8] sm:$0xff]
        %v2315 = vld [vmem:[%s354 + $0x11e0] sm:$0xff]
        %v2316 = vld [vmem:[%s354 + $0x11e8] sm:$0xff]
        %v2317 = vld [vmem:[%s354 + $0x11f0] sm:$0xff]
        %v2318 = vld [vmem:[%s354 + $0x11f8] sm:$0xff]
        %v2319 = vld [vmem:[%s354 + $0x1200] sm:$0xff]
        %v2320 = vld [vmem:[%s354 + $0x1208] sm:$0xff]
        %v2321 = vld [vmem:[%s354 + $0x1210] sm:$0xff]
        %v2322 = vld [vmem:[%s354 + $0x1218] sm:$0xff]
        %v2323 = vld [vmem:[%s354 + $0x1220] sm:$0xff]
        %v2324 = vld [vmem:[%s354 + $0x1228] sm:$0xff]
        %v2325 = vld [vmem:[%s354 + $0x1230] sm:$0xff]
        %v2326 = vld [vmem:[%s354 + $0x1238] sm:$0xff]
        %v2327 = vld [vmem:[%s354 + $0x1240] sm:$0xff]
        %v2328 = vld [vmem:[%s354 + $0x1248] sm:$0xff]
        %v2329 = vld [vmem:[%s354 + $0x1250] sm:$0xff]
        %v2330 = vld [vmem:[%s354 + $0x1258] sm:$0xff]
        %v2331 = vld [vmem:[%s354 + $0x1260] sm:$0xff]
        %v2332 = vld [vmem:[%s354 + $0x1268] sm:$0xff]
        %v2333 = vld [vmem:[%s354 + $0x1270] sm:$0xff]
        %v2334 = vld [vmem:[%s354 + $0x1278] sm:$0xff]
        %v2335 = vld [vmem:[%s354 + $0x1280] sm:$0xff]
        %v2336 = vld [vmem:[%s354 + $0x1288] sm:$0xff]
        %v2337 = vld [vmem:[%s354 + $0x1290] sm:$0xff]
        %v2338 = vld [vmem:[%s354 + $0x1298] sm:$0xff]
        %v2339 = vld [vmem:[%s354 + $0x12a0] sm:$0xff]
        %v2340 = vld [vmem:[%s354 + $0x12a8] sm:$0xff]
        %v2341 = vld [vmem:[%s354 + $0x12b0] sm:$0xff]
        %v2342 = vld [vmem:[%s354 + $0x12b8] sm:$0xff]
        %v2343 = vld [vmem:[%s354 + $0x12c0] sm:$0xff]
        %v2344 = vld [vmem:[%s354 + $0x12c8] sm:$0xff]
        %v2345 = vld [vmem:[%s354 + $0x12d0] sm:$0xff]
        %v2346 = vld [vmem:[%s354 + $0x12d8] sm:$0xff]
        %v2347 = vld [vmem:[%s354 + $0x12e0] sm:$0xff]
        %v2348 = vld [vmem:[%s354 + $0x12e8] sm:$0xff]
        %v2349 = vld [vmem:[%s354 + $0x12f0] sm:$0xff]
        %v2350 = vld [vmem:[%s354 + $0x12f8] sm:$0xff]
        %v2351 = vld [vmem:[%s354 + $0x1300] sm:$0xff]
        %v2352 = vld [vmem:[%s354 + $0x1308] sm:$0xff]
        %v2353 = vld [vmem:[%s354 + $0x1310] sm:$0xff]
        %v2354 = vld [vmem:[%s354 + $0x1318] sm:$0xff]
        %v2355 = vld [vmem:[%s354 + $0x1320] sm:$0xff]
        %v2356 = vld [vmem:[%s354 + $0x1328] sm:$0xff]
        %v2357 = vld [vmem:[%s354 + $0x1330] sm:$0xff]
        %v2358 = vld [vmem:[%s354 + $0x1338] sm:$0xff]
        %v2359 = vld [vmem:[%s354 + $0x1340] sm:$0xff]
        %v2360 = vld [vmem:[%s354 + $0x1348] sm:$0xff]
        %v2361 = vld [vmem:[%s354 + $0x1350] sm:$0xff]
        %v2362 = vld [vmem:[%s354 + $0x1358] sm:$0xff]
        %v2363 = vld [vmem:[%s354 + $0x1360] sm:$0xff]
        %v2364 = vld [vmem:[%s354 + $0x1368] sm:$0xff]
        %v2365 = vld [vmem:[%s354 + $0x1370] sm:$0xff]
        %v2366 = vld [vmem:[%s354 + $0x1378] sm:$0xff]
        %v2367 = vld [vmem:[%s354 + $0x1380] sm:$0xff]
        %v2368 = vld [vmem:[%s354 + $0x1388] sm:$0xff]
        %v2369 = vld [vmem:[%s354 + $0x1390] sm:$0xff]
        %v2370 = vld [vmem:[%s354 + $0x1398] sm:$0xff]
        %v2371 = vld [vmem:[%s354 + $0x13a0] sm:$0xff]
        %v2372 = vld [vmem:[%s354 + $0x13a8] sm:$0xff]
        %v2373 = vld [vmem:[%s354 + $0x13b0] sm:$0xff]
        %v2374 = vld [vmem:[%s354 + $0x13b8] sm:$0xff]
        %v2375 = vld [vmem:[%s354 + $0x13c0] sm:$0xff]
        %v2376 = vld [vmem:[%s354 + $0x13c8] sm:$0xff]
        %v2377 = vld [vmem:[%s354 + $0x13d0] sm:$0xff]
        %v2378 = vld [vmem:[%s354 + $0x13d8] sm:$0xff]
        %v2379 = vld [vmem:[%s354 + $0x13e0] sm:$0xff]
        %v2380 = vld [vmem:[%s354 + $0x13e8] sm:$0xff]
        %v2381 = vld [vmem:[%s354 + $0x13f0] sm:$0xff]
        %v2382 = vld [vmem:[%s354 + $0x13f8] sm:$0xff]
        %v2383 = vld [vmem:[%s354 + $0x1400] sm:$0xff]
        %v2384 = vld [vmem:[%s354 + $0x1408] sm:$0xff]
        %v2385 = vld [vmem:[%s354 + $0x1410] sm:$0xff]
        %v2386 = vld [vmem:[%s354 + $0x1418] sm:$0xff]
        %v2387 = vld [vmem:[%s354 + $0x1420] sm:$0xff]
        %v2388 = vld [vmem:[%s354 + $0x1428] sm:$0xff]
        %v2389 = vld [vmem:[%s354 + $0x1430] sm:$0xff]
        %v2390 = vld [vmem:[%s354 + $0x1438] sm:$0xff]
        %v2391 = vld [vmem:[%s354 + $0x1440] sm:$0xff]
        %v2392 = vld [vmem:[%s354 + $0x1448] sm:$0xff]
        %v2393 = vld [vmem:[%s354 + $0x1450] sm:$0xff]
        %v2394 = vld [vmem:[%s354 + $0x1458] sm:$0xff]
        %v2395 = vld [vmem:[%s354 + $0x1460] sm:$0xff]
        %v2396 = vld [vmem:[%s354 + $0x1468] sm:$0xff]
        %v2397 = vld [vmem:[%s354 + $0x1470] sm:$0xff]
        %v2398 = vld [vmem:[%s354 + $0x1478] sm:$0xff]
        %v2399 = vld [vmem:[%s354 + $0x1480] sm:$0xff]
        %v2400 = vld [vmem:[%s354 + $0x1488] sm:$0xff]
        %v2401 = vld [vmem:[%s354 + $0x1490] sm:$0xff]
        %v2402 = vld [vmem:[%s354 + $0x1498] sm:$0xff]
        %v2403 = vld [vmem:[%s354 + $0x14a0] sm:$0xff]
        %v2404 = vld [vmem:[%s354 + $0x14a8] sm:$0xff]
        %v2405 = vld [vmem:[%s354 + $0x14b0] sm:$0xff]
        %v2406 = vld [vmem:[%s354 + $0x14b8] sm:$0xff]
        %v2407 = vld [vmem:[%s354 + $0x14c0] sm:$0xff]
        %v2408 = vld [vmem:[%s354 + $0x14c8] sm:$0xff]
        %v2409 = vld [vmem:[%s354 + $0x14d0] sm:$0xff]
        %v2410 = vld [vmem:[%s354 + $0x14d8] sm:$0xff]
        %v2411 = vld [vmem:[%s354 + $0x14e0] sm:$0xff]
        %v2412 = vld [vmem:[%s354 + $0x14e8] sm:$0xff]
        %v2413 = vld [vmem:[%s354 + $0x14f0] sm:$0xff]
        %v2414 = vld [vmem:[%s354 + $0x14f8] sm:$0xff]
        %v2415 = vld [vmem:[%s354 + $0x1500] sm:$0xff]
        %v2416 = vld [vmem:[%s354 + $0x1508] sm:$0xff]
        %v2417 = vld [vmem:[%s354 + $0x1510] sm:$0xff]
        %v2418 = vld [vmem:[%s354 + $0x1518] sm:$0xff]
        %v2419 = vld [vmem:[%s354 + $0x1520] sm:$0xff]
        %v2420 = vld [vmem:[%s354 + $0x1528] sm:$0xff]
        %v2421 = vld [vmem:[%s354 + $0x1530] sm:$0xff]
        %v2422 = vld [vmem:[%s354 + $0x1538] sm:$0xff]
        %v2423 = vld [vmem:[%s354 + $0x1540] sm:$0xff]
        %v2424 = vld [vmem:[%s354 + $0x1548] sm:$0xff]
        %v2425 = vld [vmem:[%s354 + $0x1550] sm:$0xff]
        %v2426 = vld [vmem:[%s354 + $0x1558] sm:$0xff]
        %v2427 = vld [vmem:[%s354 + $0x1560] sm:$0xff]
        %v2428 = vld [vmem:[%s354 + $0x1568] sm:$0xff]
        %v2429 = vld [vmem:[%s354 + $0x1570] sm:$0xff]
        %v2430 = vld [vmem:[%s354 + $0x1578] sm:$0xff]
        %v2431 = vld [vmem:[%s354 + $0x1580] sm:$0xff]
        %v2432 = vld [vmem:[%s354 + $0x1588] sm:$0xff]
        %v2433 = vld [vmem:[%s354 + $0x1590] sm:$0xff]
        %v2434 = vld [vmem:[%s354 + $0x1598] sm:$0xff]
        %v2435 = vld [vmem:[%s354 + $0x15a0] sm:$0xff]
        %v2436 = vld [vmem:[%s354 + $0x15a8] sm:$0xff]
        %v2437 = vld [vmem:[%s354 + $0x15b0] sm:$0xff]
        %v2438 = vld [vmem:[%s354 + $0x15b8] sm:$0xff]
        %v2439 = vld [vmem:[%s354 + $0x15c0] sm:$0xff]
        %v2440 = vld [vmem:[%s354 + $0x15c8] sm:$0xff]
        %v2441 = vld [vmem:[%s354 + $0x15d0] sm:$0xff]
        %v2442 = vld [vmem:[%s354 + $0x15d8] sm:$0xff]
        %v2443 = vld [vmem:[%s354 + $0x15e0] sm:$0xff]
        %v2444 = vld [vmem:[%s354 + $0x15e8] sm:$0xff]
        %v2445 = vld [vmem:[%s354 + $0x15f0] sm:$0xff]
        %v2446 = vld [vmem:[%s354 + $0x15f8] sm:$0xff]
        %v2447 = vld [vmem:[%s354 + $0x1600] sm:$0xff]
        %v2448 = vld [vmem:[%s354 + $0x1608] sm:$0xff]
        %v2449 = vld [vmem:[%s354 + $0x1610] sm:$0xff]
        %v2450 = vld [vmem:[%s354 + $0x1618] sm:$0xff]
        %v2451 = vld [vmem:[%s354 + $0x1620] sm:$0xff]
        %v2452 = vld [vmem:[%s354 + $0x1628] sm:$0xff]
        %v2453 = vld [vmem:[%s354 + $0x1630] sm:$0xff]
        %v2454 = vld [vmem:[%s354 + $0x1638] sm:$0xff]
        %v2455 = vld [vmem:[%s354 + $0x1640] sm:$0xff]
        %v2456 = vld [vmem:[%s354 + $0x1648] sm:$0xff]
        %v2457 = vld [vmem:[%s354 + $0x1650] sm:$0xff]
        %v2458 = vld [vmem:[%s354 + $0x1658] sm:$0xff]
        %v2459 = vld [vmem:[%s354 + $0x1660] sm:$0xff]
        %v2460 = vld [vmem:[%s354 + $0x1668] sm:$0xff]
        %v2461 = vld [vmem:[%s354 + $0x1670] sm:$0xff]
        %v2462 = vld [vmem:[%s354 + $0x1678] sm:$0xff]
        %v2463 = vld [vmem:[%s354 + $0x1680] sm:$0xff]
        %v2464 = vld [vmem:[%s354 + $0x1688] sm:$0xff]
        %v2465 = vld [vmem:[%s354 + $0x1690] sm:$0xff]
        %v2466 = vld [vmem:[%s354 + $0x1698] sm:$0xff]
        %v2467 = vld [vmem:[%s354 + $0x16a0] sm:$0xff]
        %v2468 = vld [vmem:[%s354 + $0x16a8] sm:$0xff]
        %v2469 = vld [vmem:[%s354 + $0x16b0] sm:$0xff]
        %v2470 = vld [vmem:[%s354 + $0x16b8] sm:$0xff]
        %v2471 = vld [vmem:[%s354 + $0x16c0] sm:$0xff]
        %v2472 = vld [vmem:[%s354 + $0x16c8] sm:$0xff]
        %v2473 = vld [vmem:[%s354 + $0x16d0] sm:$0xff]
        %v2474 = vld [vmem:[%s354 + $0x16d8] sm:$0xff]
        %v2475 = vld [vmem:[%s354 + $0x16e0] sm:$0xff]
        %v2476 = vld [vmem:[%s354 + $0x16e8] sm:$0xff]
        %v2477 = vld [vmem:[%s354 + $0x16f0] sm:$0xff]
        %v2478 = vld [vmem:[%s354 + $0x16f8] sm:$0xff]
        %v2479 = vld [vmem:[%s354 + $0x1700] sm:$0xff]
        %v2480 = vld [vmem:[%s354 + $0x1708] sm:$0xff]
        %v2481 = vld [vmem:[%s354 + $0x1710] sm:$0xff]
        %v2482 = vld [vmem:[%s354 + $0x1718] sm:$0xff]
        %v2483 = vld [vmem:[%s354 + $0x1720] sm:$0xff]
        %v2484 = vld [vmem:[%s354 + $0x1728] sm:$0xff]
        %v2485 = vld [vmem:[%s354 + $0x1730] sm:$0xff]
        %v2486 = vld [vmem:[%s354 + $0x1738] sm:$0xff]
        %v2487 = vld [vmem:[%s354 + $0x1740] sm:$0xff]
        %v2488 = vld [vmem:[%s354 + $0x1748] sm:$0xff]
        %v2489 = vld [vmem:[%s354 + $0x1750] sm:$0xff]
        %v2490 = vld [vmem:[%s354 + $0x1758] sm:$0xff]
        %v2491 = vld [vmem:[%s354 + $0x1760] sm:$0xff]
        %v2492 = vld [vmem:[%s354 + $0x1768] sm:$0xff]
        %v2493 = vld [vmem:[%s354 + $0x1770] sm:$0xff]
        %v2494 = vld [vmem:[%s354 + $0x1778] sm:$0xff]
        %v2495 = vld [vmem:[%s354 + $0x1780] sm:$0xff]
        %v2496 = vld [vmem:[%s354 + $0x1788] sm:$0xff]
        %v2497 = vld [vmem:[%s354 + $0x1790] sm:$0xff]
        %v2498 = vld [vmem:[%s354 + $0x1798] sm:$0xff]
        %v2499 = vld [vmem:[%s354 + $0x17a0] sm:$0xff]
        %v2500 = vld [vmem:[%s354 + $0x17a8] sm:$0xff]
        %v2501 = vld [vmem:[%s354 + $0x17b0] sm:$0xff]
        %v2502 = vld [vmem:[%s354 + $0x17b8] sm:$0xff]
        %v2503 = vld [vmem:[%s354 + $0x17c0] sm:$0xff]
        %v2504 = vld [vmem:[%s354 + $0x17c8] sm:$0xff]
        %v2505 = vld [vmem:[%s354 + $0x17d0] sm:$0xff]
        %v2506 = vld [vmem:[%s354 + $0x17d8] sm:$0xff]
        %v2507 = vld [vmem:[%s354 + $0x17e0] sm:$0xff]
        %v2508 = vld [vmem:[%s354 + $0x17e8] sm:$0xff]
        %v2509 = vld [vmem:[%s354 + $0x17f0] sm:$0xff]
        %v2510 = vld [vmem:[%s354 + $0x17f8] sm:$0xff]
        %v2511 = vld [vmem:[%s354 + $0x1800] sm:$0xff]
        %v2512 = vld [vmem:[%s354 + $0x1808] sm:$0xff]
        %v2513 = vld [vmem:[%s354 + $0x1810] sm:$0xff]
        %v2514 = vld [vmem:[%s354 + $0x1818] sm:$0xff]
        %v2515 = vld [vmem:[%s354 + $0x1820] sm:$0xff]
        %v2516 = vld [vmem:[%s354 + $0x1828] sm:$0xff]
        %v2517 = vld [vmem:[%s354 + $0x1830] sm:$0xff]
        %v2518 = vld [vmem:[%s354 + $0x1838] sm:$0xff]
        %v2519 = vld [vmem:[%s354 + $0x1840] sm:$0xff]
        %v2520 = vld [vmem:[%s354 + $0x1848] sm:$0xff]
        %v2521 = vld [vmem:[%s354 + $0x1850] sm:$0xff]
        %v2522 = vld [vmem:[%s354 + $0x1858] sm:$0xff]
        %v2523 = vld [vmem:[%s354 + $0x1860] sm:$0xff]
        %v2524 = vld [vmem:[%s354 + $0x1868] sm:$0xff]
        %v2525 = vld [vmem:[%s354 + $0x1870] sm:$0xff]
        %v2526 = vld [vmem:[%s354 + $0x1878] sm:$0xff]
        %v2527 = vld [vmem:[%s354 + $0x1880] sm:$0xff]
        %v2528 = vld [vmem:[%s354 + $0x1888] sm:$0xff]
        %v2529 = vld [vmem:[%s354 + $0x1890] sm:$0xff]
        %v2530 = vld [vmem:[%s354 + $0x1898] sm:$0xff]
        %v2531 = vld [vmem:[%s354 + $0x18a0] sm:$0xff]
        %v2532 = vld [vmem:[%s354 + $0x18a8] sm:$0xff]
        %v2533 = vld [vmem:[%s354 + $0x18b0] sm:$0xff]
        %v2534 = vld [vmem:[%s354 + $0x18b8] sm:$0xff]
        %v2535 = vld [vmem:[%s354 + $0x18c0] sm:$0xff]
        %v2536 = vld [vmem:[%s354 + $0x18c8] sm:$0xff]
        %v2537 = vld [vmem:[%s354 + $0x18d0] sm:$0xff]
        %v2538 = vld [vmem:[%s354 + $0x18d8] sm:$0xff]
        %v2539 = vld [vmem:[%s354 + $0x18e0] sm:$0xff]
        %v2540 = vld [vmem:[%s354 + $0x18e8] sm:$0xff]
        %v2541 = vld [vmem:[%s354 + $0x18f0] sm:$0xff]
        %v2542 = vld [vmem:[%s354 + $0x18f8] sm:$0xff]
        %v2543 = vld [vmem:[%s354 + $0x1900] sm:$0xff]
        %v2544 = vld [vmem:[%s354 + $0x1908] sm:$0xff]
        %v2545 = vld [vmem:[%s354 + $0x1910] sm:$0xff]
        %v2546 = vld [vmem:[%s354 + $0x1918] sm:$0xff]
        %v2547 = vld [vmem:[%s354 + $0x1920] sm:$0xff]
        %v2548 = vld [vmem:[%s354 + $0x1928] sm:$0xff]
        %v2549 = vld [vmem:[%s354 + $0x1930] sm:$0xff]
        %v2550 = vld [vmem:[%s354 + $0x1938] sm:$0xff]
        %v2551 = vld [vmem:[%s354 + $0x1940] sm:$0xff]
        %v2552 = vld [vmem:[%s354 + $0x1948] sm:$0xff]
        %v2553 = vld [vmem:[%s354 + $0x1950] sm:$0xff]
        %v2554 = vld [vmem:[%s354 + $0x1958] sm:$0xff]
        %v2555 = vld [vmem:[%s354 + $0x1960] sm:$0xff]
        %v2556 = vld [vmem:[%s354 + $0x1968] sm:$0xff]
        %v2557 = vld [vmem:[%s354 + $0x1970] sm:$0xff]
        %v2558 = vld [vmem:[%s354 + $0x1978] sm:$0xff]
        %v2559 = vld [vmem:[%s354 + $0x1980] sm:$0xff]
        %v2560 = vld [vmem:[%s354 + $0x1988] sm:$0xff]
        %v2561 = vld [vmem:[%s354 + $0x1990] sm:$0xff]
        %v2562 = vld [vmem:[%s354 + $0x1998] sm:$0xff]
        %v2563 = vld [vmem:[%s354 + $0x19a0] sm:$0xff]
        %v2564 = vld [vmem:[%s354 + $0x19a8] sm:$0xff]
        %v2565 = vld [vmem:[%s354 + $0x19b0] sm:$0xff]
        %v2566 = vld [vmem:[%s354 + $0x19b8] sm:$0xff]
        %v2567 = vld [vmem:[%s354 + $0x19c0] sm:$0xff]
        %v2568 = vld [vmem:[%s354 + $0x19c8] sm:$0xff]
        %v2569 = vld [vmem:[%s354 + $0x19d0] sm:$0xff]
        %v2570 = vld [vmem:[%s354 + $0x19d8] sm:$0xff]
        %v2571 = vld [vmem:[%s354 + $0x19e0] sm:$0xff]
        %v2572 = vld [vmem:[%s354 + $0x19e8] sm:$0xff]
        %v2573 = vld [vmem:[%s354 + $0x19f0] sm:$0xff]
        %v2574 = vld [vmem:[%s354 + $0x19f8] sm:$0xff]
        %v2575 = vld [vmem:[%s354 + $0x1a00] sm:$0xff]
        %v2576 = vld [vmem:[%s354 + $0x1a08] sm:$0xff]
        %v2577 = vld [vmem:[%s354 + $0x1a10] sm:$0xff]
        %v2578 = vld [vmem:[%s354 + $0x1a18] sm:$0xff]
        %v2579 = vld [vmem:[%s354 + $0x1a20] sm:$0xff]
        %v2580 = vld [vmem:[%s354 + $0x1a28] sm:$0xff]
        %v2581 = vld [vmem:[%s354 + $0x1a30] sm:$0xff]
        %v2582 = vld [vmem:[%s354 + $0x1a38] sm:$0xff]
        %v2583 = vld [vmem:[%s354 + $0x1a40] sm:$0xff]
        %v2584 = vld [vmem:[%s354 + $0x1a48] sm:$0xff]
        %v2585 = vld [vmem:[%s354 + $0x1a50] sm:$0xff]
        %v2586 = vld [vmem:[%s354 + $0x1a58] sm:$0xff]
        %v2587 = vld [vmem:[%s354 + $0x1a60] sm:$0xff]
        %v2588 = vld [vmem:[%s354 + $0x1a68] sm:$0xff]
        %v2589 = vld [vmem:[%s354 + $0x1a70] sm:$0xff]
        %v2590 = vld [vmem:[%s354 + $0x1a78] sm:$0xff]
        %v2591 = vld [vmem:[%s354 + $0x1a80] sm:$0xff]
        %v2592 = vld [vmem:[%s354 + $0x1a88] sm:$0xff]
        %v2593 = vld [vmem:[%s354 + $0x1a90] sm:$0xff]
        %v2594 = vld [vmem:[%s354 + $0x1a98] sm:$0xff]
        %v2595 = vld [vmem:[%s354 + $0x1aa0] sm:$0xff]
        %v2596 = vld [vmem:[%s354 + $0x1aa8] sm:$0xff]
        %v2597 = vld [vmem:[%s354 + $0x1ab0] sm:$0xff]
        %v2598 = vld [vmem:[%s354 + $0x1ab8] sm:$0xff]
        %v2599 = vld [vmem:[%s354 + $0x1ac0] sm:$0xff]
        %v2600 = vld [vmem:[%s354 + $0x1ac8] sm:$0xff]
        %v2601 = vld [vmem:[%s354 + $0x1ad0] sm:$0xff]
        %v2602 = vld [vmem:[%s354 + $0x1ad8] sm:$0xff]
        %v2603 = vld [vmem:[%s354 + $0x1ae0] sm:$0xff]
        %v2604 = vld [vmem:[%s354 + $0x1ae8] sm:$0xff]
        %v2605 = vld [vmem:[%s354 + $0x1af0] sm:$0xff]
        %v2606 = vld [vmem:[%s354 + $0x1af8] sm:$0xff]
        %v2607 = vld [vmem:[%s354 + $0x1b00] sm:$0xff]
        %v2608 = vld [vmem:[%s354 + $0x1b08] sm:$0xff]
        %v2609 = vld [vmem:[%s354 + $0x1b10] sm:$0xff]
        %v2610 = vld [vmem:[%s354 + $0x1b18] sm:$0xff]
        %v2611 = vld [vmem:[%s354 + $0x1b20] sm:$0xff]
        %v2612 = vld [vmem:[%s354 + $0x1b28] sm:$0xff]
        %v2613 = vld [vmem:[%s354 + $0x1b30] sm:$0xff]
        %v2614 = vld [vmem:[%s354 + $0x1b38] sm:$0xff]
        %v2615 = vld [vmem:[%s354 + $0x1b40] sm:$0xff]
        %v2616 = vld [vmem:[%s354 + $0x1b48] sm:$0xff]
        %v2617 = vld [vmem:[%s354 + $0x1b50] sm:$0xff]
        %v2618 = vld [vmem:[%s354 + $0x1b58] sm:$0xff]
        %v2619 = vld [vmem:[%s354 + $0x1b60] sm:$0xff]
        %v2620 = vld [vmem:[%s354 + $0x1b68] sm:$0xff]
        %v2621 = vld [vmem:[%s354 + $0x1b70] sm:$0xff]
        %v2622 = vld [vmem:[%s354 + $0x1b78] sm:$0xff]
        %v2623 = vld [vmem:[%s354 + $0x1b80] sm:$0xff]
        %v2624 = vld [vmem:[%s354 + $0x1b88] sm:$0xff]
        %v2625 = vld [vmem:[%s354 + $0x1b90] sm:$0xff]
        %v2626 = vld [vmem:[%s354 + $0x1b98] sm:$0xff]
        %v2627 = vld [vmem:[%s354 + $0x1ba0] sm:$0xff]
        %v2628 = vld [vmem:[%s354 + $0x1ba8] sm:$0xff]
        %v2629 = vld [vmem:[%s354 + $0x1bb0] sm:$0xff]
        %v2630 = vld [vmem:[%s354 + $0x1bb8] sm:$0xff]
        %v2631 = vld [vmem:[%s354 + $0x1bc0] sm:$0xff]
        %v2632 = vld [vmem:[%s354 + $0x1bc8] sm:$0xff]
        %v2633 = vld [vmem:[%s354 + $0x1bd0] sm:$0xff]
        %v2634 = vld [vmem:[%s354 + $0x1bd8] sm:$0xff]
        %v2635 = vld [vmem:[%s354 + $0x1be0] sm:$0xff]
        %v2636 = vld [vmem:[%s354 + $0x1be8] sm:$0xff]
        %v2637 = vld [vmem:[%s354 + $0x1bf0] sm:$0xff]
        %v2638 = vld [vmem:[%s354 + $0x1bf8] sm:$0xff]
        %v2639 = vld [vmem:[%s354 + $0x1c00] sm:$0xff]
        %v2640 = vld [vmem:[%s354 + $0x1c08] sm:$0xff]
        %v2641 = vld [vmem:[%s354 + $0x1c10] sm:$0xff]
        %v2642 = vld [vmem:[%s354 + $0x1c18] sm:$0xff]
        %v2643 = vld [vmem:[%s354 + $0x1c20] sm:$0xff]
        %v2644 = vld [vmem:[%s354 + $0x1c28] sm:$0xff]
        %v2645 = vld [vmem:[%s354 + $0x1c30] sm:$0xff]
        %v2646 = vld [vmem:[%s354 + $0x1c38] sm:$0xff]
        %v2647 = vld [vmem:[%s354 + $0x1c40] sm:$0xff]
        %v2648 = vld [vmem:[%s354 + $0x1c48] sm:$0xff]
        %v2649 = vld [vmem:[%s354 + $0x1c50] sm:$0xff]
        %v2650 = vld [vmem:[%s354 + $0x1c58] sm:$0xff]
        %v2651 = vld [vmem:[%s354 + $0x1c60] sm:$0xff]
        %v2652 = vld [vmem:[%s354 + $0x1c68] sm:$0xff]
        %v2653 = vld [vmem:[%s354 + $0x1c70] sm:$0xff]
        %v2654 = vld [vmem:[%s354 + $0x1c78] sm:$0xff]
        %v2655 = vld [vmem:[%s354 + $0x1c80] sm:$0xff]
        %v2656 = vld [vmem:[%s354 + $0x1c88] sm:$0xff]
        %v2657 = vld [vmem:[%s354 + $0x1c90] sm:$0xff]
        %v2658 = vld [vmem:[%s354 + $0x1c98] sm:$0xff]
        %v2659 = vld [vmem:[%s354 + $0x1ca0] sm:$0xff]
        %v2660 = vld [vmem:[%s354 + $0x1ca8] sm:$0xff]
        %v2661 = vld [vmem:[%s354 + $0x1cb0] sm:$0xff]
        %v2662 = vld [vmem:[%s354 + $0x1cb8] sm:$0xff]
        %v2663 = vld [vmem:[%s354 + $0x1cc0] sm:$0xff]
        %v2664 = vld [vmem:[%s354 + $0x1cc8] sm:$0xff]
        %v2665 = vld [vmem:[%s354 + $0x1cd0] sm:$0xff]
        %v2666 = vld [vmem:[%s354 + $0x1cd8] sm:$0xff]
        %v2667 = vld [vmem:[%s354 + $0x1ce0] sm:$0xff]
        %v2668 = vld [vmem:[%s354 + $0x1ce8] sm:$0xff]
        %v2669 = vld [vmem:[%s354 + $0x1cf0] sm:$0xff]
        %v2670 = vld [vmem:[%s354 + $0x1cf8] sm:$0xff]
        %v2671 = vld [vmem:[%s354 + $0x1d00] sm:$0xff]
        %v2672 = vld [vmem:[%s354 + $0x1d08] sm:$0xff]
        %v2673 = vld [vmem:[%s354 + $0x1d10] sm:$0xff]
        %v2674 = vld [vmem:[%s354 + $0x1d18] sm:$0xff]
        %v2675 = vld [vmem:[%s354 + $0x1d20] sm:$0xff]
        %v2676 = vld [vmem:[%s354 + $0x1d28] sm:$0xff]
        %v2677 = vld [vmem:[%s354 + $0x1d30] sm:$0xff]
        %v2678 = vld [vmem:[%s354 + $0x1d38] sm:$0xff]
        %v2679 = vld [vmem:[%s354 + $0x1d40] sm:$0xff]
        %v2680 = vld [vmem:[%s354 + $0x1d48] sm:$0xff]
        %v2681 = vld [vmem:[%s354 + $0x1d50] sm:$0xff]
        %v2682 = vld [vmem:[%s354 + $0x1d58] sm:$0xff]
        %v2683 = vld [vmem:[%s354 + $0x1d60] sm:$0xff]
        %v2684 = vld [vmem:[%s354 + $0x1d68] sm:$0xff]
        %v2685 = vld [vmem:[%s354 + $0x1d70] sm:$0xff]
        %v2686 = vld [vmem:[%s354 + $0x1d78] sm:$0xff]
        %v2687 = vld [vmem:[%s354 + $0x1d80] sm:$0xff]
        %v2688 = vld [vmem:[%s354 + $0x1d88] sm:$0xff]
        %v2689 = vld [vmem:[%s354 + $0x1d90] sm:$0xff]
        %v2690 = vld [vmem:[%s354 + $0x1d98] sm:$0xff]
        %v2691 = vld [vmem:[%s354 + $0x1da0] sm:$0xff]
        %v2692 = vld [vmem:[%s354 + $0x1da8] sm:$0xff]
        %v2693 = vld [vmem:[%s354 + $0x1db0] sm:$0xff]
        %v2694 = vld [vmem:[%s354 + $0x1db8] sm:$0xff]
        %v2695 = vld [vmem:[%s354 + $0x1dc0] sm:$0xff]
        %v2696 = vld [vmem:[%s354 + $0x1dc8] sm:$0xff]
        %v2697 = vld [vmem:[%s354 + $0x1dd0] sm:$0xff]
        %v2698 = vld [vmem:[%s354 + $0x1dd8] sm:$0xff]
        %v2699 = vld [vmem:[%s354 + $0x1de0] sm:$0xff]
        %v2700 = vld [vmem:[%s354 + $0x1de8] sm:$0xff]
        %v2701 = vld [vmem:[%s354 + $0x1df0] sm:$0xff]
        %v2702 = vld [vmem:[%s354 + $0x1df8] sm:$0xff]
        %v2703 = vld [vmem:[%s354 + $0x1e00] sm:$0xff]
        %v2704 = vld [vmem:[%s354 + $0x1e08] sm:$0xff]
        %v2705 = vld [vmem:[%s354 + $0x1e10] sm:$0xff]
        %v2706 = vld [vmem:[%s354 + $0x1e18] sm:$0xff]
        %v2707 = vld [vmem:[%s354 + $0x1e20] sm:$0xff]
        %v2708 = vld [vmem:[%s354 + $0x1e28] sm:$0xff]
        %v2709 = vld [vmem:[%s354 + $0x1e30] sm:$0xff]
        %v2710 = vld [vmem:[%s354 + $0x1e38] sm:$0xff]
        %v2711 = vld [vmem:[%s354 + $0x1e40] sm:$0xff]
        %v2712 = vld [vmem:[%s354 + $0x1e48] sm:$0xff]
        %v2713 = vld [vmem:[%s354 + $0x1e50] sm:$0xff]
        %v2714 = vld [vmem:[%s354 + $0x1e58] sm:$0xff]
        %v2715 = vld [vmem:[%s354 + $0x1e60] sm:$0xff]
        %v2716 = vld [vmem:[%s354 + $0x1e68] sm:$0xff]
        %v2717 = vld [vmem:[%s354 + $0x1e70] sm:$0xff]
        %v2718 = vld [vmem:[%s354 + $0x1e78] sm:$0xff]
        %v2719 = vld [vmem:[%s354 + $0x1e80] sm:$0xff]
        %v2720 = vld [vmem:[%s354 + $0x1e88] sm:$0xff]
        %v2721 = vld [vmem:[%s354 + $0x1e90] sm:$0xff]
        %v2722 = vld [vmem:[%s354 + $0x1e98] sm:$0xff]
        %v2723 = vld [vmem:[%s354 + $0x1ea0] sm:$0xff]
        %v2724 = vld [vmem:[%s354 + $0x1ea8] sm:$0xff]
        %v2725 = vld [vmem:[%s354 + $0x1eb0] sm:$0xff]
        %v2726 = vld [vmem:[%s354 + $0x1eb8] sm:$0xff]
        %v2727 = vld [vmem:[%s354 + $0x1ec0] sm:$0xff]
        %v2728 = vld [vmem:[%s354 + $0x1ec8] sm:$0xff]
        %v2729 = vld [vmem:[%s354 + $0x1ed0] sm:$0xff]
        %v2730 = vld [vmem:[%s354 + $0x1ed8] sm:$0xff]
        %v2731 = vld [vmem:[%s354 + $0x1ee0] sm:$0xff]
        %v2732 = vld [vmem:[%s354 + $0x1ee8] sm:$0xff]
        %v2733 = vld [vmem:[%s354 + $0x1ef0] sm:$0xff]
        %v2734 = vld [vmem:[%s354 + $0x1ef8] sm:$0xff]
        %v2735 = vld [vmem:[%s354 + $0x1f00] sm:$0xff]
        %v2736 = vld [vmem:[%s354 + $0x1f08] sm:$0xff]
        %v2737 = vld [vmem:[%s354 + $0x1f10] sm:$0xff]
        %v2738 = vld [vmem:[%s354 + $0x1f18] sm:$0xff]
        %v2739 = vld [vmem:[%s354 + $0x1f20] sm:$0xff]
        %v2740 = vld [vmem:[%s354 + $0x1f28] sm:$0xff]
        %v2741 = vld [vmem:[%s354 + $0x1f30] sm:$0xff]
        %v2742 = vld [vmem:[%s354 + $0x1f38] sm:$0xff]
        %v2743 = vld [vmem:[%s354 + $0x1f40] sm:$0xff]
        %v2744 = vld [vmem:[%s354 + $0x1f48] sm:$0xff]
        %v2745 = vld [vmem:[%s354 + $0x1f50] sm:$0xff]
        %v2746 = vld [vmem:[%s354 + $0x1f58] sm:$0xff]
        %v2747 = vld [vmem:[%s354 + $0x1f60] sm:$0xff]
        %v2748 = vld [vmem:[%s354 + $0x1f68] sm:$0xff]
        %v2749 = vld [vmem:[%s354 + $0x1f70] sm:$0xff]
        %v2750 = vld [vmem:[%s354 + $0x1f78] sm:$0xff]
        %v2751 = vld [vmem:[%s354 + $0x1f80] sm:$0xff]
        %v2752 = vld [vmem:[%s354 + $0x1f88] sm:$0xff]
        %v2753 = vld [vmem:[%s354 + $0x1f90] sm:$0xff]
        %v2754 = vld [vmem:[%s354 + $0x1f98] sm:$0xff]
        %v2755 = vld [vmem:[%s354 + $0x1fa0] sm:$0xff]
        %v2756 = vld [vmem:[%s354 + $0x1fa8] sm:$0xff]
        %v2757 = vld [vmem:[%s354 + $0x1fb0] sm:$0xff]
        %v2758 = vld [vmem:[%s354 + $0x1fb8] sm:$0xff]
        %v2759 = vld [vmem:[%s354 + $0x1fc0] sm:$0xff]
        %v2760 = vld [vmem:[%s354 + $0x1fc8] sm:$0xff]
        %v2761 = vld [vmem:[%s354 + $0x1fd0] sm:$0xff]
        %v2762 = vld [vmem:[%s354 + $0x1fd8] sm:$0xff]
        %v2763 = vld [vmem:[%s354 + $0x1fe0] sm:$0xff]
        %v2764 = vld [vmem:[%s354 + $0x1fe8] sm:$0xff]
        %v2765 = vld [vmem:[%s354 + $0x1ff0] sm:$0xff]
        %v2766 = vld [vmem:[%s354 + $0x1ff8] sm:$0xff]
        %v2767 = vld [vmem:[%s354 + $0x2000] sm:$0xff]
        %v2768 = vld [vmem:[%s354 + $0x2008] sm:$0xff]
        %v2769 = vld [vmem:[%s354 + $0x2010] sm:$0xff]
        %v2770 = vld [vmem:[%s354 + $0x2018] sm:$0xff]
        %v2771 = vld [vmem:[%s354 + $0x2020] sm:$0xff]
        %v2772 = vld [vmem:[%s354 + $0x2028] sm:$0xff]
        %v2773 = vld [vmem:[%s354 + $0x2030] sm:$0xff]
        %v2774 = vld [vmem:[%s354 + $0x2038] sm:$0xff]
        %v2775 = vld [vmem:[%s354 + $0x2040] sm:$0xff]
        %v2776 = vld [vmem:[%s354 + $0x2048] sm:$0xff]
        %v2777 = vld [vmem:[%s354 + $0x2050] sm:$0xff]
        %v2778 = vld [vmem:[%s354 + $0x2058] sm:$0xff]
        %v2779 = vld [vmem:[%s354 + $0x2060] sm:$0xff]
        %v2780 = vld [vmem:[%s354 + $0x2068] sm:$0xff]
        %v2781 = vld [vmem:[%s354 + $0x2070] sm:$0xff]
        %v2782 = vld [vmem:[%s354 + $0x2078] sm:$0xff]
        %v2783 = vld [vmem:[%s354 + $0x2080] sm:$0xff]
        %v2784 = vld [vmem:[%s354 + $0x2088] sm:$0xff]
        %v2785 = vld [vmem:[%s354 + $0x2090] sm:$0xff]
        %v2786 = vld [vmem:[%s354 + $0x2098] sm:$0xff]
        %v2787 = vld [vmem:[%s354 + $0x20a0] sm:$0xff]
        %v2788 = vld [vmem:[%s354 + $0x20a8] sm:$0xff]
        %v2789 = vld [vmem:[%s354 + $0x20b0] sm:$0xff]
        %v2790 = vld [vmem:[%s354 + $0x20b8] sm:$0xff]
        %v2791 = vld [vmem:[%s354 + $0x20c0] sm:$0xff]
        %v2792 = vld [vmem:[%s354 + $0x20c8] sm:$0xff]
        %v2793 = vld [vmem:[%s354 + $0x20d0] sm:$0xff]
        %v2794 = vld [vmem:[%s354 + $0x20d8] sm:$0xff]
        %v2795 = vld [vmem:[%s354 + $0x20e0] sm:$0xff]
        %v2796 = vld [vmem:[%s354 + $0x20e8] sm:$0xff]
        %v2797 = vld [vmem:[%s354 + $0x20f0] sm:$0xff]
        %v2798 = vld [vmem:[%s354 + $0x20f8] sm:$0xff]
        %v2799 = vld [vmem:[%s354 + $0x2100] sm:$0xff]
        %v2800 = vld [vmem:[%s354 + $0x2108] sm:$0xff]
        %v2801 = vld [vmem:[%s354 + $0x2110] sm:$0xff]
        %v2802 = vld [vmem:[%s354 + $0x2118] sm:$0xff]
        %v2803 = vld [vmem:[%s354 + $0x2120] sm:$0xff]
        %v2804 = vld [vmem:[%s354 + $0x2128] sm:$0xff]
        %v2805 = vld [vmem:[%s354 + $0x2130] sm:$0xff]
        %v2806 = vld [vmem:[%s354 + $0x2138] sm:$0xff]
        %v2807 = vld [vmem:[%s354 + $0x2140] sm:$0xff]
        %v2808 = vld [vmem:[%s354 + $0x2148] sm:$0xff]
        %v2809 = vld [vmem:[%s354 + $0x2150] sm:$0xff]
        %v2810 = vld [vmem:[%s354 + $0x2158] sm:$0xff]
        %v2811 = vld [vmem:[%s354 + $0x2160] sm:$0xff]
        %v2812 = vld [vmem:[%s354 + $0x2168] sm:$0xff]
        %v2813 = vld [vmem:[%s354 + $0x2170] sm:$0xff]
        %v2814 = vld [vmem:[%s354 + $0x2178] sm:$0xff]
        %v2815 = vld [vmem:[%s354 + $0x2180] sm:$0xff]
        %v2816 = vld [vmem:[%s354 + $0x2188] sm:$0xff]
        %v2817 = vld [vmem:[%s354 + $0x2190] sm:$0xff]
        %v2818 = vld [vmem:[%s354 + $0x2198] sm:$0xff]
        %v2819 = vld [vmem:[%s354 + $0x21a0] sm:$0xff]
        %v2820 = vld [vmem:[%s354 + $0x21a8] sm:$0xff]
        %v2821 = vld [vmem:[%s354 + $0x21b0] sm:$0xff]
        %v2822 = vld [vmem:[%s354 + $0x21b8] sm:$0xff]
        %v2823 = vld [vmem:[%s354 + $0x21c0] sm:$0xff]
        %v2824 = vld [vmem:[%s354 + $0x21c8] sm:$0xff]
        %v2825 = vld [vmem:[%s354 + $0x21d0] sm:$0xff]
        %v2826 = vld [vmem:[%s354 + $0x21d8] sm:$0xff]
        %v2827 = vld [vmem:[%s354 + $0x21e0] sm:$0xff]
        %v2828 = vld [vmem:[%s354 + $0x21e8] sm:$0xff]
        %v2829 = vld [vmem:[%s354 + $0x21f0] sm:$0xff]
        %v2830 = vld [vmem:[%s354 + $0x21f8] sm:$0xff]
        %v2831 = vld [vmem:[%s354 + $0x2200] sm:$0xff]
        %v2832 = vld [vmem:[%s354 + $0x2208] sm:$0xff]
        %v2833 = vld [vmem:[%s354 + $0x2210] sm:$0xff]
        %v2834 = vld [vmem:[%s354 + $0x2218] sm:$0xff]
        %v2835 = vld [vmem:[%s354 + $0x2220] sm:$0xff]
        %v2836 = vld [vmem:[%s354 + $0x2228] sm:$0xff]
        %v2837 = vld [vmem:[%s354 + $0x2230] sm:$0xff]
        %v2838 = vld [vmem:[%s354 + $0x2238] sm:$0xff]
        %v2839 = vld [vmem:[%s354 + $0x2240] sm:$0xff]
        %v2840 = vld [vmem:[%s354 + $0x2248] sm:$0xff]
        %v2841 = vld [vmem:[%s354 + $0x2250] sm:$0xff]
        %v2842 = vld [vmem:[%s354 + $0x2258] sm:$0xff]
        %v2843 = vld [vmem:[%s354 + $0x2260] sm:$0xff]
        %v2844 = vld [vmem:[%s354 + $0x2268] sm:$0xff]
        %v2845 = vld [vmem:[%s354 + $0x2270] sm:$0xff]
        %v2846 = vld [vmem:[%s354 + $0x2278] sm:$0xff]
        %v2847 = vld [vmem:[%s354 + $0x2280] sm:$0xff]
        %v2848 = vld [vmem:[%s354 + $0x2288] sm:$0xff]
        %v2849 = vld [vmem:[%s354 + $0x2290] sm:$0xff]
        %v2850 = vld [vmem:[%s354 + $0x2298] sm:$0xff]
        %v2851 = vld [vmem:[%s354 + $0x22a0] sm:$0xff]
        %v2852 = vld [vmem:[%s354 + $0x22a8] sm:$0xff]
        %v2853 = vld [vmem:[%s354 + $0x22b0] sm:$0xff]
        %v2854 = vld [vmem:[%s354 + $0x22b8] sm:$0xff]
        %v2855 = vld [vmem:[%s354 + $0x22c0] sm:$0xff]
        %v2856 = vld [vmem:[%s354 + $0x22c8] sm:$0xff]
        %v2857 = vld [vmem:[%s354 + $0x22d0] sm:$0xff]
        %v2858 = vld [vmem:[%s354 + $0x22d8] sm:$0xff]
        %v2859 = vld [vmem:[%s354 + $0x22e0] sm:$0xff]
        %v2860 = vld [vmem:[%s354 + $0x22e8] sm:$0xff]
        %v2861 = vld [vmem:[%s354 + $0x22f0] sm:$0xff]
        %v2862 = vld [vmem:[%s354 + $0x22f8] sm:$0xff]
        %v2863 = vld [vmem:[%s354 + $0x2300] sm:$0xff]
        %v2864 = vld [vmem:[%s354 + $0x2308] sm:$0xff]
        %v2865 = vld [vmem:[%s354 + $0x2310] sm:$0xff]
        %v2866 = vld [vmem:[%s354 + $0x2318] sm:$0xff]
        %v2867 = vld [vmem:[%s354 + $0x2320] sm:$0xff]
        %v2868 = vld [vmem:[%s354 + $0x2328] sm:$0xff]
        %v2869 = vld [vmem:[%s354 + $0x2330] sm:$0xff]
        %v2870 = vld [vmem:[%s354 + $0x2338] sm:$0xff]
        %v2871 = vld [vmem:[%s354 + $0x2340] sm:$0xff]
        %v2872 = vld [vmem:[%s354 + $0x2348] sm:$0xff]
        %v2873 = vld [vmem:[%s354 + $0x2350] sm:$0xff]
        %v2874 = vld [vmem:[%s354 + $0x2358] sm:$0xff]
        %v2875 = vld [vmem:[%s354 + $0x2360] sm:$0xff]
        %v2876 = vld [vmem:[%s354 + $0x2368] sm:$0xff]
        %v2877 = vld [vmem:[%s354 + $0x2370] sm:$0xff]
        %v2878 = vld [vmem:[%s354 + $0x2378] sm:$0xff]
        %v2879 = vld [vmem:[%s354 + $0x2380] sm:$0xff]
        %v2880 = vld [vmem:[%s354 + $0x2388] sm:$0xff]
        %v2881 = vld [vmem:[%s354 + $0x2390] sm:$0xff]
        %v2882 = vld [vmem:[%s354 + $0x2398] sm:$0xff]
        %v2883 = vld [vmem:[%s354 + $0x23a0] sm:$0xff]
        %v2884 = vld [vmem:[%s354 + $0x23a8] sm:$0xff]
        %v2885 = vld [vmem:[%s354 + $0x23b0] sm:$0xff]
        %v2886 = vld [vmem:[%s354 + $0x23b8] sm:$0xff]
        %v2887 = vld [vmem:[%s354 + $0x23c0] sm:$0xff]
        %v2888 = vld [vmem:[%s354 + $0x23c8] sm:$0xff]
        %v2889 = vld [vmem:[%s354 + $0x23d0] sm:$0xff]
        %v2890 = vld [vmem:[%s354 + $0x23d8] sm:$0xff]
        %v2891 = vld [vmem:[%s354 + $0x23e0] sm:$0xff]
        %v2892 = vld [vmem:[%s354 + $0x23e8] sm:$0xff]
        %v2893 = vld [vmem:[%s354 + $0x23f0] sm:$0xff]
        %v2894 = vld [vmem:[%s354 + $0x23f8] sm:$0xff]
        %v2895 = vld [vmem:[%s354 + $0x2400] sm:$0xff]
        %v2896 = vld [vmem:[%s354 + $0x2408] sm:$0xff]
        %v2897 = vld [vmem:[%s354 + $0x2410] sm:$0xff]
        %v2898 = vld [vmem:[%s354 + $0x2418] sm:$0xff]
        %v2899 = vld [vmem:[%s354 + $0x2420] sm:$0xff]
        %v2900 = vld [vmem:[%s354 + $0x2428] sm:$0xff]
        %v2901 = vld [vmem:[%s354 + $0x2430] sm:$0xff]
        %v2902 = vld [vmem:[%s354 + $0x2438] sm:$0xff]
        %v2903 = vld [vmem:[%s354 + $0x2440] sm:$0xff]
        %v2904 = vld [vmem:[%s354 + $0x2448] sm:$0xff]
        %v2905 = vld [vmem:[%s354 + $0x2450] sm:$0xff]
        %v2906 = vld [vmem:[%s354 + $0x2458] sm:$0xff]
        %v2907 = vld [vmem:[%s354 + $0x2460] sm:$0xff]
        %v2908 = vld [vmem:[%s354 + $0x2468] sm:$0xff]
        %v2909 = vld [vmem:[%s354 + $0x2470] sm:$0xff]
        %v2910 = vld [vmem:[%s354 + $0x2478] sm:$0xff]
        %v2911 = vld [vmem:[%s354 + $0x2480] sm:$0xff]
        %v2912 = vld [vmem:[%s354 + $0x2488] sm:$0xff]
        %v2913 = vld [vmem:[%s354 + $0x2490] sm:$0xff]
        %v2914 = vld [vmem:[%s354 + $0x2498] sm:$0xff]
        %v2915 = vld [vmem:[%s354 + $0x24a0] sm:$0xff]
        %v2916 = vld [vmem:[%s354 + $0x24a8] sm:$0xff]
        %v2917 = vld [vmem:[%s354 + $0x24b0] sm:$0xff]
        %v2918 = vld [vmem:[%s354 + $0x24b8] sm:$0xff]
        %v2919 = vld [vmem:[%s354 + $0x24c0] sm:$0xff]
        %v2920 = vld [vmem:[%s354 + $0x24c8] sm:$0xff]
        %v2921 = vld [vmem:[%s354 + $0x24d0] sm:$0xff]
        %v2922 = vld [vmem:[%s354 + $0x24d8] sm:$0xff]
        %v2923 = vld [vmem:[%s354 + $0x24e0] sm:$0xff]
        %v2924 = vld [vmem:[%s354 + $0x24e8] sm:$0xff]
        %v2925 = vld [vmem:[%s354 + $0x24f0] sm:$0xff]
        %v2926 = vld [vmem:[%s354 + $0x24f8] sm:$0xff]
        %v2927 = vld [vmem:[%s354 + $0x2500] sm:$0xff]
        %v2928 = vld [vmem:[%s354 + $0x2508] sm:$0xff]
        %v2929 = vld [vmem:[%s354 + $0x2510] sm:$0xff]
        %v2930 = vld [vmem:[%s354 + $0x2518] sm:$0xff]
        %v2931 = vld [vmem:[%s354 + $0x2520] sm:$0xff]
        %v2932 = vld [vmem:[%s354 + $0x2528] sm:$0xff]
        %v2933 = vld [vmem:[%s354 + $0x2530] sm:$0xff]
        %v2934 = vld [vmem:[%s354 + $0x2538] sm:$0xff]
        %v2935 = vld [vmem:[%s354 + $0x2540] sm:$0xff]
        %v2936 = vld [vmem:[%s354 + $0x2548] sm:$0xff]
        %v2937 = vld [vmem:[%s354 + $0x2550] sm:$0xff]
        %v2938 = vld [vmem:[%s354 + $0x2558] sm:$0xff]
        %v2939 = vld [vmem:[%s354 + $0x2560] sm:$0xff]
        %v2940 = vld [vmem:[%s354 + $0x2568] sm:$0xff]
        %v2941 = vld [vmem:[%s354 + $0x2570] sm:$0xff]
        %v2942 = vld [vmem:[%s354 + $0x2578] sm:$0xff]
        %v2943 = vld [vmem:[%s354 + $0x2580] sm:$0xff]
        %v2944 = vld [vmem:[%s354 + $0x2588] sm:$0xff]
        %v2945 = vld [vmem:[%s354 + $0x2590] sm:$0xff]
        %v2946 = vld [vmem:[%s354 + $0x2598] sm:$0xff]
        %v2947 = vld [vmem:[%s354 + $0x25a0] sm:$0xff]
        %v2948 = vld [vmem:[%s354 + $0x25a8] sm:$0xff]
        %v2949 = vld [vmem:[%s354 + $0x25b0] sm:$0xff]
        %v2950 = vld [vmem:[%s354 + $0x25b8] sm:$0xff]
        %v2951 = vld [vmem:[%s354 + $0x25c0] sm:$0xff]
        %v2952 = vld [vmem:[%s354 + $0x25c8] sm:$0xff]
        %v2953 = vld [vmem:[%s354 + $0x25d0] sm:$0xff]
        %v2954 = vld [vmem:[%s354 + $0x25d8] sm:$0xff]
        %v2955 = vld [vmem:[%s354 + $0x25e0] sm:$0xff]
        %v2956 = vld [vmem:[%s354 + $0x25e8] sm:$0xff]
        %v2957 = vld [vmem:[%s354 + $0x25f0] sm:$0xff]
        %v2958 = vld [vmem:[%s354 + $0x25f8] sm:$0xff]
        %v2959 = vld [vmem:[%s354 + $0x2600] sm:$0xff]
        %v2960 = vld [vmem:[%s354 + $0x2608] sm:$0xff]
        %v2961 = vld [vmem:[%s354 + $0x2610] sm:$0xff]
        %v2962 = vld [vmem:[%s354 + $0x2618] sm:$0xff]
        %v2963 = vld [vmem:[%s354 + $0x2620] sm:$0xff]
        %v2964 = vld [vmem:[%s354 + $0x2628] sm:$0xff]
        %v2965 = vld [vmem:[%s354 + $0x2630] sm:$0xff]
        %v2966 = vld [vmem:[%s354 + $0x2638] sm:$0xff]
        %v2967 = vld [vmem:[%s354 + $0x2640] sm:$0xff]
        %v2968 = vld [vmem:[%s354 + $0x2648] sm:$0xff]
        %v2969 = vld [vmem:[%s354 + $0x2650] sm:$0xff]
        %v2970 = vld [vmem:[%s354 + $0x2658] sm:$0xff]
        %v2971 = vld [vmem:[%s354 + $0x2660] sm:$0xff]
        %v2972 = vld [vmem:[%s354 + $0x2668] sm:$0xff]
        %v2973 = vld [vmem:[%s354 + $0x2670] sm:$0xff]
        %v2974 = vld [vmem:[%s354 + $0x2678] sm:$0xff]
        %v2975 = vld [vmem:[%s354 + $0x2680] sm:$0xff]
        %v2976 = vld [vmem:[%s354 + $0x2688] sm:$0xff]
        %v2977 = vld [vmem:[%s354 + $0x2690] sm:$0xff]
        %v2978 = vld [vmem:[%s354 + $0x2698] sm:$0xff]
        %v2979 = vld [vmem:[%s354 + $0x26a0] sm:$0xff]
        %v2980 = vld [vmem:[%s354 + $0x26a8] sm:$0xff]
        %v2981 = vld [vmem:[%s354 + $0x26b0] sm:$0xff]
        %v2982 = vld [vmem:[%s354 + $0x26b8] sm:$0xff]
        %v2983 = vld [vmem:[%s354 + $0x26c0] sm:$0xff]
        %v2984 = vld [vmem:[%s354 + $0x26c8] sm:$0xff]
        %v2985 = vld [vmem:[%s354 + $0x26d0] sm:$0xff]
        %v2986 = vld [vmem:[%s354 + $0x26d8] sm:$0xff]
        %v2987 = vld [vmem:[%s354 + $0x26e0] sm:$0xff]
        %v2988 = vld [vmem:[%s354 + $0x26e8] sm:$0xff]
        %v2989 = vld [vmem:[%s354 + $0x26f0] sm:$0xff]
        %v2990 = vld [vmem:[%s354 + $0x26f8] sm:$0xff]
        %v2991 = vld [vmem:[%s354 + $0x2700] sm:$0xff]
        %v2992 = vld [vmem:[%s354 + $0x2708] sm:$0xff]
        %v2993 = vld [vmem:[%s354 + $0x2710] sm:$0xff]
        %v2994 = vld [vmem:[%s354 + $0x2718] sm:$0xff]
        %v2995 = vld [vmem:[%s354 + $0x2720] sm:$0xff]
        %v2996 = vld [vmem:[%s354 + $0x2728] sm:$0xff]
        %v2997 = vld [vmem:[%s354 + $0x2730] sm:$0xff]
        %v2998 = vld [vmem:[%s354 + $0x2738] sm:$0xff]
        %v2999 = vld [vmem:[%s354 + $0x2740] sm:$0xff]
        %v3000 = vld [vmem:[%s354 + $0x2748] sm:$0xff]
        %v3001 = vld [vmem:[%s354 + $0x2750] sm:$0xff]
        %v3002 = vld [vmem:[%s354 + $0x2758] sm:$0xff]
        %v3003 = vld [vmem:[%s354 + $0x2760] sm:$0xff]
        %v3004 = vld [vmem:[%s354 + $0x2768] sm:$0xff]
        %v3005 = vld [vmem:[%s354 + $0x2770] sm:$0xff]
        %v3006 = vld [vmem:[%s354 + $0x2778] sm:$0xff]
        %v3007 = vld [vmem:[%s354 + $0x2780] sm:$0xff]
        %v3008 = vld [vmem:[%s354 + $0x2788] sm:$0xff]
        %v3009 = vld [vmem:[%s354 + $0x2790] sm:$0xff]
        %v3010 = vld [vmem:[%s354 + $0x2798] sm:$0xff]
        %v3011 = vld [vmem:[%s354 + $0x27a0] sm:$0xff]
        %v3012 = vld [vmem:[%s354 + $0x27a8] sm:$0xff]
        %v3013 = vld [vmem:[%s354 + $0x27b0] sm:$0xff]
        %v3014 = vld [vmem:[%s354 + $0x27b8] sm:$0xff]
        %v3015 = vld [vmem:[%s354 + $0x27c0] sm:$0xff]
        %v3016 = vld [vmem:[%s354 + $0x27c8] sm:$0xff]
        %v3017 = vld [vmem:[%s354 + $0x27d0] sm:$0xff]
        %v3018 = vld [vmem:[%s354 + $0x27d8] sm:$0xff]
        %v3019 = vld [vmem:[%s354 + $0x27e0] sm:$0xff]
        %v3020 = vld [vmem:[%s354 + $0x27e8] sm:$0xff]
        %v3021 = vld [vmem:[%s354 + $0x27f0] sm:$0xff]
        %v3022 = vld [vmem:[%s354 + $0x27f8] sm:$0xff]
        %v3023 = vld [vmem:[%s363] sm:$0xff]
        %v3024 = vld [vmem:[%s363 + $0x8] sm:$0xff]
        %v3025 = vld [vmem:[%s363 + $0x10] sm:$0xff]
        %v3026 = vld [vmem:[%s363 + $0x18] sm:$0xff]
        %v3027 = vld [vmem:[%s363 + $0x20] sm:$0xff]
        %v3028 = vld [vmem:[%s363 + $0x28] sm:$0xff]
        %v3029 = vld [vmem:[%s363 + $0x30] sm:$0xff]
        %v3030 = vld [vmem:[%s363 + $0x38] sm:$0xff]
        %v3031 = vld [vmem:[%s363 + $0x40] sm:$0xff]
        %v3032 = vld [vmem:[%s363 + $0x48] sm:$0xff]
        %v3043 = vlaneseq
        %v3044 = vshrl.u32 %v3043, 7
        %v3045 = vsub.s32 0, %v3044
        %v3046 = vrot.slane %v3023, %v3045
        %v3047 = vlaneseq
        %v3048 = vshrl.u32 %v3047, 7
        %v3049 = vsub.s32 1, %v3048
        %v3050 = vrot.slane %v3023, %v3049
        %v3051 = vlaneseq
        %v3052 = vshrl.u32 %v3051, 7
        %v3053 = vsub.s32 2, %v3052
        %v3054 = vrot.slane %v3023, %v3053
        %v3055 = vlaneseq
        %v3056 = vshrl.u32 %v3055, 7
        %v3057 = vsub.s32 3, %v3056
        %v3058 = vrot.slane %v3023, %v3057
        %v3059 = vlaneseq
        %v3060 = vshrl.u32 %v3059, 7
        %v3061 = vsub.s32 4, %v3060
        %v3062 = vrot.slane %v3023, %v3061
        %v3063 = vlaneseq
        %v3064 = vshrl.u32 %v3063, 7
        %v3065 = vsub.s32 5, %v3064
        %v3066 = vrot.slane %v3023, %v3065
        %v3067 = vlaneseq
        %v3068 = vshrl.u32 %v3067, 7
        %v3069 = vsub.s32 6, %v3068
        %v3070 = vrot.slane %v3023, %v3069
        %v3071 = vlaneseq
        %v3072 = vshrl.u32 %v3071, 7
        %v3073 = vsub.s32 7, %v3072
        %v3074 = vrot.slane %v3023, %v3073
        %v3075 = vlaneseq
        %v3076 = vshrl.u32 %v3075, 7
        %v3077 = vsub.s32 0, %v3076
        %v3078 = vrot.slane %v3024, %v3077
        %v3079 = vlaneseq
        %v3080 = vshrl.u32 %v3079, 7
        %v3081 = vsub.s32 1, %v3080
        %v3082 = vrot.slane %v3024, %v3081
        %v3083 = vlaneseq
        %v3084 = vshrl.u32 %v3083, 7
        %v3085 = vsub.s32 2, %v3084
        %v3086 = vrot.slane %v3024, %v3085
        %v3087 = vlaneseq
        %v3088 = vshrl.u32 %v3087, 7
        %v3089 = vsub.s32 3, %v3088
        %v3090 = vrot.slane %v3024, %v3089
        %v3091 = vlaneseq
        %v3092 = vshrl.u32 %v3091, 7
        %v3093 = vsub.s32 4, %v3092
        %v3094 = vrot.slane %v3024, %v3093
        %v3095 = vlaneseq
        %v3096 = vshrl.u32 %v3095, 7
        %v3097 = vsub.s32 5, %v3096
        %v3098 = vrot.slane %v3024, %v3097
        %v3099 = vlaneseq
        %v3100 = vshrl.u32 %v3099, 7
        %v3101 = vsub.s32 6, %v3100
        %v3102 = vrot.slane %v3024, %v3101
        %v3103 = vlaneseq
        %v3104 = vshrl.u32 %v3103, 7
        %v3105 = vsub.s32 7, %v3104
        %v3106 = vrot.slane %v3024, %v3105
        %v3107 = vlaneseq
        %v3108 = vshrl.u32 %v3107, 7
        %v3109 = vsub.s32 0, %v3108
        %v3110 = vrot.slane %v3025, %v3109
        %v3111 = vlaneseq
        %v3112 = vshrl.u32 %v3111, 7
        %v3113 = vsub.s32 1, %v3112
        %v3114 = vrot.slane %v3025, %v3113
        %v3115 = vlaneseq
        %v3116 = vshrl.u32 %v3115, 7
        %v3117 = vsub.s32 2, %v3116
        %v3118 = vrot.slane %v3025, %v3117
        %v3119 = vlaneseq
        %v3120 = vshrl.u32 %v3119, 7
        %v3121 = vsub.s32 3, %v3120
        %v3122 = vrot.slane %v3025, %v3121
        %v3123 = vlaneseq
        %v3124 = vshrl.u32 %v3123, 7
        %v3125 = vsub.s32 4, %v3124
        %v3126 = vrot.slane %v3025, %v3125
        %v3127 = vlaneseq
        %v3128 = vshrl.u32 %v3127, 7
        %v3129 = vsub.s32 5, %v3128
        %v3130 = vrot.slane %v3025, %v3129
        %v3131 = vlaneseq
        %v3132 = vshrl.u32 %v3131, 7
        %v3133 = vsub.s32 6, %v3132
        %v3134 = vrot.slane %v3025, %v3133
        %v3135 = vlaneseq
        %v3136 = vshrl.u32 %v3135, 7
        %v3137 = vsub.s32 7, %v3136
        %v3138 = vrot.slane %v3025, %v3137
        %v3139 = vlaneseq
        %v3140 = vshrl.u32 %v3139, 7
        %v3141 = vsub.s32 0, %v3140
        %v3142 = vrot.slane %v3026, %v3141
        %v3143 = vlaneseq
        %v3144 = vshrl.u32 %v3143, 7
        %v3145 = vsub.s32 1, %v3144
        %v3146 = vrot.slane %v3026, %v3145
        %v3147 = vlaneseq
        %v3148 = vshrl.u32 %v3147, 7
        %v3149 = vsub.s32 2, %v3148
        %v3150 = vrot.slane %v3026, %v3149
        %v3151 = vlaneseq
        %v3152 = vshrl.u32 %v3151, 7
        %v3153 = vsub.s32 3, %v3152
        %v3154 = vrot.slane %v3026, %v3153
        %v3155 = vlaneseq
        %v3156 = vshrl.u32 %v3155, 7
        %v3157 = vsub.s32 4, %v3156
        %v3158 = vrot.slane %v3026, %v3157
        %v3159 = vlaneseq
        %v3160 = vshrl.u32 %v3159, 7
        %v3161 = vsub.s32 5, %v3160
        %v3162 = vrot.slane %v3026, %v3161
        %v3163 = vlaneseq
        %v3164 = vshrl.u32 %v3163, 7
        %v3165 = vsub.s32 6, %v3164
        %v3166 = vrot.slane %v3026, %v3165
        %v3167 = vlaneseq
        %v3168 = vshrl.u32 %v3167, 7
        %v3169 = vsub.s32 7, %v3168
        %v3170 = vrot.slane %v3026, %v3169
        %v3171 = vlaneseq
        %v3172 = vshrl.u32 %v3171, 7
        %v3173 = vsub.s32 0, %v3172
        %v3174 = vrot.slane %v3027, %v3173
        %v3175 = vlaneseq
        %v3176 = vshrl.u32 %v3175, 7
        %v3177 = vsub.s32 1, %v3176
        %v3178 = vrot.slane %v3027, %v3177
        %v3179 = vlaneseq
        %v3180 = vshrl.u32 %v3179, 7
        %v3181 = vsub.s32 2, %v3180
        %v3182 = vrot.slane %v3027, %v3181
        %v3183 = vlaneseq
        %v3184 = vshrl.u32 %v3183, 7
        %v3185 = vsub.s32 3, %v3184
        %v3186 = vrot.slane %v3027, %v3185
        %v3187 = vlaneseq
        %v3188 = vshrl.u32 %v3187, 7
        %v3189 = vsub.s32 4, %v3188
        %v3190 = vrot.slane %v3027, %v3189
        %v3191 = vlaneseq
        %v3192 = vshrl.u32 %v3191, 7
        %v3193 = vsub.s32 5, %v3192
        %v3194 = vrot.slane %v3027, %v3193
        %v3195 = vlaneseq
        %v3196 = vshrl.u32 %v3195, 7
        %v3197 = vsub.s32 6, %v3196
        %v3198 = vrot.slane %v3027, %v3197
        %v3199 = vlaneseq
        %v3200 = vshrl.u32 %v3199, 7
        %v3201 = vsub.s32 7, %v3200
        %v3202 = vrot.slane %v3027, %v3201
        %v3203 = vlaneseq
        %v3204 = vshrl.u32 %v3203, 7
        %v3205 = vsub.s32 0, %v3204
        %v3206 = vrot.slane %v3028, %v3205
        %v3207 = vlaneseq
        %v3208 = vshrl.u32 %v3207, 7
        %v3209 = vsub.s32 1, %v3208
        %v3210 = vrot.slane %v3028, %v3209
        %v3211 = vlaneseq
        %v3212 = vshrl.u32 %v3211, 7
        %v3213 = vsub.s32 2, %v3212
        %v3214 = vrot.slane %v3028, %v3213
        %v3215 = vlaneseq
        %v3216 = vshrl.u32 %v3215, 7
        %v3217 = vsub.s32 3, %v3216
        %v3218 = vrot.slane %v3028, %v3217
        %v3219 = vlaneseq
        %v3220 = vshrl.u32 %v3219, 7
        %v3221 = vsub.s32 4, %v3220
        %v3222 = vrot.slane %v3028, %v3221
        %v3223 = vlaneseq
        %v3224 = vshrl.u32 %v3223, 7
        %v3225 = vsub.s32 5, %v3224
        %v3226 = vrot.slane %v3028, %v3225
        %v3227 = vlaneseq
        %v3228 = vshrl.u32 %v3227, 7
        %v3229 = vsub.s32 6, %v3228
        %v3230 = vrot.slane %v3028, %v3229
        %v3231 = vlaneseq
        %v3232 = vshrl.u32 %v3231, 7
        %v3233 = vsub.s32 7, %v3232
        %v3234 = vrot.slane %v3028, %v3233
        %v3235 = vlaneseq
        %v3236 = vshrl.u32 %v3235, 7
        %v3237 = vsub.s32 0, %v3236
        %v3238 = vrot.slane %v3029, %v3237
        %v3239 = vlaneseq
        %v3240 = vshrl.u32 %v3239, 7
        %v3241 = vsub.s32 1, %v3240
        %v3242 = vrot.slane %v3029, %v3241
        %v3243 = vlaneseq
        %v3244 = vshrl.u32 %v3243, 7
        %v3245 = vsub.s32 2, %v3244
        %v3246 = vrot.slane %v3029, %v3245
        %v3247 = vlaneseq
        %v3248 = vshrl.u32 %v3247, 7
        %v3249 = vsub.s32 3, %v3248
        %v3250 = vrot.slane %v3029, %v3249
        %v3251 = vlaneseq
        %v3252 = vshrl.u32 %v3251, 7
        %v3253 = vsub.s32 4, %v3252
        %v3254 = vrot.slane %v3029, %v3253
        %v3255 = vlaneseq
        %v3256 = vshrl.u32 %v3255, 7
        %v3257 = vsub.s32 5, %v3256
        %v3258 = vrot.slane %v3029, %v3257
        %v3259 = vlaneseq
        %v3260 = vshrl.u32 %v3259, 7
        %v3261 = vsub.s32 6, %v3260
        %v3262 = vrot.slane %v3029, %v3261
        %v3263 = vlaneseq
        %v3264 = vshrl.u32 %v3263, 7
        %v3265 = vsub.s32 7, %v3264
        %v3266 = vrot.slane %v3029, %v3265
        %v3267 = vlaneseq
        %v3268 = vshrl.u32 %v3267, 7
        %v3269 = vsub.s32 0, %v3268
        %v3270 = vrot.slane %v3030, %v3269
        %v3271 = vlaneseq
        %v3272 = vshrl.u32 %v3271, 7
        %v3273 = vsub.s32 1, %v3272
        %v3274 = vrot.slane %v3030, %v3273
        %v3275 = vlaneseq
        %v3276 = vshrl.u32 %v3275, 7
        %v3277 = vsub.s32 2, %v3276
        %v3278 = vrot.slane %v3030, %v3277
        %v3279 = vlaneseq
        %v3280 = vshrl.u32 %v3279, 7
        %v3281 = vsub.s32 3, %v3280
        %v3282 = vrot.slane %v3030, %v3281
        %v3283 = vlaneseq
        %v3284 = vshrl.u32 %v3283, 7
        %v3285 = vsub.s32 4, %v3284
        %v3286 = vrot.slane %v3030, %v3285
        %v3287 = vlaneseq
        %v3288 = vshrl.u32 %v3287, 7
        %v3289 = vsub.s32 5, %v3288
        %v3290 = vrot.slane %v3030, %v3289
        %v3291 = vlaneseq
        %v3292 = vshrl.u32 %v3291, 7
        %v3293 = vsub.s32 6, %v3292
        %v3294 = vrot.slane %v3030, %v3293
        %v3295 = vlaneseq
        %v3296 = vshrl.u32 %v3295, 7
        %v3297 = vsub.s32 7, %v3296
        %v3298 = vrot.slane %v3030, %v3297
        %v3299 = vlaneseq
        %v3300 = vshrl.u32 %v3299, 7
        %v3301 = vsub.s32 0, %v3300
        %v3302 = vrot.slane %v3031, %v3301
        %v3303 = vlaneseq
        %v3304 = vshrl.u32 %v3303, 7
        %v3305 = vsub.s32 1, %v3304
        %v3306 = vrot.slane %v3031, %v3305
        %v3307 = vlaneseq
        %v3308 = vshrl.u32 %v3307, 7
        %v3309 = vsub.s32 2, %v3308
        %v3310 = vrot.slane %v3031, %v3309
        %v3311 = vlaneseq
        %v3312 = vshrl.u32 %v3311, 7
        %v3313 = vsub.s32 3, %v3312
        %v3314 = vrot.slane %v3031, %v3313
        %v3315 = vlaneseq
        %v3316 = vshrl.u32 %v3315, 7
        %v3317 = vsub.s32 4, %v3316
        %v3318 = vrot.slane %v3031, %v3317
        %v3319 = vlaneseq
        %v3320 = vshrl.u32 %v3319, 7
        %v3321 = vsub.s32 5, %v3320
        %v3322 = vrot.slane %v3031, %v3321
        %v3323 = vlaneseq
        %v3324 = vshrl.u32 %v3323, 7
        %v3325 = vsub.s32 6, %v3324
        %v3326 = vrot.slane %v3031, %v3325
        %v3327 = vlaneseq
        %v3328 = vshrl.u32 %v3327, 7
        %v3329 = vsub.s32 7, %v3328
        %v3330 = vrot.slane %v3031, %v3329
        %v3331 = vlaneseq
        %v3332 = vshrl.u32 %v3331, 7
        %v3333 = vsub.s32 0, %v3332
        %v3334 = vrot.slane %v3032, %v3333
        %v3335 = vlaneseq
        %v3336 = vshrl.u32 %v3335, 7
        %v3337 = vsub.s32 1, %v3336
        %v3338 = vrot.slane %v3032, %v3337
        %v3339 = vlaneseq
        %v3340 = vshrl.u32 %v3339, 7
        %v3341 = vsub.s32 2, %v3340
        %v3342 = vrot.slane %v3032, %v3341
        %v3343 = vlaneseq
        %v3344 = vshrl.u32 %v3343, 7
        %v3345 = vsub.s32 3, %v3344
        %v3346 = vrot.slane %v3032, %v3345
        %v3347 = vlaneseq
        %v3348 = vshrl.u32 %v3347, 7
        %v3349 = vsub.s32 4, %v3348
        %v3350 = vrot.slane %v3032, %v3349
        %v3351 = vlaneseq
        %v3352 = vshrl.u32 %v3351, 7
        %v3353 = vsub.s32 5, %v3352
        %v3354 = vrot.slane %v3032, %v3353
        %v3355 = vlaneseq
        %v3356 = vshrl.u32 %v3355, 7
        %v3357 = vsub.s32 6, %v3356
        %v3358 = vrot.slane %v3032, %v3357
        %v3359 = vlaneseq
        %v3360 = vshrl.u32 %v3359, 7
        %v3361 = vsub.s32 7, %v3360
        %v3362 = vrot.slane %v3032, %v3361
        %v4723 = vunpack.c.l.b16 %v1743
        %v4724 = vunpack.c.h.b16 %v1743
        %v4725 = vunpack.c.l.b16 %v1744
        %v4726 = vunpack.c.h.b16 %v1744
        %v4727 = vunpack.c.l.b16 %v1745
        %v4728 = vunpack.c.h.b16 %v1745
        %v4729 = vunpack.c.l.b16 %v1746
        %v4730 = vunpack.c.h.b16 %v1746
        %v4731 = vunpack.c.l.b16 %v1747
        %v4732 = vunpack.c.h.b16 %v1747
        %v4733 = vunpack.c.l.b16 %v1748
        %v4734 = vunpack.c.h.b16 %v1748
        %v4735 = vunpack.c.l.b16 %v1749
        %v4736 = vunpack.c.h.b16 %v1749
        %v4737 = vunpack.c.l.b16 %v1750
        %v4738 = vunpack.c.h.b16 %v1750
        %v4739 = vunpack.c.l.b16 %v1751
        %v4740 = vunpack.c.h.b16 %v1751
        %v4741 = vunpack.c.l.b16 %v1752
        %v4742 = vunpack.c.h.b16 %v1752
        %v4743 = vunpack.c.l.b16 %v1753
        %v4744 = vunpack.c.h.b16 %v1753
        %v4745 = vunpack.c.l.b16 %v1754
        %v4746 = vunpack.c.h.b16 %v1754
        %v4747 = vunpack.c.l.b16 %v1755
        %v4748 = vunpack.c.h.b16 %v1755
        %v4749 = vunpack.c.l.b16 %v1756
        %v4750 = vunpack.c.h.b16 %v1756
        %v4751 = vunpack.c.l.b16 %v1757
        %v4752 = vunpack.c.h.b16 %v1757
        %v4753 = vunpack.c.l.b16 %v1758
        %v4754 = vunpack.c.h.b16 %v1758
        %v4755 = vunpack.c.l.b16 %v1759
        %v4756 = vunpack.c.h.b16 %v1759
        %v4757 = vunpack.c.l.b16 %v1760
        %v4758 = vunpack.c.h.b16 %v1760
        %v4759 = vunpack.c.l.b16 %v1761
        %v4760 = vunpack.c.h.b16 %v1761
        %v4761 = vunpack.c.l.b16 %v1762
        %v4762 = vunpack.c.h.b16 %v1762
        %v4763 = vunpack.c.l.b16 %v1763
        %v4764 = vunpack.c.h.b16 %v1763
        %v4765 = vunpack.c.l.b16 %v1764
        %v4766 = vunpack.c.h.b16 %v1764
        %v4767 = vunpack.c.l.b16 %v1765
        %v4768 = vunpack.c.h.b16 %v1765
        %v4769 = vunpack.c.l.b16 %v1766
        %v4770 = vunpack.c.h.b16 %v1766
        %v4771 = vunpack.c.l.b16 %v1767
        %v4772 = vunpack.c.h.b16 %v1767
        %v4773 = vunpack.c.l.b16 %v1768
        %v4774 = vunpack.c.h.b16 %v1768
        %v4775 = vunpack.c.l.b16 %v1769
        %v4776 = vunpack.c.h.b16 %v1769
        %v4777 = vunpack.c.l.b16 %v1770
        %v4778 = vunpack.c.h.b16 %v1770
        %v4779 = vunpack.c.l.b16 %v1771
        %v4780 = vunpack.c.h.b16 %v1771
        %v4781 = vunpack.c.l.b16 %v1772
        %v4782 = vunpack.c.h.b16 %v1772
        %v4783 = vunpack.c.l.b16 %v1773
        %v4784 = vunpack.c.h.b16 %v1773
        %v4785 = vunpack.c.l.b16 %v1774
        %v4786 = vunpack.c.h.b16 %v1774
        %v4787 = vunpack.c.l.b16 %v1775
        %v4788 = vunpack.c.h.b16 %v1775
        %v4789 = vunpack.c.l.b16 %v1776
        %v4790 = vunpack.c.h.b16 %v1776
        %v4791 = vunpack.c.l.b16 %v1777
        %v4792 = vunpack.c.h.b16 %v1777
        %v4793 = vunpack.c.l.b16 %v1778
        %v4794 = vunpack.c.h.b16 %v1778
        %v4795 = vunpack.c.l.b16 %v1779
        %v4796 = vunpack.c.h.b16 %v1779
        %v4797 = vunpack.c.l.b16 %v1780
        %v4798 = vunpack.c.h.b16 %v1780
        %v4799 = vunpack.c.l.b16 %v1781
        %v4800 = vunpack.c.h.b16 %v1781
        %v4801 = vunpack.c.l.b16 %v1782
        %v4802 = vunpack.c.h.b16 %v1782
        %v4803 = vunpack.c.l.b16 %v1783
        %v4804 = vunpack.c.h.b16 %v1783
        %v4805 = vunpack.c.l.b16 %v1784
        %v4806 = vunpack.c.h.b16 %v1784
        %v4807 = vunpack.c.l.b16 %v1785
        %v4808 = vunpack.c.h.b16 %v1785
        %v4809 = vunpack.c.l.b16 %v1786
        %v4810 = vunpack.c.h.b16 %v1786
        %v4811 = vunpack.c.l.b16 %v1787
        %v4812 = vunpack.c.h.b16 %v1787
        %v4813 = vunpack.c.l.b16 %v1788
        %v4814 = vunpack.c.h.b16 %v1788
        %v4815 = vunpack.c.l.b16 %v1789
        %v4816 = vunpack.c.h.b16 %v1789
        %v4817 = vunpack.c.l.b16 %v1790
        %v4818 = vunpack.c.h.b16 %v1790
        %v4819 = vunpack.c.l.b16 %v1791
        %v4820 = vunpack.c.h.b16 %v1791
        %v4821 = vunpack.c.l.b16 %v1792
        %v4822 = vunpack.c.h.b16 %v1792
        %v4823 = vunpack.c.l.b16 %v1793
        %v4824 = vunpack.c.h.b16 %v1793
        %v4825 = vunpack.c.l.b16 %v1794
        %v4826 = vunpack.c.h.b16 %v1794
        %v4827 = vunpack.c.l.b16 %v1795
        %v4828 = vunpack.c.h.b16 %v1795
        %v4829 = vunpack.c.l.b16 %v1796
        %v4830 = vunpack.c.h.b16 %v1796
        %v4831 = vunpack.c.l.b16 %v1797
        %v4832 = vunpack.c.h.b16 %v1797
        %v4833 = vunpack.c.l.b16 %v1798
        %v4834 = vunpack.c.h.b16 %v1798
        %v4835 = vunpack.c.l.b16 %v1799
        %v4836 = vunpack.c.h.b16 %v1799
        %v4837 = vunpack.c.l.b16 %v1800
        %v4838 = vunpack.c.h.b16 %v1800
        %v4839 = vunpack.c.l.b16 %v1801
        %v4840 = vunpack.c.h.b16 %v1801
        %v4841 = vunpack.c.l.b16 %v1802
        %v4842 = vunpack.c.h.b16 %v1802
        %v4843 = vunpack.c.l.b16 %v1803
        %v4844 = vunpack.c.h.b16 %v1803
        %v4845 = vunpack.c.l.b16 %v1804
        %v4846 = vunpack.c.h.b16 %v1804
        %v4847 = vunpack.c.l.b16 %v1805
        %v4848 = vunpack.c.h.b16 %v1805
        %v4849 = vunpack.c.l.b16 %v1806
        %v4850 = vunpack.c.h.b16 %v1806
        %v4851 = vunpack.c.l.b16 %v1807
        %v4852 = vunpack.c.h.b16 %v1807
        %v4853 = vunpack.c.l.b16 %v1808
        %v4854 = vunpack.c.h.b16 %v1808
        %v4855 = vunpack.c.l.b16 %v1809
        %v4856 = vunpack.c.h.b16 %v1809
        %v4857 = vunpack.c.l.b16 %v1810
        %v4858 = vunpack.c.h.b16 %v1810
        %v4859 = vunpack.c.l.b16 %v1811
        %v4860 = vunpack.c.h.b16 %v1811
        %v4861 = vunpack.c.l.b16 %v1812
        %v4862 = vunpack.c.h.b16 %v1812
        %v4863 = vunpack.c.l.b16 %v1813
        %v4864 = vunpack.c.h.b16 %v1813
        %v4865 = vunpack.c.l.b16 %v1814
        %v4866 = vunpack.c.h.b16 %v1814
        %v4867 = vunpack.c.l.b16 %v1815
        %v4868 = vunpack.c.h.b16 %v1815
        %v4869 = vunpack.c.l.b16 %v1816
        %v4870 = vunpack.c.h.b16 %v1816
        %v4871 = vunpack.c.l.b16 %v1817
        %v4872 = vunpack.c.h.b16 %v1817
        %v4873 = vunpack.c.l.b16 %v1818
        %v4874 = vunpack.c.h.b16 %v1818
        %v4875 = vunpack.c.l.b16 %v1819
        %v4876 = vunpack.c.h.b16 %v1819
        %v4877 = vunpack.c.l.b16 %v1820
        %v4878 = vunpack.c.h.b16 %v1820
        %v4879 = vunpack.c.l.b16 %v1821
        %v4880 = vunpack.c.h.b16 %v1821
        %v4881 = vunpack.c.l.b16 %v1822
        %v4882 = vunpack.c.h.b16 %v1822
        %v4883 = vunpack.c.l.b16 %v1823
        %v4884 = vunpack.c.h.b16 %v1823
        %v4885 = vunpack.c.l.b16 %v1824
        %v4886 = vunpack.c.h.b16 %v1824
        %v4887 = vunpack.c.l.b16 %v1825
        %v4888 = vunpack.c.h.b16 %v1825
        %v4889 = vunpack.c.l.b16 %v1826
        %v4890 = vunpack.c.h.b16 %v1826
        %v4891 = vunpack.c.l.b16 %v1827
        %v4892 = vunpack.c.h.b16 %v1827
        %v4893 = vunpack.c.l.b16 %v1828
        %v4894 = vunpack.c.h.b16 %v1828
        %v4895 = vunpack.c.l.b16 %v1829
        %v4896 = vunpack.c.h.b16 %v1829
        %v4897 = vunpack.c.l.b16 %v1830
        %v4898 = vunpack.c.h.b16 %v1830
        %v4899 = vunpack.c.l.b16 %v1831
        %v4900 = vunpack.c.h.b16 %v1831
        %v4901 = vunpack.c.l.b16 %v1832
        %v4902 = vunpack.c.h.b16 %v1832
        %v4903 = vunpack.c.l.b16 %v1833
        %v4904 = vunpack.c.h.b16 %v1833
        %v4905 = vunpack.c.l.b16 %v1834
        %v4906 = vunpack.c.h.b16 %v1834
        %v4907 = vunpack.c.l.b16 %v1835
        %v4908 = vunpack.c.h.b16 %v1835
        %v4909 = vunpack.c.l.b16 %v1836
        %v4910 = vunpack.c.h.b16 %v1836
        %v4911 = vunpack.c.l.b16 %v1837
        %v4912 = vunpack.c.h.b16 %v1837
        %v4913 = vunpack.c.l.b16 %v1838
        %v4914 = vunpack.c.h.b16 %v1838
        %v4915 = vunpack.c.l.b16 %v1839
        %v4916 = vunpack.c.h.b16 %v1839
        %v4917 = vunpack.c.l.b16 %v1840
        %v4918 = vunpack.c.h.b16 %v1840
        %v4919 = vunpack.c.l.b16 %v1841
        %v4920 = vunpack.c.h.b16 %v1841
        %v4921 = vunpack.c.l.b16 %v1842
        %v4922 = vunpack.c.h.b16 %v1842
        %v4923 = vunpack.c.l.b16 %v1843
        %v4924 = vunpack.c.h.b16 %v1843
        %v4925 = vunpack.c.l.b16 %v1844
        %v4926 = vunpack.c.h.b16 %v1844
        %v4927 = vunpack.c.l.b16 %v1845
        %v4928 = vunpack.c.h.b16 %v1845
        %v4929 = vunpack.c.l.b16 %v1846
        %v4930 = vunpack.c.h.b16 %v1846
        %v4931 = vunpack.c.l.b16 %v1847
        %v4932 = vunpack.c.h.b16 %v1847
        %v4933 = vunpack.c.l.b16 %v1848
        %v4934 = vunpack.c.h.b16 %v1848
        %v4935 = vunpack.c.l.b16 %v1849
        %v4936 = vunpack.c.h.b16 %v1849
        %v4937 = vunpack.c.l.b16 %v1850
        %v4938 = vunpack.c.h.b16 %v1850
        %v4939 = vunpack.c.l.b16 %v1851
        %v4940 = vunpack.c.h.b16 %v1851
        %v4941 = vunpack.c.l.b16 %v1852
        %v4942 = vunpack.c.h.b16 %v1852
        %v4943 = vunpack.c.l.b16 %v1853
        %v4944 = vunpack.c.h.b16 %v1853
        %v4945 = vunpack.c.l.b16 %v1854
        %v4946 = vunpack.c.h.b16 %v1854
        %v4947 = vunpack.c.l.b16 %v1855
        %v4948 = vunpack.c.h.b16 %v1855
        %v4949 = vunpack.c.l.b16 %v1856
        %v4950 = vunpack.c.h.b16 %v1856
        %v4951 = vunpack.c.l.b16 %v1857
        %v4952 = vunpack.c.h.b16 %v1857
        %v4953 = vunpack.c.l.b16 %v1858
        %v4954 = vunpack.c.h.b16 %v1858
        %v4955 = vunpack.c.l.b16 %v1859
        %v4956 = vunpack.c.h.b16 %v1859
        %v4957 = vunpack.c.l.b16 %v1860
        %v4958 = vunpack.c.h.b16 %v1860
        %v4959 = vunpack.c.l.b16 %v1861
        %v4960 = vunpack.c.h.b16 %v1861
        %v4961 = vunpack.c.l.b16 %v1862
        %v4962 = vunpack.c.h.b16 %v1862
        %v4963 = vunpack.c.l.b16 %v1863
        %v4964 = vunpack.c.h.b16 %v1863
        %v4965 = vunpack.c.l.b16 %v1864
        %v4966 = vunpack.c.h.b16 %v1864
        %v4967 = vunpack.c.l.b16 %v1865
        %v4968 = vunpack.c.h.b16 %v1865
        %v4969 = vunpack.c.l.b16 %v1866
        %v4970 = vunpack.c.h.b16 %v1866
        %v4971 = vunpack.c.l.b16 %v1867
        %v4972 = vunpack.c.h.b16 %v1867
        %v4973 = vunpack.c.l.b16 %v1868
        %v4974 = vunpack.c.h.b16 %v1868
        %v4975 = vunpack.c.l.b16 %v1869
        %v4976 = vunpack.c.h.b16 %v1869
        %v4977 = vunpack.c.l.b16 %v1870
        %v4978 = vunpack.c.h.b16 %v1870
        %v4979 = vunpack.c.l.b16 %v1871
        %v4980 = vunpack.c.h.b16 %v1871
        %v4981 = vunpack.c.l.b16 %v1872
        %v4982 = vunpack.c.h.b16 %v1872
        %v4983 = vunpack.c.l.b16 %v1873
        %v4984 = vunpack.c.h.b16 %v1873
        %v4985 = vunpack.c.l.b16 %v1874
        %v4986 = vunpack.c.h.b16 %v1874
        %v4987 = vunpack.c.l.b16 %v1875
        %v4988 = vunpack.c.h.b16 %v1875
        %v4989 = vunpack.c.l.b16 %v1876
        %v4990 = vunpack.c.h.b16 %v1876
        %v4991 = vunpack.c.l.b16 %v1877
        %v4992 = vunpack.c.h.b16 %v1877
        %v4993 = vunpack.c.l.b16 %v1878
        %v4994 = vunpack.c.h.b16 %v1878
        %v4995 = vunpack.c.l.b16 %v1879
        %v4996 = vunpack.c.h.b16 %v1879
        %v4997 = vunpack.c.l.b16 %v1880
        %v4998 = vunpack.c.h.b16 %v1880
        %v4999 = vunpack.c.l.b16 %v1881
        %v5000 = vunpack.c.h.b16 %v1881
        %v5001 = vunpack.c.l.b16 %v1882
        %v5002 = vunpack.c.h.b16 %v1882
        %v5003 = vunpack.c.l.b16 %v1883
        %v5004 = vunpack.c.h.b16 %v1883
        %v5005 = vunpack.c.l.b16 %v1884
        %v5006 = vunpack.c.h.b16 %v1884
        %v5007 = vunpack.c.l.b16 %v1885
        %v5008 = vunpack.c.h.b16 %v1885
        %v5009 = vunpack.c.l.b16 %v1886
        %v5010 = vunpack.c.h.b16 %v1886
        %v5011 = vunpack.c.l.b16 %v1887
        %v5012 = vunpack.c.h.b16 %v1887
        %v5013 = vunpack.c.l.b16 %v1888
        %v5014 = vunpack.c.h.b16 %v1888
        %v5015 = vunpack.c.l.b16 %v1889
        %v5016 = vunpack.c.h.b16 %v1889
        %v5017 = vunpack.c.l.b16 %v1890
        %v5018 = vunpack.c.h.b16 %v1890
        %v5019 = vunpack.c.l.b16 %v1891
        %v5020 = vunpack.c.h.b16 %v1891
        %v5021 = vunpack.c.l.b16 %v1892
        %v5022 = vunpack.c.h.b16 %v1892
        %v5023 = vunpack.c.l.b16 %v1893
        %v5024 = vunpack.c.h.b16 %v1893
        %v5025 = vunpack.c.l.b16 %v1894
        %v5026 = vunpack.c.h.b16 %v1894
        %v5027 = vunpack.c.l.b16 %v1895
        %v5028 = vunpack.c.h.b16 %v1895
        %v5029 = vunpack.c.l.b16 %v1896
        %v5030 = vunpack.c.h.b16 %v1896
        %v5031 = vunpack.c.l.b16 %v1897
        %v5032 = vunpack.c.h.b16 %v1897
        %v5033 = vunpack.c.l.b16 %v1898
        %v5034 = vunpack.c.h.b16 %v1898
        %v5035 = vunpack.c.l.b16 %v1899
        %v5036 = vunpack.c.h.b16 %v1899
        %v5037 = vunpack.c.l.b16 %v1900
        %v5038 = vunpack.c.h.b16 %v1900
        %v5039 = vunpack.c.l.b16 %v1901
        %v5040 = vunpack.c.h.b16 %v1901
        %v5041 = vunpack.c.l.b16 %v1902
        %v5042 = vunpack.c.h.b16 %v1902
        %v5043 = vunpack.c.l.b16 %v1903
        %v5044 = vunpack.c.h.b16 %v1903
        %v5045 = vunpack.c.l.b16 %v1904
        %v5046 = vunpack.c.h.b16 %v1904
        %v5047 = vunpack.c.l.b16 %v1905
        %v5048 = vunpack.c.h.b16 %v1905
        %v5049 = vunpack.c.l.b16 %v1906
        %v5050 = vunpack.c.h.b16 %v1906
        %v5051 = vunpack.c.l.b16 %v1907
        %v5052 = vunpack.c.h.b16 %v1907
        %v5053 = vunpack.c.l.b16 %v1908
        %v5054 = vunpack.c.h.b16 %v1908
        %v5055 = vunpack.c.l.b16 %v1909
        %v5056 = vunpack.c.h.b16 %v1909
        %v5057 = vunpack.c.l.b16 %v1910
        %v5058 = vunpack.c.h.b16 %v1910
        %v5059 = vunpack.c.l.b16 %v1911
        %v5060 = vunpack.c.h.b16 %v1911
        %v5061 = vunpack.c.l.b16 %v1912
        %v5062 = vunpack.c.h.b16 %v1912
        %v5063 = vunpack.c.l.b16 %v1913
        %v5064 = vunpack.c.h.b16 %v1913
        %v5065 = vunpack.c.l.b16 %v1914
        %v5066 = vunpack.c.h.b16 %v1914
        %v5067 = vunpack.c.l.b16 %v1915
        %v5068 = vunpack.c.h.b16 %v1915
        %v5069 = vunpack.c.l.b16 %v1916
        %v5070 = vunpack.c.h.b16 %v1916
        %v5071 = vunpack.c.l.b16 %v1917
        %v5072 = vunpack.c.h.b16 %v1917
        %v5073 = vunpack.c.l.b16 %v1918
        %v5074 = vunpack.c.h.b16 %v1918
        %v5075 = vunpack.c.l.b16 %v1919
        %v5076 = vunpack.c.h.b16 %v1919
        %v5077 = vunpack.c.l.b16 %v1920
        %v5078 = vunpack.c.h.b16 %v1920
        %v5079 = vunpack.c.l.b16 %v1921
        %v5080 = vunpack.c.h.b16 %v1921
        %v5081 = vunpack.c.l.b16 %v1922
        %v5082 = vunpack.c.h.b16 %v1922
        %v5083 = vunpack.c.l.b16 %v1923
        %v5084 = vunpack.c.h.b16 %v1923
        %v5085 = vunpack.c.l.b16 %v1924
        %v5086 = vunpack.c.h.b16 %v1924
        %v5087 = vunpack.c.l.b16 %v1925
        %v5088 = vunpack.c.h.b16 %v1925
        %v5089 = vunpack.c.l.b16 %v1926
        %v5090 = vunpack.c.h.b16 %v1926
        %v5091 = vunpack.c.l.b16 %v1927
        %v5092 = vunpack.c.h.b16 %v1927
        %v5093 = vunpack.c.l.b16 %v1928
        %v5094 = vunpack.c.h.b16 %v1928
        %v5095 = vunpack.c.l.b16 %v1929
        %v5096 = vunpack.c.h.b16 %v1929
        %v5097 = vunpack.c.l.b16 %v1930
        %v5098 = vunpack.c.h.b16 %v1930
        %v5099 = vunpack.c.l.b16 %v1931
        %v5100 = vunpack.c.h.b16 %v1931
        %v5101 = vunpack.c.l.b16 %v1932
        %v5102 = vunpack.c.h.b16 %v1932
        %v5103 = vunpack.c.l.b16 %v1933
        %v5104 = vunpack.c.h.b16 %v1933
        %v5105 = vunpack.c.l.b16 %v1934
        %v5106 = vunpack.c.h.b16 %v1934
        %v5107 = vunpack.c.l.b16 %v1935
        %v5108 = vunpack.c.h.b16 %v1935
        %v5109 = vunpack.c.l.b16 %v1936
        %v5110 = vunpack.c.h.b16 %v1936
        %v5111 = vunpack.c.l.b16 %v1937
        %v5112 = vunpack.c.h.b16 %v1937
        %v5113 = vunpack.c.l.b16 %v1938
        %v5114 = vunpack.c.h.b16 %v1938
        %v5115 = vunpack.c.l.b16 %v1939
        %v5116 = vunpack.c.h.b16 %v1939
        %v5117 = vunpack.c.l.b16 %v1940
        %v5118 = vunpack.c.h.b16 %v1940
        %v5119 = vunpack.c.l.b16 %v1941
        %v5120 = vunpack.c.h.b16 %v1941
        %v5121 = vunpack.c.l.b16 %v1942
        %v5122 = vunpack.c.h.b16 %v1942
        %v5123 = vunpack.c.l.b16 %v1943
        %v5124 = vunpack.c.h.b16 %v1943
        %v5125 = vunpack.c.l.b16 %v1944
        %v5126 = vunpack.c.h.b16 %v1944
        %v5127 = vunpack.c.l.b16 %v1945
        %v5128 = vunpack.c.h.b16 %v1945
        %v5129 = vunpack.c.l.b16 %v1946
        %v5130 = vunpack.c.h.b16 %v1946
        %v5131 = vunpack.c.l.b16 %v1947
        %v5132 = vunpack.c.h.b16 %v1947
        %v5133 = vunpack.c.l.b16 %v1948
        %v5134 = vunpack.c.h.b16 %v1948
        %v5135 = vunpack.c.l.b16 %v1949
        %v5136 = vunpack.c.h.b16 %v1949
        %v5137 = vunpack.c.l.b16 %v1950
        %v5138 = vunpack.c.h.b16 %v1950
        %v5139 = vunpack.c.l.b16 %v1951
        %v5140 = vunpack.c.h.b16 %v1951
        %v5141 = vunpack.c.l.b16 %v1952
        %v5142 = vunpack.c.h.b16 %v1952
        %v5143 = vunpack.c.l.b16 %v1953
        %v5144 = vunpack.c.h.b16 %v1953
        %v5145 = vunpack.c.l.b16 %v1954
        %v5146 = vunpack.c.h.b16 %v1954
        %v5147 = vunpack.c.l.b16 %v1955
        %v5148 = vunpack.c.h.b16 %v1955
        %v5149 = vunpack.c.l.b16 %v1956
        %v5150 = vunpack.c.h.b16 %v1956
        %v5151 = vunpack.c.l.b16 %v1957
        %v5152 = vunpack.c.h.b16 %v1957
        %v5153 = vunpack.c.l.b16 %v1958
        %v5154 = vunpack.c.h.b16 %v1958
        %v5155 = vunpack.c.l.b16 %v1959
        %v5156 = vunpack.c.h.b16 %v1959
        %v5157 = vunpack.c.l.b16 %v1960
        %v5158 = vunpack.c.h.b16 %v1960
        %v5159 = vunpack.c.l.b16 %v1961
        %v5160 = vunpack.c.h.b16 %v1961
        %v5161 = vunpack.c.l.b16 %v1962
        %v5162 = vunpack.c.h.b16 %v1962
        %v5163 = vunpack.c.l.b16 %v1963
        %v5164 = vunpack.c.h.b16 %v1963
        %v5165 = vunpack.c.l.b16 %v1964
        %v5166 = vunpack.c.h.b16 %v1964
        %v5167 = vunpack.c.l.b16 %v1965
        %v5168 = vunpack.c.h.b16 %v1965
        %v5169 = vunpack.c.l.b16 %v1966
        %v5170 = vunpack.c.h.b16 %v1966
        %v5171 = vunpack.c.l.b16 %v1967
        %v5172 = vunpack.c.h.b16 %v1967
        %v5173 = vunpack.c.l.b16 %v1968
        %v5174 = vunpack.c.h.b16 %v1968
        %v5175 = vunpack.c.l.b16 %v1969
        %v5176 = vunpack.c.h.b16 %v1969
        %v5177 = vunpack.c.l.b16 %v1970
        %v5178 = vunpack.c.h.b16 %v1970
        %v5179 = vunpack.c.l.b16 %v1971
        %v5180 = vunpack.c.h.b16 %v1971
        %v5181 = vunpack.c.l.b16 %v1972
        %v5182 = vunpack.c.h.b16 %v1972
        %v5183 = vunpack.c.l.b16 %v1973
        %v5184 = vunpack.c.h.b16 %v1973
        %v5185 = vunpack.c.l.b16 %v1974
        %v5186 = vunpack.c.h.b16 %v1974
        %v5187 = vunpack.c.l.b16 %v1975
        %v5188 = vunpack.c.h.b16 %v1975
        %v5189 = vunpack.c.l.b16 %v1976
        %v5190 = vunpack.c.h.b16 %v1976
        %v5191 = vunpack.c.l.b16 %v1977
        %v5192 = vunpack.c.h.b16 %v1977
        %v5193 = vunpack.c.l.b16 %v1978
        %v5194 = vunpack.c.h.b16 %v1978
        %v5195 = vunpack.c.l.b16 %v1979
        %v5196 = vunpack.c.h.b16 %v1979
        %v5197 = vunpack.c.l.b16 %v1980
        %v5198 = vunpack.c.h.b16 %v1980
        %v5199 = vunpack.c.l.b16 %v1981
        %v5200 = vunpack.c.h.b16 %v1981
        %v5201 = vunpack.c.l.b16 %v1982
        %v5202 = vunpack.c.h.b16 %v1982
        %v5203 = vunpack.c.l.b16 %v1983
        %v5204 = vunpack.c.h.b16 %v1983
        %v5205 = vunpack.c.l.b16 %v1984
        %v5206 = vunpack.c.h.b16 %v1984
        %v5207 = vunpack.c.l.b16 %v1985
        %v5208 = vunpack.c.h.b16 %v1985
        %v5209 = vunpack.c.l.b16 %v1986
        %v5210 = vunpack.c.h.b16 %v1986
        %v5211 = vunpack.c.l.b16 %v1987
        %v5212 = vunpack.c.h.b16 %v1987
        %v5213 = vunpack.c.l.b16 %v1988
        %v5214 = vunpack.c.h.b16 %v1988
        %v5215 = vunpack.c.l.b16 %v1989
        %v5216 = vunpack.c.h.b16 %v1989
        %v5217 = vunpack.c.l.b16 %v1990
        %v5218 = vunpack.c.h.b16 %v1990
        %v5219 = vunpack.c.l.b16 %v1991
        %v5220 = vunpack.c.h.b16 %v1991
        %v5221 = vunpack.c.l.b16 %v1992
        %v5222 = vunpack.c.h.b16 %v1992
        %v5223 = vunpack.c.l.b16 %v1993
        %v5224 = vunpack.c.h.b16 %v1993
        %v5225 = vunpack.c.l.b16 %v1994
        %v5226 = vunpack.c.h.b16 %v1994
        %v5227 = vunpack.c.l.b16 %v1995
        %v5228 = vunpack.c.h.b16 %v1995
        %v5229 = vunpack.c.l.b16 %v1996
        %v5230 = vunpack.c.h.b16 %v1996
        %v5231 = vunpack.c.l.b16 %v1997
        %v5232 = vunpack.c.h.b16 %v1997
        %v5233 = vunpack.c.l.b16 %v1998
        %v5234 = vunpack.c.h.b16 %v1998
        %v5235 = vunpack.c.l.b16 %v1999
        %v5236 = vunpack.c.h.b16 %v1999
        %v5237 = vunpack.c.l.b16 %v2000
        %v5238 = vunpack.c.h.b16 %v2000
        %v5239 = vunpack.c.l.b16 %v2001
        %v5240 = vunpack.c.h.b16 %v2001
        %v5241 = vunpack.c.l.b16 %v2002
        %v5242 = vunpack.c.h.b16 %v2002
        %v5243 = vunpack.c.l.b16 %v2003
        %v5244 = vunpack.c.h.b16 %v2003
        %v5245 = vunpack.c.l.b16 %v2004
        %v5246 = vunpack.c.h.b16 %v2004
        %v5247 = vunpack.c.l.b16 %v2005
        %v5248 = vunpack.c.h.b16 %v2005
        %v5249 = vunpack.c.l.b16 %v2006
        %v5250 = vunpack.c.h.b16 %v2006
        %v5251 = vunpack.c.l.b16 %v2007
        %v5252 = vunpack.c.h.b16 %v2007
        %v5253 = vunpack.c.l.b16 %v2008
        %v5254 = vunpack.c.h.b16 %v2008
        %v5255 = vunpack.c.l.b16 %v2009
        %v5256 = vunpack.c.h.b16 %v2009
        %v5257 = vunpack.c.l.b16 %v2010
        %v5258 = vunpack.c.h.b16 %v2010
        %v5259 = vunpack.c.l.b16 %v2011
        %v5260 = vunpack.c.h.b16 %v2011
        %v5261 = vunpack.c.l.b16 %v2012
        %v5262 = vunpack.c.h.b16 %v2012
        %v5263 = vunpack.c.l.b16 %v2013
        %v5264 = vunpack.c.h.b16 %v2013
        %v5265 = vunpack.c.l.b16 %v2014
        %v5266 = vunpack.c.h.b16 %v2014
        %v5267 = vunpack.c.l.b16 %v2015
        %v5268 = vunpack.c.h.b16 %v2015
        %v5269 = vunpack.c.l.b16 %v2016
        %v5270 = vunpack.c.h.b16 %v2016
        %v5271 = vunpack.c.l.b16 %v2017
        %v5272 = vunpack.c.h.b16 %v2017
        %v5273 = vunpack.c.l.b16 %v2018
        %v5274 = vunpack.c.h.b16 %v2018
        %v5275 = vunpack.c.l.b16 %v2019
        %v5276 = vunpack.c.h.b16 %v2019
        %v5277 = vunpack.c.l.b16 %v2020
        %v5278 = vunpack.c.h.b16 %v2020
        %v5279 = vunpack.c.l.b16 %v2021
        %v5280 = vunpack.c.h.b16 %v2021
        %v5281 = vunpack.c.l.b16 %v2022
        %v5282 = vunpack.c.h.b16 %v2022
        %v5283 = vunpack.c.l.b16 %v2023
        %v5284 = vunpack.c.h.b16 %v2023
        %v5285 = vunpack.c.l.b16 %v2024
        %v5286 = vunpack.c.h.b16 %v2024
        %v5287 = vunpack.c.l.b16 %v2025
        %v5288 = vunpack.c.h.b16 %v2025
        %v5289 = vunpack.c.l.b16 %v2026
        %v5290 = vunpack.c.h.b16 %v2026
        %v5291 = vunpack.c.l.b16 %v2027
        %v5292 = vunpack.c.h.b16 %v2027
        %v5293 = vunpack.c.l.b16 %v2028
        %v5294 = vunpack.c.h.b16 %v2028
        %v5295 = vunpack.c.l.b16 %v2029
        %v5296 = vunpack.c.h.b16 %v2029
        %v5297 = vunpack.c.l.b16 %v2030
        %v5298 = vunpack.c.h.b16 %v2030
        %v5299 = vunpack.c.l.b16 %v2031
        %v5300 = vunpack.c.h.b16 %v2031
        %v5301 = vunpack.c.l.b16 %v2032
        %v5302 = vunpack.c.h.b16 %v2032
        %v5303 = vunpack.c.l.b16 %v2033
        %v5304 = vunpack.c.h.b16 %v2033
        %v5305 = vunpack.c.l.b16 %v2034
        %v5306 = vunpack.c.h.b16 %v2034
        %v5307 = vunpack.c.l.b16 %v2035
        %v5308 = vunpack.c.h.b16 %v2035
        %v5309 = vunpack.c.l.b16 %v2036
        %v5310 = vunpack.c.h.b16 %v2036
        %v5311 = vunpack.c.l.b16 %v2037
        %v5312 = vunpack.c.h.b16 %v2037
        %v5313 = vunpack.c.l.b16 %v2038
        %v5314 = vunpack.c.h.b16 %v2038
        %v5315 = vunpack.c.l.b16 %v2039
        %v5316 = vunpack.c.h.b16 %v2039
        %v5317 = vunpack.c.l.b16 %v2040
        %v5318 = vunpack.c.h.b16 %v2040
        %v5319 = vunpack.c.l.b16 %v2041
        %v5320 = vunpack.c.h.b16 %v2041
        %v5321 = vunpack.c.l.b16 %v2042
        %v5322 = vunpack.c.h.b16 %v2042
        %v5323 = vunpack.c.l.b16 %v2043
        %v5324 = vunpack.c.h.b16 %v2043
        %v5325 = vunpack.c.l.b16 %v2044
        %v5326 = vunpack.c.h.b16 %v2044
        %v5327 = vunpack.c.l.b16 %v2045
        %v5328 = vunpack.c.h.b16 %v2045
        %v5329 = vunpack.c.l.b16 %v2046
        %v5330 = vunpack.c.h.b16 %v2046
        %v5331 = vunpack.c.l.b16 %v2047
        %v5332 = vunpack.c.h.b16 %v2047
        %v5333 = vunpack.c.l.b16 %v2048
        %v5334 = vunpack.c.h.b16 %v2048
        %v5335 = vunpack.c.l.b16 %v2049
        %v5336 = vunpack.c.h.b16 %v2049
        %v5337 = vunpack.c.l.b16 %v2050
        %v5338 = vunpack.c.h.b16 %v2050
        %v5339 = vunpack.c.l.b16 %v2051
        %v5340 = vunpack.c.h.b16 %v2051
        %v5341 = vunpack.c.l.b16 %v2052
        %v5342 = vunpack.c.h.b16 %v2052
        %v5343 = vunpack.c.l.b16 %v2053
        %v5344 = vunpack.c.h.b16 %v2053
        %v5345 = vunpack.c.l.b16 %v2054
        %v5346 = vunpack.c.h.b16 %v2054
        %v5347 = vunpack.c.l.b16 %v2055
        %v5348 = vunpack.c.h.b16 %v2055
        %v5349 = vunpack.c.l.b16 %v2056
        %v5350 = vunpack.c.h.b16 %v2056
        %v5351 = vunpack.c.l.b16 %v2057
        %v5352 = vunpack.c.h.b16 %v2057
        %v5353 = vunpack.c.l.b16 %v2058
        %v5354 = vunpack.c.h.b16 %v2058
        %v5355 = vunpack.c.l.b16 %v2059
        %v5356 = vunpack.c.h.b16 %v2059
        %v5357 = vunpack.c.l.b16 %v2060
        %v5358 = vunpack.c.h.b16 %v2060
        %v5359 = vunpack.c.l.b16 %v2061
        %v5360 = vunpack.c.h.b16 %v2061
        %v5361 = vunpack.c.l.b16 %v2062
        %v5362 = vunpack.c.h.b16 %v2062
        %v5363 = vunpack.c.l.b16 %v2063
        %v5364 = vunpack.c.h.b16 %v2063
        %v5365 = vunpack.c.l.b16 %v2064
        %v5366 = vunpack.c.h.b16 %v2064
        %v5367 = vunpack.c.l.b16 %v2065
        %v5368 = vunpack.c.h.b16 %v2065
        %v5369 = vunpack.c.l.b16 %v2066
        %v5370 = vunpack.c.h.b16 %v2066
        %v5371 = vunpack.c.l.b16 %v2067
        %v5372 = vunpack.c.h.b16 %v2067
        %v5373 = vunpack.c.l.b16 %v2068
        %v5374 = vunpack.c.h.b16 %v2068
        %v5375 = vunpack.c.l.b16 %v2069
        %v5376 = vunpack.c.h.b16 %v2069
        %v5377 = vunpack.c.l.b16 %v2070
        %v5378 = vunpack.c.h.b16 %v2070
        %v5379 = vunpack.c.l.b16 %v2071
        %v5380 = vunpack.c.h.b16 %v2071
        %v5381 = vunpack.c.l.b16 %v2072
        %v5382 = vunpack.c.h.b16 %v2072
        %v5383 = vunpack.c.l.b16 %v2073
        %v5384 = vunpack.c.h.b16 %v2073
        %v5385 = vunpack.c.l.b16 %v2074
        %v5386 = vunpack.c.h.b16 %v2074
        %v5387 = vunpack.c.l.b16 %v2075
        %v5388 = vunpack.c.h.b16 %v2075
        %v5389 = vunpack.c.l.b16 %v2076
        %v5390 = vunpack.c.h.b16 %v2076
        %v5391 = vunpack.c.l.b16 %v2077
        %v5392 = vunpack.c.h.b16 %v2077
        %v5393 = vunpack.c.l.b16 %v2078
        %v5394 = vunpack.c.h.b16 %v2078
        %v5395 = vunpack.c.l.b16 %v2079
        %v5396 = vunpack.c.h.b16 %v2079
        %v5397 = vunpack.c.l.b16 %v2080
        %v5398 = vunpack.c.h.b16 %v2080
        %v5399 = vunpack.c.l.b16 %v2081
        %v5400 = vunpack.c.h.b16 %v2081
        %v5401 = vunpack.c.l.b16 %v2082
        %v5402 = vunpack.c.h.b16 %v2082
        %v5403 = vunpack.c.l.b16 %v2083
        %v5404 = vunpack.c.h.b16 %v2083
        %v5405 = vunpack.c.l.b16 %v2084
        %v5406 = vunpack.c.h.b16 %v2084
        %v5407 = vunpack.c.l.b16 %v2085
        %v5408 = vunpack.c.h.b16 %v2085
        %v5409 = vunpack.c.l.b16 %v2086
        %v5410 = vunpack.c.h.b16 %v2086
        %v5411 = vunpack.c.l.b16 %v2087
        %v5412 = vunpack.c.h.b16 %v2087
        %v5413 = vunpack.c.l.b16 %v2088
        %v5414 = vunpack.c.h.b16 %v2088
        %v5415 = vunpack.c.l.b16 %v2089
        %v5416 = vunpack.c.h.b16 %v2089
        %v5417 = vunpack.c.l.b16 %v2090
        %v5418 = vunpack.c.h.b16 %v2090
        %v5419 = vunpack.c.l.b16 %v2091
        %v5420 = vunpack.c.h.b16 %v2091
        %v5421 = vunpack.c.l.b16 %v2092
        %v5422 = vunpack.c.h.b16 %v2092
        %v5423 = vunpack.c.l.b16 %v2093
        %v5424 = vunpack.c.h.b16 %v2093
        %v5425 = vunpack.c.l.b16 %v2094
        %v5426 = vunpack.c.h.b16 %v2094
        %v5427 = vunpack.c.l.b16 %v2095
        %v5428 = vunpack.c.h.b16 %v2095
        %v5429 = vunpack.c.l.b16 %v2096
        %v5430 = vunpack.c.h.b16 %v2096
        %v5431 = vunpack.c.l.b16 %v2097
        %v5432 = vunpack.c.h.b16 %v2097
        %v5433 = vunpack.c.l.b16 %v2098
        %v5434 = vunpack.c.h.b16 %v2098
        %v5435 = vunpack.c.l.b16 %v2099
        %v5436 = vunpack.c.h.b16 %v2099
        %v5437 = vunpack.c.l.b16 %v2100
        %v5438 = vunpack.c.h.b16 %v2100
        %v5439 = vunpack.c.l.b16 %v2101
        %v5440 = vunpack.c.h.b16 %v2101
        %v5441 = vunpack.c.l.b16 %v2102
        %v5442 = vunpack.c.h.b16 %v2102
        %v5443 = vunpack.c.l.b16 %v2103
        %v5444 = vunpack.c.h.b16 %v2103
        %v5445 = vunpack.c.l.b16 %v2104
        %v5446 = vunpack.c.h.b16 %v2104
        %v5447 = vunpack.c.l.b16 %v2105
        %v5448 = vunpack.c.h.b16 %v2105
        %v5449 = vunpack.c.l.b16 %v2106
        %v5450 = vunpack.c.h.b16 %v2106
        %v5451 = vunpack.c.l.b16 %v2107
        %v5452 = vunpack.c.h.b16 %v2107
        %v5453 = vunpack.c.l.b16 %v2108
        %v5454 = vunpack.c.h.b16 %v2108
        %v5455 = vunpack.c.l.b16 %v2109
        %v5456 = vunpack.c.h.b16 %v2109
        %v5457 = vunpack.c.l.b16 %v2110
        %v5458 = vunpack.c.h.b16 %v2110
        %v5459 = vunpack.c.l.b16 %v2111
        %v5460 = vunpack.c.h.b16 %v2111
        %v5461 = vunpack.c.l.b16 %v2112
        %v5462 = vunpack.c.h.b16 %v2112
        %v5463 = vunpack.c.l.b16 %v2113
        %v5464 = vunpack.c.h.b16 %v2113
        %v5465 = vunpack.c.l.b16 %v2114
        %v5466 = vunpack.c.h.b16 %v2114
        %v5467 = vunpack.c.l.b16 %v2115
        %v5468 = vunpack.c.h.b16 %v2115
        %v5469 = vunpack.c.l.b16 %v2116
        %v5470 = vunpack.c.h.b16 %v2116
        %v5471 = vunpack.c.l.b16 %v2117
        %v5472 = vunpack.c.h.b16 %v2117
        %v5473 = vunpack.c.l.b16 %v2118
        %v5474 = vunpack.c.h.b16 %v2118
        %v5475 = vunpack.c.l.b16 %v2119
        %v5476 = vunpack.c.h.b16 %v2119
        %v5477 = vunpack.c.l.b16 %v2120
        %v5478 = vunpack.c.h.b16 %v2120
        %v5479 = vunpack.c.l.b16 %v2121
        %v5480 = vunpack.c.h.b16 %v2121
        %v5481 = vunpack.c.l.b16 %v2122
        %v5482 = vunpack.c.h.b16 %v2122
        %v5483 = vunpack.c.l.b16 %v2123
        %v5484 = vunpack.c.h.b16 %v2123
        %v5485 = vunpack.c.l.b16 %v2124
        %v5486 = vunpack.c.h.b16 %v2124
        %v5487 = vunpack.c.l.b16 %v2125
        %v5488 = vunpack.c.h.b16 %v2125
        %v5489 = vunpack.c.l.b16 %v2126
        %v5490 = vunpack.c.h.b16 %v2126
        %v5491 = vunpack.c.l.b16 %v2127
        %v5492 = vunpack.c.h.b16 %v2127
        %v5493 = vunpack.c.l.b16 %v2128
        %v5494 = vunpack.c.h.b16 %v2128
        %v5495 = vunpack.c.l.b16 %v2129
        %v5496 = vunpack.c.h.b16 %v2129
        %v5497 = vunpack.c.l.b16 %v2130
        %v5498 = vunpack.c.h.b16 %v2130
        %v5499 = vunpack.c.l.b16 %v2131
        %v5500 = vunpack.c.h.b16 %v2131
        %v5501 = vunpack.c.l.b16 %v2132
        %v5502 = vunpack.c.h.b16 %v2132
        %v5503 = vunpack.c.l.b16 %v2133
        %v5504 = vunpack.c.h.b16 %v2133
        %v5505 = vunpack.c.l.b16 %v2134
        %v5506 = vunpack.c.h.b16 %v2134
        %v5507 = vunpack.c.l.b16 %v2135
        %v5508 = vunpack.c.h.b16 %v2135
        %v5509 = vunpack.c.l.b16 %v2136
        %v5510 = vunpack.c.h.b16 %v2136
        %v5511 = vunpack.c.l.b16 %v2137
        %v5512 = vunpack.c.h.b16 %v2137
        %v5513 = vunpack.c.l.b16 %v2138
        %v5514 = vunpack.c.h.b16 %v2138
        %v5515 = vunpack.c.l.b16 %v2139
        %v5516 = vunpack.c.h.b16 %v2139
        %v5517 = vunpack.c.l.b16 %v2140
        %v5518 = vunpack.c.h.b16 %v2140
        %v5519 = vunpack.c.l.b16 %v2141
        %v5520 = vunpack.c.h.b16 %v2141
        %v5521 = vunpack.c.l.b16 %v2142
        %v5522 = vunpack.c.h.b16 %v2142
        %v5523 = vunpack.c.l.b16 %v2143
        %v5524 = vunpack.c.h.b16 %v2143
        %v5525 = vunpack.c.l.b16 %v2144
        %v5526 = vunpack.c.h.b16 %v2144
        %v5527 = vunpack.c.l.b16 %v2145
        %v5528 = vunpack.c.h.b16 %v2145
        %v5529 = vunpack.c.l.b16 %v2146
        %v5530 = vunpack.c.h.b16 %v2146
        %v5531 = vunpack.c.l.b16 %v2147
        %v5532 = vunpack.c.h.b16 %v2147
        %v5533 = vunpack.c.l.b16 %v2148
        %v5534 = vunpack.c.h.b16 %v2148
        %v5535 = vunpack.c.l.b16 %v2149
        %v5536 = vunpack.c.h.b16 %v2149
        %v5537 = vunpack.c.l.b16 %v2150
        %v5538 = vunpack.c.h.b16 %v2150
        %v5539 = vunpack.c.l.b16 %v2151
        %v5540 = vunpack.c.h.b16 %v2151
        %v5541 = vunpack.c.l.b16 %v2152
        %v5542 = vunpack.c.h.b16 %v2152
        %v5543 = vunpack.c.l.b16 %v2153
        %v5544 = vunpack.c.h.b16 %v2153
        %v5545 = vunpack.c.l.b16 %v2154
        %v5546 = vunpack.c.h.b16 %v2154
        %v5547 = vunpack.c.l.b16 %v2155
        %v5548 = vunpack.c.h.b16 %v2155
        %v5549 = vunpack.c.l.b16 %v2156
        %v5550 = vunpack.c.h.b16 %v2156
        %v5551 = vunpack.c.l.b16 %v2157
        %v5552 = vunpack.c.h.b16 %v2157
        %v5553 = vunpack.c.l.b16 %v2158
        %v5554 = vunpack.c.h.b16 %v2158
        %v5555 = vunpack.c.l.b16 %v2159
        %v5556 = vunpack.c.h.b16 %v2159
        %v5557 = vunpack.c.l.b16 %v2160
        %v5558 = vunpack.c.h.b16 %v2160
        %v5559 = vunpack.c.l.b16 %v2161
        %v5560 = vunpack.c.h.b16 %v2161
        %v5561 = vunpack.c.l.b16 %v2162
        %v5562 = vunpack.c.h.b16 %v2162
        %v5563 = vunpack.c.l.b16 %v2163
        %v5564 = vunpack.c.h.b16 %v2163
        %v5565 = vunpack.c.l.b16 %v2164
        %v5566 = vunpack.c.h.b16 %v2164
        %v5567 = vunpack.c.l.b16 %v2165
        %v5568 = vunpack.c.h.b16 %v2165
        %v5569 = vunpack.c.l.b16 %v2166
        %v5570 = vunpack.c.h.b16 %v2166
        %v5571 = vunpack.c.l.b16 %v2167
        %v5572 = vunpack.c.h.b16 %v2167
        %v5573 = vunpack.c.l.b16 %v2168
        %v5574 = vunpack.c.h.b16 %v2168
        %v5575 = vunpack.c.l.b16 %v2169
        %v5576 = vunpack.c.h.b16 %v2169
        %v5577 = vunpack.c.l.b16 %v2170
        %v5578 = vunpack.c.h.b16 %v2170
        %v5579 = vunpack.c.l.b16 %v2171
        %v5580 = vunpack.c.h.b16 %v2171
        %v5581 = vunpack.c.l.b16 %v2172
        %v5582 = vunpack.c.h.b16 %v2172
        %v5583 = vunpack.c.l.b16 %v2173
        %v5584 = vunpack.c.h.b16 %v2173
        %v5585 = vunpack.c.l.b16 %v2174
        %v5586 = vunpack.c.h.b16 %v2174
        %v5587 = vunpack.c.l.b16 %v2175
        %v5588 = vunpack.c.h.b16 %v2175
        %v5589 = vunpack.c.l.b16 %v2176
        %v5590 = vunpack.c.h.b16 %v2176
        %v5591 = vunpack.c.l.b16 %v2177
        %v5592 = vunpack.c.h.b16 %v2177
        %v5593 = vunpack.c.l.b16 %v2178
        %v5594 = vunpack.c.h.b16 %v2178
        %v5595 = vunpack.c.l.b16 %v2179
        %v5596 = vunpack.c.h.b16 %v2179
        %v5597 = vunpack.c.l.b16 %v2180
        %v5598 = vunpack.c.h.b16 %v2180
        %v5599 = vunpack.c.l.b16 %v2181
        %v5600 = vunpack.c.h.b16 %v2181
        %v5601 = vunpack.c.l.b16 %v2182
        %v5602 = vunpack.c.h.b16 %v2182
        %v5603 = vunpack.c.l.b16 %v2183
        %v5604 = vunpack.c.h.b16 %v2183
        %v5605 = vunpack.c.l.b16 %v2184
        %v5606 = vunpack.c.h.b16 %v2184
        %v5607 = vunpack.c.l.b16 %v2185
        %v5608 = vunpack.c.h.b16 %v2185
        %v5609 = vunpack.c.l.b16 %v2186
        %v5610 = vunpack.c.h.b16 %v2186
        %v5611 = vunpack.c.l.b16 %v2187
        %v5612 = vunpack.c.h.b16 %v2187
        %v5613 = vunpack.c.l.b16 %v2188
        %v5614 = vunpack.c.h.b16 %v2188
        %v5615 = vunpack.c.l.b16 %v2189
        %v5616 = vunpack.c.h.b16 %v2189
        %v5617 = vunpack.c.l.b16 %v2190
        %v5618 = vunpack.c.h.b16 %v2190
        %v5619 = vunpack.c.l.b16 %v2191
        %v5620 = vunpack.c.h.b16 %v2191
        %v5621 = vunpack.c.l.b16 %v2192
        %v5622 = vunpack.c.h.b16 %v2192
        %v5623 = vunpack.c.l.b16 %v2193
        %v5624 = vunpack.c.h.b16 %v2193
        %v5625 = vunpack.c.l.b16 %v2194
        %v5626 = vunpack.c.h.b16 %v2194
        %v5627 = vunpack.c.l.b16 %v2195
        %v5628 = vunpack.c.h.b16 %v2195
        %v5629 = vunpack.c.l.b16 %v2196
        %v5630 = vunpack.c.h.b16 %v2196
        %v5631 = vunpack.c.l.b16 %v2197
        %v5632 = vunpack.c.h.b16 %v2197
        %v5633 = vunpack.c.l.b16 %v2198
        %v5634 = vunpack.c.h.b16 %v2198
        %v5635 = vunpack.c.l.b16 %v2199
        %v5636 = vunpack.c.h.b16 %v2199
        %v5637 = vunpack.c.l.b16 %v2200
        %v5638 = vunpack.c.h.b16 %v2200
        %v5639 = vunpack.c.l.b16 %v2201
        %v5640 = vunpack.c.h.b16 %v2201
        %v5641 = vunpack.c.l.b16 %v2202
        %v5642 = vunpack.c.h.b16 %v2202
        %v5643 = vunpack.c.l.b16 %v2203
        %v5644 = vunpack.c.h.b16 %v2203
        %v5645 = vunpack.c.l.b16 %v2204
        %v5646 = vunpack.c.h.b16 %v2204
        %v5647 = vunpack.c.l.b16 %v2205
        %v5648 = vunpack.c.h.b16 %v2205
        %v5649 = vunpack.c.l.b16 %v2206
        %v5650 = vunpack.c.h.b16 %v2206
        %v5651 = vunpack.c.l.b16 %v2207
        %v5652 = vunpack.c.h.b16 %v2207
        %v5653 = vunpack.c.l.b16 %v2208
        %v5654 = vunpack.c.h.b16 %v2208
        %v5655 = vunpack.c.l.b16 %v2209
        %v5656 = vunpack.c.h.b16 %v2209
        %v5657 = vunpack.c.l.b16 %v2210
        %v5658 = vunpack.c.h.b16 %v2210
        %v5659 = vunpack.c.l.b16 %v2211
        %v5660 = vunpack.c.h.b16 %v2211
        %v5661 = vunpack.c.l.b16 %v2212
        %v5662 = vunpack.c.h.b16 %v2212
        %v5663 = vunpack.c.l.b16 %v2213
        %v5664 = vunpack.c.h.b16 %v2213
        %v5665 = vunpack.c.l.b16 %v2214
        %v5666 = vunpack.c.h.b16 %v2214
        %v5667 = vunpack.c.l.b16 %v2215
        %v5668 = vunpack.c.h.b16 %v2215
        %v5669 = vunpack.c.l.b16 %v2216
        %v5670 = vunpack.c.h.b16 %v2216
        %v5671 = vunpack.c.l.b16 %v2217
        %v5672 = vunpack.c.h.b16 %v2217
        %v5673 = vunpack.c.l.b16 %v2218
        %v5674 = vunpack.c.h.b16 %v2218
        %v5675 = vunpack.c.l.b16 %v2219
        %v5676 = vunpack.c.h.b16 %v2219
        %v5677 = vunpack.c.l.b16 %v2220
        %v5678 = vunpack.c.h.b16 %v2220
        %v5679 = vunpack.c.l.b16 %v2221
        %v5680 = vunpack.c.h.b16 %v2221
        %v5681 = vunpack.c.l.b16 %v2222
        %v5682 = vunpack.c.h.b16 %v2222
        %v5683 = vunpack.c.l.b16 %v2223
        %v5684 = vunpack.c.h.b16 %v2223
        %v5685 = vunpack.c.l.b16 %v2224
        %v5686 = vunpack.c.h.b16 %v2224
        %v5687 = vunpack.c.l.b16 %v2225
        %v5688 = vunpack.c.h.b16 %v2225
        %v5689 = vunpack.c.l.b16 %v2226
        %v5690 = vunpack.c.h.b16 %v2226
        %v5691 = vunpack.c.l.b16 %v2227
        %v5692 = vunpack.c.h.b16 %v2227
        %v5693 = vunpack.c.l.b16 %v2228
        %v5694 = vunpack.c.h.b16 %v2228
        %v5695 = vunpack.c.l.b16 %v2229
        %v5696 = vunpack.c.h.b16 %v2229
        %v5697 = vunpack.c.l.b16 %v2230
        %v5698 = vunpack.c.h.b16 %v2230
        %v5699 = vunpack.c.l.b16 %v2231
        %v5700 = vunpack.c.h.b16 %v2231
        %v5701 = vunpack.c.l.b16 %v2232
        %v5702 = vunpack.c.h.b16 %v2232
        %v5703 = vunpack.c.l.b16 %v2233
        %v5704 = vunpack.c.h.b16 %v2233
        %v5705 = vunpack.c.l.b16 %v2234
        %v5706 = vunpack.c.h.b16 %v2234
        %v5707 = vunpack.c.l.b16 %v2235
        %v5708 = vunpack.c.h.b16 %v2235
        %v5709 = vunpack.c.l.b16 %v2236
        %v5710 = vunpack.c.h.b16 %v2236
        %v5711 = vunpack.c.l.b16 %v2237
        %v5712 = vunpack.c.h.b16 %v2237
        %v5713 = vunpack.c.l.b16 %v2238
        %v5714 = vunpack.c.h.b16 %v2238
        %v5715 = vunpack.c.l.b16 %v2239
        %v5716 = vunpack.c.h.b16 %v2239
        %v5717 = vunpack.c.l.b16 %v2240
        %v5718 = vunpack.c.h.b16 %v2240
        %v5719 = vunpack.c.l.b16 %v2241
        %v5720 = vunpack.c.h.b16 %v2241
        %v5721 = vunpack.c.l.b16 %v2242
        %v5722 = vunpack.c.h.b16 %v2242
        %v5723 = vunpack.c.l.b16 %v2243
        %v5724 = vunpack.c.h.b16 %v2243
        %v5725 = vunpack.c.l.b16 %v2244
        %v5726 = vunpack.c.h.b16 %v2244
        %v5727 = vunpack.c.l.b16 %v2245
        %v5728 = vunpack.c.h.b16 %v2245
        %v5729 = vunpack.c.l.b16 %v2246
        %v5730 = vunpack.c.h.b16 %v2246
        %v5731 = vunpack.c.l.b16 %v2247
        %v5732 = vunpack.c.h.b16 %v2247
        %v5733 = vunpack.c.l.b16 %v2248
        %v5734 = vunpack.c.h.b16 %v2248
        %v5735 = vunpack.c.l.b16 %v2249
        %v5736 = vunpack.c.h.b16 %v2249
        %v5737 = vunpack.c.l.b16 %v2250
        %v5738 = vunpack.c.h.b16 %v2250
        %v5739 = vunpack.c.l.b16 %v2251
        %v5740 = vunpack.c.h.b16 %v2251
        %v5741 = vunpack.c.l.b16 %v2252
        %v5742 = vunpack.c.h.b16 %v2252
        %v5743 = vunpack.c.l.b16 %v2253
        %v5744 = vunpack.c.h.b16 %v2253
        %v5745 = vunpack.c.l.b16 %v2254
        %v5746 = vunpack.c.h.b16 %v2254
        %v5747 = vunpack.c.l.b16 %v2255
        %v5748 = vunpack.c.h.b16 %v2255
        %v5749 = vunpack.c.l.b16 %v2256
        %v5750 = vunpack.c.h.b16 %v2256
        %v5751 = vunpack.c.l.b16 %v2257
        %v5752 = vunpack.c.h.b16 %v2257
        %v5753 = vunpack.c.l.b16 %v2258
        %v5754 = vunpack.c.h.b16 %v2258
        %v5755 = vunpack.c.l.b16 %v2259
        %v5756 = vunpack.c.h.b16 %v2259
        %v5757 = vunpack.c.l.b16 %v2260
        %v5758 = vunpack.c.h.b16 %v2260
        %v5759 = vunpack.c.l.b16 %v2261
        %v5760 = vunpack.c.h.b16 %v2261
        %v5761 = vunpack.c.l.b16 %v2262
        %v5762 = vunpack.c.h.b16 %v2262
        %v5763 = vunpack.c.l.b16 %v2263
        %v5764 = vunpack.c.h.b16 %v2263
        %v5765 = vunpack.c.l.b16 %v2264
        %v5766 = vunpack.c.h.b16 %v2264
        %v5767 = vunpack.c.l.b16 %v2265
        %v5768 = vunpack.c.h.b16 %v2265
        %v5769 = vunpack.c.l.b16 %v2266
        %v5770 = vunpack.c.h.b16 %v2266
        %v5771 = vunpack.c.l.b16 %v2267
        %v5772 = vunpack.c.h.b16 %v2267
        %v5773 = vunpack.c.l.b16 %v2268
        %v5774 = vunpack.c.h.b16 %v2268
        %v5775 = vunpack.c.l.b16 %v2269
        %v5776 = vunpack.c.h.b16 %v2269
        %v5777 = vunpack.c.l.b16 %v2270
        %v5778 = vunpack.c.h.b16 %v2270
        %v5779 = vunpack.c.l.b16 %v2271
        %v5780 = vunpack.c.h.b16 %v2271
        %v5781 = vunpack.c.l.b16 %v2272
        %v5782 = vunpack.c.h.b16 %v2272
        %v5783 = vunpack.c.l.b16 %v2273
        %v5784 = vunpack.c.h.b16 %v2273
        %v5785 = vunpack.c.l.b16 %v2274
        %v5786 = vunpack.c.h.b16 %v2274
        %v5787 = vunpack.c.l.b16 %v2275
        %v5788 = vunpack.c.h.b16 %v2275
        %v5789 = vunpack.c.l.b16 %v2276
        %v5790 = vunpack.c.h.b16 %v2276
        %v5791 = vunpack.c.l.b16 %v2277
        %v5792 = vunpack.c.h.b16 %v2277
        %v5793 = vunpack.c.l.b16 %v2278
        %v5794 = vunpack.c.h.b16 %v2278
        %v5795 = vunpack.c.l.b16 %v2279
        %v5796 = vunpack.c.h.b16 %v2279
        %v5797 = vunpack.c.l.b16 %v2280
        %v5798 = vunpack.c.h.b16 %v2280
        %v5799 = vunpack.c.l.b16 %v2281
        %v5800 = vunpack.c.h.b16 %v2281
        %v5801 = vunpack.c.l.b16 %v2282
        %v5802 = vunpack.c.h.b16 %v2282
        %v5803 = vunpack.c.l.b16 %v2283
        %v5804 = vunpack.c.h.b16 %v2283
        %v5805 = vunpack.c.l.b16 %v2284
        %v5806 = vunpack.c.h.b16 %v2284
        %v5807 = vunpack.c.l.b16 %v2285
        %v5808 = vunpack.c.h.b16 %v2285
        %v5809 = vunpack.c.l.b16 %v2286
        %v5810 = vunpack.c.h.b16 %v2286
        %v5811 = vunpack.c.l.b16 %v2287
        %v5812 = vunpack.c.h.b16 %v2287
        %v5813 = vunpack.c.l.b16 %v2288
        %v5814 = vunpack.c.h.b16 %v2288
        %v5815 = vunpack.c.l.b16 %v2289
        %v5816 = vunpack.c.h.b16 %v2289
        %v5817 = vunpack.c.l.b16 %v2290
        %v5818 = vunpack.c.h.b16 %v2290
        %v5819 = vunpack.c.l.b16 %v2291
        %v5820 = vunpack.c.h.b16 %v2291
        %v5821 = vunpack.c.l.b16 %v2292
        %v5822 = vunpack.c.h.b16 %v2292
        %v5823 = vunpack.c.l.b16 %v2293
        %v5824 = vunpack.c.h.b16 %v2293
        %v5825 = vunpack.c.l.b16 %v2294
        %v5826 = vunpack.c.h.b16 %v2294
        %v5827 = vunpack.c.l.b16 %v2295
        %v5828 = vunpack.c.h.b16 %v2295
        %v5829 = vunpack.c.l.b16 %v2296
        %v5830 = vunpack.c.h.b16 %v2296
        %v5831 = vunpack.c.l.b16 %v2297
        %v5832 = vunpack.c.h.b16 %v2297
        %v5833 = vunpack.c.l.b16 %v2298
        %v5834 = vunpack.c.h.b16 %v2298
        %v5835 = vunpack.c.l.b16 %v2299
        %v5836 = vunpack.c.h.b16 %v2299
        %v5837 = vunpack.c.l.b16 %v2300
        %v5838 = vunpack.c.h.b16 %v2300
        %v5839 = vunpack.c.l.b16 %v2301
        %v5840 = vunpack.c.h.b16 %v2301
        %v5841 = vunpack.c.l.b16 %v2302
        %v5842 = vunpack.c.h.b16 %v2302
        %v5843 = vunpack.c.l.b16 %v2303
        %v5844 = vunpack.c.h.b16 %v2303
        %v5845 = vunpack.c.l.b16 %v2304
        %v5846 = vunpack.c.h.b16 %v2304
        %v5847 = vunpack.c.l.b16 %v2305
        %v5848 = vunpack.c.h.b16 %v2305
        %v5849 = vunpack.c.l.b16 %v2306
        %v5850 = vunpack.c.h.b16 %v2306
        %v5851 = vunpack.c.l.b16 %v2307
        %v5852 = vunpack.c.h.b16 %v2307
        %v5853 = vunpack.c.l.b16 %v2308
        %v5854 = vunpack.c.h.b16 %v2308
        %v5855 = vunpack.c.l.b16 %v2309
        %v5856 = vunpack.c.h.b16 %v2309
        %v5857 = vunpack.c.l.b16 %v2310
        %v5858 = vunpack.c.h.b16 %v2310
        %v5859 = vunpack.c.l.b16 %v2311
        %v5860 = vunpack.c.h.b16 %v2311
        %v5861 = vunpack.c.l.b16 %v2312
        %v5862 = vunpack.c.h.b16 %v2312
        %v5863 = vunpack.c.l.b16 %v2313
        %v5864 = vunpack.c.h.b16 %v2313
        %v5865 = vunpack.c.l.b16 %v2314
        %v5866 = vunpack.c.h.b16 %v2314
        %v5867 = vunpack.c.l.b16 %v2315
        %v5868 = vunpack.c.h.b16 %v2315
        %v5869 = vunpack.c.l.b16 %v2316
        %v5870 = vunpack.c.h.b16 %v2316
        %v5871 = vunpack.c.l.b16 %v2317
        %v5872 = vunpack.c.h.b16 %v2317
        %v5873 = vunpack.c.l.b16 %v2318
        %v5874 = vunpack.c.h.b16 %v2318
        %v5875 = vunpack.c.l.b16 %v2319
        %v5876 = vunpack.c.h.b16 %v2319
        %v5877 = vunpack.c.l.b16 %v2320
        %v5878 = vunpack.c.h.b16 %v2320
        %v5879 = vunpack.c.l.b16 %v2321
        %v5880 = vunpack.c.h.b16 %v2321
        %v5881 = vunpack.c.l.b16 %v2322
        %v5882 = vunpack.c.h.b16 %v2322
        %v5883 = vunpack.c.l.b16 %v2323
        %v5884 = vunpack.c.h.b16 %v2323
        %v5885 = vunpack.c.l.b16 %v2324
        %v5886 = vunpack.c.h.b16 %v2324
        %v5887 = vunpack.c.l.b16 %v2325
        %v5888 = vunpack.c.h.b16 %v2325
        %v5889 = vunpack.c.l.b16 %v2326
        %v5890 = vunpack.c.h.b16 %v2326
        %v5891 = vunpack.c.l.b16 %v2327
        %v5892 = vunpack.c.h.b16 %v2327
        %v5893 = vunpack.c.l.b16 %v2328
        %v5894 = vunpack.c.h.b16 %v2328
        %v5895 = vunpack.c.l.b16 %v2329
        %v5896 = vunpack.c.h.b16 %v2329
        %v5897 = vunpack.c.l.b16 %v2330
        %v5898 = vunpack.c.h.b16 %v2330
        %v5899 = vunpack.c.l.b16 %v2331
        %v5900 = vunpack.c.h.b16 %v2331
        %v5901 = vunpack.c.l.b16 %v2332
        %v5902 = vunpack.c.h.b16 %v2332
        %v5903 = vunpack.c.l.b16 %v2333
        %v5904 = vunpack.c.h.b16 %v2333
        %v5905 = vunpack.c.l.b16 %v2334
        %v5906 = vunpack.c.h.b16 %v2334
        %v5907 = vunpack.c.l.b16 %v2335
        %v5908 = vunpack.c.h.b16 %v2335
        %v5909 = vunpack.c.l.b16 %v2336
        %v5910 = vunpack.c.h.b16 %v2336
        %v5911 = vunpack.c.l.b16 %v2337
        %v5912 = vunpack.c.h.b16 %v2337
        %v5913 = vunpack.c.l.b16 %v2338
        %v5914 = vunpack.c.h.b16 %v2338
        %v5915 = vunpack.c.l.b16 %v2339
        %v5916 = vunpack.c.h.b16 %v2339
        %v5917 = vunpack.c.l.b16 %v2340
        %v5918 = vunpack.c.h.b16 %v2340
        %v5919 = vunpack.c.l.b16 %v2341
        %v5920 = vunpack.c.h.b16 %v2341
        %v5921 = vunpack.c.l.b16 %v2342
        %v5922 = vunpack.c.h.b16 %v2342
        %v5923 = vunpack.c.l.b16 %v2343
        %v5924 = vunpack.c.h.b16 %v2343
        %v5925 = vunpack.c.l.b16 %v2344
        %v5926 = vunpack.c.h.b16 %v2344
        %v5927 = vunpack.c.l.b16 %v2345
        %v5928 = vunpack.c.h.b16 %v2345
        %v5929 = vunpack.c.l.b16 %v2346
        %v5930 = vunpack.c.h.b16 %v2346
        %v5931 = vunpack.c.l.b16 %v2347
        %v5932 = vunpack.c.h.b16 %v2347
        %v5933 = vunpack.c.l.b16 %v2348
        %v5934 = vunpack.c.h.b16 %v2348
        %v5935 = vunpack.c.l.b16 %v2349
        %v5936 = vunpack.c.h.b16 %v2349
        %v5937 = vunpack.c.l.b16 %v2350
        %v5938 = vunpack.c.h.b16 %v2350
        %v5939 = vunpack.c.l.b16 %v2351
        %v5940 = vunpack.c.h.b16 %v2351
        %v5941 = vunpack.c.l.b16 %v2352
        %v5942 = vunpack.c.h.b16 %v2352
        %v5943 = vunpack.c.l.b16 %v2353
        %v5944 = vunpack.c.h.b16 %v2353
        %v5945 = vunpack.c.l.b16 %v2354
        %v5946 = vunpack.c.h.b16 %v2354
        %v5947 = vunpack.c.l.b16 %v2355
        %v5948 = vunpack.c.h.b16 %v2355
        %v5949 = vunpack.c.l.b16 %v2356
        %v5950 = vunpack.c.h.b16 %v2356
        %v5951 = vunpack.c.l.b16 %v2357
        %v5952 = vunpack.c.h.b16 %v2357
        %v5953 = vunpack.c.l.b16 %v2358
        %v5954 = vunpack.c.h.b16 %v2358
        %v5955 = vunpack.c.l.b16 %v2359
        %v5956 = vunpack.c.h.b16 %v2359
        %v5957 = vunpack.c.l.b16 %v2360
        %v5958 = vunpack.c.h.b16 %v2360
        %v5959 = vunpack.c.l.b16 %v2361
        %v5960 = vunpack.c.h.b16 %v2361
        %v5961 = vunpack.c.l.b16 %v2362
        %v5962 = vunpack.c.h.b16 %v2362
        %v5963 = vunpack.c.l.b16 %v2363
        %v5964 = vunpack.c.h.b16 %v2363
        %v5965 = vunpack.c.l.b16 %v2364
        %v5966 = vunpack.c.h.b16 %v2364
        %v5967 = vunpack.c.l.b16 %v2365
        %v5968 = vunpack.c.h.b16 %v2365
        %v5969 = vunpack.c.l.b16 %v2366
        %v5970 = vunpack.c.h.b16 %v2366
        %v5971 = vunpack.c.l.b16 %v2367
        %v5972 = vunpack.c.h.b16 %v2367
        %v5973 = vunpack.c.l.b16 %v2368
        %v5974 = vunpack.c.h.b16 %v2368
        %v5975 = vunpack.c.l.b16 %v2369
        %v5976 = vunpack.c.h.b16 %v2369
        %v5977 = vunpack.c.l.b16 %v2370
        %v5978 = vunpack.c.h.b16 %v2370
        %v5979 = vunpack.c.l.b16 %v2371
        %v5980 = vunpack.c.h.b16 %v2371
        %v5981 = vunpack.c.l.b16 %v2372
        %v5982 = vunpack.c.h.b16 %v2372
        %v5983 = vunpack.c.l.b16 %v2373
        %v5984 = vunpack.c.h.b16 %v2373
        %v5985 = vunpack.c.l.b16 %v2374
        %v5986 = vunpack.c.h.b16 %v2374
        %v5987 = vunpack.c.l.b16 %v2375
        %v5988 = vunpack.c.h.b16 %v2375
        %v5989 = vunpack.c.l.b16 %v2376
        %v5990 = vunpack.c.h.b16 %v2376
        %v5991 = vunpack.c.l.b16 %v2377
        %v5992 = vunpack.c.h.b16 %v2377
        %v5993 = vunpack.c.l.b16 %v2378
        %v5994 = vunpack.c.h.b16 %v2378
        %v5995 = vunpack.c.l.b16 %v2379
        %v5996 = vunpack.c.h.b16 %v2379
        %v5997 = vunpack.c.l.b16 %v2380
        %v5998 = vunpack.c.h.b16 %v2380
        %v5999 = vunpack.c.l.b16 %v2381
        %v6000 = vunpack.c.h.b16 %v2381
        %v6001 = vunpack.c.l.b16 %v2382
        %v6002 = vunpack.c.h.b16 %v2382
        %v6003 = vunpack.c.l.b16 %v2383
        %v6004 = vunpack.c.h.b16 %v2383
        %v6005 = vunpack.c.l.b16 %v2384
        %v6006 = vunpack.c.h.b16 %v2384
        %v6007 = vunpack.c.l.b16 %v2385
        %v6008 = vunpack.c.h.b16 %v2385
        %v6009 = vunpack.c.l.b16 %v2386
        %v6010 = vunpack.c.h.b16 %v2386
        %v6011 = vunpack.c.l.b16 %v2387
        %v6012 = vunpack.c.h.b16 %v2387
        %v6013 = vunpack.c.l.b16 %v2388
        %v6014 = vunpack.c.h.b16 %v2388
        %v6015 = vunpack.c.l.b16 %v2389
        %v6016 = vunpack.c.h.b16 %v2389
        %v6017 = vunpack.c.l.b16 %v2390
        %v6018 = vunpack.c.h.b16 %v2390
        %v6019 = vunpack.c.l.b16 %v2391
        %v6020 = vunpack.c.h.b16 %v2391
        %v6021 = vunpack.c.l.b16 %v2392
        %v6022 = vunpack.c.h.b16 %v2392
        %v6023 = vunpack.c.l.b16 %v2393
        %v6024 = vunpack.c.h.b16 %v2393
        %v6025 = vunpack.c.l.b16 %v2394
        %v6026 = vunpack.c.h.b16 %v2394
        %v6027 = vunpack.c.l.b16 %v2395
        %v6028 = vunpack.c.h.b16 %v2395
        %v6029 = vunpack.c.l.b16 %v2396
        %v6030 = vunpack.c.h.b16 %v2396
        %v6031 = vunpack.c.l.b16 %v2397
        %v6032 = vunpack.c.h.b16 %v2397
        %v6033 = vunpack.c.l.b16 %v2398
        %v6034 = vunpack.c.h.b16 %v2398
        %v6035 = vunpack.c.l.b16 %v2399
        %v6036 = vunpack.c.h.b16 %v2399
        %v6037 = vunpack.c.l.b16 %v2400
        %v6038 = vunpack.c.h.b16 %v2400
        %v6039 = vunpack.c.l.b16 %v2401
        %v6040 = vunpack.c.h.b16 %v2401
        %v6041 = vunpack.c.l.b16 %v2402
        %v6042 = vunpack.c.h.b16 %v2402
        %v6043 = vunpack.c.l.b16 %v2403
        %v6044 = vunpack.c.h.b16 %v2403
        %v6045 = vunpack.c.l.b16 %v2404
        %v6046 = vunpack.c.h.b16 %v2404
        %v6047 = vunpack.c.l.b16 %v2405
        %v6048 = vunpack.c.h.b16 %v2405
        %v6049 = vunpack.c.l.b16 %v2406
        %v6050 = vunpack.c.h.b16 %v2406
        %v6051 = vunpack.c.l.b16 %v2407
        %v6052 = vunpack.c.h.b16 %v2407
        %v6053 = vunpack.c.l.b16 %v2408
        %v6054 = vunpack.c.h.b16 %v2408
        %v6055 = vunpack.c.l.b16 %v2409
        %v6056 = vunpack.c.h.b16 %v2409
        %v6057 = vunpack.c.l.b16 %v2410
        %v6058 = vunpack.c.h.b16 %v2410
        %v6059 = vunpack.c.l.b16 %v2411
        %v6060 = vunpack.c.h.b16 %v2411
        %v6061 = vunpack.c.l.b16 %v2412
        %v6062 = vunpack.c.h.b16 %v2412
        %v6063 = vunpack.c.l.b16 %v2413
        %v6064 = vunpack.c.h.b16 %v2413
        %v6065 = vunpack.c.l.b16 %v2414
        %v6066 = vunpack.c.h.b16 %v2414
        %v6067 = vunpack.c.l.b16 %v2415
        %v6068 = vunpack.c.h.b16 %v2415
        %v6069 = vunpack.c.l.b16 %v2416
        %v6070 = vunpack.c.h.b16 %v2416
        %v6071 = vunpack.c.l.b16 %v2417
        %v6072 = vunpack.c.h.b16 %v2417
        %v6073 = vunpack.c.l.b16 %v2418
        %v6074 = vunpack.c.h.b16 %v2418
        %v6075 = vunpack.c.l.b16 %v2419
        %v6076 = vunpack.c.h.b16 %v2419
        %v6077 = vunpack.c.l.b16 %v2420
        %v6078 = vunpack.c.h.b16 %v2420
        %v6079 = vunpack.c.l.b16 %v2421
        %v6080 = vunpack.c.h.b16 %v2421
        %v6081 = vunpack.c.l.b16 %v2422
        %v6082 = vunpack.c.h.b16 %v2422
        %v6083 = vunpack.c.l.b16 %v2423
        %v6084 = vunpack.c.h.b16 %v2423
        %v6085 = vunpack.c.l.b16 %v2424
        %v6086 = vunpack.c.h.b16 %v2424
        %v6087 = vunpack.c.l.b16 %v2425
        %v6088 = vunpack.c.h.b16 %v2425
        %v6089 = vunpack.c.l.b16 %v2426
        %v6090 = vunpack.c.h.b16 %v2426
        %v6091 = vunpack.c.l.b16 %v2427
        %v6092 = vunpack.c.h.b16 %v2427
        %v6093 = vunpack.c.l.b16 %v2428
        %v6094 = vunpack.c.h.b16 %v2428
        %v6095 = vunpack.c.l.b16 %v2429
        %v6096 = vunpack.c.h.b16 %v2429
        %v6097 = vunpack.c.l.b16 %v2430
        %v6098 = vunpack.c.h.b16 %v2430
        %v6099 = vunpack.c.l.b16 %v2431
        %v6100 = vunpack.c.h.b16 %v2431
        %v6101 = vunpack.c.l.b16 %v2432
        %v6102 = vunpack.c.h.b16 %v2432
        %v6103 = vunpack.c.l.b16 %v2433
        %v6104 = vunpack.c.h.b16 %v2433
        %v6105 = vunpack.c.l.b16 %v2434
        %v6106 = vunpack.c.h.b16 %v2434
        %v6107 = vunpack.c.l.b16 %v2435
        %v6108 = vunpack.c.h.b16 %v2435
        %v6109 = vunpack.c.l.b16 %v2436
        %v6110 = vunpack.c.h.b16 %v2436
        %v6111 = vunpack.c.l.b16 %v2437
        %v6112 = vunpack.c.h.b16 %v2437
        %v6113 = vunpack.c.l.b16 %v2438
        %v6114 = vunpack.c.h.b16 %v2438
        %v6115 = vunpack.c.l.b16 %v2439
        %v6116 = vunpack.c.h.b16 %v2439
        %v6117 = vunpack.c.l.b16 %v2440
        %v6118 = vunpack.c.h.b16 %v2440
        %v6119 = vunpack.c.l.b16 %v2441
        %v6120 = vunpack.c.h.b16 %v2441
        %v6121 = vunpack.c.l.b16 %v2442
        %v6122 = vunpack.c.h.b16 %v2442
        %v6123 = vunpack.c.l.b16 %v2443
        %v6124 = vunpack.c.h.b16 %v2443
        %v6125 = vunpack.c.l.b16 %v2444
        %v6126 = vunpack.c.h.b16 %v2444
        %v6127 = vunpack.c.l.b16 %v2445
        %v6128 = vunpack.c.h.b16 %v2445
        %v6129 = vunpack.c.l.b16 %v2446
        %v6130 = vunpack.c.h.b16 %v2446
        %v6131 = vunpack.c.l.b16 %v2447
        %v6132 = vunpack.c.h.b16 %v2447
        %v6133 = vunpack.c.l.b16 %v2448
        %v6134 = vunpack.c.h.b16 %v2448
        %v6135 = vunpack.c.l.b16 %v2449
        %v6136 = vunpack.c.h.b16 %v2449
        %v6137 = vunpack.c.l.b16 %v2450
        %v6138 = vunpack.c.h.b16 %v2450
        %v6139 = vunpack.c.l.b16 %v2451
        %v6140 = vunpack.c.h.b16 %v2451
        %v6141 = vunpack.c.l.b16 %v2452
        %v6142 = vunpack.c.h.b16 %v2452
        %v6143 = vunpack.c.l.b16 %v2453
        %v6144 = vunpack.c.h.b16 %v2453
        %v6145 = vunpack.c.l.b16 %v2454
        %v6146 = vunpack.c.h.b16 %v2454
        %v6147 = vunpack.c.l.b16 %v2455
        %v6148 = vunpack.c.h.b16 %v2455
        %v6149 = vunpack.c.l.b16 %v2456
        %v6150 = vunpack.c.h.b16 %v2456
        %v6151 = vunpack.c.l.b16 %v2457
        %v6152 = vunpack.c.h.b16 %v2457
        %v6153 = vunpack.c.l.b16 %v2458
        %v6154 = vunpack.c.h.b16 %v2458
        %v6155 = vunpack.c.l.b16 %v2459
        %v6156 = vunpack.c.h.b16 %v2459
        %v6157 = vunpack.c.l.b16 %v2460
        %v6158 = vunpack.c.h.b16 %v2460
        %v6159 = vunpack.c.l.b16 %v2461
        %v6160 = vunpack.c.h.b16 %v2461
        %v6161 = vunpack.c.l.b16 %v2462
        %v6162 = vunpack.c.h.b16 %v2462
        %v6163 = vunpack.c.l.b16 %v2463
        %v6164 = vunpack.c.h.b16 %v2463
        %v6165 = vunpack.c.l.b16 %v2464
        %v6166 = vunpack.c.h.b16 %v2464
        %v6167 = vunpack.c.l.b16 %v2465
        %v6168 = vunpack.c.h.b16 %v2465
        %v6169 = vunpack.c.l.b16 %v2466
        %v6170 = vunpack.c.h.b16 %v2466
        %v6171 = vunpack.c.l.b16 %v2467
        %v6172 = vunpack.c.h.b16 %v2467
        %v6173 = vunpack.c.l.b16 %v2468
        %v6174 = vunpack.c.h.b16 %v2468
        %v6175 = vunpack.c.l.b16 %v2469
        %v6176 = vunpack.c.h.b16 %v2469
        %v6177 = vunpack.c.l.b16 %v2470
        %v6178 = vunpack.c.h.b16 %v2470
        %v6179 = vunpack.c.l.b16 %v2471
        %v6180 = vunpack.c.h.b16 %v2471
        %v6181 = vunpack.c.l.b16 %v2472
        %v6182 = vunpack.c.h.b16 %v2472
        %v6183 = vunpack.c.l.b16 %v2473
        %v6184 = vunpack.c.h.b16 %v2473
        %v6185 = vunpack.c.l.b16 %v2474
        %v6186 = vunpack.c.h.b16 %v2474
        %v6187 = vunpack.c.l.b16 %v2475
        %v6188 = vunpack.c.h.b16 %v2475
        %v6189 = vunpack.c.l.b16 %v2476
        %v6190 = vunpack.c.h.b16 %v2476
        %v6191 = vunpack.c.l.b16 %v2477
        %v6192 = vunpack.c.h.b16 %v2477
        %v6193 = vunpack.c.l.b16 %v2478
        %v6194 = vunpack.c.h.b16 %v2478
        %v6195 = vunpack.c.l.b16 %v2479
        %v6196 = vunpack.c.h.b16 %v2479
        %v6197 = vunpack.c.l.b16 %v2480
        %v6198 = vunpack.c.h.b16 %v2480
        %v6199 = vunpack.c.l.b16 %v2481
        %v6200 = vunpack.c.h.b16 %v2481
        %v6201 = vunpack.c.l.b16 %v2482
        %v6202 = vunpack.c.h.b16 %v2482
        %v6203 = vunpack.c.l.b16 %v2483
        %v6204 = vunpack.c.h.b16 %v2483
        %v6205 = vunpack.c.l.b16 %v2484
        %v6206 = vunpack.c.h.b16 %v2484
        %v6207 = vunpack.c.l.b16 %v2485
        %v6208 = vunpack.c.h.b16 %v2485
        %v6209 = vunpack.c.l.b16 %v2486
        %v6210 = vunpack.c.h.b16 %v2486
        %v6211 = vunpack.c.l.b16 %v2487
        %v6212 = vunpack.c.h.b16 %v2487
        %v6213 = vunpack.c.l.b16 %v2488
        %v6214 = vunpack.c.h.b16 %v2488
        %v6215 = vunpack.c.l.b16 %v2489
        %v6216 = vunpack.c.h.b16 %v2489
        %v6217 = vunpack.c.l.b16 %v2490
        %v6218 = vunpack.c.h.b16 %v2490
        %v6219 = vunpack.c.l.b16 %v2491
        %v6220 = vunpack.c.h.b16 %v2491
        %v6221 = vunpack.c.l.b16 %v2492
        %v6222 = vunpack.c.h.b16 %v2492
        %v6223 = vunpack.c.l.b16 %v2493
        %v6224 = vunpack.c.h.b16 %v2493
        %v6225 = vunpack.c.l.b16 %v2494
        %v6226 = vunpack.c.h.b16 %v2494
        %v6227 = vunpack.c.l.b16 %v2495
        %v6228 = vunpack.c.h.b16 %v2495
        %v6229 = vunpack.c.l.b16 %v2496
        %v6230 = vunpack.c.h.b16 %v2496
        %v6231 = vunpack.c.l.b16 %v2497
        %v6232 = vunpack.c.h.b16 %v2497
        %v6233 = vunpack.c.l.b16 %v2498
        %v6234 = vunpack.c.h.b16 %v2498
        %v6235 = vunpack.c.l.b16 %v2499
        %v6236 = vunpack.c.h.b16 %v2499
        %v6237 = vunpack.c.l.b16 %v2500
        %v6238 = vunpack.c.h.b16 %v2500
        %v6239 = vunpack.c.l.b16 %v2501
        %v6240 = vunpack.c.h.b16 %v2501
        %v6241 = vunpack.c.l.b16 %v2502
        %v6242 = vunpack.c.h.b16 %v2502
        %v6243 = vunpack.c.l.b16 %v2503
        %v6244 = vunpack.c.h.b16 %v2503
        %v6245 = vunpack.c.l.b16 %v2504
        %v6246 = vunpack.c.h.b16 %v2504
        %v6247 = vunpack.c.l.b16 %v2505
        %v6248 = vunpack.c.h.b16 %v2505
        %v6249 = vunpack.c.l.b16 %v2506
        %v6250 = vunpack.c.h.b16 %v2506
        %v6251 = vunpack.c.l.b16 %v2507
        %v6252 = vunpack.c.h.b16 %v2507
        %v6253 = vunpack.c.l.b16 %v2508
        %v6254 = vunpack.c.h.b16 %v2508
        %v6255 = vunpack.c.l.b16 %v2509
        %v6256 = vunpack.c.h.b16 %v2509
        %v6257 = vunpack.c.l.b16 %v2510
        %v6258 = vunpack.c.h.b16 %v2510
        %v6259 = vunpack.c.l.b16 %v2511
        %v6260 = vunpack.c.h.b16 %v2511
        %v6261 = vunpack.c.l.b16 %v2512
        %v6262 = vunpack.c.h.b16 %v2512
        %v6263 = vunpack.c.l.b16 %v2513
        %v6264 = vunpack.c.h.b16 %v2513
        %v6265 = vunpack.c.l.b16 %v2514
        %v6266 = vunpack.c.h.b16 %v2514
        %v6267 = vunpack.c.l.b16 %v2515
        %v6268 = vunpack.c.h.b16 %v2515
        %v6269 = vunpack.c.l.b16 %v2516
        %v6270 = vunpack.c.h.b16 %v2516
        %v6271 = vunpack.c.l.b16 %v2517
        %v6272 = vunpack.c.h.b16 %v2517
        %v6273 = vunpack.c.l.b16 %v2518
        %v6274 = vunpack.c.h.b16 %v2518
        %v6275 = vunpack.c.l.b16 %v2519
        %v6276 = vunpack.c.h.b16 %v2519
        %v6277 = vunpack.c.l.b16 %v2520
        %v6278 = vunpack.c.h.b16 %v2520
        %v6279 = vunpack.c.l.b16 %v2521
        %v6280 = vunpack.c.h.b16 %v2521
        %v6281 = vunpack.c.l.b16 %v2522
        %v6282 = vunpack.c.h.b16 %v2522
        %v6283 = vunpack.c.l.b16 %v2523
        %v6284 = vunpack.c.h.b16 %v2523
        %v6285 = vunpack.c.l.b16 %v2524
        %v6286 = vunpack.c.h.b16 %v2524
        %v6287 = vunpack.c.l.b16 %v2525
        %v6288 = vunpack.c.h.b16 %v2525
        %v6289 = vunpack.c.l.b16 %v2526
        %v6290 = vunpack.c.h.b16 %v2526
        %v6291 = vunpack.c.l.b16 %v2527
        %v6292 = vunpack.c.h.b16 %v2527
        %v6293 = vunpack.c.l.b16 %v2528
        %v6294 = vunpack.c.h.b16 %v2528
        %v6295 = vunpack.c.l.b16 %v2529
        %v6296 = vunpack.c.h.b16 %v2529
        %v6297 = vunpack.c.l.b16 %v2530
        %v6298 = vunpack.c.h.b16 %v2530
        %v6299 = vunpack.c.l.b16 %v2531
        %v6300 = vunpack.c.h.b16 %v2531
        %v6301 = vunpack.c.l.b16 %v2532
        %v6302 = vunpack.c.h.b16 %v2532
        %v6303 = vunpack.c.l.b16 %v2533
        %v6304 = vunpack.c.h.b16 %v2533
        %v6305 = vunpack.c.l.b16 %v2534
        %v6306 = vunpack.c.h.b16 %v2534
        %v6307 = vunpack.c.l.b16 %v2535
        %v6308 = vunpack.c.h.b16 %v2535
        %v6309 = vunpack.c.l.b16 %v2536
        %v6310 = vunpack.c.h.b16 %v2536
        %v6311 = vunpack.c.l.b16 %v2537
        %v6312 = vunpack.c.h.b16 %v2537
        %v6313 = vunpack.c.l.b16 %v2538
        %v6314 = vunpack.c.h.b16 %v2538
        %v6315 = vunpack.c.l.b16 %v2539
        %v6316 = vunpack.c.h.b16 %v2539
        %v6317 = vunpack.c.l.b16 %v2540
        %v6318 = vunpack.c.h.b16 %v2540
        %v6319 = vunpack.c.l.b16 %v2541
        %v6320 = vunpack.c.h.b16 %v2541
        %v6321 = vunpack.c.l.b16 %v2542
        %v6322 = vunpack.c.h.b16 %v2542
        %v6323 = vunpack.c.l.b16 %v2543
        %v6324 = vunpack.c.h.b16 %v2543
        %v6325 = vunpack.c.l.b16 %v2544
        %v6326 = vunpack.c.h.b16 %v2544
        %v6327 = vunpack.c.l.b16 %v2545
        %v6328 = vunpack.c.h.b16 %v2545
        %v6329 = vunpack.c.l.b16 %v2546
        %v6330 = vunpack.c.h.b16 %v2546
        %v6331 = vunpack.c.l.b16 %v2547
        %v6332 = vunpack.c.h.b16 %v2547
        %v6333 = vunpack.c.l.b16 %v2548
        %v6334 = vunpack.c.h.b16 %v2548
        %v6335 = vunpack.c.l.b16 %v2549
        %v6336 = vunpack.c.h.b16 %v2549
        %v6337 = vunpack.c.l.b16 %v2550
        %v6338 = vunpack.c.h.b16 %v2550
        %v6339 = vunpack.c.l.b16 %v2551
        %v6340 = vunpack.c.h.b16 %v2551
        %v6341 = vunpack.c.l.b16 %v2552
        %v6342 = vunpack.c.h.b16 %v2552
        %v6343 = vunpack.c.l.b16 %v2553
        %v6344 = vunpack.c.h.b16 %v2553
        %v6345 = vunpack.c.l.b16 %v2554
        %v6346 = vunpack.c.h.b16 %v2554
        %v6347 = vunpack.c.l.b16 %v2555
        %v6348 = vunpack.c.h.b16 %v2555
        %v6349 = vunpack.c.l.b16 %v2556
        %v6350 = vunpack.c.h.b16 %v2556
        %v6351 = vunpack.c.l.b16 %v2557
        %v6352 = vunpack.c.h.b16 %v2557
        %v6353 = vunpack.c.l.b16 %v2558
        %v6354 = vunpack.c.h.b16 %v2558
        %v6355 = vunpack.c.l.b16 %v2559
        %v6356 = vunpack.c.h.b16 %v2559
        %v6357 = vunpack.c.l.b16 %v2560
        %v6358 = vunpack.c.h.b16 %v2560
        %v6359 = vunpack.c.l.b16 %v2561
        %v6360 = vunpack.c.h.b16 %v2561
        %v6361 = vunpack.c.l.b16 %v2562
        %v6362 = vunpack.c.h.b16 %v2562
        %v6363 = vunpack.c.l.b16 %v2563
        %v6364 = vunpack.c.h.b16 %v2563
        %v6365 = vunpack.c.l.b16 %v2564
        %v6366 = vunpack.c.h.b16 %v2564
        %v6367 = vunpack.c.l.b16 %v2565
        %v6368 = vunpack.c.h.b16 %v2565
        %v6369 = vunpack.c.l.b16 %v2566
        %v6370 = vunpack.c.h.b16 %v2566
        %v6371 = vunpack.c.l.b16 %v2567
        %v6372 = vunpack.c.h.b16 %v2567
        %v6373 = vunpack.c.l.b16 %v2568
        %v6374 = vunpack.c.h.b16 %v2568
        %v6375 = vunpack.c.l.b16 %v2569
        %v6376 = vunpack.c.h.b16 %v2569
        %v6377 = vunpack.c.l.b16 %v2570
        %v6378 = vunpack.c.h.b16 %v2570
        %v6379 = vunpack.c.l.b16 %v2571
        %v6380 = vunpack.c.h.b16 %v2571
        %v6381 = vunpack.c.l.b16 %v2572
        %v6382 = vunpack.c.h.b16 %v2572
        %v6383 = vunpack.c.l.b16 %v2573
        %v6384 = vunpack.c.h.b16 %v2573
        %v6385 = vunpack.c.l.b16 %v2574
        %v6386 = vunpack.c.h.b16 %v2574
        %v6387 = vunpack.c.l.b16 %v2575
        %v6388 = vunpack.c.h.b16 %v2575
        %v6389 = vunpack.c.l.b16 %v2576
        %v6390 = vunpack.c.h.b16 %v2576
        %v6391 = vunpack.c.l.b16 %v2577
        %v6392 = vunpack.c.h.b16 %v2577
        %v6393 = vunpack.c.l.b16 %v2578
        %v6394 = vunpack.c.h.b16 %v2578
        %v6395 = vunpack.c.l.b16 %v2579
        %v6396 = vunpack.c.h.b16 %v2579
        %v6397 = vunpack.c.l.b16 %v2580
        %v6398 = vunpack.c.h.b16 %v2580
        %v6399 = vunpack.c.l.b16 %v2581
        %v6400 = vunpack.c.h.b16 %v2581
        %v6401 = vunpack.c.l.b16 %v2582
        %v6402 = vunpack.c.h.b16 %v2582
        %v6403 = vunpack.c.l.b16 %v2583
        %v6404 = vunpack.c.h.b16 %v2583
        %v6405 = vunpack.c.l.b16 %v2584
        %v6406 = vunpack.c.h.b16 %v2584
        %v6407 = vunpack.c.l.b16 %v2585
        %v6408 = vunpack.c.h.b16 %v2585
        %v6409 = vunpack.c.l.b16 %v2586
        %v6410 = vunpack.c.h.b16 %v2586
        %v6411 = vunpack.c.l.b16 %v2587
        %v6412 = vunpack.c.h.b16 %v2587
        %v6413 = vunpack.c.l.b16 %v2588
        %v6414 = vunpack.c.h.b16 %v2588
        %v6415 = vunpack.c.l.b16 %v2589
        %v6416 = vunpack.c.h.b16 %v2589
        %v6417 = vunpack.c.l.b16 %v2590
        %v6418 = vunpack.c.h.b16 %v2590
        %v6419 = vunpack.c.l.b16 %v2591
        %v6420 = vunpack.c.h.b16 %v2591
        %v6421 = vunpack.c.l.b16 %v2592
        %v6422 = vunpack.c.h.b16 %v2592
        %v6423 = vunpack.c.l.b16 %v2593
        %v6424 = vunpack.c.h.b16 %v2593
        %v6425 = vunpack.c.l.b16 %v2594
        %v6426 = vunpack.c.h.b16 %v2594
        %v6427 = vunpack.c.l.b16 %v2595
        %v6428 = vunpack.c.h.b16 %v2595
        %v6429 = vunpack.c.l.b16 %v2596
        %v6430 = vunpack.c.h.b16 %v2596
        %v6431 = vunpack.c.l.b16 %v2597
        %v6432 = vunpack.c.h.b16 %v2597
        %v6433 = vunpack.c.l.b16 %v2598
        %v6434 = vunpack.c.h.b16 %v2598
        %v6435 = vunpack.c.l.b16 %v2599
        %v6436 = vunpack.c.h.b16 %v2599
        %v6437 = vunpack.c.l.b16 %v2600
        %v6438 = vunpack.c.h.b16 %v2600
        %v6439 = vunpack.c.l.b16 %v2601
        %v6440 = vunpack.c.h.b16 %v2601
        %v6441 = vunpack.c.l.b16 %v2602
        %v6442 = vunpack.c.h.b16 %v2602
        %v6443 = vunpack.c.l.b16 %v2603
        %v6444 = vunpack.c.h.b16 %v2603
        %v6445 = vunpack.c.l.b16 %v2604
        %v6446 = vunpack.c.h.b16 %v2604
        %v6447 = vunpack.c.l.b16 %v2605
        %v6448 = vunpack.c.h.b16 %v2605
        %v6449 = vunpack.c.l.b16 %v2606
        %v6450 = vunpack.c.h.b16 %v2606
        %v6451 = vunpack.c.l.b16 %v2607
        %v6452 = vunpack.c.h.b16 %v2607
        %v6453 = vunpack.c.l.b16 %v2608
        %v6454 = vunpack.c.h.b16 %v2608
        %v6455 = vunpack.c.l.b16 %v2609
        %v6456 = vunpack.c.h.b16 %v2609
        %v6457 = vunpack.c.l.b16 %v2610
        %v6458 = vunpack.c.h.b16 %v2610
        %v6459 = vunpack.c.l.b16 %v2611
        %v6460 = vunpack.c.h.b16 %v2611
        %v6461 = vunpack.c.l.b16 %v2612
        %v6462 = vunpack.c.h.b16 %v2612
        %v6463 = vunpack.c.l.b16 %v2613
        %v6464 = vunpack.c.h.b16 %v2613
        %v6465 = vunpack.c.l.b16 %v2614
        %v6466 = vunpack.c.h.b16 %v2614
        %v6467 = vunpack.c.l.b16 %v2615
        %v6468 = vunpack.c.h.b16 %v2615
        %v6469 = vunpack.c.l.b16 %v2616
        %v6470 = vunpack.c.h.b16 %v2616
        %v6471 = vunpack.c.l.b16 %v2617
        %v6472 = vunpack.c.h.b16 %v2617
        %v6473 = vunpack.c.l.b16 %v2618
        %v6474 = vunpack.c.h.b16 %v2618
        %v6475 = vunpack.c.l.b16 %v2619
        %v6476 = vunpack.c.h.b16 %v2619
        %v6477 = vunpack.c.l.b16 %v2620
        %v6478 = vunpack.c.h.b16 %v2620
        %v6479 = vunpack.c.l.b16 %v2621
        %v6480 = vunpack.c.h.b16 %v2621
        %v6481 = vunpack.c.l.b16 %v2622
        %v6482 = vunpack.c.h.b16 %v2622
        %v6483 = vunpack.c.l.b16 %v2623
        %v6484 = vunpack.c.h.b16 %v2623
        %v6485 = vunpack.c.l.b16 %v2624
        %v6486 = vunpack.c.h.b16 %v2624
        %v6487 = vunpack.c.l.b16 %v2625
        %v6488 = vunpack.c.h.b16 %v2625
        %v6489 = vunpack.c.l.b16 %v2626
        %v6490 = vunpack.c.h.b16 %v2626
        %v6491 = vunpack.c.l.b16 %v2627
        %v6492 = vunpack.c.h.b16 %v2627
        %v6493 = vunpack.c.l.b16 %v2628
        %v6494 = vunpack.c.h.b16 %v2628
        %v6495 = vunpack.c.l.b16 %v2629
        %v6496 = vunpack.c.h.b16 %v2629
        %v6497 = vunpack.c.l.b16 %v2630
        %v6498 = vunpack.c.h.b16 %v2630
        %v6499 = vunpack.c.l.b16 %v2631
        %v6500 = vunpack.c.h.b16 %v2631
        %v6501 = vunpack.c.l.b16 %v2632
        %v6502 = vunpack.c.h.b16 %v2632
        %v6503 = vunpack.c.l.b16 %v2633
        %v6504 = vunpack.c.h.b16 %v2633
        %v6505 = vunpack.c.l.b16 %v2634
        %v6506 = vunpack.c.h.b16 %v2634
        %v6507 = vunpack.c.l.b16 %v2635
        %v6508 = vunpack.c.h.b16 %v2635
        %v6509 = vunpack.c.l.b16 %v2636
        %v6510 = vunpack.c.h.b16 %v2636
        %v6511 = vunpack.c.l.b16 %v2637
        %v6512 = vunpack.c.h.b16 %v2637
        %v6513 = vunpack.c.l.b16 %v2638
        %v6514 = vunpack.c.h.b16 %v2638
        %v6515 = vunpack.c.l.b16 %v2639
        %v6516 = vunpack.c.h.b16 %v2639
        %v6517 = vunpack.c.l.b16 %v2640
        %v6518 = vunpack.c.h.b16 %v2640
        %v6519 = vunpack.c.l.b16 %v2641
        %v6520 = vunpack.c.h.b16 %v2641
        %v6521 = vunpack.c.l.b16 %v2642
        %v6522 = vunpack.c.h.b16 %v2642
        %v6523 = vunpack.c.l.b16 %v2643
        %v6524 = vunpack.c.h.b16 %v2643
        %v6525 = vunpack.c.l.b16 %v2644
        %v6526 = vunpack.c.h.b16 %v2644
        %v6527 = vunpack.c.l.b16 %v2645
        %v6528 = vunpack.c.h.b16 %v2645
        %v6529 = vunpack.c.l.b16 %v2646
        %v6530 = vunpack.c.h.b16 %v2646
        %v6531 = vunpack.c.l.b16 %v2647
        %v6532 = vunpack.c.h.b16 %v2647
        %v6533 = vunpack.c.l.b16 %v2648
        %v6534 = vunpack.c.h.b16 %v2648
        %v6535 = vunpack.c.l.b16 %v2649
        %v6536 = vunpack.c.h.b16 %v2649
        %v6537 = vunpack.c.l.b16 %v2650
        %v6538 = vunpack.c.h.b16 %v2650
        %v6539 = vunpack.c.l.b16 %v2651
        %v6540 = vunpack.c.h.b16 %v2651
        %v6541 = vunpack.c.l.b16 %v2652
        %v6542 = vunpack.c.h.b16 %v2652
        %v6543 = vunpack.c.l.b16 %v2653
        %v6544 = vunpack.c.h.b16 %v2653
        %v6545 = vunpack.c.l.b16 %v2654
        %v6546 = vunpack.c.h.b16 %v2654
        %v6547 = vunpack.c.l.b16 %v2655
        %v6548 = vunpack.c.h.b16 %v2655
        %v6549 = vunpack.c.l.b16 %v2656
        %v6550 = vunpack.c.h.b16 %v2656
        %v6551 = vunpack.c.l.b16 %v2657
        %v6552 = vunpack.c.h.b16 %v2657
        %v6553 = vunpack.c.l.b16 %v2658
        %v6554 = vunpack.c.h.b16 %v2658
        %v6555 = vunpack.c.l.b16 %v2659
        %v6556 = vunpack.c.h.b16 %v2659
        %v6557 = vunpack.c.l.b16 %v2660
        %v6558 = vunpack.c.h.b16 %v2660
        %v6559 = vunpack.c.l.b16 %v2661
        %v6560 = vunpack.c.h.b16 %v2661
        %v6561 = vunpack.c.l.b16 %v2662
        %v6562 = vunpack.c.h.b16 %v2662
        %v6563 = vunpack.c.l.b16 %v2663
        %v6564 = vunpack.c.h.b16 %v2663
        %v6565 = vunpack.c.l.b16 %v2664
        %v6566 = vunpack.c.h.b16 %v2664
        %v6567 = vunpack.c.l.b16 %v2665
        %v6568 = vunpack.c.h.b16 %v2665
        %v6569 = vunpack.c.l.b16 %v2666
        %v6570 = vunpack.c.h.b16 %v2666
        %v6571 = vunpack.c.l.b16 %v2667
        %v6572 = vunpack.c.h.b16 %v2667
        %v6573 = vunpack.c.l.b16 %v2668
        %v6574 = vunpack.c.h.b16 %v2668
        %v6575 = vunpack.c.l.b16 %v2669
        %v6576 = vunpack.c.h.b16 %v2669
        %v6577 = vunpack.c.l.b16 %v2670
        %v6578 = vunpack.c.h.b16 %v2670
        %v6579 = vunpack.c.l.b16 %v2671
        %v6580 = vunpack.c.h.b16 %v2671
        %v6581 = vunpack.c.l.b16 %v2672
        %v6582 = vunpack.c.h.b16 %v2672
        %v6583 = vunpack.c.l.b16 %v2673
        %v6584 = vunpack.c.h.b16 %v2673
        %v6585 = vunpack.c.l.b16 %v2674
        %v6586 = vunpack.c.h.b16 %v2674
        %v6587 = vunpack.c.l.b16 %v2675
        %v6588 = vunpack.c.h.b16 %v2675
        %v6589 = vunpack.c.l.b16 %v2676
        %v6590 = vunpack.c.h.b16 %v2676
        %v6591 = vunpack.c.l.b16 %v2677
        %v6592 = vunpack.c.h.b16 %v2677
        %v6593 = vunpack.c.l.b16 %v2678
        %v6594 = vunpack.c.h.b16 %v2678
        %v6595 = vunpack.c.l.b16 %v2679
        %v6596 = vunpack.c.h.b16 %v2679
        %v6597 = vunpack.c.l.b16 %v2680
        %v6598 = vunpack.c.h.b16 %v2680
        %v6599 = vunpack.c.l.b16 %v2681
        %v6600 = vunpack.c.h.b16 %v2681
        %v6601 = vunpack.c.l.b16 %v2682
        %v6602 = vunpack.c.h.b16 %v2682
        %v6603 = vunpack.c.l.b16 %v2683
        %v6604 = vunpack.c.h.b16 %v2683
        %v6605 = vunpack.c.l.b16 %v2684
        %v6606 = vunpack.c.h.b16 %v2684
        %v6607 = vunpack.c.l.b16 %v2685
        %v6608 = vunpack.c.h.b16 %v2685
        %v6609 = vunpack.c.l.b16 %v2686
        %v6610 = vunpack.c.h.b16 %v2686
        %v6611 = vunpack.c.l.b16 %v2687
        %v6612 = vunpack.c.h.b16 %v2687
        %v6613 = vunpack.c.l.b16 %v2688
        %v6614 = vunpack.c.h.b16 %v2688
        %v6615 = vunpack.c.l.b16 %v2689
        %v6616 = vunpack.c.h.b16 %v2689
        %v6617 = vunpack.c.l.b16 %v2690
        %v6618 = vunpack.c.h.b16 %v2690
        %v6619 = vunpack.c.l.b16 %v2691
        %v6620 = vunpack.c.h.b16 %v2691
        %v6621 = vunpack.c.l.b16 %v2692
        %v6622 = vunpack.c.h.b16 %v2692
        %v6623 = vunpack.c.l.b16 %v2693
        %v6624 = vunpack.c.h.b16 %v2693
        %v6625 = vunpack.c.l.b16 %v2694
        %v6626 = vunpack.c.h.b16 %v2694
        %v6627 = vunpack.c.l.b16 %v2695
        %v6628 = vunpack.c.h.b16 %v2695
        %v6629 = vunpack.c.l.b16 %v2696
        %v6630 = vunpack.c.h.b16 %v2696
        %v6631 = vunpack.c.l.b16 %v2697
        %v6632 = vunpack.c.h.b16 %v2697
        %v6633 = vunpack.c.l.b16 %v2698
        %v6634 = vunpack.c.h.b16 %v2698
        %v6635 = vunpack.c.l.b16 %v2699
        %v6636 = vunpack.c.h.b16 %v2699
        %v6637 = vunpack.c.l.b16 %v2700
        %v6638 = vunpack.c.h.b16 %v2700
        %v6639 = vunpack.c.l.b16 %v2701
        %v6640 = vunpack.c.h.b16 %v2701
        %v6641 = vunpack.c.l.b16 %v2702
        %v6642 = vunpack.c.h.b16 %v2702
        %v6643 = vunpack.c.l.b16 %v2703
        %v6644 = vunpack.c.h.b16 %v2703
        %v6645 = vunpack.c.l.b16 %v2704
        %v6646 = vunpack.c.h.b16 %v2704
        %v6647 = vunpack.c.l.b16 %v2705
        %v6648 = vunpack.c.h.b16 %v2705
        %v6649 = vunpack.c.l.b16 %v2706
        %v6650 = vunpack.c.h.b16 %v2706
        %v6651 = vunpack.c.l.b16 %v2707
        %v6652 = vunpack.c.h.b16 %v2707
        %v6653 = vunpack.c.l.b16 %v2708
        %v6654 = vunpack.c.h.b16 %v2708
        %v6655 = vunpack.c.l.b16 %v2709
        %v6656 = vunpack.c.h.b16 %v2709
        %v6657 = vunpack.c.l.b16 %v2710
        %v6658 = vunpack.c.h.b16 %v2710
        %v6659 = vunpack.c.l.b16 %v2711
        %v6660 = vunpack.c.h.b16 %v2711
        %v6661 = vunpack.c.l.b16 %v2712
        %v6662 = vunpack.c.h.b16 %v2712
        %v6663 = vunpack.c.l.b16 %v2713
        %v6664 = vunpack.c.h.b16 %v2713
        %v6665 = vunpack.c.l.b16 %v2714
        %v6666 = vunpack.c.h.b16 %v2714
        %v6667 = vunpack.c.l.b16 %v2715
        %v6668 = vunpack.c.h.b16 %v2715
        %v6669 = vunpack.c.l.b16 %v2716
        %v6670 = vunpack.c.h.b16 %v2716
        %v6671 = vunpack.c.l.b16 %v2717
        %v6672 = vunpack.c.h.b16 %v2717
        %v6673 = vunpack.c.l.b16 %v2718
        %v6674 = vunpack.c.h.b16 %v2718
        %v6675 = vunpack.c.l.b16 %v2719
        %v6676 = vunpack.c.h.b16 %v2719
        %v6677 = vunpack.c.l.b16 %v2720
        %v6678 = vunpack.c.h.b16 %v2720
        %v6679 = vunpack.c.l.b16 %v2721
        %v6680 = vunpack.c.h.b16 %v2721
        %v6681 = vunpack.c.l.b16 %v2722
        %v6682 = vunpack.c.h.b16 %v2722
        %v6683 = vunpack.c.l.b16 %v2723
        %v6684 = vunpack.c.h.b16 %v2723
        %v6685 = vunpack.c.l.b16 %v2724
        %v6686 = vunpack.c.h.b16 %v2724
        %v6687 = vunpack.c.l.b16 %v2725
        %v6688 = vunpack.c.h.b16 %v2725
        %v6689 = vunpack.c.l.b16 %v2726
        %v6690 = vunpack.c.h.b16 %v2726
        %v6691 = vunpack.c.l.b16 %v2727
        %v6692 = vunpack.c.h.b16 %v2727
        %v6693 = vunpack.c.l.b16 %v2728
        %v6694 = vunpack.c.h.b16 %v2728
        %v6695 = vunpack.c.l.b16 %v2729
        %v6696 = vunpack.c.h.b16 %v2729
        %v6697 = vunpack.c.l.b16 %v2730
        %v6698 = vunpack.c.h.b16 %v2730
        %v6699 = vunpack.c.l.b16 %v2731
        %v6700 = vunpack.c.h.b16 %v2731
        %v6701 = vunpack.c.l.b16 %v2732
        %v6702 = vunpack.c.h.b16 %v2732
        %v6703 = vunpack.c.l.b16 %v2733
        %v6704 = vunpack.c.h.b16 %v2733
        %v6705 = vunpack.c.l.b16 %v2734
        %v6706 = vunpack.c.h.b16 %v2734
        %v6707 = vunpack.c.l.b16 %v2735
        %v6708 = vunpack.c.h.b16 %v2735
        %v6709 = vunpack.c.l.b16 %v2736
        %v6710 = vunpack.c.h.b16 %v2736
        %v6711 = vunpack.c.l.b16 %v2737
        %v6712 = vunpack.c.h.b16 %v2737
        %v6713 = vunpack.c.l.b16 %v2738
        %v6714 = vunpack.c.h.b16 %v2738
        %v6715 = vunpack.c.l.b16 %v2739
        %v6716 = vunpack.c.h.b16 %v2739
        %v6717 = vunpack.c.l.b16 %v2740
        %v6718 = vunpack.c.h.b16 %v2740
        %v6719 = vunpack.c.l.b16 %v2741
        %v6720 = vunpack.c.h.b16 %v2741
        %v6721 = vunpack.c.l.b16 %v2742
        %v6722 = vunpack.c.h.b16 %v2742
        %v6723 = vunpack.c.l.b16 %v2743
        %v6724 = vunpack.c.h.b16 %v2743
        %v6725 = vunpack.c.l.b16 %v2744
        %v6726 = vunpack.c.h.b16 %v2744
        %v6727 = vunpack.c.l.b16 %v2745
        %v6728 = vunpack.c.h.b16 %v2745
        %v6729 = vunpack.c.l.b16 %v2746
        %v6730 = vunpack.c.h.b16 %v2746
        %v6731 = vunpack.c.l.b16 %v2747
        %v6732 = vunpack.c.h.b16 %v2747
        %v6733 = vunpack.c.l.b16 %v2748
        %v6734 = vunpack.c.h.b16 %v2748
        %v6735 = vunpack.c.l.b16 %v2749
        %v6736 = vunpack.c.h.b16 %v2749
        %v6737 = vunpack.c.l.b16 %v2750
        %v6738 = vunpack.c.h.b16 %v2750
        %v6739 = vunpack.c.l.b16 %v2751
        %v6740 = vunpack.c.h.b16 %v2751
        %v6741 = vunpack.c.l.b16 %v2752
        %v6742 = vunpack.c.h.b16 %v2752
        %v6743 = vunpack.c.l.b16 %v2753
        %v6744 = vunpack.c.h.b16 %v2753
        %v6745 = vunpack.c.l.b16 %v2754
        %v6746 = vunpack.c.h.b16 %v2754
        %v6747 = vunpack.c.l.b16 %v2755
        %v6748 = vunpack.c.h.b16 %v2755
        %v6749 = vunpack.c.l.b16 %v2756
        %v6750 = vunpack.c.h.b16 %v2756
        %v6751 = vunpack.c.l.b16 %v2757
        %v6752 = vunpack.c.h.b16 %v2757
        %v6753 = vunpack.c.l.b16 %v2758
        %v6754 = vunpack.c.h.b16 %v2758
        %v6755 = vunpack.c.l.b16 %v2759
        %v6756 = vunpack.c.h.b16 %v2759
        %v6757 = vunpack.c.l.b16 %v2760
        %v6758 = vunpack.c.h.b16 %v2760
        %v6759 = vunpack.c.l.b16 %v2761
        %v6760 = vunpack.c.h.b16 %v2761
        %v6761 = vunpack.c.l.b16 %v2762
        %v6762 = vunpack.c.h.b16 %v2762
        %v6763 = vunpack.c.l.b16 %v2763
        %v6764 = vunpack.c.h.b16 %v2763
        %v6765 = vunpack.c.l.b16 %v2764
        %v6766 = vunpack.c.h.b16 %v2764
        %v6767 = vunpack.c.l.b16 %v2765
        %v6768 = vunpack.c.h.b16 %v2765
        %v6769 = vunpack.c.l.b16 %v2766
        %v6770 = vunpack.c.h.b16 %v2766
        %v6771 = vunpack.c.l.b16 %v2767
        %v6772 = vunpack.c.h.b16 %v2767
        %v6773 = vunpack.c.l.b16 %v2768
        %v6774 = vunpack.c.h.b16 %v2768
        %v6775 = vunpack.c.l.b16 %v2769
        %v6776 = vunpack.c.h.b16 %v2769
        %v6777 = vunpack.c.l.b16 %v2770
        %v6778 = vunpack.c.h.b16 %v2770
        %v6779 = vunpack.c.l.b16 %v2771
        %v6780 = vunpack.c.h.b16 %v2771
        %v6781 = vunpack.c.l.b16 %v2772
        %v6782 = vunpack.c.h.b16 %v2772
        %v6783 = vunpack.c.l.b16 %v2773
        %v6784 = vunpack.c.h.b16 %v2773
        %v6785 = vunpack.c.l.b16 %v2774
        %v6786 = vunpack.c.h.b16 %v2774
        %v6787 = vunpack.c.l.b16 %v2775
        %v6788 = vunpack.c.h.b16 %v2775
        %v6789 = vunpack.c.l.b16 %v2776
        %v6790 = vunpack.c.h.b16 %v2776
        %v6791 = vunpack.c.l.b16 %v2777
        %v6792 = vunpack.c.h.b16 %v2777
        %v6793 = vunpack.c.l.b16 %v2778
        %v6794 = vunpack.c.h.b16 %v2778
        %v6795 = vunpack.c.l.b16 %v2779
        %v6796 = vunpack.c.h.b16 %v2779
        %v6797 = vunpack.c.l.b16 %v2780
        %v6798 = vunpack.c.h.b16 %v2780
        %v6799 = vunpack.c.l.b16 %v2781
        %v6800 = vunpack.c.h.b16 %v2781
        %v6801 = vunpack.c.l.b16 %v2782
        %v6802 = vunpack.c.h.b16 %v2782
        %v6803 = vunpack.c.l.b16 %v2783
        %v6804 = vunpack.c.h.b16 %v2783
        %v6805 = vunpack.c.l.b16 %v2784
        %v6806 = vunpack.c.h.b16 %v2784
        %v6807 = vunpack.c.l.b16 %v2785
        %v6808 = vunpack.c.h.b16 %v2785
        %v6809 = vunpack.c.l.b16 %v2786
        %v6810 = vunpack.c.h.b16 %v2786
        %v6811 = vunpack.c.l.b16 %v2787
        %v6812 = vunpack.c.h.b16 %v2787
        %v6813 = vunpack.c.l.b16 %v2788
        %v6814 = vunpack.c.h.b16 %v2788
        %v6815 = vunpack.c.l.b16 %v2789
        %v6816 = vunpack.c.h.b16 %v2789
        %v6817 = vunpack.c.l.b16 %v2790
        %v6818 = vunpack.c.h.b16 %v2790
        %v6819 = vunpack.c.l.b16 %v2791
        %v6820 = vunpack.c.h.b16 %v2791
        %v6821 = vunpack.c.l.b16 %v2792
        %v6822 = vunpack.c.h.b16 %v2792
        %v6823 = vunpack.c.l.b16 %v2793
        %v6824 = vunpack.c.h.b16 %v2793
        %v6825 = vunpack.c.l.b16 %v2794
        %v6826 = vunpack.c.h.b16 %v2794
        %v6827 = vunpack.c.l.b16 %v2795
        %v6828 = vunpack.c.h.b16 %v2795
        %v6829 = vunpack.c.l.b16 %v2796
        %v6830 = vunpack.c.h.b16 %v2796
        %v6831 = vunpack.c.l.b16 %v2797
        %v6832 = vunpack.c.h.b16 %v2797
        %v6833 = vunpack.c.l.b16 %v2798
        %v6834 = vunpack.c.h.b16 %v2798
        %v6835 = vunpack.c.l.b16 %v2799
        %v6836 = vunpack.c.h.b16 %v2799
        %v6837 = vunpack.c.l.b16 %v2800
        %v6838 = vunpack.c.h.b16 %v2800
        %v6839 = vunpack.c.l.b16 %v2801
        %v6840 = vunpack.c.h.b16 %v2801
        %v6841 = vunpack.c.l.b16 %v2802
        %v6842 = vunpack.c.h.b16 %v2802
        %v6843 = vunpack.c.l.b16 %v2803
        %v6844 = vunpack.c.h.b16 %v2803
        %v6845 = vunpack.c.l.b16 %v2804
        %v6846 = vunpack.c.h.b16 %v2804
        %v6847 = vunpack.c.l.b16 %v2805
        %v6848 = vunpack.c.h.b16 %v2805
        %v6849 = vunpack.c.l.b16 %v2806
        %v6850 = vunpack.c.h.b16 %v2806
        %v6851 = vunpack.c.l.b16 %v2807
        %v6852 = vunpack.c.h.b16 %v2807
        %v6853 = vunpack.c.l.b16 %v2808
        %v6854 = vunpack.c.h.b16 %v2808
        %v6855 = vunpack.c.l.b16 %v2809
        %v6856 = vunpack.c.h.b16 %v2809
        %v6857 = vunpack.c.l.b16 %v2810
        %v6858 = vunpack.c.h.b16 %v2810
        %v6859 = vunpack.c.l.b16 %v2811
        %v6860 = vunpack.c.h.b16 %v2811
        %v6861 = vunpack.c.l.b16 %v2812
        %v6862 = vunpack.c.h.b16 %v2812
        %v6863 = vunpack.c.l.b16 %v2813
        %v6864 = vunpack.c.h.b16 %v2813
        %v6865 = vunpack.c.l.b16 %v2814
        %v6866 = vunpack.c.h.b16 %v2814
        %v6867 = vunpack.c.l.b16 %v2815
        %v6868 = vunpack.c.h.b16 %v2815
        %v6869 = vunpack.c.l.b16 %v2816
        %v6870 = vunpack.c.h.b16 %v2816
        %v6871 = vunpack.c.l.b16 %v2817
        %v6872 = vunpack.c.h.b16 %v2817
        %v6873 = vunpack.c.l.b16 %v2818
        %v6874 = vunpack.c.h.b16 %v2818
        %v6875 = vunpack.c.l.b16 %v2819
        %v6876 = vunpack.c.h.b16 %v2819
        %v6877 = vunpack.c.l.b16 %v2820
        %v6878 = vunpack.c.h.b16 %v2820
        %v6879 = vunpack.c.l.b16 %v2821
        %v6880 = vunpack.c.h.b16 %v2821
        %v6881 = vunpack.c.l.b16 %v2822
        %v6882 = vunpack.c.h.b16 %v2822
        %v6883 = vunpack.c.l.b16 %v2823
        %v6884 = vunpack.c.h.b16 %v2823
        %v6885 = vunpack.c.l.b16 %v2824
        %v6886 = vunpack.c.h.b16 %v2824
        %v6887 = vunpack.c.l.b16 %v2825
        %v6888 = vunpack.c.h.b16 %v2825
        %v6889 = vunpack.c.l.b16 %v2826
        %v6890 = vunpack.c.h.b16 %v2826
        %v6891 = vunpack.c.l.b16 %v2827
        %v6892 = vunpack.c.h.b16 %v2827
        %v6893 = vunpack.c.l.b16 %v2828
        %v6894 = vunpack.c.h.b16 %v2828
        %v6895 = vunpack.c.l.b16 %v2829
        %v6896 = vunpack.c.h.b16 %v2829
        %v6897 = vunpack.c.l.b16 %v2830
        %v6898 = vunpack.c.h.b16 %v2830
        %v6899 = vunpack.c.l.b16 %v2831
        %v6900 = vunpack.c.h.b16 %v2831
        %v6901 = vunpack.c.l.b16 %v2832
        %v6902 = vunpack.c.h.b16 %v2832
        %v6903 = vunpack.c.l.b16 %v2833
        %v6904 = vunpack.c.h.b16 %v2833
        %v6905 = vunpack.c.l.b16 %v2834
        %v6906 = vunpack.c.h.b16 %v2834
        %v6907 = vunpack.c.l.b16 %v2835
        %v6908 = vunpack.c.h.b16 %v2835
        %v6909 = vunpack.c.l.b16 %v2836
        %v6910 = vunpack.c.h.b16 %v2836
        %v6911 = vunpack.c.l.b16 %v2837
        %v6912 = vunpack.c.h.b16 %v2837
        %v6913 = vunpack.c.l.b16 %v2838
        %v6914 = vunpack.c.h.b16 %v2838
        %v6915 = vunpack.c.l.b16 %v2839
        %v6916 = vunpack.c.h.b16 %v2839
        %v6917 = vunpack.c.l.b16 %v2840
        %v6918 = vunpack.c.h.b16 %v2840
        %v6919 = vunpack.c.l.b16 %v2841
        %v6920 = vunpack.c.h.b16 %v2841
        %v6921 = vunpack.c.l.b16 %v2842
        %v6922 = vunpack.c.h.b16 %v2842
        %v6923 = vunpack.c.l.b16 %v2843
        %v6924 = vunpack.c.h.b16 %v2843
        %v6925 = vunpack.c.l.b16 %v2844
        %v6926 = vunpack.c.h.b16 %v2844
        %v6927 = vunpack.c.l.b16 %v2845
        %v6928 = vunpack.c.h.b16 %v2845
        %v6929 = vunpack.c.l.b16 %v2846
        %v6930 = vunpack.c.h.b16 %v2846
        %v6931 = vunpack.c.l.b16 %v2847
        %v6932 = vunpack.c.h.b16 %v2847
        %v6933 = vunpack.c.l.b16 %v2848
        %v6934 = vunpack.c.h.b16 %v2848
        %v6935 = vunpack.c.l.b16 %v2849
        %v6936 = vunpack.c.h.b16 %v2849
        %v6937 = vunpack.c.l.b16 %v2850
        %v6938 = vunpack.c.h.b16 %v2850
        %v6939 = vunpack.c.l.b16 %v2851
        %v6940 = vunpack.c.h.b16 %v2851
        %v6941 = vunpack.c.l.b16 %v2852
        %v6942 = vunpack.c.h.b16 %v2852
        %v6943 = vunpack.c.l.b16 %v2853
        %v6944 = vunpack.c.h.b16 %v2853
        %v6945 = vunpack.c.l.b16 %v2854
        %v6946 = vunpack.c.h.b16 %v2854
        %v6947 = vunpack.c.l.b16 %v2855
        %v6948 = vunpack.c.h.b16 %v2855
        %v6949 = vunpack.c.l.b16 %v2856
        %v6950 = vunpack.c.h.b16 %v2856
        %v6951 = vunpack.c.l.b16 %v2857
        %v6952 = vunpack.c.h.b16 %v2857
        %v6953 = vunpack.c.l.b16 %v2858
        %v6954 = vunpack.c.h.b16 %v2858
        %v6955 = vunpack.c.l.b16 %v2859
        %v6956 = vunpack.c.h.b16 %v2859
        %v6957 = vunpack.c.l.b16 %v2860
        %v6958 = vunpack.c.h.b16 %v2860
        %v6959 = vunpack.c.l.b16 %v2861
        %v6960 = vunpack.c.h.b16 %v2861
        %v6961 = vunpack.c.l.b16 %v2862
        %v6962 = vunpack.c.h.b16 %v2862
        %v6963 = vunpack.c.l.b16 %v2863
        %v6964 = vunpack.c.h.b16 %v2863
        %v6965 = vunpack.c.l.b16 %v2864
        %v6966 = vunpack.c.h.b16 %v2864
        %v6967 = vunpack.c.l.b16 %v2865
        %v6968 = vunpack.c.h.b16 %v2865
        %v6969 = vunpack.c.l.b16 %v2866
        %v6970 = vunpack.c.h.b16 %v2866
        %v6971 = vunpack.c.l.b16 %v2867
        %v6972 = vunpack.c.h.b16 %v2867
        %v6973 = vunpack.c.l.b16 %v2868
        %v6974 = vunpack.c.h.b16 %v2868
        %v6975 = vunpack.c.l.b16 %v2869
        %v6976 = vunpack.c.h.b16 %v2869
        %v6977 = vunpack.c.l.b16 %v2870
        %v6978 = vunpack.c.h.b16 %v2870
        %v6979 = vunpack.c.l.b16 %v2871
        %v6980 = vunpack.c.h.b16 %v2871
        %v6981 = vunpack.c.l.b16 %v2872
        %v6982 = vunpack.c.h.b16 %v2872
        %v6983 = vunpack.c.l.b16 %v2873
        %v6984 = vunpack.c.h.b16 %v2873
        %v6985 = vunpack.c.l.b16 %v2874
        %v6986 = vunpack.c.h.b16 %v2874
        %v6987 = vunpack.c.l.b16 %v2875
        %v6988 = vunpack.c.h.b16 %v2875
        %v6989 = vunpack.c.l.b16 %v2876
        %v6990 = vunpack.c.h.b16 %v2876
        %v6991 = vunpack.c.l.b16 %v2877
        %v6992 = vunpack.c.h.b16 %v2877
        %v6993 = vunpack.c.l.b16 %v2878
        %v6994 = vunpack.c.h.b16 %v2878
        %v6995 = vunpack.c.l.b16 %v2879
        %v6996 = vunpack.c.h.b16 %v2879
        %v6997 = vunpack.c.l.b16 %v2880
        %v6998 = vunpack.c.h.b16 %v2880
        %v6999 = vunpack.c.l.b16 %v2881
        %v7000 = vunpack.c.h.b16 %v2881
        %v7001 = vunpack.c.l.b16 %v2882
        %v7002 = vunpack.c.h.b16 %v2882
        %v7003 = vunpack.c.l.b16 %v2883
        %v7004 = vunpack.c.h.b16 %v2883
        %v7005 = vunpack.c.l.b16 %v2884
        %v7006 = vunpack.c.h.b16 %v2884
        %v7007 = vunpack.c.l.b16 %v2885
        %v7008 = vunpack.c.h.b16 %v2885
        %v7009 = vunpack.c.l.b16 %v2886
        %v7010 = vunpack.c.h.b16 %v2886
        %v7011 = vunpack.c.l.b16 %v2887
        %v7012 = vunpack.c.h.b16 %v2887
        %v7013 = vunpack.c.l.b16 %v2888
        %v7014 = vunpack.c.h.b16 %v2888
        %v7015 = vunpack.c.l.b16 %v2889
        %v7016 = vunpack.c.h.b16 %v2889
        %v7017 = vunpack.c.l.b16 %v2890
        %v7018 = vunpack.c.h.b16 %v2890
        %v7019 = vunpack.c.l.b16 %v2891
        %v7020 = vunpack.c.h.b16 %v2891
        %v7021 = vunpack.c.l.b16 %v2892
        %v7022 = vunpack.c.h.b16 %v2892
        %v7023 = vunpack.c.l.b16 %v2893
        %v7024 = vunpack.c.h.b16 %v2893
        %v7025 = vunpack.c.l.b16 %v2894
        %v7026 = vunpack.c.h.b16 %v2894
        %v7027 = vunpack.c.l.b16 %v2895
        %v7028 = vunpack.c.h.b16 %v2895
        %v7029 = vunpack.c.l.b16 %v2896
        %v7030 = vunpack.c.h.b16 %v2896
        %v7031 = vunpack.c.l.b16 %v2897
        %v7032 = vunpack.c.h.b16 %v2897
        %v7033 = vunpack.c.l.b16 %v2898
        %v7034 = vunpack.c.h.b16 %v2898
        %v7035 = vunpack.c.l.b16 %v2899
        %v7036 = vunpack.c.h.b16 %v2899
        %v7037 = vunpack.c.l.b16 %v2900
        %v7038 = vunpack.c.h.b16 %v2900
        %v7039 = vunpack.c.l.b16 %v2901
        %v7040 = vunpack.c.h.b16 %v2901
        %v7041 = vunpack.c.l.b16 %v2902
        %v7042 = vunpack.c.h.b16 %v2902
        %v7043 = vunpack.c.l.b16 %v2903
        %v7044 = vunpack.c.h.b16 %v2903
        %v7045 = vunpack.c.l.b16 %v2904
        %v7046 = vunpack.c.h.b16 %v2904
        %v7047 = vunpack.c.l.b16 %v2905
        %v7048 = vunpack.c.h.b16 %v2905
        %v7049 = vunpack.c.l.b16 %v2906
        %v7050 = vunpack.c.h.b16 %v2906
        %v7051 = vunpack.c.l.b16 %v2907
        %v7052 = vunpack.c.h.b16 %v2907
        %v7053 = vunpack.c.l.b16 %v2908
        %v7054 = vunpack.c.h.b16 %v2908
        %v7055 = vunpack.c.l.b16 %v2909
        %v7056 = vunpack.c.h.b16 %v2909
        %v7057 = vunpack.c.l.b16 %v2910
        %v7058 = vunpack.c.h.b16 %v2910
        %v7059 = vunpack.c.l.b16 %v2911
        %v7060 = vunpack.c.h.b16 %v2911
        %v7061 = vunpack.c.l.b16 %v2912
        %v7062 = vunpack.c.h.b16 %v2912
        %v7063 = vunpack.c.l.b16 %v2913
        %v7064 = vunpack.c.h.b16 %v2913
        %v7065 = vunpack.c.l.b16 %v2914
        %v7066 = vunpack.c.h.b16 %v2914
        %v7067 = vunpack.c.l.b16 %v2915
        %v7068 = vunpack.c.h.b16 %v2915
        %v7069 = vunpack.c.l.b16 %v2916
        %v7070 = vunpack.c.h.b16 %v2916
        %v7071 = vunpack.c.l.b16 %v2917
        %v7072 = vunpack.c.h.b16 %v2917
        %v7073 = vunpack.c.l.b16 %v2918
        %v7074 = vunpack.c.h.b16 %v2918
        %v7075 = vunpack.c.l.b16 %v2919
        %v7076 = vunpack.c.h.b16 %v2919
        %v7077 = vunpack.c.l.b16 %v2920
        %v7078 = vunpack.c.h.b16 %v2920
        %v7079 = vunpack.c.l.b16 %v2921
        %v7080 = vunpack.c.h.b16 %v2921
        %v7081 = vunpack.c.l.b16 %v2922
        %v7082 = vunpack.c.h.b16 %v2922
        %v7083 = vunpack.c.l.b16 %v2923
        %v7084 = vunpack.c.h.b16 %v2923
        %v7085 = vunpack.c.l.b16 %v2924
        %v7086 = vunpack.c.h.b16 %v2924
        %v7087 = vunpack.c.l.b16 %v2925
        %v7088 = vunpack.c.h.b16 %v2925
        %v7089 = vunpack.c.l.b16 %v2926
        %v7090 = vunpack.c.h.b16 %v2926
        %v7091 = vunpack.c.l.b16 %v2927
        %v7092 = vunpack.c.h.b16 %v2927
        %v7093 = vunpack.c.l.b16 %v2928
        %v7094 = vunpack.c.h.b16 %v2928
        %v7095 = vunpack.c.l.b16 %v2929
        %v7096 = vunpack.c.h.b16 %v2929
        %v7097 = vunpack.c.l.b16 %v2930
        %v7098 = vunpack.c.h.b16 %v2930
        %v7099 = vunpack.c.l.b16 %v2931
        %v7100 = vunpack.c.h.b16 %v2931
        %v7101 = vunpack.c.l.b16 %v2932
        %v7102 = vunpack.c.h.b16 %v2932
        %v7103 = vunpack.c.l.b16 %v2933
        %v7104 = vunpack.c.h.b16 %v2933
        %v7105 = vunpack.c.l.b16 %v2934
        %v7106 = vunpack.c.h.b16 %v2934
        %v7107 = vunpack.c.l.b16 %v2935
        %v7108 = vunpack.c.h.b16 %v2935
        %v7109 = vunpack.c.l.b16 %v2936
        %v7110 = vunpack.c.h.b16 %v2936
        %v7111 = vunpack.c.l.b16 %v2937
        %v7112 = vunpack.c.h.b16 %v2937
        %v7113 = vunpack.c.l.b16 %v2938
        %v7114 = vunpack.c.h.b16 %v2938
        %v7115 = vunpack.c.l.b16 %v2939
        %v7116 = vunpack.c.h.b16 %v2939
        %v7117 = vunpack.c.l.b16 %v2940
        %v7118 = vunpack.c.h.b16 %v2940
        %v7119 = vunpack.c.l.b16 %v2941
        %v7120 = vunpack.c.h.b16 %v2941
        %v7121 = vunpack.c.l.b16 %v2942
        %v7122 = vunpack.c.h.b16 %v2942
        %v7123 = vunpack.c.l.b16 %v2943
        %v7124 = vunpack.c.h.b16 %v2943
        %v7125 = vunpack.c.l.b16 %v2944
        %v7126 = vunpack.c.h.b16 %v2944
        %v7127 = vunpack.c.l.b16 %v2945
        %v7128 = vunpack.c.h.b16 %v2945
        %v7129 = vunpack.c.l.b16 %v2946
        %v7130 = vunpack.c.h.b16 %v2946
        %v7131 = vunpack.c.l.b16 %v2947
        %v7132 = vunpack.c.h.b16 %v2947
        %v7133 = vunpack.c.l.b16 %v2948
        %v7134 = vunpack.c.h.b16 %v2948
        %v7135 = vunpack.c.l.b16 %v2949
        %v7136 = vunpack.c.h.b16 %v2949
        %v7137 = vunpack.c.l.b16 %v2950
        %v7138 = vunpack.c.h.b16 %v2950
        %v7139 = vunpack.c.l.b16 %v2951
        %v7140 = vunpack.c.h.b16 %v2951
        %v7141 = vunpack.c.l.b16 %v2952
        %v7142 = vunpack.c.h.b16 %v2952
        %v7143 = vunpack.c.l.b16 %v2953
        %v7144 = vunpack.c.h.b16 %v2953
        %v7145 = vunpack.c.l.b16 %v2954
        %v7146 = vunpack.c.h.b16 %v2954
        %v7147 = vunpack.c.l.b16 %v2955
        %v7148 = vunpack.c.h.b16 %v2955
        %v7149 = vunpack.c.l.b16 %v2956
        %v7150 = vunpack.c.h.b16 %v2956
        %v7151 = vunpack.c.l.b16 %v2957
        %v7152 = vunpack.c.h.b16 %v2957
        %v7153 = vunpack.c.l.b16 %v2958
        %v7154 = vunpack.c.h.b16 %v2958
        %v7155 = vunpack.c.l.b16 %v2959
        %v7156 = vunpack.c.h.b16 %v2959
        %v7157 = vunpack.c.l.b16 %v2960
        %v7158 = vunpack.c.h.b16 %v2960
        %v7159 = vunpack.c.l.b16 %v2961
        %v7160 = vunpack.c.h.b16 %v2961
        %v7161 = vunpack.c.l.b16 %v2962
        %v7162 = vunpack.c.h.b16 %v2962
        %v7163 = vunpack.c.l.b16 %v2963
        %v7164 = vunpack.c.h.b16 %v2963
        %v7165 = vunpack.c.l.b16 %v2964
        %v7166 = vunpack.c.h.b16 %v2964
        %v7167 = vunpack.c.l.b16 %v2965
        %v7168 = vunpack.c.h.b16 %v2965
        %v7169 = vunpack.c.l.b16 %v2966
        %v7170 = vunpack.c.h.b16 %v2966
        %v7171 = vunpack.c.l.b16 %v2967
        %v7172 = vunpack.c.h.b16 %v2967
        %v7173 = vunpack.c.l.b16 %v2968
        %v7174 = vunpack.c.h.b16 %v2968
        %v7175 = vunpack.c.l.b16 %v2969
        %v7176 = vunpack.c.h.b16 %v2969
        %v7177 = vunpack.c.l.b16 %v2970
        %v7178 = vunpack.c.h.b16 %v2970
        %v7179 = vunpack.c.l.b16 %v2971
        %v7180 = vunpack.c.h.b16 %v2971
        %v7181 = vunpack.c.l.b16 %v2972
        %v7182 = vunpack.c.h.b16 %v2972
        %v7183 = vunpack.c.l.b16 %v2973
        %v7184 = vunpack.c.h.b16 %v2973
        %v7185 = vunpack.c.l.b16 %v2974
        %v7186 = vunpack.c.h.b16 %v2974
        %v7187 = vunpack.c.l.b16 %v2975
        %v7188 = vunpack.c.h.b16 %v2975
        %v7189 = vunpack.c.l.b16 %v2976
        %v7190 = vunpack.c.h.b16 %v2976
        %v7191 = vunpack.c.l.b16 %v2977
        %v7192 = vunpack.c.h.b16 %v2977
        %v7193 = vunpack.c.l.b16 %v2978
        %v7194 = vunpack.c.h.b16 %v2978
        %v7195 = vunpack.c.l.b16 %v2979
        %v7196 = vunpack.c.h.b16 %v2979
        %v7197 = vunpack.c.l.b16 %v2980
        %v7198 = vunpack.c.h.b16 %v2980
        %v7199 = vunpack.c.l.b16 %v2981
        %v7200 = vunpack.c.h.b16 %v2981
        %v7201 = vunpack.c.l.b16 %v2982
        %v7202 = vunpack.c.h.b16 %v2982
        %v7203 = vunpack.c.l.b16 %v2983
        %v7204 = vunpack.c.h.b16 %v2983
        %v7205 = vunpack.c.l.b16 %v2984
        %v7206 = vunpack.c.h.b16 %v2984
        %v7207 = vunpack.c.l.b16 %v2985
        %v7208 = vunpack.c.h.b16 %v2985
        %v7209 = vunpack.c.l.b16 %v2986
        %v7210 = vunpack.c.h.b16 %v2986
        %v7211 = vunpack.c.l.b16 %v2987
        %v7212 = vunpack.c.h.b16 %v2987
        %v7213 = vunpack.c.l.b16 %v2988
        %v7214 = vunpack.c.h.b16 %v2988
        %v7215 = vunpack.c.l.b16 %v2989
        %v7216 = vunpack.c.h.b16 %v2989
        %v7217 = vunpack.c.l.b16 %v2990
        %v7218 = vunpack.c.h.b16 %v2990
        %v7219 = vunpack.c.l.b16 %v2991
        %v7220 = vunpack.c.h.b16 %v2991
        %v7221 = vunpack.c.l.b16 %v2992
        %v7222 = vunpack.c.h.b16 %v2992
        %v7223 = vunpack.c.l.b16 %v2993
        %v7224 = vunpack.c.h.b16 %v2993
        %v7225 = vunpack.c.l.b16 %v2994
        %v7226 = vunpack.c.h.b16 %v2994
        %v7227 = vunpack.c.l.b16 %v2995
        %v7228 = vunpack.c.h.b16 %v2995
        %v7229 = vunpack.c.l.b16 %v2996
        %v7230 = vunpack.c.h.b16 %v2996
        %v7231 = vunpack.c.l.b16 %v2997
        %v7232 = vunpack.c.h.b16 %v2997
        %v7233 = vunpack.c.l.b16 %v2998
        %v7234 = vunpack.c.h.b16 %v2998
        %v7235 = vunpack.c.l.b16 %v2999
        %v7236 = vunpack.c.h.b16 %v2999
        %v7237 = vunpack.c.l.b16 %v3000
        %v7238 = vunpack.c.h.b16 %v3000
        %v7239 = vunpack.c.l.b16 %v3001
        %v7240 = vunpack.c.h.b16 %v3001
        %v7241 = vunpack.c.l.b16 %v3002
        %v7242 = vunpack.c.h.b16 %v3002
        %v7243 = vunpack.c.l.b16 %v3003
        %v7244 = vunpack.c.h.b16 %v3003
        %v7245 = vunpack.c.l.b16 %v3004
        %v7246 = vunpack.c.h.b16 %v3004
        %v7247 = vunpack.c.l.b16 %v3005
        %v7248 = vunpack.c.h.b16 %v3005
        %v7249 = vunpack.c.l.b16 %v3006
        %v7250 = vunpack.c.h.b16 %v3006
        %v7251 = vunpack.c.l.b16 %v3007
        %v7252 = vunpack.c.h.b16 %v3007
        %v7253 = vunpack.c.l.b16 %v3008
        %v7254 = vunpack.c.h.b16 %v3008
        %v7255 = vunpack.c.l.b16 %v3009
        %v7256 = vunpack.c.h.b16 %v3009
        %v7257 = vunpack.c.l.b16 %v3010
        %v7258 = vunpack.c.h.b16 %v3010
        %v7259 = vunpack.c.l.b16 %v3011
        %v7260 = vunpack.c.h.b16 %v3011
        %v7261 = vunpack.c.l.b16 %v3012
        %v7262 = vunpack.c.h.b16 %v3012
        %v7263 = vunpack.c.l.b16 %v3013
        %v7264 = vunpack.c.h.b16 %v3013
        %v7265 = vunpack.c.l.b16 %v3014
        %v7266 = vunpack.c.h.b16 %v3014
        %v7267 = vunpack.c.l.b16 %v3015
        %v7268 = vunpack.c.h.b16 %v3015
        %v7269 = vunpack.c.l.b16 %v3016
        %v7270 = vunpack.c.h.b16 %v3016
        %v7271 = vunpack.c.l.b16 %v3017
        %v7272 = vunpack.c.h.b16 %v3017
        %v7273 = vunpack.c.l.b16 %v3018
        %v7274 = vunpack.c.h.b16 %v3018
        %v7275 = vunpack.c.l.b16 %v3019
        %v7276 = vunpack.c.h.b16 %v3019
        %v7277 = vunpack.c.l.b16 %v3020
        %v7278 = vunpack.c.h.b16 %v3020
        %v7279 = vunpack.c.l.b16 %v3021
        %v7280 = vunpack.c.h.b16 %v3021
        %v7281 = vunpack.c.l.b16 %v3022
        %v7282 = vunpack.c.h.b16 %v3022
        %v7283 = vpack.c.b16 %v4803, %v4723
        %v7284 = vpack.c.b16 %v4804, %v4724
        %v7285 = vpack.c.b16 %v4805, %v4725
        %v7286 = vpack.c.b16 %v4806, %v4726
        %v7287 = vpack.c.b16 %v4807, %v4727
        %v7288 = vpack.c.b16 %v4808, %v4728
        %v7289 = vpack.c.b16 %v4809, %v4729
        %v7290 = vpack.c.b16 %v4810, %v4730
        %v7291 = vpack.c.b16 %v4811, %v4731
        %v7292 = vpack.c.b16 %v4812, %v4732
        %v7293 = vpack.c.b16 %v4813, %v4733
        %v7294 = vpack.c.b16 %v4814, %v4734
        %v7295 = vpack.c.b16 %v4815, %v4735
        %v7296 = vpack.c.b16 %v4816, %v4736
        %v7297 = vpack.c.b16 %v4817, %v4737
        %v7298 = vpack.c.b16 %v4818, %v4738
        %v7299 = vpack.c.b16 %v4819, %v4739
        %v7300 = vpack.c.b16 %v4820, %v4740
        %v7301 = vpack.c.b16 %v4821, %v4741
        %v7302 = vpack.c.b16 %v4822, %v4742
        %v7303 = vpack.c.b16 %v4823, %v4743
        %v7304 = vpack.c.b16 %v4824, %v4744
        %v7305 = vpack.c.b16 %v4825, %v4745
        %v7306 = vpack.c.b16 %v4826, %v4746
        %v7307 = vpack.c.b16 %v4827, %v4747
        %v7308 = vpack.c.b16 %v4828, %v4748
        %v7309 = vpack.c.b16 %v4829, %v4749
        %v7310 = vpack.c.b16 %v4830, %v4750
        %v7311 = vpack.c.b16 %v4831, %v4751
        %v7312 = vpack.c.b16 %v4832, %v4752
        %v7313 = vpack.c.b16 %v4833, %v4753
        %v7314 = vpack.c.b16 %v4834, %v4754
        %v7315 = vpack.c.b16 %v4835, %v4755
        %v7316 = vpack.c.b16 %v4836, %v4756
        %v7317 = vpack.c.b16 %v4837, %v4757
        %v7318 = vpack.c.b16 %v4838, %v4758
        %v7319 = vpack.c.b16 %v4839, %v4759
        %v7320 = vpack.c.b16 %v4840, %v4760
        %v7321 = vpack.c.b16 %v4841, %v4761
        %v7322 = vpack.c.b16 %v4842, %v4762
        %v7323 = vpack.c.b16 %v4843, %v4763
        %v7324 = vpack.c.b16 %v4844, %v4764
        %v7325 = vpack.c.b16 %v4845, %v4765
        %v7326 = vpack.c.b16 %v4846, %v4766
        %v7327 = vpack.c.b16 %v4847, %v4767
        %v7328 = vpack.c.b16 %v4848, %v4768
        %v7329 = vpack.c.b16 %v4849, %v4769
        %v7330 = vpack.c.b16 %v4850, %v4770
        %v7331 = vpack.c.b16 %v4851, %v4771
        %v7332 = vpack.c.b16 %v4852, %v4772
        %v7333 = vpack.c.b16 %v4853, %v4773
        %v7334 = vpack.c.b16 %v4854, %v4774
        %v7335 = vpack.c.b16 %v4855, %v4775
        %v7336 = vpack.c.b16 %v4856, %v4776
        %v7337 = vpack.c.b16 %v4857, %v4777
        %v7338 = vpack.c.b16 %v4858, %v4778
        %v7339 = vpack.c.b16 %v4859, %v4779
        %v7340 = vpack.c.b16 %v4860, %v4780
        %v7341 = vpack.c.b16 %v4861, %v4781
        %v7342 = vpack.c.b16 %v4862, %v4782
        %v7343 = vpack.c.b16 %v4863, %v4783
        %v7344 = vpack.c.b16 %v4864, %v4784
        %v7345 = vpack.c.b16 %v4865, %v4785
        %v7346 = vpack.c.b16 %v4866, %v4786
        %v7347 = vpack.c.b16 %v4867, %v4787
        %v7348 = vpack.c.b16 %v4868, %v4788
        %v7349 = vpack.c.b16 %v4869, %v4789
        %v7350 = vpack.c.b16 %v4870, %v4790
        %v7351 = vpack.c.b16 %v4871, %v4791
        %v7352 = vpack.c.b16 %v4872, %v4792
        %v7353 = vpack.c.b16 %v4873, %v4793
        %v7354 = vpack.c.b16 %v4874, %v4794
        %v7355 = vpack.c.b16 %v4875, %v4795
        %v7356 = vpack.c.b16 %v4876, %v4796
        %v7357 = vpack.c.b16 %v4877, %v4797
        %v7358 = vpack.c.b16 %v4878, %v4798
        %v7359 = vpack.c.b16 %v4879, %v4799
        %v7360 = vpack.c.b16 %v4880, %v4800
        %v7361 = vpack.c.b16 %v4881, %v4801
        %v7362 = vpack.c.b16 %v4882, %v4802
        %v7363 = vpack.c.b16 %v4963, %v4883
        %v7364 = vpack.c.b16 %v4964, %v4884
        %v7365 = vpack.c.b16 %v4965, %v4885
        %v7366 = vpack.c.b16 %v4966, %v4886
        %v7367 = vpack.c.b16 %v4967, %v4887
        %v7368 = vpack.c.b16 %v4968, %v4888
        %v7369 = vpack.c.b16 %v4969, %v4889
        %v7370 = vpack.c.b16 %v4970, %v4890
        %v7371 = vpack.c.b16 %v4971, %v4891
        %v7372 = vpack.c.b16 %v4972, %v4892
        %v7373 = vpack.c.b16 %v4973, %v4893
        %v7374 = vpack.c.b16 %v4974, %v4894
        %v7375 = vpack.c.b16 %v4975, %v4895
        %v7376 = vpack.c.b16 %v4976, %v4896
        %v7377 = vpack.c.b16 %v4977, %v4897
        %v7378 = vpack.c.b16 %v4978, %v4898
        %v7379 = vpack.c.b16 %v4979, %v4899
        %v7380 = vpack.c.b16 %v4980, %v4900
        %v7381 = vpack.c.b16 %v4981, %v4901
        %v7382 = vpack.c.b16 %v4982, %v4902
        %v7383 = vpack.c.b16 %v4983, %v4903
        %v7384 = vpack.c.b16 %v4984, %v4904
        %v7385 = vpack.c.b16 %v4985, %v4905
        %v7386 = vpack.c.b16 %v4986, %v4906
        %v7387 = vpack.c.b16 %v4987, %v4907
        %v7388 = vpack.c.b16 %v4988, %v4908
        %v7389 = vpack.c.b16 %v4989, %v4909
        %v7390 = vpack.c.b16 %v4990, %v4910
        %v7391 = vpack.c.b16 %v4991, %v4911
        %v7392 = vpack.c.b16 %v4992, %v4912
        %v7393 = vpack.c.b16 %v4993, %v4913
        %v7394 = vpack.c.b16 %v4994, %v4914
        %v7395 = vpack.c.b16 %v4995, %v4915
        %v7396 = vpack.c.b16 %v4996, %v4916
        %v7397 = vpack.c.b16 %v4997, %v4917
        %v7398 = vpack.c.b16 %v4998, %v4918
        %v7399 = vpack.c.b16 %v4999, %v4919
        %v7400 = vpack.c.b16 %v5000, %v4920
        %v7401 = vpack.c.b16 %v5001, %v4921
        %v7402 = vpack.c.b16 %v5002, %v4922
        %v7403 = vpack.c.b16 %v5003, %v4923
        %v7404 = vpack.c.b16 %v5004, %v4924
        %v7405 = vpack.c.b16 %v5005, %v4925
        %v7406 = vpack.c.b16 %v5006, %v4926
        %v7407 = vpack.c.b16 %v5007, %v4927
        %v7408 = vpack.c.b16 %v5008, %v4928
        %v7409 = vpack.c.b16 %v5009, %v4929
        %v7410 = vpack.c.b16 %v5010, %v4930
        %v7411 = vpack.c.b16 %v5011, %v4931
        %v7412 = vpack.c.b16 %v5012, %v4932
        %v7413 = vpack.c.b16 %v5013, %v4933
        %v7414 = vpack.c.b16 %v5014, %v4934
        %v7415 = vpack.c.b16 %v5015, %v4935
        %v7416 = vpack.c.b16 %v5016, %v4936
        %v7417 = vpack.c.b16 %v5017, %v4937
        %v7418 = vpack.c.b16 %v5018, %v4938
        %v7419 = vpack.c.b16 %v5019, %v4939
        %v7420 = vpack.c.b16 %v5020, %v4940
        %v7421 = vpack.c.b16 %v5021, %v4941
        %v7422 = vpack.c.b16 %v5022, %v4942
        %v7423 = vpack.c.b16 %v5023, %v4943
        %v7424 = vpack.c.b16 %v5024, %v4944
        %v7425 = vpack.c.b16 %v5025, %v4945
        %v7426 = vpack.c.b16 %v5026, %v4946
        %v7427 = vpack.c.b16 %v5027, %v4947
        %v7428 = vpack.c.b16 %v5028, %v4948
        %v7429 = vpack.c.b16 %v5029, %v4949
        %v7430 = vpack.c.b16 %v5030, %v4950
        %v7431 = vpack.c.b16 %v5031, %v4951
        %v7432 = vpack.c.b16 %v5032, %v4952
        %v7433 = vpack.c.b16 %v5033, %v4953
        %v7434 = vpack.c.b16 %v5034, %v4954
        %v7435 = vpack.c.b16 %v5035, %v4955
        %v7436 = vpack.c.b16 %v5036, %v4956
        %v7437 = vpack.c.b16 %v5037, %v4957
        %v7438 = vpack.c.b16 %v5038, %v4958
        %v7439 = vpack.c.b16 %v5039, %v4959
        %v7440 = vpack.c.b16 %v5040, %v4960
        %v7441 = vpack.c.b16 %v5041, %v4961
        %v7442 = vpack.c.b16 %v5042, %v4962
        %v7443 = vpack.c.b16 %v5123, %v5043
        %v7444 = vpack.c.b16 %v5124, %v5044
        %v7445 = vpack.c.b16 %v5125, %v5045
        %v7446 = vpack.c.b16 %v5126, %v5046
        %v7447 = vpack.c.b16 %v5127, %v5047
        %v7448 = vpack.c.b16 %v5128, %v5048
        %v7449 = vpack.c.b16 %v5129, %v5049
        %v7450 = vpack.c.b16 %v5130, %v5050
        %v7451 = vpack.c.b16 %v5131, %v5051
        %v7452 = vpack.c.b16 %v5132, %v5052
        %v7453 = vpack.c.b16 %v5133, %v5053
        %v7454 = vpack.c.b16 %v5134, %v5054
        %v7455 = vpack.c.b16 %v5135, %v5055
        %v7456 = vpack.c.b16 %v5136, %v5056
        %v7457 = vpack.c.b16 %v5137, %v5057
        %v7458 = vpack.c.b16 %v5138, %v5058
        %v7459 = vpack.c.b16 %v5139, %v5059
        %v7460 = vpack.c.b16 %v5140, %v5060
        %v7461 = vpack.c.b16 %v5141, %v5061
        %v7462 = vpack.c.b16 %v5142, %v5062
        %v7463 = vpack.c.b16 %v5143, %v5063
        %v7464 = vpack.c.b16 %v5144, %v5064
        %v7465 = vpack.c.b16 %v5145, %v5065
        %v7466 = vpack.c.b16 %v5146, %v5066
        %v7467 = vpack.c.b16 %v5147, %v5067
        %v7468 = vpack.c.b16 %v5148, %v5068
        %v7469 = vpack.c.b16 %v5149, %v5069
        %v7470 = vpack.c.b16 %v5150, %v5070
        %v7471 = vpack.c.b16 %v5151, %v5071
        %v7472 = vpack.c.b16 %v5152, %v5072
        %v7473 = vpack.c.b16 %v5153, %v5073
        %v7474 = vpack.c.b16 %v5154, %v5074
        %v7475 = vpack.c.b16 %v5155, %v5075
        %v7476 = vpack.c.b16 %v5156, %v5076
        %v7477 = vpack.c.b16 %v5157, %v5077
        %v7478 = vpack.c.b16 %v5158, %v5078
        %v7479 = vpack.c.b16 %v5159, %v5079
        %v7480 = vpack.c.b16 %v5160, %v5080
        %v7481 = vpack.c.b16 %v5161, %v5081
        %v7482 = vpack.c.b16 %v5162, %v5082
        %v7483 = vpack.c.b16 %v5163, %v5083
        %v7484 = vpack.c.b16 %v5164, %v5084
        %v7485 = vpack.c.b16 %v5165, %v5085
        %v7486 = vpack.c.b16 %v5166, %v5086
        %v7487 = vpack.c.b16 %v5167, %v5087
        %v7488 = vpack.c.b16 %v5168, %v5088
        %v7489 = vpack.c.b16 %v5169, %v5089
        %v7490 = vpack.c.b16 %v5170, %v5090
        %v7491 = vpack.c.b16 %v5171, %v5091
        %v7492 = vpack.c.b16 %v5172, %v5092
        %v7493 = vpack.c.b16 %v5173, %v5093
        %v7494 = vpack.c.b16 %v5174, %v5094
        %v7495 = vpack.c.b16 %v5175, %v5095
        %v7496 = vpack.c.b16 %v5176, %v5096
        %v7497 = vpack.c.b16 %v5177, %v5097
        %v7498 = vpack.c.b16 %v5178, %v5098
        %v7499 = vpack.c.b16 %v5179, %v5099
        %v7500 = vpack.c.b16 %v5180, %v5100
        %v7501 = vpack.c.b16 %v5181, %v5101
        %v7502 = vpack.c.b16 %v5182, %v5102
        %v7503 = vpack.c.b16 %v5183, %v5103
        %v7504 = vpack.c.b16 %v5184, %v5104
        %v7505 = vpack.c.b16 %v5185, %v5105
        %v7506 = vpack.c.b16 %v5186, %v5106
        %v7507 = vpack.c.b16 %v5187, %v5107
        %v7508 = vpack.c.b16 %v5188, %v5108
        %v7509 = vpack.c.b16 %v5189, %v5109
        %v7510 = vpack.c.b16 %v5190, %v5110
        %v7511 = vpack.c.b16 %v5191, %v5111
        %v7512 = vpack.c.b16 %v5192, %v5112
        %v7513 = vpack.c.b16 %v5193, %v5113
        %v7514 = vpack.c.b16 %v5194, %v5114
        %v7515 = vpack.c.b16 %v5195, %v5115
        %v7516 = vpack.c.b16 %v5196, %v5116
        %v7517 = vpack.c.b16 %v5197, %v5117
        %v7518 = vpack.c.b16 %v5198, %v5118
        %v7519 = vpack.c.b16 %v5199, %v5119
        %v7520 = vpack.c.b16 %v5200, %v5120
        %v7521 = vpack.c.b16 %v5201, %v5121
        %v7522 = vpack.c.b16 %v5202, %v5122
        %v7523 = vpack.c.b16 %v5283, %v5203
        %v7524 = vpack.c.b16 %v5284, %v5204
        %v7525 = vpack.c.b16 %v5285, %v5205
        %v7526 = vpack.c.b16 %v5286, %v5206
        %v7527 = vpack.c.b16 %v5287, %v5207
        %v7528 = vpack.c.b16 %v5288, %v5208
        %v7529 = vpack.c.b16 %v5289, %v5209
        %v7530 = vpack.c.b16 %v5290, %v5210
        %v7531 = vpack.c.b16 %v5291, %v5211
        %v7532 = vpack.c.b16 %v5292, %v5212
        %v7533 = vpack.c.b16 %v5293, %v5213
        %v7534 = vpack.c.b16 %v5294, %v5214
        %v7535 = vpack.c.b16 %v5295, %v5215
        %v7536 = vpack.c.b16 %v5296, %v5216
        %v7537 = vpack.c.b16 %v5297, %v5217
        %v7538 = vpack.c.b16 %v5298, %v5218
        %v7539 = vpack.c.b16 %v5299, %v5219
        %v7540 = vpack.c.b16 %v5300, %v5220
        %v7541 = vpack.c.b16 %v5301, %v5221
        %v7542 = vpack.c.b16 %v5302, %v5222
        %v7543 = vpack.c.b16 %v5303, %v5223
        %v7544 = vpack.c.b16 %v5304, %v5224
        %v7545 = vpack.c.b16 %v5305, %v5225
        %v7546 = vpack.c.b16 %v5306, %v5226
        %v7547 = vpack.c.b16 %v5307, %v5227
        %v7548 = vpack.c.b16 %v5308, %v5228
        %v7549 = vpack.c.b16 %v5309, %v5229
        %v7550 = vpack.c.b16 %v5310, %v5230
        %v7551 = vpack.c.b16 %v5311, %v5231
        %v7552 = vpack.c.b16 %v5312, %v5232
        %v7553 = vpack.c.b16 %v5313, %v5233
        %v7554 = vpack.c.b16 %v5314, %v5234
        %v7555 = vpack.c.b16 %v5315, %v5235
        %v7556 = vpack.c.b16 %v5316, %v5236
        %v7557 = vpack.c.b16 %v5317, %v5237
        %v7558 = vpack.c.b16 %v5318, %v5238
        %v7559 = vpack.c.b16 %v5319, %v5239
        %v7560 = vpack.c.b16 %v5320, %v5240
        %v7561 = vpack.c.b16 %v5321, %v5241
        %v7562 = vpack.c.b16 %v5322, %v5242
        %v7563 = vpack.c.b16 %v5323, %v5243
        %v7564 = vpack.c.b16 %v5324, %v5244
        %v7565 = vpack.c.b16 %v5325, %v5245
        %v7566 = vpack.c.b16 %v5326, %v5246
        %v7567 = vpack.c.b16 %v5327, %v5247
        %v7568 = vpack.c.b16 %v5328, %v5248
        %v7569 = vpack.c.b16 %v5329, %v5249
        %v7570 = vpack.c.b16 %v5330, %v5250
        %v7571 = vpack.c.b16 %v5331, %v5251
        %v7572 = vpack.c.b16 %v5332, %v5252
        %v7573 = vpack.c.b16 %v5333, %v5253
        %v7574 = vpack.c.b16 %v5334, %v5254
        %v7575 = vpack.c.b16 %v5335, %v5255
        %v7576 = vpack.c.b16 %v5336, %v5256
        %v7577 = vpack.c.b16 %v5337, %v5257
        %v7578 = vpack.c.b16 %v5338, %v5258
        %v7579 = vpack.c.b16 %v5339, %v5259
        %v7580 = vpack.c.b16 %v5340, %v5260
        %v7581 = vpack.c.b16 %v5341, %v5261
        %v7582 = vpack.c.b16 %v5342, %v5262
        %v7583 = vpack.c.b16 %v5343, %v5263
        %v7584 = vpack.c.b16 %v5344, %v5264
        %v7585 = vpack.c.b16 %v5345, %v5265
        %v7586 = vpack.c.b16 %v5346, %v5266
        %v7587 = vpack.c.b16 %v5347, %v5267
        %v7588 = vpack.c.b16 %v5348, %v5268
        %v7589 = vpack.c.b16 %v5349, %v5269
        %v7590 = vpack.c.b16 %v5350, %v5270
        %v7591 = vpack.c.b16 %v5351, %v5271
        %v7592 = vpack.c.b16 %v5352, %v5272
        %v7593 = vpack.c.b16 %v5353, %v5273
        %v7594 = vpack.c.b16 %v5354, %v5274
        %v7595 = vpack.c.b16 %v5355, %v5275
        %v7596 = vpack.c.b16 %v5356, %v5276
        %v7597 = vpack.c.b16 %v5357, %v5277
        %v7598 = vpack.c.b16 %v5358, %v5278
        %v7599 = vpack.c.b16 %v5359, %v5279
        %v7600 = vpack.c.b16 %v5360, %v5280
        %v7601 = vpack.c.b16 %v5361, %v5281
        %v7602 = vpack.c.b16 %v5362, %v5282
        %v7603 = vpack.c.b16 %v5443, %v5363
        %v7604 = vpack.c.b16 %v5444, %v5364
        %v7605 = vpack.c.b16 %v5445, %v5365
        %v7606 = vpack.c.b16 %v5446, %v5366
        %v7607 = vpack.c.b16 %v5447, %v5367
        %v7608 = vpack.c.b16 %v5448, %v5368
        %v7609 = vpack.c.b16 %v5449, %v5369
        %v7610 = vpack.c.b16 %v5450, %v5370
        %v7611 = vpack.c.b16 %v5451, %v5371
        %v7612 = vpack.c.b16 %v5452, %v5372
        %v7613 = vpack.c.b16 %v5453, %v5373
        %v7614 = vpack.c.b16 %v5454, %v5374
        %v7615 = vpack.c.b16 %v5455, %v5375
        %v7616 = vpack.c.b16 %v5456, %v5376
        %v7617 = vpack.c.b16 %v5457, %v5377
        %v7618 = vpack.c.b16 %v5458, %v5378
        %v7619 = vpack.c.b16 %v5459, %v5379
        %v7620 = vpack.c.b16 %v5460, %v5380
        %v7621 = vpack.c.b16 %v5461, %v5381
        %v7622 = vpack.c.b16 %v5462, %v5382
        %v7623 = vpack.c.b16 %v5463, %v5383
        %v7624 = vpack.c.b16 %v5464, %v5384
        %v7625 = vpack.c.b16 %v5465, %v5385
        %v7626 = vpack.c.b16 %v5466, %v5386
        %v7627 = vpack.c.b16 %v5467, %v5387
        %v7628 = vpack.c.b16 %v5468, %v5388
        %v7629 = vpack.c.b16 %v5469, %v5389
        %v7630 = vpack.c.b16 %v5470, %v5390
        %v7631 = vpack.c.b16 %v5471, %v5391
        %v7632 = vpack.c.b16 %v5472, %v5392
        %v7633 = vpack.c.b16 %v5473, %v5393
        %v7634 = vpack.c.b16 %v5474, %v5394
        %v7635 = vpack.c.b16 %v5475, %v5395
        %v7636 = vpack.c.b16 %v5476, %v5396
        %v7637 = vpack.c.b16 %v5477, %v5397
        %v7638 = vpack.c.b16 %v5478, %v5398
        %v7639 = vpack.c.b16 %v5479, %v5399
        %v7640 = vpack.c.b16 %v5480, %v5400
        %v7641 = vpack.c.b16 %v5481, %v5401
        %v7642 = vpack.c.b16 %v5482, %v5402
        %v7643 = vpack.c.b16 %v5483, %v5403
        %v7644 = vpack.c.b16 %v5484, %v5404
        %v7645 = vpack.c.b16 %v5485, %v5405
        %v7646 = vpack.c.b16 %v5486, %v5406
        %v7647 = vpack.c.b16 %v5487, %v5407
        %v7648 = vpack.c.b16 %v5488, %v5408
        %v7649 = vpack.c.b16 %v5489, %v5409
        %v7650 = vpack.c.b16 %v5490, %v5410
        %v7651 = vpack.c.b16 %v5491, %v5411
        %v7652 = vpack.c.b16 %v5492, %v5412
        %v7653 = vpack.c.b16 %v5493, %v5413
        %v7654 = vpack.c.b16 %v5494, %v5414
        %v7655 = vpack.c.b16 %v5495, %v5415
        %v7656 = vpack.c.b16 %v5496, %v5416
        %v7657 = vpack.c.b16 %v5497, %v5417
        %v7658 = vpack.c.b16 %v5498, %v5418
        %v7659 = vpack.c.b16 %v5499, %v5419
        %v7660 = vpack.c.b16 %v5500, %v5420
        %v7661 = vpack.c.b16 %v5501, %v5421
        %v7662 = vpack.c.b16 %v5502, %v5422
        %v7663 = vpack.c.b16 %v5503, %v5423
        %v7664 = vpack.c.b16 %v5504, %v5424
        %v7665 = vpack.c.b16 %v5505, %v5425
        %v7666 = vpack.c.b16 %v5506, %v5426
        %v7667 = vpack.c.b16 %v5507, %v5427
        %v7668 = vpack.c.b16 %v5508, %v5428
        %v7669 = vpack.c.b16 %v5509, %v5429
        %v7670 = vpack.c.b16 %v5510, %v5430
        %v7671 = vpack.c.b16 %v5511, %v5431
        %v7672 = vpack.c.b16 %v5512, %v5432
        %v7673 = vpack.c.b16 %v5513, %v5433
        %v7674 = vpack.c.b16 %v5514, %v5434
        %v7675 = vpack.c.b16 %v5515, %v5435
        %v7676 = vpack.c.b16 %v5516, %v5436
        %v7677 = vpack.c.b16 %v5517, %v5437
        %v7678 = vpack.c.b16 %v5518, %v5438
        %v7679 = vpack.c.b16 %v5519, %v5439
        %v7680 = vpack.c.b16 %v5520, %v5440
        %v7681 = vpack.c.b16 %v5521, %v5441
        %v7682 = vpack.c.b16 %v5522, %v5442
        %v7683 = vpack.c.b16 %v5603, %v5523
        %v7684 = vpack.c.b16 %v5604, %v5524
        %v7685 = vpack.c.b16 %v5605, %v5525
        %v7686 = vpack.c.b16 %v5606, %v5526
        %v7687 = vpack.c.b16 %v5607, %v5527
        %v7688 = vpack.c.b16 %v5608, %v5528
        %v7689 = vpack.c.b16 %v5609, %v5529
        %v7690 = vpack.c.b16 %v5610, %v5530
        %v7691 = vpack.c.b16 %v5611, %v5531
        %v7692 = vpack.c.b16 %v5612, %v5532
        %v7693 = vpack.c.b16 %v5613, %v5533
        %v7694 = vpack.c.b16 %v5614, %v5534
        %v7695 = vpack.c.b16 %v5615, %v5535
        %v7696 = vpack.c.b16 %v5616, %v5536
        %v7697 = vpack.c.b16 %v5617, %v5537
        %v7698 = vpack.c.b16 %v5618, %v5538
        %v7699 = vpack.c.b16 %v5619, %v5539
        %v7700 = vpack.c.b16 %v5620, %v5540
        %v7701 = vpack.c.b16 %v5621, %v5541
        %v7702 = vpack.c.b16 %v5622, %v5542
        %v7703 = vpack.c.b16 %v5623, %v5543
        %v7704 = vpack.c.b16 %v5624, %v5544
        %v7705 = vpack.c.b16 %v5625, %v5545
        %v7706 = vpack.c.b16 %v5626, %v5546
        %v7707 = vpack.c.b16 %v5627, %v5547
        %v7708 = vpack.c.b16 %v5628, %v5548
        %v7709 = vpack.c.b16 %v5629, %v5549
        %v7710 = vpack.c.b16 %v5630, %v5550
        %v7711 = vpack.c.b16 %v5631, %v5551
        %v7712 = vpack.c.b16 %v5632, %v5552
        %v7713 = vpack.c.b16 %v5633, %v5553
        %v7714 = vpack.c.b16 %v5634, %v5554
        %v7715 = vpack.c.b16 %v5635, %v5555
        %v7716 = vpack.c.b16 %v5636, %v5556
        %v7717 = vpack.c.b16 %v5637, %v5557
        %v7718 = vpack.c.b16 %v5638, %v5558
        %v7719 = vpack.c.b16 %v5639, %v5559
        %v7720 = vpack.c.b16 %v5640, %v5560
        %v7721 = vpack.c.b16 %v5641, %v5561
        %v7722 = vpack.c.b16 %v5642, %v5562
        %v7723 = vpack.c.b16 %v5643, %v5563
        %v7724 = vpack.c.b16 %v5644, %v5564
        %v7725 = vpack.c.b16 %v5645, %v5565
        %v7726 = vpack.c.b16 %v5646, %v5566
        %v7727 = vpack.c.b16 %v5647, %v5567
        %v7728 = vpack.c.b16 %v5648, %v5568
        %v7729 = vpack.c.b16 %v5649, %v5569
        %v7730 = vpack.c.b16 %v5650, %v5570
        %v7731 = vpack.c.b16 %v5651, %v5571
        %v7732 = vpack.c.b16 %v5652, %v5572
        %v7733 = vpack.c.b16 %v5653, %v5573
        %v7734 = vpack.c.b16 %v5654, %v5574
        %v7735 = vpack.c.b16 %v5655, %v5575
        %v7736 = vpack.c.b16 %v5656, %v5576
        %v7737 = vpack.c.b16 %v5657, %v5577
        %v7738 = vpack.c.b16 %v5658, %v5578
        %v7739 = vpack.c.b16 %v5659, %v5579
        %v7740 = vpack.c.b16 %v5660, %v5580
        %v7741 = vpack.c.b16 %v5661, %v5581
        %v7742 = vpack.c.b16 %v5662, %v5582
        %v7743 = vpack.c.b16 %v5663, %v5583
        %v7744 = vpack.c.b16 %v5664, %v5584
        %v7745 = vpack.c.b16 %v5665, %v5585
        %v7746 = vpack.c.b16 %v5666, %v5586
        %v7747 = vpack.c.b16 %v5667, %v5587
        %v7748 = vpack.c.b16 %v5668, %v5588
        %v7749 = vpack.c.b16 %v5669, %v5589
        %v7750 = vpack.c.b16 %v5670, %v5590
        %v7751 = vpack.c.b16 %v5671, %v5591
        %v7752 = vpack.c.b16 %v5672, %v5592
        %v7753 = vpack.c.b16 %v5673, %v5593
        %v7754 = vpack.c.b16 %v5674, %v5594
        %v7755 = vpack.c.b16 %v5675, %v5595
        %v7756 = vpack.c.b16 %v5676, %v5596
        %v7757 = vpack.c.b16 %v5677, %v5597
        %v7758 = vpack.c.b16 %v5678, %v5598
        %v7759 = vpack.c.b16 %v5679, %v5599
        %v7760 = vpack.c.b16 %v5680, %v5600
        %v7761 = vpack.c.b16 %v5681, %v5601
        %v7762 = vpack.c.b16 %v5682, %v5602
        %v7763 = vpack.c.b16 %v5763, %v5683
        %v7764 = vpack.c.b16 %v5764, %v5684
        %v7765 = vpack.c.b16 %v5765, %v5685
        %v7766 = vpack.c.b16 %v5766, %v5686
        %v7767 = vpack.c.b16 %v5767, %v5687
        %v7768 = vpack.c.b16 %v5768, %v5688
        %v7769 = vpack.c.b16 %v5769, %v5689
        %v7770 = vpack.c.b16 %v5770, %v5690
        %v7771 = vpack.c.b16 %v5771, %v5691
        %v7772 = vpack.c.b16 %v5772, %v5692
        %v7773 = vpack.c.b16 %v5773, %v5693
        %v7774 = vpack.c.b16 %v5774, %v5694
        %v7775 = vpack.c.b16 %v5775, %v5695
        %v7776 = vpack.c.b16 %v5776, %v5696
        %v7777 = vpack.c.b16 %v5777, %v5697
        %v7778 = vpack.c.b16 %v5778, %v5698
        %v7779 = vpack.c.b16 %v5779, %v5699
        %v7780 = vpack.c.b16 %v5780, %v5700
        %v7781 = vpack.c.b16 %v5781, %v5701
        %v7782 = vpack.c.b16 %v5782, %v5702
        %v7783 = vpack.c.b16 %v5783, %v5703
        %v7784 = vpack.c.b16 %v5784, %v5704
        %v7785 = vpack.c.b16 %v5785, %v5705
        %v7786 = vpack.c.b16 %v5786, %v5706
        %v7787 = vpack.c.b16 %v5787, %v5707
        %v7788 = vpack.c.b16 %v5788, %v5708
        %v7789 = vpack.c.b16 %v5789, %v5709
        %v7790 = vpack.c.b16 %v5790, %v5710
        %v7791 = vpack.c.b16 %v5791, %v5711
        %v7792 = vpack.c.b16 %v5792, %v5712
        %v7793 = vpack.c.b16 %v5793, %v5713
        %v7794 = vpack.c.b16 %v5794, %v5714
        %v7795 = vpack.c.b16 %v5795, %v5715
        %v7796 = vpack.c.b16 %v5796, %v5716
        %v7797 = vpack.c.b16 %v5797, %v5717
        %v7798 = vpack.c.b16 %v5798, %v5718
        %v7799 = vpack.c.b16 %v5799, %v5719
        %v7800 = vpack.c.b16 %v5800, %v5720
        %v7801 = vpack.c.b16 %v5801, %v5721
        %v7802 = vpack.c.b16 %v5802, %v5722
        %v7803 = vpack.c.b16 %v5803, %v5723
        %v7804 = vpack.c.b16 %v5804, %v5724
        %v7805 = vpack.c.b16 %v5805, %v5725
        %v7806 = vpack.c.b16 %v5806, %v5726
        %v7807 = vpack.c.b16 %v5807, %v5727
        %v7808 = vpack.c.b16 %v5808, %v5728
        %v7809 = vpack.c.b16 %v5809, %v5729
        %v7810 = vpack.c.b16 %v5810, %v5730
        %v7811 = vpack.c.b16 %v5811, %v5731
        %v7812 = vpack.c.b16 %v5812, %v5732
        %v7813 = vpack.c.b16 %v5813, %v5733
        %v7814 = vpack.c.b16 %v5814, %v5734
        %v7815 = vpack.c.b16 %v5815, %v5735
        %v7816 = vpack.c.b16 %v5816, %v5736
        %v7817 = vpack.c.b16 %v5817, %v5737
        %v7818 = vpack.c.b16 %v5818, %v5738
        %v7819 = vpack.c.b16 %v5819, %v5739
        %v7820 = vpack.c.b16 %v5820, %v5740
        %v7821 = vpack.c.b16 %v5821, %v5741
        %v7822 = vpack.c.b16 %v5822, %v5742
        %v7823 = vpack.c.b16 %v5823, %v5743
        %v7824 = vpack.c.b16 %v5824, %v5744
        %v7825 = vpack.c.b16 %v5825, %v5745
        %v7826 = vpack.c.b16 %v5826, %v5746
        %v7827 = vpack.c.b16 %v5827, %v5747
        %v7828 = vpack.c.b16 %v5828, %v5748
        %v7829 = vpack.c.b16 %v5829, %v5749
        %v7830 = vpack.c.b16 %v5830, %v5750
        %v7831 = vpack.c.b16 %v5831, %v5751
        %v7832 = vpack.c.b16 %v5832, %v5752
        %v7833 = vpack.c.b16 %v5833, %v5753
        %v7834 = vpack.c.b16 %v5834, %v5754
        %v7835 = vpack.c.b16 %v5835, %v5755
        %v7836 = vpack.c.b16 %v5836, %v5756
        %v7837 = vpack.c.b16 %v5837, %v5757
        %v7838 = vpack.c.b16 %v5838, %v5758
        %v7839 = vpack.c.b16 %v5839, %v5759
        %v7840 = vpack.c.b16 %v5840, %v5760
        %v7841 = vpack.c.b16 %v5841, %v5761
        %v7842 = vpack.c.b16 %v5842, %v5762
        %v7843 = vpack.c.b16 %v5923, %v5843
        %v7844 = vpack.c.b16 %v5924, %v5844
        %v7845 = vpack.c.b16 %v5925, %v5845
        %v7846 = vpack.c.b16 %v5926, %v5846
        %v7847 = vpack.c.b16 %v5927, %v5847
        %v7848 = vpack.c.b16 %v5928, %v5848
        %v7849 = vpack.c.b16 %v5929, %v5849
        %v7850 = vpack.c.b16 %v5930, %v5850
        %v7851 = vpack.c.b16 %v5931, %v5851
        %v7852 = vpack.c.b16 %v5932, %v5852
        %v7853 = vpack.c.b16 %v5933, %v5853
        %v7854 = vpack.c.b16 %v5934, %v5854
        %v7855 = vpack.c.b16 %v5935, %v5855
        %v7856 = vpack.c.b16 %v5936, %v5856
        %v7857 = vpack.c.b16 %v5937, %v5857
        %v7858 = vpack.c.b16 %v5938, %v5858
        %v7859 = vpack.c.b16 %v5939, %v5859
        %v7860 = vpack.c.b16 %v5940, %v5860
        %v7861 = vpack.c.b16 %v5941, %v5861
        %v7862 = vpack.c.b16 %v5942, %v5862
        %v7863 = vpack.c.b16 %v5943, %v5863
        %v7864 = vpack.c.b16 %v5944, %v5864
        %v7865 = vpack.c.b16 %v5945, %v5865
        %v7866 = vpack.c.b16 %v5946, %v5866
        %v7867 = vpack.c.b16 %v5947, %v5867
        %v7868 = vpack.c.b16 %v5948, %v5868
        %v7869 = vpack.c.b16 %v5949, %v5869
        %v7870 = vpack.c.b16 %v5950, %v5870
        %v7871 = vpack.c.b16 %v5951, %v5871
        %v7872 = vpack.c.b16 %v5952, %v5872
        %v7873 = vpack.c.b16 %v5953, %v5873
        %v7874 = vpack.c.b16 %v5954, %v5874
        %v7875 = vpack.c.b16 %v5955, %v5875
        %v7876 = vpack.c.b16 %v5956, %v5876
        %v7877 = vpack.c.b16 %v5957, %v5877
        %v7878 = vpack.c.b16 %v5958, %v5878
        %v7879 = vpack.c.b16 %v5959, %v5879
        %v7880 = vpack.c.b16 %v5960, %v5880
        %v7881 = vpack.c.b16 %v5961, %v5881
        %v7882 = vpack.c.b16 %v5962, %v5882
        %v7883 = vpack.c.b16 %v5963, %v5883
        %v7884 = vpack.c.b16 %v5964, %v5884
        %v7885 = vpack.c.b16 %v5965, %v5885
        %v7886 = vpack.c.b16 %v5966, %v5886
        %v7887 = vpack.c.b16 %v5967, %v5887
        %v7888 = vpack.c.b16 %v5968, %v5888
        %v7889 = vpack.c.b16 %v5969, %v5889
        %v7890 = vpack.c.b16 %v5970, %v5890
        %v7891 = vpack.c.b16 %v5971, %v5891
        %v7892 = vpack.c.b16 %v5972, %v5892
        %v7893 = vpack.c.b16 %v5973, %v5893
        %v7894 = vpack.c.b16 %v5974, %v5894
        %v7895 = vpack.c.b16 %v5975, %v5895
        %v7896 = vpack.c.b16 %v5976, %v5896
        %v7897 = vpack.c.b16 %v5977, %v5897
        %v7898 = vpack.c.b16 %v5978, %v5898
        %v7899 = vpack.c.b16 %v5979, %v5899
        %v7900 = vpack.c.b16 %v5980, %v5900
        %v7901 = vpack.c.b16 %v5981, %v5901
        %v7902 = vpack.c.b16 %v5982, %v5902
        %v7903 = vpack.c.b16 %v5983, %v5903
        %v7904 = vpack.c.b16 %v5984, %v5904
        %v7905 = vpack.c.b16 %v5985, %v5905
        %v7906 = vpack.c.b16 %v5986, %v5906
        %v7907 = vpack.c.b16 %v5987, %v5907
        %v7908 = vpack.c.b16 %v5988, %v5908
        %v7909 = vpack.c.b16 %v5989, %v5909
        %v7910 = vpack.c.b16 %v5990, %v5910
        %v7911 = vpack.c.b16 %v5991, %v5911
        %v7912 = vpack.c.b16 %v5992, %v5912
        %v7913 = vpack.c.b16 %v5993, %v5913
        %v7914 = vpack.c.b16 %v5994, %v5914
        %v7915 = vpack.c.b16 %v5995, %v5915
        %v7916 = vpack.c.b16 %v5996, %v5916
        %v7917 = vpack.c.b16 %v5997, %v5917
        %v7918 = vpack.c.b16 %v5998, %v5918
        %v7919 = vpack.c.b16 %v5999, %v5919
        %v7920 = vpack.c.b16 %v6000, %v5920
        %v7921 = vpack.c.b16 %v6001, %v5921
        %v7922 = vpack.c.b16 %v6002, %v5922
        %v7923 = vpack.c.b16 %v6083, %v6003
        %v7924 = vpack.c.b16 %v6084, %v6004
        %v7925 = vpack.c.b16 %v6085, %v6005
        %v7926 = vpack.c.b16 %v6086, %v6006
        %v7927 = vpack.c.b16 %v6087, %v6007
        %v7928 = vpack.c.b16 %v6088, %v6008
        %v7929 = vpack.c.b16 %v6089, %v6009
        %v7930 = vpack.c.b16 %v6090, %v6010
        %v7931 = vpack.c.b16 %v6091, %v6011
        %v7932 = vpack.c.b16 %v6092, %v6012
        %v7933 = vpack.c.b16 %v6093, %v6013
        %v7934 = vpack.c.b16 %v6094, %v6014
        %v7935 = vpack.c.b16 %v6095, %v6015
        %v7936 = vpack.c.b16 %v6096, %v6016
        %v7937 = vpack.c.b16 %v6097, %v6017
        %v7938 = vpack.c.b16 %v6098, %v6018
        %v7939 = vpack.c.b16 %v6099, %v6019
        %v7940 = vpack.c.b16 %v6100, %v6020
        %v7941 = vpack.c.b16 %v6101, %v6021
        %v7942 = vpack.c.b16 %v6102, %v6022
        %v7943 = vpack.c.b16 %v6103, %v6023
        %v7944 = vpack.c.b16 %v6104, %v6024
        %v7945 = vpack.c.b16 %v6105, %v6025
        %v7946 = vpack.c.b16 %v6106, %v6026
        %v7947 = vpack.c.b16 %v6107, %v6027
        %v7948 = vpack.c.b16 %v6108, %v6028
        %v7949 = vpack.c.b16 %v6109, %v6029
        %v7950 = vpack.c.b16 %v6110, %v6030
        %v7951 = vpack.c.b16 %v6111, %v6031
        %v7952 = vpack.c.b16 %v6112, %v6032
        %v7953 = vpack.c.b16 %v6113, %v6033
        %v7954 = vpack.c.b16 %v6114, %v6034
        %v7955 = vpack.c.b16 %v6115, %v6035
        %v7956 = vpack.c.b16 %v6116, %v6036
        %v7957 = vpack.c.b16 %v6117, %v6037
        %v7958 = vpack.c.b16 %v6118, %v6038
        %v7959 = vpack.c.b16 %v6119, %v6039
        %v7960 = vpack.c.b16 %v6120, %v6040
        %v7961 = vpack.c.b16 %v6121, %v6041
        %v7962 = vpack.c.b16 %v6122, %v6042
        %v7963 = vpack.c.b16 %v6123, %v6043
        %v7964 = vpack.c.b16 %v6124, %v6044
        %v7965 = vpack.c.b16 %v6125, %v6045
        %v7966 = vpack.c.b16 %v6126, %v6046
        %v7967 = vpack.c.b16 %v6127, %v6047
        %v7968 = vpack.c.b16 %v6128, %v6048
        %v7969 = vpack.c.b16 %v6129, %v6049
        %v7970 = vpack.c.b16 %v6130, %v6050
        %v7971 = vpack.c.b16 %v6131, %v6051
        %v7972 = vpack.c.b16 %v6132, %v6052
        %v7973 = vpack.c.b16 %v6133, %v6053
        %v7974 = vpack.c.b16 %v6134, %v6054
        %v7975 = vpack.c.b16 %v6135, %v6055
        %v7976 = vpack.c.b16 %v6136, %v6056
        %v7977 = vpack.c.b16 %v6137, %v6057
        %v7978 = vpack.c.b16 %v6138, %v6058
        %v7979 = vpack.c.b16 %v6139, %v6059
        %v7980 = vpack.c.b16 %v6140, %v6060
        %v7981 = vpack.c.b16 %v6141, %v6061
        %v7982 = vpack.c.b16 %v6142, %v6062
        %v7983 = vpack.c.b16 %v6143, %v6063
        %v7984 = vpack.c.b16 %v6144, %v6064
        %v7985 = vpack.c.b16 %v6145, %v6065
        %v7986 = vpack.c.b16 %v6146, %v6066
        %v7987 = vpack.c.b16 %v6147, %v6067
        %v7988 = vpack.c.b16 %v6148, %v6068
        %v7989 = vpack.c.b16 %v6149, %v6069
        %v7990 = vpack.c.b16 %v6150, %v6070
        %v7991 = vpack.c.b16 %v6151, %v6071
        %v7992 = vpack.c.b16 %v6152, %v6072
        %v7993 = vpack.c.b16 %v6153, %v6073
        %v7994 = vpack.c.b16 %v6154, %v6074
        %v7995 = vpack.c.b16 %v6155, %v6075
        %v7996 = vpack.c.b16 %v6156, %v6076
        %v7997 = vpack.c.b16 %v6157, %v6077
        %v7998 = vpack.c.b16 %v6158, %v6078
        %v7999 = vpack.c.b16 %v6159, %v6079
        %v8000 = vpack.c.b16 %v6160, %v6080
        %v8001 = vpack.c.b16 %v6161, %v6081
        %v8002 = vpack.c.b16 %v6162, %v6082
        %v8003 = vpack.c.b16 %v6243, %v6163
        %v8004 = vpack.c.b16 %v6244, %v6164
        %v8005 = vpack.c.b16 %v6245, %v6165
        %v8006 = vpack.c.b16 %v6246, %v6166
        %v8007 = vpack.c.b16 %v6247, %v6167
        %v8008 = vpack.c.b16 %v6248, %v6168
        %v8009 = vpack.c.b16 %v6249, %v6169
        %v8010 = vpack.c.b16 %v6250, %v6170
        %v8011 = vpack.c.b16 %v6251, %v6171
        %v8012 = vpack.c.b16 %v6252, %v6172
        %v8013 = vpack.c.b16 %v6253, %v6173
        %v8014 = vpack.c.b16 %v6254, %v6174
        %v8015 = vpack.c.b16 %v6255, %v6175
        %v8016 = vpack.c.b16 %v6256, %v6176
        %v8017 = vpack.c.b16 %v6257, %v6177
        %v8018 = vpack.c.b16 %v6258, %v6178
        %v8019 = vpack.c.b16 %v6259, %v6179
        %v8020 = vpack.c.b16 %v6260, %v6180
        %v8021 = vpack.c.b16 %v6261, %v6181
        %v8022 = vpack.c.b16 %v6262, %v6182
        %v8023 = vpack.c.b16 %v6263, %v6183
        %v8024 = vpack.c.b16 %v6264, %v6184
        %v8025 = vpack.c.b16 %v6265, %v6185
        %v8026 = vpack.c.b16 %v6266, %v6186
        %v8027 = vpack.c.b16 %v6267, %v6187
        %v8028 = vpack.c.b16 %v6268, %v6188
        %v8029 = vpack.c.b16 %v6269, %v6189
        %v8030 = vpack.c.b16 %v6270, %v6190
        %v8031 = vpack.c.b16 %v6271, %v6191
        %v8032 = vpack.c.b16 %v6272, %v6192
        %v8033 = vpack.c.b16 %v6273, %v6193
        %v8034 = vpack.c.b16 %v6274, %v6194
        %v8035 = vpack.c.b16 %v6275, %v6195
        %v8036 = vpack.c.b16 %v6276, %v6196
        %v8037 = vpack.c.b16 %v6277, %v6197
        %v8038 = vpack.c.b16 %v6278, %v6198
        %v8039 = vpack.c.b16 %v6279, %v6199
        %v8040 = vpack.c.b16 %v6280, %v6200
        %v8041 = vpack.c.b16 %v6281, %v6201
        %v8042 = vpack.c.b16 %v6282, %v6202
        %v8043 = vpack.c.b16 %v6283, %v6203
        %v8044 = vpack.c.b16 %v6284, %v6204
        %v8045 = vpack.c.b16 %v6285, %v6205
        %v8046 = vpack.c.b16 %v6286, %v6206
        %v8047 = vpack.c.b16 %v6287, %v6207
        %v8048 = vpack.c.b16 %v6288, %v6208
        %v8049 = vpack.c.b16 %v6289, %v6209
        %v8050 = vpack.c.b16 %v6290, %v6210
        %v8051 = vpack.c.b16 %v6291, %v6211
        %v8052 = vpack.c.b16 %v6292, %v6212
        %v8053 = vpack.c.b16 %v6293, %v6213
        %v8054 = vpack.c.b16 %v6294, %v6214
        %v8055 = vpack.c.b16 %v6295, %v6215
        %v8056 = vpack.c.b16 %v6296, %v6216
        %v8057 = vpack.c.b16 %v6297, %v6217
        %v8058 = vpack.c.b16 %v6298, %v6218
        %v8059 = vpack.c.b16 %v6299, %v6219
        %v8060 = vpack.c.b16 %v6300, %v6220
        %v8061 = vpack.c.b16 %v6301, %v6221
        %v8062 = vpack.c.b16 %v6302, %v6222
        %v8063 = vpack.c.b16 %v6303, %v6223
        %v8064 = vpack.c.b16 %v6304, %v6224
        %v8065 = vpack.c.b16 %v6305, %v6225
        %v8066 = vpack.c.b16 %v6306, %v6226
        %v8067 = vpack.c.b16 %v6307, %v6227
        %v8068 = vpack.c.b16 %v6308, %v6228
        %v8069 = vpack.c.b16 %v6309, %v6229
        %v8070 = vpack.c.b16 %v6310, %v6230
        %v8071 = vpack.c.b16 %v6311, %v6231
        %v8072 = vpack.c.b16 %v6312, %v6232
        %v8073 = vpack.c.b16 %v6313, %v6233
        %v8074 = vpack.c.b16 %v6314, %v6234
        %v8075 = vpack.c.b16 %v6315, %v6235
        %v8076 = vpack.c.b16 %v6316, %v6236
        %v8077 = vpack.c.b16 %v6317, %v6237
        %v8078 = vpack.c.b16 %v6318, %v6238
        %v8079 = vpack.c.b16 %v6319, %v6239
        %v8080 = vpack.c.b16 %v6320, %v6240
        %v8081 = vpack.c.b16 %v6321, %v6241
        %v8082 = vpack.c.b16 %v6322, %v6242
        %v8083 = vpack.c.b16 %v6403, %v6323
        %v8084 = vpack.c.b16 %v6404, %v6324
        %v8085 = vpack.c.b16 %v6405, %v6325
        %v8086 = vpack.c.b16 %v6406, %v6326
        %v8087 = vpack.c.b16 %v6407, %v6327
        %v8088 = vpack.c.b16 %v6408, %v6328
        %v8089 = vpack.c.b16 %v6409, %v6329
        %v8090 = vpack.c.b16 %v6410, %v6330
        %v8091 = vpack.c.b16 %v6411, %v6331
        %v8092 = vpack.c.b16 %v6412, %v6332
        %v8093 = vpack.c.b16 %v6413, %v6333
        %v8094 = vpack.c.b16 %v6414, %v6334
        %v8095 = vpack.c.b16 %v6415, %v6335
        %v8096 = vpack.c.b16 %v6416, %v6336
        %v8097 = vpack.c.b16 %v6417, %v6337
        %v8098 = vpack.c.b16 %v6418, %v6338
        %v8099 = vpack.c.b16 %v6419, %v6339
        %v8100 = vpack.c.b16 %v6420, %v6340
        %v8101 = vpack.c.b16 %v6421, %v6341
        %v8102 = vpack.c.b16 %v6422, %v6342
        %v8103 = vpack.c.b16 %v6423, %v6343
        %v8104 = vpack.c.b16 %v6424, %v6344
        %v8105 = vpack.c.b16 %v6425, %v6345
        %v8106 = vpack.c.b16 %v6426, %v6346
        %v8107 = vpack.c.b16 %v6427, %v6347
        %v8108 = vpack.c.b16 %v6428, %v6348
        %v8109 = vpack.c.b16 %v6429, %v6349
        %v8110 = vpack.c.b16 %v6430, %v6350
        %v8111 = vpack.c.b16 %v6431, %v6351
        %v8112 = vpack.c.b16 %v6432, %v6352
        %v8113 = vpack.c.b16 %v6433, %v6353
        %v8114 = vpack.c.b16 %v6434, %v6354
        %v8115 = vpack.c.b16 %v6435, %v6355
        %v8116 = vpack.c.b16 %v6436, %v6356
        %v8117 = vpack.c.b16 %v6437, %v6357
        %v8118 = vpack.c.b16 %v6438, %v6358
        %v8119 = vpack.c.b16 %v6439, %v6359
        %v8120 = vpack.c.b16 %v6440, %v6360
        %v8121 = vpack.c.b16 %v6441, %v6361
        %v8122 = vpack.c.b16 %v6442, %v6362
        %v8123 = vpack.c.b16 %v6443, %v6363
        %v8124 = vpack.c.b16 %v6444, %v6364
        %v8125 = vpack.c.b16 %v6445, %v6365
        %v8126 = vpack.c.b16 %v6446, %v6366
        %v8127 = vpack.c.b16 %v6447, %v6367
        %v8128 = vpack.c.b16 %v6448, %v6368
        %v8129 = vpack.c.b16 %v6449, %v6369
        %v8130 = vpack.c.b16 %v6450, %v6370
        %v8131 = vpack.c.b16 %v6451, %v6371
        %v8132 = vpack.c.b16 %v6452, %v6372
        %v8133 = vpack.c.b16 %v6453, %v6373
        %v8134 = vpack.c.b16 %v6454, %v6374
        %v8135 = vpack.c.b16 %v6455, %v6375
        %v8136 = vpack.c.b16 %v6456, %v6376
        %v8137 = vpack.c.b16 %v6457, %v6377
        %v8138 = vpack.c.b16 %v6458, %v6378
        %v8139 = vpack.c.b16 %v6459, %v6379
        %v8140 = vpack.c.b16 %v6460, %v6380
        %v8141 = vpack.c.b16 %v6461, %v6381
        %v8142 = vpack.c.b16 %v6462, %v6382
        %v8143 = vpack.c.b16 %v6463, %v6383
        %v8144 = vpack.c.b16 %v6464, %v6384
        %v8145 = vpack.c.b16 %v6465, %v6385
        %v8146 = vpack.c.b16 %v6466, %v6386
        %v8147 = vpack.c.b16 %v6467, %v6387
        %v8148 = vpack.c.b16 %v6468, %v6388
        %v8149 = vpack.c.b16 %v6469, %v6389
        %v8150 = vpack.c.b16 %v6470, %v6390
        %v8151 = vpack.c.b16 %v6471, %v6391
        %v8152 = vpack.c.b16 %v6472, %v6392
        %v8153 = vpack.c.b16 %v6473, %v6393
        %v8154 = vpack.c.b16 %v6474, %v6394
        %v8155 = vpack.c.b16 %v6475, %v6395
        %v8156 = vpack.c.b16 %v6476, %v6396
        %v8157 = vpack.c.b16 %v6477, %v6397
        %v8158 = vpack.c.b16 %v6478, %v6398
        %v8159 = vpack.c.b16 %v6479, %v6399
        %v8160 = vpack.c.b16 %v6480, %v6400
        %v8161 = vpack.c.b16 %v6481, %v6401
        %v8162 = vpack.c.b16 %v6482, %v6402
        %v8163 = vpack.c.b16 %v6563, %v6483
        %v8164 = vpack.c.b16 %v6564, %v6484
        %v8165 = vpack.c.b16 %v6565, %v6485
        %v8166 = vpack.c.b16 %v6566, %v6486
        %v8167 = vpack.c.b16 %v6567, %v6487
        %v8168 = vpack.c.b16 %v6568, %v6488
        %v8169 = vpack.c.b16 %v6569, %v6489
        %v8170 = vpack.c.b16 %v6570, %v6490
        %v8171 = vpack.c.b16 %v6571, %v6491
        %v8172 = vpack.c.b16 %v6572, %v6492
        %v8173 = vpack.c.b16 %v6573, %v6493
        %v8174 = vpack.c.b16 %v6574, %v6494
        %v8175 = vpack.c.b16 %v6575, %v6495
        %v8176 = vpack.c.b16 %v6576, %v6496
        %v8177 = vpack.c.b16 %v6577, %v6497
        %v8178 = vpack.c.b16 %v6578, %v6498
        %v8179 = vpack.c.b16 %v6579, %v6499
        %v8180 = vpack.c.b16 %v6580, %v6500
        %v8181 = vpack.c.b16 %v6581, %v6501
        %v8182 = vpack.c.b16 %v6582, %v6502
        %v8183 = vpack.c.b16 %v6583, %v6503
        %v8184 = vpack.c.b16 %v6584, %v6504
        %v8185 = vpack.c.b16 %v6585, %v6505
        %v8186 = vpack.c.b16 %v6586, %v6506
        %v8187 = vpack.c.b16 %v6587, %v6507
        %v8188 = vpack.c.b16 %v6588, %v6508
        %v8189 = vpack.c.b16 %v6589, %v6509
        %v8190 = vpack.c.b16 %v6590, %v6510
        %v8191 = vpack.c.b16 %v6591, %v6511
        %v8192 = vpack.c.b16 %v6592, %v6512
        %v8193 = vpack.c.b16 %v6593, %v6513
        %v8194 = vpack.c.b16 %v6594, %v6514
        %v8195 = vpack.c.b16 %v6595, %v6515
        %v8196 = vpack.c.b16 %v6596, %v6516
        %v8197 = vpack.c.b16 %v6597, %v6517
        %v8198 = vpack.c.b16 %v6598, %v6518
        %v8199 = vpack.c.b16 %v6599, %v6519
        %v8200 = vpack.c.b16 %v6600, %v6520
        %v8201 = vpack.c.b16 %v6601, %v6521
        %v8202 = vpack.c.b16 %v6602, %v6522
        %v8203 = vpack.c.b16 %v6603, %v6523
        %v8204 = vpack.c.b16 %v6604, %v6524
        %v8205 = vpack.c.b16 %v6605, %v6525
        %v8206 = vpack.c.b16 %v6606, %v6526
        %v8207 = vpack.c.b16 %v6607, %v6527
        %v8208 = vpack.c.b16 %v6608, %v6528
        %v8209 = vpack.c.b16 %v6609, %v6529
        %v8210 = vpack.c.b16 %v6610, %v6530
        %v8211 = vpack.c.b16 %v6611, %v6531
        %v8212 = vpack.c.b16 %v6612, %v6532
        %v8213 = vpack.c.b16 %v6613, %v6533
        %v8214 = vpack.c.b16 %v6614, %v6534
        %v8215 = vpack.c.b16 %v6615, %v6535
        %v8216 = vpack.c.b16 %v6616, %v6536
        %v8217 = vpack.c.b16 %v6617, %v6537
        %v8218 = vpack.c.b16 %v6618, %v6538
        %v8219 = vpack.c.b16 %v6619, %v6539
        %v8220 = vpack.c.b16 %v6620, %v6540
        %v8221 = vpack.c.b16 %v6621, %v6541
        %v8222 = vpack.c.b16 %v6622, %v6542
        %v8223 = vpack.c.b16 %v6623, %v6543
        %v8224 = vpack.c.b16 %v6624, %v6544
        %v8225 = vpack.c.b16 %v6625, %v6545
        %v8226 = vpack.c.b16 %v6626, %v6546
        %v8227 = vpack.c.b16 %v6627, %v6547
        %v8228 = vpack.c.b16 %v6628, %v6548
        %v8229 = vpack.c.b16 %v6629, %v6549
        %v8230 = vpack.c.b16 %v6630, %v6550
        %v8231 = vpack.c.b16 %v6631, %v6551
        %v8232 = vpack.c.b16 %v6632, %v6552
        %v8233 = vpack.c.b16 %v6633, %v6553
        %v8234 = vpack.c.b16 %v6634, %v6554
        %v8235 = vpack.c.b16 %v6635, %v6555
        %v8236 = vpack.c.b16 %v6636, %v6556
        %v8237 = vpack.c.b16 %v6637, %v6557
        %v8238 = vpack.c.b16 %v6638, %v6558
        %v8239 = vpack.c.b16 %v6639, %v6559
        %v8240 = vpack.c.b16 %v6640, %v6560
        %v8241 = vpack.c.b16 %v6641, %v6561
        %v8242 = vpack.c.b16 %v6642, %v6562
        %v8243 = vpack.c.b16 %v6723, %v6643
        %v8244 = vpack.c.b16 %v6724, %v6644
        %v8245 = vpack.c.b16 %v6725, %v6645
        %v8246 = vpack.c.b16 %v6726, %v6646
        %v8247 = vpack.c.b16 %v6727, %v6647
        %v8248 = vpack.c.b16 %v6728, %v6648
        %v8249 = vpack.c.b16 %v6729, %v6649
        %v8250 = vpack.c.b16 %v6730, %v6650
        %v8251 = vpack.c.b16 %v6731, %v6651
        %v8252 = vpack.c.b16 %v6732, %v6652
        %v8253 = vpack.c.b16 %v6733, %v6653
        %v8254 = vpack.c.b16 %v6734, %v6654
        %v8255 = vpack.c.b16 %v6735, %v6655
        %v8256 = vpack.c.b16 %v6736, %v6656
        %v8257 = vpack.c.b16 %v6737, %v6657
        %v8258 = vpack.c.b16 %v6738, %v6658
        %v8259 = vpack.c.b16 %v6739, %v6659
        %v8260 = vpack.c.b16 %v6740, %v6660
        %v8261 = vpack.c.b16 %v6741, %v6661
        %v8262 = vpack.c.b16 %v6742, %v6662
        %v8263 = vpack.c.b16 %v6743, %v6663
        %v8264 = vpack.c.b16 %v6744, %v6664
        %v8265 = vpack.c.b16 %v6745, %v6665
        %v8266 = vpack.c.b16 %v6746, %v6666
        %v8267 = vpack.c.b16 %v6747, %v6667
        %v8268 = vpack.c.b16 %v6748, %v6668
        %v8269 = vpack.c.b16 %v6749, %v6669
        %v8270 = vpack.c.b16 %v6750, %v6670
        %v8271 = vpack.c.b16 %v6751, %v6671
        %v8272 = vpack.c.b16 %v6752, %v6672
        %v8273 = vpack.c.b16 %v6753, %v6673
        %v8274 = vpack.c.b16 %v6754, %v6674
        %v8275 = vpack.c.b16 %v6755, %v6675
        %v8276 = vpack.c.b16 %v6756, %v6676
        %v8277 = vpack.c.b16 %v6757, %v6677
        %v8278 = vpack.c.b16 %v6758, %v6678
        %v8279 = vpack.c.b16 %v6759, %v6679
        %v8280 = vpack.c.b16 %v6760, %v6680
        %v8281 = vpack.c.b16 %v6761, %v6681
        %v8282 = vpack.c.b16 %v6762, %v6682
        %v8283 = vpack.c.b16 %v6763, %v6683
        %v8284 = vpack.c.b16 %v6764, %v6684
        %v8285 = vpack.c.b16 %v6765, %v6685
        %v8286 = vpack.c.b16 %v6766, %v6686
        %v8287 = vpack.c.b16 %v6767, %v6687
        %v8288 = vpack.c.b16 %v6768, %v6688
        %v8289 = vpack.c.b16 %v6769, %v6689
        %v8290 = vpack.c.b16 %v6770, %v6690
        %v8291 = vpack.c.b16 %v6771, %v6691
        %v8292 = vpack.c.b16 %v6772, %v6692
        %v8293 = vpack.c.b16 %v6773, %v6693
        %v8294 = vpack.c.b16 %v6774, %v6694
        %v8295 = vpack.c.b16 %v6775, %v6695
        %v8296 = vpack.c.b16 %v6776, %v6696
        %v8297 = vpack.c.b16 %v6777, %v6697
        %v8298 = vpack.c.b16 %v6778, %v6698
        %v8299 = vpack.c.b16 %v6779, %v6699
        %v8300 = vpack.c.b16 %v6780, %v6700
        %v8301 = vpack.c.b16 %v6781, %v6701
        %v8302 = vpack.c.b16 %v6782, %v6702
        %v8303 = vpack.c.b16 %v6783, %v6703
        %v8304 = vpack.c.b16 %v6784, %v6704
        %v8305 = vpack.c.b16 %v6785, %v6705
        %v8306 = vpack.c.b16 %v6786, %v6706
        %v8307 = vpack.c.b16 %v6787, %v6707
        %v8308 = vpack.c.b16 %v6788, %v6708
        %v8309 = vpack.c.b16 %v6789, %v6709
        %v8310 = vpack.c.b16 %v6790, %v6710
        %v8311 = vpack.c.b16 %v6791, %v6711
        %v8312 = vpack.c.b16 %v6792, %v6712
        %v8313 = vpack.c.b16 %v6793, %v6713
        %v8314 = vpack.c.b16 %v6794, %v6714
        %v8315 = vpack.c.b16 %v6795, %v6715
        %v8316 = vpack.c.b16 %v6796, %v6716
        %v8317 = vpack.c.b16 %v6797, %v6717
        %v8318 = vpack.c.b16 %v6798, %v6718
        %v8319 = vpack.c.b16 %v6799, %v6719
        %v8320 = vpack.c.b16 %v6800, %v6720
        %v8321 = vpack.c.b16 %v6801, %v6721
        %v8322 = vpack.c.b16 %v6802, %v6722
        %v8323 = vpack.c.b16 %v6883, %v6803
        %v8324 = vpack.c.b16 %v6884, %v6804
        %v8325 = vpack.c.b16 %v6885, %v6805
        %v8326 = vpack.c.b16 %v6886, %v6806
        %v8327 = vpack.c.b16 %v6887, %v6807
        %v8328 = vpack.c.b16 %v6888, %v6808
        %v8329 = vpack.c.b16 %v6889, %v6809
        %v8330 = vpack.c.b16 %v6890, %v6810
        %v8331 = vpack.c.b16 %v6891, %v6811
        %v8332 = vpack.c.b16 %v6892, %v6812
        %v8333 = vpack.c.b16 %v6893, %v6813
        %v8334 = vpack.c.b16 %v6894, %v6814
        %v8335 = vpack.c.b16 %v6895, %v6815
        %v8336 = vpack.c.b16 %v6896, %v6816
        %v8337 = vpack.c.b16 %v6897, %v6817
        %v8338 = vpack.c.b16 %v6898, %v6818
        %v8339 = vpack.c.b16 %v6899, %v6819
        %v8340 = vpack.c.b16 %v6900, %v6820
        %v8341 = vpack.c.b16 %v6901, %v6821
        %v8342 = vpack.c.b16 %v6902, %v6822
        %v8343 = vpack.c.b16 %v6903, %v6823
        %v8344 = vpack.c.b16 %v6904, %v6824
        %v8345 = vpack.c.b16 %v6905, %v6825
        %v8346 = vpack.c.b16 %v6906, %v6826
        %v8347 = vpack.c.b16 %v6907, %v6827
        %v8348 = vpack.c.b16 %v6908, %v6828
        %v8349 = vpack.c.b16 %v6909, %v6829
        %v8350 = vpack.c.b16 %v6910, %v6830
        %v8351 = vpack.c.b16 %v6911, %v6831
        %v8352 = vpack.c.b16 %v6912, %v6832
        %v8353 = vpack.c.b16 %v6913, %v6833
        %v8354 = vpack.c.b16 %v6914, %v6834
        %v8355 = vpack.c.b16 %v6915, %v6835
        %v8356 = vpack.c.b16 %v6916, %v6836
        %v8357 = vpack.c.b16 %v6917, %v6837
        %v8358 = vpack.c.b16 %v6918, %v6838
        %v8359 = vpack.c.b16 %v6919, %v6839
        %v8360 = vpack.c.b16 %v6920, %v6840
        %v8361 = vpack.c.b16 %v6921, %v6841
        %v8362 = vpack.c.b16 %v6922, %v6842
        %v8363 = vpack.c.b16 %v6923, %v6843
        %v8364 = vpack.c.b16 %v6924, %v6844
        %v8365 = vpack.c.b16 %v6925, %v6845
        %v8366 = vpack.c.b16 %v6926, %v6846
        %v8367 = vpack.c.b16 %v6927, %v6847
        %v8368 = vpack.c.b16 %v6928, %v6848
        %v8369 = vpack.c.b16 %v6929, %v6849
        %v8370 = vpack.c.b16 %v6930, %v6850
        %v8371 = vpack.c.b16 %v6931, %v6851
        %v8372 = vpack.c.b16 %v6932, %v6852
        %v8373 = vpack.c.b16 %v6933, %v6853
        %v8374 = vpack.c.b16 %v6934, %v6854
        %v8375 = vpack.c.b16 %v6935, %v6855
        %v8376 = vpack.c.b16 %v6936, %v6856
        %v8377 = vpack.c.b16 %v6937, %v6857
        %v8378 = vpack.c.b16 %v6938, %v6858
        %v8379 = vpack.c.b16 %v6939, %v6859
        %v8380 = vpack.c.b16 %v6940, %v6860
        %v8381 = vpack.c.b16 %v6941, %v6861
        %v8382 = vpack.c.b16 %v6942, %v6862
        %v8383 = vpack.c.b16 %v6943, %v6863
        %v8384 = vpack.c.b16 %v6944, %v6864
        %v8385 = vpack.c.b16 %v6945, %v6865
        %v8386 = vpack.c.b16 %v6946, %v6866
        %v8387 = vpack.c.b16 %v6947, %v6867
        %v8388 = vpack.c.b16 %v6948, %v6868
        %v8389 = vpack.c.b16 %v6949, %v6869
        %v8390 = vpack.c.b16 %v6950, %v6870
        %v8391 = vpack.c.b16 %v6951, %v6871
        %v8392 = vpack.c.b16 %v6952, %v6872
        %v8393 = vpack.c.b16 %v6953, %v6873
        %v8394 = vpack.c.b16 %v6954, %v6874
        %v8395 = vpack.c.b16 %v6955, %v6875
        %v8396 = vpack.c.b16 %v6956, %v6876
        %v8397 = vpack.c.b16 %v6957, %v6877
        %v8398 = vpack.c.b16 %v6958, %v6878
        %v8399 = vpack.c.b16 %v6959, %v6879
        %v8400 = vpack.c.b16 %v6960, %v6880
        %v8401 = vpack.c.b16 %v6961, %v6881
        %v8402 = vpack.c.b16 %v6962, %v6882
        %v8403 = vpack.c.b16 %v7043, %v6963
        %v8404 = vpack.c.b16 %v7044, %v6964
        %v8405 = vpack.c.b16 %v7045, %v6965
        %v8406 = vpack.c.b16 %v7046, %v6966
        %v8407 = vpack.c.b16 %v7047, %v6967
        %v8408 = vpack.c.b16 %v7048, %v6968
        %v8409 = vpack.c.b16 %v7049, %v6969
        %v8410 = vpack.c.b16 %v7050, %v6970
        %v8411 = vpack.c.b16 %v7051, %v6971
        %v8412 = vpack.c.b16 %v7052, %v6972
        %v8413 = vpack.c.b16 %v7053, %v6973
        %v8414 = vpack.c.b16 %v7054, %v6974
        %v8415 = vpack.c.b16 %v7055, %v6975
        %v8416 = vpack.c.b16 %v7056, %v6976
        %v8417 = vpack.c.b16 %v7057, %v6977
        %v8418 = vpack.c.b16 %v7058, %v6978
        %v8419 = vpack.c.b16 %v7059, %v6979
        %v8420 = vpack.c.b16 %v7060, %v6980
        %v8421 = vpack.c.b16 %v7061, %v6981
        %v8422 = vpack.c.b16 %v7062, %v6982
        %v8423 = vpack.c.b16 %v7063, %v6983
        %v8424 = vpack.c.b16 %v7064, %v6984
        %v8425 = vpack.c.b16 %v7065, %v6985
        %v8426 = vpack.c.b16 %v7066, %v6986
        %v8427 = vpack.c.b16 %v7067, %v6987
        %v8428 = vpack.c.b16 %v7068, %v6988
        %v8429 = vpack.c.b16 %v7069, %v6989
        %v8430 = vpack.c.b16 %v7070, %v6990
        %v8431 = vpack.c.b16 %v7071, %v6991
        %v8432 = vpack.c.b16 %v7072, %v6992
        %v8433 = vpack.c.b16 %v7073, %v6993
        %v8434 = vpack.c.b16 %v7074, %v6994
        %v8435 = vpack.c.b16 %v7075, %v6995
        %v8436 = vpack.c.b16 %v7076, %v6996
        %v8437 = vpack.c.b16 %v7077, %v6997
        %v8438 = vpack.c.b16 %v7078, %v6998
        %v8439 = vpack.c.b16 %v7079, %v6999
        %v8440 = vpack.c.b16 %v7080, %v7000
        %v8441 = vpack.c.b16 %v7081, %v7001
        %v8442 = vpack.c.b16 %v7082, %v7002
        %v8443 = vpack.c.b16 %v7083, %v7003
        %v8444 = vpack.c.b16 %v7084, %v7004
        %v8445 = vpack.c.b16 %v7085, %v7005
        %v8446 = vpack.c.b16 %v7086, %v7006
        %v8447 = vpack.c.b16 %v7087, %v7007
        %v8448 = vpack.c.b16 %v7088, %v7008
        %v8449 = vpack.c.b16 %v7089, %v7009
        %v8450 = vpack.c.b16 %v7090, %v7010
        %v8451 = vpack.c.b16 %v7091, %v7011
        %v8452 = vpack.c.b16 %v7092, %v7012
        %v8453 = vpack.c.b16 %v7093, %v7013
        %v8454 = vpack.c.b16 %v7094, %v7014
        %v8455 = vpack.c.b16 %v7095, %v7015
        %v8456 = vpack.c.b16 %v7096, %v7016
        %v8457 = vpack.c.b16 %v7097, %v7017
        %v8458 = vpack.c.b16 %v7098, %v7018
        %v8459 = vpack.c.b16 %v7099, %v7019
        %v8460 = vpack.c.b16 %v7100, %v7020
        %v8461 = vpack.c.b16 %v7101, %v7021
        %v8462 = vpack.c.b16 %v7102, %v7022
        %v8463 = vpack.c.b16 %v7103, %v7023
        %v8464 = vpack.c.b16 %v7104, %v7024
        %v8465 = vpack.c.b16 %v7105, %v7025
        %v8466 = vpack.c.b16 %v7106, %v7026
        %v8467 = vpack.c.b16 %v7107, %v7027
        %v8468 = vpack.c.b16 %v7108, %v7028
        %v8469 = vpack.c.b16 %v7109, %v7029
        %v8470 = vpack.c.b16 %v7110, %v7030
        %v8471 = vpack.c.b16 %v7111, %v7031
        %v8472 = vpack.c.b16 %v7112, %v7032
        %v8473 = vpack.c.b16 %v7113, %v7033
        %v8474 = vpack.c.b16 %v7114, %v7034
        %v8475 = vpack.c.b16 %v7115, %v7035
        %v8476 = vpack.c.b16 %v7116, %v7036
        %v8477 = vpack.c.b16 %v7117, %v7037
        %v8478 = vpack.c.b16 %v7118, %v7038
        %v8479 = vpack.c.b16 %v7119, %v7039
        %v8480 = vpack.c.b16 %v7120, %v7040
        %v8481 = vpack.c.b16 %v7121, %v7041
        %v8482 = vpack.c.b16 %v7122, %v7042
        %v8483 = vpack.c.b16 %v7203, %v7123
        %v8484 = vpack.c.b16 %v7204, %v7124
        %v8485 = vpack.c.b16 %v7205, %v7125
        %v8486 = vpack.c.b16 %v7206, %v7126
        %v8487 = vpack.c.b16 %v7207, %v7127
        %v8488 = vpack.c.b16 %v7208, %v7128
        %v8489 = vpack.c.b16 %v7209, %v7129
        %v8490 = vpack.c.b16 %v7210, %v7130
        %v8491 = vpack.c.b16 %v7211, %v7131
        %v8492 = vpack.c.b16 %v7212, %v7132
        %v8493 = vpack.c.b16 %v7213, %v7133
        %v8494 = vpack.c.b16 %v7214, %v7134
        %v8495 = vpack.c.b16 %v7215, %v7135
        %v8496 = vpack.c.b16 %v7216, %v7136
        %v8497 = vpack.c.b16 %v7217, %v7137
        %v8498 = vpack.c.b16 %v7218, %v7138
        %v8499 = vpack.c.b16 %v7219, %v7139
        %v8500 = vpack.c.b16 %v7220, %v7140
        %v8501 = vpack.c.b16 %v7221, %v7141
        %v8502 = vpack.c.b16 %v7222, %v7142
        %v8503 = vpack.c.b16 %v7223, %v7143
        %v8504 = vpack.c.b16 %v7224, %v7144
        %v8505 = vpack.c.b16 %v7225, %v7145
        %v8506 = vpack.c.b16 %v7226, %v7146
        %v8507 = vpack.c.b16 %v7227, %v7147
        %v8508 = vpack.c.b16 %v7228, %v7148
        %v8509 = vpack.c.b16 %v7229, %v7149
        %v8510 = vpack.c.b16 %v7230, %v7150
        %v8511 = vpack.c.b16 %v7231, %v7151
        %v8512 = vpack.c.b16 %v7232, %v7152
        %v8513 = vpack.c.b16 %v7233, %v7153
        %v8514 = vpack.c.b16 %v7234, %v7154
        %v8515 = vpack.c.b16 %v7235, %v7155
        %v8516 = vpack.c.b16 %v7236, %v7156
        %v8517 = vpack.c.b16 %v7237, %v7157
        %v8518 = vpack.c.b16 %v7238, %v7158
        %v8519 = vpack.c.b16 %v7239, %v7159
        %v8520 = vpack.c.b16 %v7240, %v7160
        %v8521 = vpack.c.b16 %v7241, %v7161
        %v8522 = vpack.c.b16 %v7242, %v7162
        %v8523 = vpack.c.b16 %v7243, %v7163
        %v8524 = vpack.c.b16 %v7244, %v7164
        %v8525 = vpack.c.b16 %v7245, %v7165
        %v8526 = vpack.c.b16 %v7246, %v7166
        %v8527 = vpack.c.b16 %v7247, %v7167
        %v8528 = vpack.c.b16 %v7248, %v7168
        %v8529 = vpack.c.b16 %v7249, %v7169
        %v8530 = vpack.c.b16 %v7250, %v7170
        %v8531 = vpack.c.b16 %v7251, %v7171
        %v8532 = vpack.c.b16 %v7252, %v7172
        %v8533 = vpack.c.b16 %v7253, %v7173
        %v8534 = vpack.c.b16 %v7254, %v7174
        %v8535 = vpack.c.b16 %v7255, %v7175
        %v8536 = vpack.c.b16 %v7256, %v7176
        %v8537 = vpack.c.b16 %v7257, %v7177
        %v8538 = vpack.c.b16 %v7258, %v7178
        %v8539 = vpack.c.b16 %v7259, %v7179
        %v8540 = vpack.c.b16 %v7260, %v7180
        %v8541 = vpack.c.b16 %v7261, %v7181
        %v8542 = vpack.c.b16 %v7262, %v7182
        %v8543 = vpack.c.b16 %v7263, %v7183
        %v8544 = vpack.c.b16 %v7264, %v7184
        %v8545 = vpack.c.b16 %v7265, %v7185
        %v8546 = vpack.c.b16 %v7266, %v7186
        %v8547 = vpack.c.b16 %v7267, %v7187
        %v8548 = vpack.c.b16 %v7268, %v7188
        %v8549 = vpack.c.b16 %v7269, %v7189
        %v8550 = vpack.c.b16 %v7270, %v7190
        %v8551 = vpack.c.b16 %v7271, %v7191
        %v8552 = vpack.c.b16 %v7272, %v7192
        %v8553 = vpack.c.b16 %v7273, %v7193
        %v8554 = vpack.c.b16 %v7274, %v7194
        %v8555 = vpack.c.b16 %v7275, %v7195
        %v8556 = vpack.c.b16 %v7276, %v7196
        %v8557 = vpack.c.b16 %v7277, %v7197
        %v8558 = vpack.c.b16 %v7278, %v7198
        %v8559 = vpack.c.b16 %v7279, %v7199
        %v8560 = vpack.c.b16 %v7280, %v7200
        %v8561 = vpack.c.b16 %v7281, %v7201
        %v8562 = vpack.c.b16 %v7282, %v7202
        %9843 = vmatprep.subr.bf16.mxu0 %v7844
        %9844 = vmatpush1.bf16.msra.mxu0 %v7843
        %9845 = vmatprep.subr.bf16.mxu0 %v7764
        %9846 = vmatpush1.bf16.msra.mxu0 %v7763
        %9847 = vmatprep.subr.bf16.mxu0 %v7684
        %9848 = vmatpush1.bf16.msra.mxu0 %v7683
        %9849 = vmatprep.subr.bf16.mxu0 %v7604
        %9850 = vmatpush1.bf16.msra.mxu0 %v7603
        %9851 = vmatprep.subr.bf16.mxu0 %v7524
        %9852 = vmatpush1.bf16.msra.mxu0 %v7523
        %9853 = vmatprep.subr.bf16.mxu0 %v7444
        %9854 = vmatpush1.bf16.msra.mxu0 %v7443
        %9855 = vmatprep.subr.bf16.mxu0 %v7364
        %9856 = vmatpush1.bf16.msra.mxu0 %v7363
        %9857 = vmatprep.subr.bf16.mxu0 %v7284
        %9858 = vmatpush1.bf16.msra.mxu0 %v7283
        %9859 = vmatprep.subr.bf16.mxu0 %v8484
        %9860 = vmatpush2.bf16.msra.mxu0 %v8483
        %9861 = vmatprep.subr.bf16.mxu0 %v8404
        %9862 = vmatpush2.bf16.msra.mxu0 %v8403
        %9863 = vmatprep.subr.bf16.mxu0 %v8324
        %9864 = vmatpush2.bf16.msra.mxu0 %v8323
        %9865 = vmatprep.subr.bf16.mxu0 %v8244
        %9866 = vmatpush2.bf16.msra.mxu0 %v8243
        %9867 = vmatprep.subr.bf16.mxu0 %v8164
        %9868 = vmatpush2.bf16.msra.mxu0 %v8163
        %9869 = vmatprep.subr.bf16.mxu0 %v8084
        %9870 = vmatpush2.bf16.msra.mxu0 %v8083
        %9871 = vmatprep.subr.bf16.mxu0 %v8004
        %9872 = vmatpush2.bf16.msra.mxu0 %v8003
        %9873 = vmatprep.subr.bf16.mxu0 %v7924
        %9874 = vmatpush2.bf16.msra.mxu0 %v7923
        %9875 = vmatprep.mubr.bf16.mxu0 %v1742
        %9876 = vmatmul.mubr.bf16.gmra.mxu0 %v1741
        %v9877 = vpop.f32.mrf.mxu0
        %v9878 = vadd.f32 %v3046, %v9877
        %v9879 = vpop.f32.mrf.mxu0
        %v9880 = vadd.f32 %v3050, %v9879
        %v9881 = vpop.f32.mrf.mxu0
        %v9882 = vpop.f32.mrf.mxu0
        %9883 = vdwg.mxu0
        %9884 = vmatprep.subr.bf16.mxu0 %v7846
        %9885 = vmatpush1.bf16.msra.mxu0 %v7845
        %9886 = vmatprep.subr.bf16.mxu0 %v7766
        %9887 = vmatpush1.bf16.msra.mxu0 %v7765
        %9888 = vmatprep.subr.bf16.mxu0 %v7686
        %9889 = vmatpush1.bf16.msra.mxu0 %v7685
        %9890 = vmatprep.subr.bf16.mxu0 %v7606
        %9891 = vmatpush1.bf16.msra.mxu0 %v7605
        %9892 = vmatprep.subr.bf16.mxu0 %v7526
        %9893 = vmatpush1.bf16.msra.mxu0 %v7525
        %9894 = vmatprep.subr.bf16.mxu0 %v7446
        %9895 = vmatpush1.bf16.msra.mxu0 %v7445
        %9896 = vmatprep.subr.bf16.mxu0 %v7366
        %9897 = vmatpush1.bf16.msra.mxu0 %v7365
        %9898 = vmatprep.subr.bf16.mxu0 %v7286
        %9899 = vmatpush1.bf16.msra.mxu0 %v7285
        %9900 = vmatprep.subr.bf16.mxu0 %v8486
        %9901 = vmatpush2.bf16.msra.mxu0 %v8485
        %9902 = vmatprep.subr.bf16.mxu0 %v8406
        %9903 = vmatpush2.bf16.msra.mxu0 %v8405
        %9904 = vmatprep.subr.bf16.mxu0 %v8326
        %9905 = vmatpush2.bf16.msra.mxu0 %v8325
        %9906 = vmatprep.subr.bf16.mxu0 %v8246
        %9907 = vmatpush2.bf16.msra.mxu0 %v8245
        %9908 = vmatprep.subr.bf16.mxu0 %v8166
        %9909 = vmatpush2.bf16.msra.mxu0 %v8165
        %9910 = vmatprep.subr.bf16.mxu0 %v8086
        %9911 = vmatpush2.bf16.msra.mxu0 %v8085
        %9912 = vmatprep.subr.bf16.mxu0 %v8006
        %9913 = vmatpush2.bf16.msra.mxu0 %v8005
        %9914 = vmatprep.subr.bf16.mxu0 %v7926
        %9915 = vmatpush2.bf16.msra.mxu0 %v7925
        %9916 = vmatprep.mubr.bf16.mxu0 %v1742
        %9917 = vmatmul.mubr.bf16.gmra.mxu0 %v1741
        %v9918 = vpop.f32.mrf.mxu0
        %v9919 = vadd.f32 %v3054, %v9918
        %v9920 = vpop.f32.mrf.mxu0
        %v9921 = vadd.f32 %v3058, %v9920
        %v9922 = vpop.f32.mrf.mxu0
        %v9923 = vpop.f32.mrf.mxu0
        %9924 = vdwg.mxu0
        %9925 = vmatprep.subr.bf16.mxu0 %v7848
        %9926 = vmatpush1.bf16.msra.mxu0 %v7847
        %9927 = vmatprep.subr.bf16.mxu0 %v7768
        %9928 = vmatpush1.bf16.msra.mxu0 %v7767
        %9929 = vmatprep.subr.bf16.mxu0 %v7688
        %9930 = vmatpush1.bf16.msra.mxu0 %v7687
        %9931 = vmatprep.subr.bf16.mxu0 %v7608
        %9932 = vmatpush1.bf16.msra.mxu0 %v7607
        %9933 = vmatprep.subr.bf16.mxu0 %v7528
        %9934 = vmatpush1.bf16.msra.mxu0 %v7527
        %9935 = vmatprep.subr.bf16.mxu0 %v7448
        %9936 = vmatpush1.bf16.msra.mxu0 %v7447
        %9937 = vmatprep.subr.bf16.mxu0 %v7368
        %9938 = vmatpush1.bf16.msra.mxu0 %v7367
        %9939 = vmatprep.subr.bf16.mxu0 %v7288
        %9940 = vmatpush1.bf16.msra.mxu0 %v7287
        %9941 = vmatprep.subr.bf16.mxu0 %v8488
        %9942 = vmatpush2.bf16.msra.mxu0 %v8487
        %9943 = vmatprep.subr.bf16.mxu0 %v8408
        %9944 = vmatpush2.bf16.msra.mxu0 %v8407
        %9945 = vmatprep.subr.bf16.mxu0 %v8328
        %9946 = vmatpush2.bf16.msra.mxu0 %v8327
        %9947 = vmatprep.subr.bf16.mxu0 %v8248
        %9948 = vmatpush2.bf16.msra.mxu0 %v8247
        %9949 = vmatprep.subr.bf16.mxu0 %v8168
        %9950 = vmatpush2.bf16.msra.mxu0 %v8167
        %9951 = vmatprep.subr.bf16.mxu0 %v8088
        %9952 = vmatpush2.bf16.msra.mxu0 %v8087
        %9953 = vmatprep.subr.bf16.mxu0 %v8008
        %9954 = vmatpush2.bf16.msra.mxu0 %v8007
        %9955 = vmatprep.subr.bf16.mxu0 %v7928
        %9956 = vmatpush2.bf16.msra.mxu0 %v7927
        %9957 = vmatprep.mubr.bf16.mxu0 %v1742
        %9958 = vmatmul.mubr.bf16.gmra.mxu0 %v1741
        %v9959 = vpop.f32.mrf.mxu0
        %v9960 = vadd.f32 %v3062, %v9959
        %v9961 = vpop.f32.mrf.mxu0
        %v9962 = vadd.f32 %v3066, %v9961
        %v9963 = vpop.f32.mrf.mxu0
        %v9964 = vpop.f32.mrf.mxu0
        %9965 = vdwg.mxu0
        %9966 = vmatprep.subr.bf16.mxu0 %v7850
        %9967 = vmatpush1.bf16.msra.mxu0 %v7849
        %9968 = vmatprep.subr.bf16.mxu0 %v7770
        %9969 = vmatpush1.bf16.msra.mxu0 %v7769
        %9970 = vmatprep.subr.bf16.mxu0 %v7690
        %9971 = vmatpush1.bf16.msra.mxu0 %v7689
        %9972 = vmatprep.subr.bf16.mxu0 %v7610
        %9973 = vmatpush1.bf16.msra.mxu0 %v7609
        %9974 = vmatprep.subr.bf16.mxu0 %v7530
        %9975 = vmatpush1.bf16.msra.mxu0 %v7529
        %9976 = vmatprep.subr.bf16.mxu0 %v7450
        %9977 = vmatpush1.bf16.msra.mxu0 %v7449
        %9978 = vmatprep.subr.bf16.mxu0 %v7370
        %9979 = vmatpush1.bf16.msra.mxu0 %v7369
        %9980 = vmatprep.subr.bf16.mxu0 %v7290
        %9981 = vmatpush1.bf16.msra.mxu0 %v7289
        %9982 = vmatprep.subr.bf16.mxu0 %v8490
        %9983 = vmatpush2.bf16.msra.mxu0 %v8489
        %9984 = vmatprep.subr.bf16.mxu0 %v8410
        %9985 = vmatpush2.bf16.msra.mxu0 %v8409
        %9986 = vmatprep.subr.bf16.mxu0 %v8330
        %9987 = vmatpush2.bf16.msra.mxu0 %v8329
        %9988 = vmatprep.subr.bf16.mxu0 %v8250
        %9989 = vmatpush2.bf16.msra.mxu0 %v8249
        %9990 = vmatprep.subr.bf16.mxu0 %v8170
        %9991 = vmatpush2.bf16.msra.mxu0 %v8169
        %9992 = vmatprep.subr.bf16.mxu0 %v8090
        %9993 = vmatpush2.bf16.msra.mxu0 %v8089
        %9994 = vmatprep.subr.bf16.mxu0 %v8010
        %9995 = vmatpush2.bf16.msra.mxu0 %v8009
        %9996 = vmatprep.subr.bf16.mxu0 %v7930
        %9997 = vmatpush2.bf16.msra.mxu0 %v7929
        %9998 = vmatprep.mubr.bf16.mxu0 %v1742
        %9999 = vmatmul.mubr.bf16.gmra.mxu0 %v1741
        %v10000 = vpop.f32.mrf.mxu0
        %v10001 = vadd.f32 %v3070, %v10000
        %v10002 = vpop.f32.mrf.mxu0
        %v10003 = vadd.f32 %v3074, %v10002
        %v10004 = vpop.f32.mrf.mxu0
        %v10005 = vpop.f32.mrf.mxu0
        %10006 = vdwg.mxu0
        %10007 = vmatprep.subr.bf16.mxu0 %v7852
        %10008 = vmatpush1.bf16.msra.mxu0 %v7851
        %10009 = vmatprep.subr.bf16.mxu0 %v7772
        %10010 = vmatpush1.bf16.msra.mxu0 %v7771
        %10011 = vmatprep.subr.bf16.mxu0 %v7692
        %10012 = vmatpush1.bf16.msra.mxu0 %v7691
        %10013 = vmatprep.subr.bf16.mxu0 %v7612
        %10014 = vmatpush1.bf16.msra.mxu0 %v7611
        %10015 = vmatprep.subr.bf16.mxu0 %v7532
        %10016 = vmatpush1.bf16.msra.mxu0 %v7531
        %10017 = vmatprep.subr.bf16.mxu0 %v7452
        %10018 = vmatpush1.bf16.msra.mxu0 %v7451
        %10019 = vmatprep.subr.bf16.mxu0 %v7372
        %10020 = vmatpush1.bf16.msra.mxu0 %v7371
        %10021 = vmatprep.subr.bf16.mxu0 %v7292
        %10022 = vmatpush1.bf16.msra.mxu0 %v7291
        %10023 = vmatprep.subr.bf16.mxu0 %v8492
        %10024 = vmatpush2.bf16.msra.mxu0 %v8491
        %10025 = vmatprep.subr.bf16.mxu0 %v8412
        %10026 = vmatpush2.bf16.msra.mxu0 %v8411
        %10027 = vmatprep.subr.bf16.mxu0 %v8332
        %10028 = vmatpush2.bf16.msra.mxu0 %v8331
        %10029 = vmatprep.subr.bf16.mxu0 %v8252
        %10030 = vmatpush2.bf16.msra.mxu0 %v8251
        %10031 = vmatprep.subr.bf16.mxu0 %v8172
        %10032 = vmatpush2.bf16.msra.mxu0 %v8171
        %10033 = vmatprep.subr.bf16.mxu0 %v8092
        %10034 = vmatpush2.bf16.msra.mxu0 %v8091
        %10035 = vmatprep.subr.bf16.mxu0 %v8012
        %10036 = vmatpush2.bf16.msra.mxu0 %v8011
        %10037 = vmatprep.subr.bf16.mxu0 %v7932
        %10038 = vmatpush2.bf16.msra.mxu0 %v7931
        %10039 = vmatprep.mubr.bf16.mxu0 %v1742
        %10040 = vmatmul.mubr.bf16.gmra.mxu0 %v1741
        %v10041 = vpop.f32.mrf.mxu0
        %v10042 = vadd.f32 %v3078, %v10041
        %v10043 = vpop.f32.mrf.mxu0
        %v10044 = vadd.f32 %v3082, %v10043
        %v10045 = vpop.f32.mrf.mxu0
        %v10046 = vpop.f32.mrf.mxu0
        %10047 = vdwg.mxu0
        %10048 = vmatprep.subr.bf16.mxu0 %v7854
        %10049 = vmatpush1.bf16.msra.mxu0 %v7853
        %10050 = vmatprep.subr.bf16.mxu0 %v7774
        %10051 = vmatpush1.bf16.msra.mxu0 %v7773
        %10052 = vmatprep.subr.bf16.mxu0 %v7694
        %10053 = vmatpush1.bf16.msra.mxu0 %v7693
        %10054 = vmatprep.subr.bf16.mxu0 %v7614
        %10055 = vmatpush1.bf16.msra.mxu0 %v7613
        %10056 = vmatprep.subr.bf16.mxu0 %v7534
        %10057 = vmatpush1.bf16.msra.mxu0 %v7533
        %10058 = vmatprep.subr.bf16.mxu0 %v7454
        %10059 = vmatpush1.bf16.msra.mxu0 %v7453
        %10060 = vmatprep.subr.bf16.mxu0 %v7374
        %10061 = vmatpush1.bf16.msra.mxu0 %v7373
        %10062 = vmatprep.subr.bf16.mxu0 %v7294
        %10063 = vmatpush1.bf16.msra.mxu0 %v7293
        %10064 = vmatprep.subr.bf16.mxu0 %v8494
        %10065 = vmatpush2.bf16.msra.mxu0 %v8493
        %10066 = vmatprep.subr.bf16.mxu0 %v8414
        %10067 = vmatpush2.bf16.msra.mxu0 %v8413
        %10068 = vmatprep.subr.bf16.mxu0 %v8334
        %10069 = vmatpush2.bf16.msra.mxu0 %v8333
        %10070 = vmatprep.subr.bf16.mxu0 %v8254
        %10071 = vmatpush2.bf16.msra.mxu0 %v8253
        %10072 = vmatprep.subr.bf16.mxu0 %v8174
        %10073 = vmatpush2.bf16.msra.mxu0 %v8173
        %10074 = vmatprep.subr.bf16.mxu0 %v8094
        %10075 = vmatpush2.bf16.msra.mxu0 %v8093
        %10076 = vmatprep.subr.bf16.mxu0 %v8014
        %10077 = vmatpush2.bf16.msra.mxu0 %v8013
        %10078 = vmatprep.subr.bf16.mxu0 %v7934
        %10079 = vmatpush2.bf16.msra.mxu0 %v7933
        %10080 = vmatprep.mubr.bf16.mxu0 %v1742
        %10081 = vmatmul.mubr.bf16.gmra.mxu0 %v1741
        %v10082 = vpop.f32.mrf.mxu0
        %v10083 = vadd.f32 %v3086, %v10082
        %v10084 = vpop.f32.mrf.mxu0
        %v10085 = vadd.f32 %v3090, %v10084
        %v10086 = vpop.f32.mrf.mxu0
        %v10087 = vpop.f32.mrf.mxu0
        %10088 = vdwg.mxu0
        %10089 = vmatprep.subr.bf16.mxu0 %v7856
        %10090 = vmatpush1.bf16.msra.mxu0 %v7855
        %10091 = vmatprep.subr.bf16.mxu0 %v7776
        %10092 = vmatpush1.bf16.msra.mxu0 %v7775
        %10093 = vmatprep.subr.bf16.mxu0 %v7696
        %10094 = vmatpush1.bf16.msra.mxu0 %v7695
        %10095 = vmatprep.subr.bf16.mxu0 %v7616
        %10096 = vmatpush1.bf16.msra.mxu0 %v7615
        %10097 = vmatprep.subr.bf16.mxu0 %v7536
        %10098 = vmatpush1.bf16.msra.mxu0 %v7535
        %10099 = vmatprep.subr.bf16.mxu0 %v7456
        %10100 = vmatpush1.bf16.msra.mxu0 %v7455
        %10101 = vmatprep.subr.bf16.mxu0 %v7376
        %10102 = vmatpush1.bf16.msra.mxu0 %v7375
        %10103 = vmatprep.subr.bf16.mxu0 %v7296
        %10104 = vmatpush1.bf16.msra.mxu0 %v7295
        %10105 = vmatprep.subr.bf16.mxu0 %v8496
        %10106 = vmatpush2.bf16.msra.mxu0 %v8495
        %10107 = vmatprep.subr.bf16.mxu0 %v8416
        %10108 = vmatpush2.bf16.msra.mxu0 %v8415
        %10109 = vmatprep.subr.bf16.mxu0 %v8336
        %10110 = vmatpush2.bf16.msra.mxu0 %v8335
        %10111 = vmatprep.subr.bf16.mxu0 %v8256
        %10112 = vmatpush2.bf16.msra.mxu0 %v8255
        %10113 = vmatprep.subr.bf16.mxu0 %v8176
        %10114 = vmatpush2.bf16.msra.mxu0 %v8175
        %10115 = vmatprep.subr.bf16.mxu0 %v8096
        %10116 = vmatpush2.bf16.msra.mxu0 %v8095
        %10117 = vmatprep.subr.bf16.mxu0 %v8016
        %10118 = vmatpush2.bf16.msra.mxu0 %v8015
        %10119 = vmatprep.subr.bf16.mxu0 %v7936
        %10120 = vmatpush2.bf16.msra.mxu0 %v7935
        %10121 = vmatprep.mubr.bf16.mxu0 %v1742
        %10122 = vmatmul.mubr.bf16.gmra.mxu0 %v1741
        %v10123 = vpop.f32.mrf.mxu0
        %v10124 = vadd.f32 %v3094, %v10123
        %v10125 = vpop.f32.mrf.mxu0
        %v10126 = vadd.f32 %v3098, %v10125
        %v10127 = vpop.f32.mrf.mxu0
        %v10128 = vpop.f32.mrf.mxu0
        %10129 = vdwg.mxu0
        %10130 = vmatprep.subr.bf16.mxu0 %v7858
        %10131 = vmatpush1.bf16.msra.mxu0 %v7857
        %10132 = vmatprep.subr.bf16.mxu0 %v7778
        %10133 = vmatpush1.bf16.msra.mxu0 %v7777
        %10134 = vmatprep.subr.bf16.mxu0 %v7698
        %10135 = vmatpush1.bf16.msra.mxu0 %v7697
        %10136 = vmatprep.subr.bf16.mxu0 %v7618
        %10137 = vmatpush1.bf16.msra.mxu0 %v7617
        %10138 = vmatprep.subr.bf16.mxu0 %v7538
        %10139 = vmatpush1.bf16.msra.mxu0 %v7537
        %10140 = vmatprep.subr.bf16.mxu0 %v7458
        %10141 = vmatpush1.bf16.msra.mxu0 %v7457
        %10142 = vmatprep.subr.bf16.mxu0 %v7378
        %10143 = vmatpush1.bf16.msra.mxu0 %v7377
        %10144 = vmatprep.subr.bf16.mxu0 %v7298
        %10145 = vmatpush1.bf16.msra.mxu0 %v7297
        %10146 = vmatprep.subr.bf16.mxu0 %v8498
        %10147 = vmatpush2.bf16.msra.mxu0 %v8497
        %10148 = vmatprep.subr.bf16.mxu0 %v8418
        %10149 = vmatpush2.bf16.msra.mxu0 %v8417
        %10150 = vmatprep.subr.bf16.mxu0 %v8338
        %10151 = vmatpush2.bf16.msra.mxu0 %v8337
        %10152 = vmatprep.subr.bf16.mxu0 %v8258
        %10153 = vmatpush2.bf16.msra.mxu0 %v8257
        %10154 = vmatprep.subr.bf16.mxu0 %v8178
        %10155 = vmatpush2.bf16.msra.mxu0 %v8177
        %10156 = vmatprep.subr.bf16.mxu0 %v8098
        %10157 = vmatpush2.bf16.msra.mxu0 %v8097
        %10158 = vmatprep.subr.bf16.mxu0 %v8018
        %10159 = vmatpush2.bf16.msra.mxu0 %v8017
        %10160 = vmatprep.subr.bf16.mxu0 %v7938
        %10161 = vmatpush2.bf16.msra.mxu0 %v7937
        %10162 = vmatprep.mubr.bf16.mxu0 %v1742
        %10163 = vmatmul.mubr.bf16.gmra.mxu0 %v1741
        %v10164 = vpop.f32.mrf.mxu0
        %v10165 = vadd.f32 %v3102, %v10164
        %v10166 = vpop.f32.mrf.mxu0
        %v10167 = vadd.f32 %v3106, %v10166
        %v10168 = vpop.f32.mrf.mxu0
        %v10169 = vpop.f32.mrf.mxu0
        %10170 = vdwg.mxu0
        %10171 = vmatprep.subr.bf16.mxu0 %v7860
        %10172 = vmatpush1.bf16.msra.mxu0 %v7859
        %10173 = vmatprep.subr.bf16.mxu0 %v7780
        %10174 = vmatpush1.bf16.msra.mxu0 %v7779
        %10175 = vmatprep.subr.bf16.mxu0 %v7700
        %10176 = vmatpush1.bf16.msra.mxu0 %v7699
        %10177 = vmatprep.subr.bf16.mxu0 %v7620
        %10178 = vmatpush1.bf16.msra.mxu0 %v7619
        %10179 = vmatprep.subr.bf16.mxu0 %v7540
        %10180 = vmatpush1.bf16.msra.mxu0 %v7539
        %10181 = vmatprep.subr.bf16.mxu0 %v7460
        %10182 = vmatpush1.bf16.msra.mxu0 %v7459
        %10183 = vmatprep.subr.bf16.mxu0 %v7380
        %10184 = vmatpush1.bf16.msra.mxu0 %v7379
        %10185 = vmatprep.subr.bf16.mxu0 %v7300
        %10186 = vmatpush1.bf16.msra.mxu0 %v7299
        %10187 = vmatprep.subr.bf16.mxu0 %v8500
        %10188 = vmatpush2.bf16.msra.mxu0 %v8499
        %10189 = vmatprep.subr.bf16.mxu0 %v8420
        %10190 = vmatpush2.bf16.msra.mxu0 %v8419
        %10191 = vmatprep.subr.bf16.mxu0 %v8340
        %10192 = vmatpush2.bf16.msra.mxu0 %v8339
        %10193 = vmatprep.subr.bf16.mxu0 %v8260
        %10194 = vmatpush2.bf16.msra.mxu0 %v8259
        %10195 = vmatprep.subr.bf16.mxu0 %v8180
        %10196 = vmatpush2.bf16.msra.mxu0 %v8179
        %10197 = vmatprep.subr.bf16.mxu0 %v8100
        %10198 = vmatpush2.bf16.msra.mxu0 %v8099
        %10199 = vmatprep.subr.bf16.mxu0 %v8020
        %10200 = vmatpush2.bf16.msra.mxu0 %v8019
        %10201 = vmatprep.subr.bf16.mxu0 %v7940
        %10202 = vmatpush2.bf16.msra.mxu0 %v7939
        %10203 = vmatprep.mubr.bf16.mxu0 %v1742
        %10204 = vmatmul.mubr.bf16.gmra.mxu0 %v1741
        %v10205 = vpop.f32.mrf.mxu0
        %v10206 = vadd.f32 %v3110, %v10205
        %v10207 = vpop.f32.mrf.mxu0
        %v10208 = vadd.f32 %v3114, %v10207
        %v10209 = vpop.f32.mrf.mxu0
        %v10210 = vpop.f32.mrf.mxu0
        %10211 = vdwg.mxu0
        %10212 = vmatprep.subr.bf16.mxu0 %v7862
        %10213 = vmatpush1.bf16.msra.mxu0 %v7861
        %10214 = vmatprep.subr.bf16.mxu0 %v7782
        %10215 = vmatpush1.bf16.msra.mxu0 %v7781
        %10216 = vmatprep.subr.bf16.mxu0 %v7702
        %10217 = vmatpush1.bf16.msra.mxu0 %v7701
        %10218 = vmatprep.subr.bf16.mxu0 %v7622
        %10219 = vmatpush1.bf16.msra.mxu0 %v7621
        %10220 = vmatprep.subr.bf16.mxu0 %v7542
        %10221 = vmatpush1.bf16.msra.mxu0 %v7541
        %10222 = vmatprep.subr.bf16.mxu0 %v7462
        %10223 = vmatpush1.bf16.msra.mxu0 %v7461
        %10224 = vmatprep.subr.bf16.mxu0 %v7382
        %10225 = vmatpush1.bf16.msra.mxu0 %v7381
        %10226 = vmatprep.subr.bf16.mxu0 %v7302
        %10227 = vmatpush1.bf16.msra.mxu0 %v7301
        %10228 = vmatprep.subr.bf16.mxu0 %v8502
        %10229 = vmatpush2.bf16.msra.mxu0 %v8501
        %10230 = vmatprep.subr.bf16.mxu0 %v8422
        %10231 = vmatpush2.bf16.msra.mxu0 %v8421
        %10232 = vmatprep.subr.bf16.mxu0 %v8342
        %10233 = vmatpush2.bf16.msra.mxu0 %v8341
        %10234 = vmatprep.subr.bf16.mxu0 %v8262
        %10235 = vmatpush2.bf16.msra.mxu0 %v8261
        %10236 = vmatprep.subr.bf16.mxu0 %v8182
        %10237 = vmatpush2.bf16.msra.mxu0 %v8181
        %10238 = vmatprep.subr.bf16.mxu0 %v8102
        %10239 = vmatpush2.bf16.msra.mxu0 %v8101
        %10240 = vmatprep.subr.bf16.mxu0 %v8022
        %10241 = vmatpush2.bf16.msra.mxu0 %v8021
        %10242 = vmatprep.subr.bf16.mxu0 %v7942
        %10243 = vmatpush2.bf16.msra.mxu0 %v7941
        %10244 = vmatprep.mubr.bf16.mxu0 %v1742
        %10245 = vmatmul.mubr.bf16.gmra.mxu0 %v1741
        %v10246 = vpop.f32.mrf.mxu0
        %v10247 = vadd.f32 %v3118, %v10246
        %v10248 = vpop.f32.mrf.mxu0
        %v10249 = vadd.f32 %v3122, %v10248
        %v10250 = vpop.f32.mrf.mxu0
        %v10251 = vpop.f32.mrf.mxu0
        %10252 = vdwg.mxu0
        %10253 = vmatprep.subr.bf16.mxu0 %v7864
        %10254 = vmatpush1.bf16.msra.mxu0 %v7863
        %10255 = vmatprep.subr.bf16.mxu0 %v7784
        %10256 = vmatpush1.bf16.msra.mxu0 %v7783
        %10257 = vmatprep.subr.bf16.mxu0 %v7704
        %10258 = vmatpush1.bf16.msra.mxu0 %v7703
        %10259 = vmatprep.subr.bf16.mxu0 %v7624
        %10260 = vmatpush1.bf16.msra.mxu0 %v7623
        %10261 = vmatprep.subr.bf16.mxu0 %v7544
        %10262 = vmatpush1.bf16.msra.mxu0 %v7543
        %10263 = vmatprep.subr.bf16.mxu0 %v7464
        %10264 = vmatpush1.bf16.msra.mxu0 %v7463
        %10265 = vmatprep.subr.bf16.mxu0 %v7384
        %10266 = vmatpush1.bf16.msra.mxu0 %v7383
        %10267 = vmatprep.subr.bf16.mxu0 %v7304
        %10268 = vmatpush1.bf16.msra.mxu0 %v7303
        %10269 = vmatprep.subr.bf16.mxu0 %v8504
        %10270 = vmatpush2.bf16.msra.mxu0 %v8503
        %10271 = vmatprep.subr.bf16.mxu0 %v8424
        %10272 = vmatpush2.bf16.msra.mxu0 %v8423
        %10273 = vmatprep.subr.bf16.mxu0 %v8344
        %10274 = vmatpush2.bf16.msra.mxu0 %v8343
        %10275 = vmatprep.subr.bf16.mxu0 %v8264
        %10276 = vmatpush2.bf16.msra.mxu0 %v8263
        %10277 = vmatprep.subr.bf16.mxu0 %v8184
        %10278 = vmatpush2.bf16.msra.mxu0 %v8183
        %10279 = vmatprep.subr.bf16.mxu0 %v8104
        %10280 = vmatpush2.bf16.msra.mxu0 %v8103
        %10281 = vmatprep.subr.bf16.mxu0 %v8024
        %10282 = vmatpush2.bf16.msra.mxu0 %v8023
        %10283 = vmatprep.subr.bf16.mxu0 %v7944
        %10284 = vmatpush2.bf16.msra.mxu0 %v7943
        %10285 = vmatprep.mubr.bf16.mxu0 %v1742
        %10286 = vmatmul.mubr.bf16.gmra.mxu0 %v1741
        %v10287 = vpop.f32.mrf.mxu0
        %v10288 = vadd.f32 %v3126, %v10287
        %v10289 = vpop.f32.mrf.mxu0
        %v10290 = vadd.f32 %v3130, %v10289
        %v10291 = vpop.f32.mrf.mxu0
        %v10292 = vpop.f32.mrf.mxu0
        %10293 = vdwg.mxu0
        %10294 = vmatprep.subr.bf16.mxu0 %v7866
        %10295 = vmatpush1.bf16.msra.mxu0 %v7865
        %10296 = vmatprep.subr.bf16.mxu0 %v7786
        %10297 = vmatpush1.bf16.msra.mxu0 %v7785
        %10298 = vmatprep.subr.bf16.mxu0 %v7706
        %10299 = vmatpush1.bf16.msra.mxu0 %v7705
        %10300 = vmatprep.subr.bf16.mxu0 %v7626
        %10301 = vmatpush1.bf16.msra.mxu0 %v7625
        %10302 = vmatprep.subr.bf16.mxu0 %v7546
        %10303 = vmatpush1.bf16.msra.mxu0 %v7545
        %10304 = vmatprep.subr.bf16.mxu0 %v7466
        %10305 = vmatpush1.bf16.msra.mxu0 %v7465
        %10306 = vmatprep.subr.bf16.mxu0 %v7386
        %10307 = vmatpush1.bf16.msra.mxu0 %v7385
        %10308 = vmatprep.subr.bf16.mxu0 %v7306
        %10309 = vmatpush1.bf16.msra.mxu0 %v7305
        %10310 = vmatprep.subr.bf16.mxu0 %v8506
        %10311 = vmatpush2.bf16.msra.mxu0 %v8505
        %10312 = vmatprep.subr.bf16.mxu0 %v8426
        %10313 = vmatpush2.bf16.msra.mxu0 %v8425
        %10314 = vmatprep.subr.bf16.mxu0 %v8346
        %10315 = vmatpush2.bf16.msra.mxu0 %v8345
        %10316 = vmatprep.subr.bf16.mxu0 %v8266
        %10317 = vmatpush2.bf16.msra.mxu0 %v8265
        %10318 = vmatprep.subr.bf16.mxu0 %v8186
        %10319 = vmatpush2.bf16.msra.mxu0 %v8185
        %10320 = vmatprep.subr.bf16.mxu0 %v8106
        %10321 = vmatpush2.bf16.msra.mxu0 %v8105
        %10322 = vmatprep.subr.bf16.mxu0 %v8026
        %10323 = vmatpush2.bf16.msra.mxu0 %v8025
        %10324 = vmatprep.subr.bf16.mxu0 %v7946
        %10325 = vmatpush2.bf16.msra.mxu0 %v7945
        %10326 = vmatprep.mubr.bf16.mxu0 %v1742
        %10327 = vmatmul.mubr.bf16.gmra.mxu0 %v1741
        %v10328 = vpop.f32.mrf.mxu0
        %v10329 = vadd.f32 %v3134, %v10328
        %v10330 = vpop.f32.mrf.mxu0
        %v10331 = vadd.f32 %v3138, %v10330
        %v10332 = vpop.f32.mrf.mxu0
        %v10333 = vpop.f32.mrf.mxu0
        %10334 = vdwg.mxu0
        %10335 = vmatprep.subr.bf16.mxu0 %v7868
        %10336 = vmatpush1.bf16.msra.mxu0 %v7867
        %10337 = vmatprep.subr.bf16.mxu0 %v7788
        %10338 = vmatpush1.bf16.msra.mxu0 %v7787
        %10339 = vmatprep.subr.bf16.mxu0 %v7708
        %10340 = vmatpush1.bf16.msra.mxu0 %v7707
        %10341 = vmatprep.subr.bf16.mxu0 %v7628
        %10342 = vmatpush1.bf16.msra.mxu0 %v7627
        %10343 = vmatprep.subr.bf16.mxu0 %v7548
        %10344 = vmatpush1.bf16.msra.mxu0 %v7547
        %10345 = vmatprep.subr.bf16.mxu0 %v7468
        %10346 = vmatpush1.bf16.msra.mxu0 %v7467
        %10347 = vmatprep.subr.bf16.mxu0 %v7388
        %10348 = vmatpush1.bf16.msra.mxu0 %v7387
        %10349 = vmatprep.subr.bf16.mxu0 %v7308
        %10350 = vmatpush1.bf16.msra.mxu0 %v7307
        %10351 = vmatprep.subr.bf16.mxu0 %v8508
        %10352 = vmatpush2.bf16.msra.mxu0 %v8507
        %10353 = vmatprep.subr.bf16.mxu0 %v8428
        %10354 = vmatpush2.bf16.msra.mxu0 %v8427
        %10355 = vmatprep.subr.bf16.mxu0 %v8348
        %10356 = vmatpush2.bf16.msra.mxu0 %v8347
        %10357 = vmatprep.subr.bf16.mxu0 %v8268
        %10358 = vmatpush2.bf16.msra.mxu0 %v8267
        %10359 = vmatprep.subr.bf16.mxu0 %v8188
        %10360 = vmatpush2.bf16.msra.mxu0 %v8187
        %10361 = vmatprep.subr.bf16.mxu0 %v8108
        %10362 = vmatpush2.bf16.msra.mxu0 %v8107
        %10363 = vmatprep.subr.bf16.mxu0 %v8028
        %10364 = vmatpush2.bf16.msra.mxu0 %v8027
        %10365 = vmatprep.subr.bf16.mxu0 %v7948
        %10366 = vmatpush2.bf16.msra.mxu0 %v7947
        %10367 = vmatprep.mubr.bf16.mxu0 %v1742
        %10368 = vmatmul.mubr.bf16.gmra.mxu0 %v1741
        %v10369 = vpop.f32.mrf.mxu0
        %v10370 = vadd.f32 %v3142, %v10369
        %v10371 = vpop.f32.mrf.mxu0
        %v10372 = vadd.f32 %v3146, %v10371
        %v10373 = vpop.f32.mrf.mxu0
        %v10374 = vpop.f32.mrf.mxu0
        %10375 = vdwg.mxu0
        %10376 = vmatprep.subr.bf16.mxu0 %v7870
        %10377 = vmatpush1.bf16.msra.mxu0 %v7869
        %10378 = vmatprep.subr.bf16.mxu0 %v7790
        %10379 = vmatpush1.bf16.msra.mxu0 %v7789
        %10380 = vmatprep.subr.bf16.mxu0 %v7710
        %10381 = vmatpush1.bf16.msra.mxu0 %v7709
        %10382 = vmatprep.subr.bf16.mxu0 %v7630
        %10383 = vmatpush1.bf16.msra.mxu0 %v7629
        %10384 = vmatprep.subr.bf16.mxu0 %v7550
        %10385 = vmatpush1.bf16.msra.mxu0 %v7549
        %10386 = vmatprep.subr.bf16.mxu0 %v7470
        %10387 = vmatpush1.bf16.msra.mxu0 %v7469
        %10388 = vmatprep.subr.bf16.mxu0 %v7390
        %10389 = vmatpush1.bf16.msra.mxu0 %v7389
        %10390 = vmatprep.subr.bf16.mxu0 %v7310
        %10391 = vmatpush1.bf16.msra.mxu0 %v7309
        %10392 = vmatprep.subr.bf16.mxu0 %v8510
        %10393 = vmatpush2.bf16.msra.mxu0 %v8509
        %10394 = vmatprep.subr.bf16.mxu0 %v8430
        %10395 = vmatpush2.bf16.msra.mxu0 %v8429
        %10396 = vmatprep.subr.bf16.mxu0 %v8350
        %10397 = vmatpush2.bf16.msra.mxu0 %v8349
        %10398 = vmatprep.subr.bf16.mxu0 %v8270
        %10399 = vmatpush2.bf16.msra.mxu0 %v8269
        %10400 = vmatprep.subr.bf16.mxu0 %v8190
        %10401 = vmatpush2.bf16.msra.mxu0 %v8189
        %10402 = vmatprep.subr.bf16.mxu0 %v8110
        %10403 = vmatpush2.bf16.msra.mxu0 %v8109
        %10404 = vmatprep.subr.bf16.mxu0 %v8030
        %10405 = vmatpush2.bf16.msra.mxu0 %v8029
        %10406 = vmatprep.subr.bf16.mxu0 %v7950
        %10407 = vmatpush2.bf16.msra.mxu0 %v7949
        %10408 = vmatprep.mubr.bf16.mxu0 %v1742
        %10409 = vmatmul.mubr.bf16.gmra.mxu0 %v1741
        %v10410 = vpop.f32.mrf.mxu0
        %v10411 = vadd.f32 %v3150, %v10410
        %v10412 = vpop.f32.mrf.mxu0
        %v10413 = vadd.f32 %v3154, %v10412
        %v10414 = vpop.f32.mrf.mxu0
        %v10415 = vpop.f32.mrf.mxu0
        %10416 = vdwg.mxu0
        %10417 = vmatprep.subr.bf16.mxu0 %v7872
        %10418 = vmatpush1.bf16.msra.mxu0 %v7871
        %10419 = vmatprep.subr.bf16.mxu0 %v7792
        %10420 = vmatpush1.bf16.msra.mxu0 %v7791
        %10421 = vmatprep.subr.bf16.mxu0 %v7712
        %10422 = vmatpush1.bf16.msra.mxu0 %v7711
        %10423 = vmatprep.subr.bf16.mxu0 %v7632
        %10424 = vmatpush1.bf16.msra.mxu0 %v7631
        %10425 = vmatprep.subr.bf16.mxu0 %v7552
        %10426 = vmatpush1.bf16.msra.mxu0 %v7551
        %10427 = vmatprep.subr.bf16.mxu0 %v7472
        %10428 = vmatpush1.bf16.msra.mxu0 %v7471
        %10429 = vmatprep.subr.bf16.mxu0 %v7392
        %10430 = vmatpush1.bf16.msra.mxu0 %v7391
        %10431 = vmatprep.subr.bf16.mxu0 %v7312
        %10432 = vmatpush1.bf16.msra.mxu0 %v7311
        %10433 = vmatprep.subr.bf16.mxu0 %v8512
        %10434 = vmatpush2.bf16.msra.mxu0 %v8511
        %10435 = vmatprep.subr.bf16.mxu0 %v8432
        %10436 = vmatpush2.bf16.msra.mxu0 %v8431
        %10437 = vmatprep.subr.bf16.mxu0 %v8352
        %10438 = vmatpush2.bf16.msra.mxu0 %v8351
        %10439 = vmatprep.subr.bf16.mxu0 %v8272
        %10440 = vmatpush2.bf16.msra.mxu0 %v8271
        %10441 = vmatprep.subr.bf16.mxu0 %v8192
        %10442 = vmatpush2.bf16.msra.mxu0 %v8191
        %10443 = vmatprep.subr.bf16.mxu0 %v8112
        %10444 = vmatpush2.bf16.msra.mxu0 %v8111
        %10445 = vmatprep.subr.bf16.mxu0 %v8032
        %10446 = vmatpush2.bf16.msra.mxu0 %v8031
        %10447 = vmatprep.subr.bf16.mxu0 %v7952
        %10448 = vmatpush2.bf16.msra.mxu0 %v7951
        %10449 = vmatprep.mubr.bf16.mxu0 %v1742
        %10450 = vmatmul.mubr.bf16.gmra.mxu0 %v1741
        %v10451 = vpop.f32.mrf.mxu0
        %v10452 = vadd.f32 %v3158, %v10451
        %v10453 = vpop.f32.mrf.mxu0
        %v10454 = vadd.f32 %v3162, %v10453
        %v10455 = vpop.f32.mrf.mxu0
        %v10456 = vpop.f32.mrf.mxu0
        %10457 = vdwg.mxu0
        %10458 = vmatprep.subr.bf16.mxu0 %v7874
        %10459 = vmatpush1.bf16.msra.mxu0 %v7873
        %10460 = vmatprep.subr.bf16.mxu0 %v7794
        %10461 = vmatpush1.bf16.msra.mxu0 %v7793
        %10462 = vmatprep.subr.bf16.mxu0 %v7714
        %10463 = vmatpush1.bf16.msra.mxu0 %v7713
        %10464 = vmatprep.subr.bf16.mxu0 %v7634
        %10465 = vmatpush1.bf16.msra.mxu0 %v7633
        %10466 = vmatprep.subr.bf16.mxu0 %v7554
        %10467 = vmatpush1.bf16.msra.mxu0 %v7553
        %10468 = vmatprep.subr.bf16.mxu0 %v7474
        %10469 = vmatpush1.bf16.msra.mxu0 %v7473
        %10470 = vmatprep.subr.bf16.mxu0 %v7394
        %10471 = vmatpush1.bf16.msra.mxu0 %v7393
        %10472 = vmatprep.subr.bf16.mxu0 %v7314
        %10473 = vmatpush1.bf16.msra.mxu0 %v7313
        %10474 = vmatprep.subr.bf16.mxu0 %v8514
        %10475 = vmatpush2.bf16.msra.mxu0 %v8513
        %10476 = vmatprep.subr.bf16.mxu0 %v8434
        %10477 = vmatpush2.bf16.msra.mxu0 %v8433
        %10478 = vmatprep.subr.bf16.mxu0 %v8354
        %10479 = vmatpush2.bf16.msra.mxu0 %v8353
        %10480 = vmatprep.subr.bf16.mxu0 %v8274
        %10481 = vmatpush2.bf16.msra.mxu0 %v8273
        %10482 = vmatprep.subr.bf16.mxu0 %v8194
        %10483 = vmatpush2.bf16.msra.mxu0 %v8193
        %10484 = vmatprep.subr.bf16.mxu0 %v8114
        %10485 = vmatpush2.bf16.msra.mxu0 %v8113
        %10486 = vmatprep.subr.bf16.mxu0 %v8034
        %10487 = vmatpush2.bf16.msra.mxu0 %v8033
        %10488 = vmatprep.subr.bf16.mxu0 %v7954
        %10489 = vmatpush2.bf16.msra.mxu0 %v7953
        %10490 = vmatprep.mubr.bf16.mxu0 %v1742
        %10491 = vmatmul.mubr.bf16.gmra.mxu0 %v1741
        %v10492 = vpop.f32.mrf.mxu0
        %v10493 = vadd.f32 %v3166, %v10492
        %v10494 = vpop.f32.mrf.mxu0
        %v10495 = vadd.f32 %v3170, %v10494
        %v10496 = vpop.f32.mrf.mxu0
        %v10497 = vpop.f32.mrf.mxu0
        %10498 = vdwg.mxu0
        %10499 = vmatprep.subr.bf16.mxu0 %v7876
        %10500 = vmatpush1.bf16.msra.mxu0 %v7875
        %10501 = vmatprep.subr.bf16.mxu0 %v7796
        %10502 = vmatpush1.bf16.msra.mxu0 %v7795
        %10503 = vmatprep.subr.bf16.mxu0 %v7716
        %10504 = vmatpush1.bf16.msra.mxu0 %v7715
        %10505 = vmatprep.subr.bf16.mxu0 %v7636
        %10506 = vmatpush1.bf16.msra.mxu0 %v7635
        %10507 = vmatprep.subr.bf16.mxu0 %v7556
        %10508 = vmatpush1.bf16.msra.mxu0 %v7555
        %10509 = vmatprep.subr.bf16.mxu0 %v7476
        %10510 = vmatpush1.bf16.msra.mxu0 %v7475
        %10511 = vmatprep.subr.bf16.mxu0 %v7396
        %10512 = vmatpush1.bf16.msra.mxu0 %v7395
        %10513 = vmatprep.subr.bf16.mxu0 %v7316
        %10514 = vmatpush1.bf16.msra.mxu0 %v7315
        %10515 = vmatprep.subr.bf16.mxu0 %v8516
        %10516 = vmatpush2.bf16.msra.mxu0 %v8515
        %10517 = vmatprep.subr.bf16.mxu0 %v8436
        %10518 = vmatpush2.bf16.msra.mxu0 %v8435
        %10519 = vmatprep.subr.bf16.mxu0 %v8356
        %10520 = vmatpush2.bf16.msra.mxu0 %v8355
        %10521 = vmatprep.subr.bf16.mxu0 %v8276
        %10522 = vmatpush2.bf16.msra.mxu0 %v8275
        %10523 = vmatprep.subr.bf16.mxu0 %v8196
        %10524 = vmatpush2.bf16.msra.mxu0 %v8195
        %10525 = vmatprep.subr.bf16.mxu0 %v8116
        %10526 = vmatpush2.bf16.msra.mxu0 %v8115
        %10527 = vmatprep.subr.bf16.mxu0 %v8036
        %10528 = vmatpush2.bf16.msra.mxu0 %v8035
        %10529 = vmatprep.subr.bf16.mxu0 %v7956
        %10530 = vmatpush2.bf16.msra.mxu0 %v7955
        %10531 = vmatprep.mubr.bf16.mxu0 %v1742
        %10532 = vmatmul.mubr.bf16.gmra.mxu0 %v1741
        %v10533 = vpop.f32.mrf.mxu0
        %v10534 = vadd.f32 %v3174, %v10533
        %v10535 = vpop.f32.mrf.mxu0
        %v10536 = vadd.f32 %v3178, %v10535
        %v10537 = vpop.f32.mrf.mxu0
        %v10538 = vpop.f32.mrf.mxu0
        %10539 = vdwg.mxu0
        %10540 = vmatprep.subr.bf16.mxu0 %v7878
        %10541 = vmatpush1.bf16.msra.mxu0 %v7877
        %10542 = vmatprep.subr.bf16.mxu0 %v7798
        %10543 = vmatpush1.bf16.msra.mxu0 %v7797
        %10544 = vmatprep.subr.bf16.mxu0 %v7718
        %10545 = vmatpush1.bf16.msra.mxu0 %v7717
        %10546 = vmatprep.subr.bf16.mxu0 %v7638
        %10547 = vmatpush1.bf16.msra.mxu0 %v7637
        %10548 = vmatprep.subr.bf16.mxu0 %v7558
        %10549 = vmatpush1.bf16.msra.mxu0 %v7557
        %10550 = vmatprep.subr.bf16.mxu0 %v7478
        %10551 = vmatpush1.bf16.msra.mxu0 %v7477
        %10552 = vmatprep.subr.bf16.mxu0 %v7398
        %10553 = vmatpush1.bf16.msra.mxu0 %v7397
        %10554 = vmatprep.subr.bf16.mxu0 %v7318
        %10555 = vmatpush1.bf16.msra.mxu0 %v7317
        %10556 = vmatprep.subr.bf16.mxu0 %v8518
        %10557 = vmatpush2.bf16.msra.mxu0 %v8517
        %10558 = vmatprep.subr.bf16.mxu0 %v8438
        %10559 = vmatpush2.bf16.msra.mxu0 %v8437
        %10560 = vmatprep.subr.bf16.mxu0 %v8358
        %10561 = vmatpush2.bf16.msra.mxu0 %v8357
        %10562 = vmatprep.subr.bf16.mxu0 %v8278
        %10563 = vmatpush2.bf16.msra.mxu0 %v8277
        %10564 = vmatprep.subr.bf16.mxu0 %v8198
        %10565 = vmatpush2.bf16.msra.mxu0 %v8197
        %10566 = vmatprep.subr.bf16.mxu0 %v8118
        %10567 = vmatpush2.bf16.msra.mxu0 %v8117
        %10568 = vmatprep.subr.bf16.mxu0 %v8038
        %10569 = vmatpush2.bf16.msra.mxu0 %v8037
        %10570 = vmatprep.subr.bf16.mxu0 %v7958
        %10571 = vmatpush2.bf16.msra.mxu0 %v7957
        %10572 = vmatprep.mubr.bf16.mxu0 %v1742
        %10573 = vmatmul.mubr.bf16.gmra.mxu0 %v1741
        %v10574 = vpop.f32.mrf.mxu0
        %v10575 = vadd.f32 %v3182, %v10574
        %v10576 = vpop.f32.mrf.mxu0
        %v10577 = vadd.f32 %v3186, %v10576
        %v10578 = vpop.f32.mrf.mxu0
        %v10579 = vpop.f32.mrf.mxu0
        %10580 = vdwg.mxu0
        %10581 = vmatprep.subr.bf16.mxu0 %v7880
        %10582 = vmatpush1.bf16.msra.mxu0 %v7879
        %10583 = vmatprep.subr.bf16.mxu0 %v7800
        %10584 = vmatpush1.bf16.msra.mxu0 %v7799
        %10585 = vmatprep.subr.bf16.mxu0 %v7720
        %10586 = vmatpush1.bf16.msra.mxu0 %v7719
        %10587 = vmatprep.subr.bf16.mxu0 %v7640
        %10588 = vmatpush1.bf16.msra.mxu0 %v7639
        %10589 = vmatprep.subr.bf16.mxu0 %v7560
        %10590 = vmatpush1.bf16.msra.mxu0 %v7559
        %10591 = vmatprep.subr.bf16.mxu0 %v7480
        %10592 = vmatpush1.bf16.msra.mxu0 %v7479
        %10593 = vmatprep.subr.bf16.mxu0 %v7400
        %10594 = vmatpush1.bf16.msra.mxu0 %v7399
        %10595 = vmatprep.subr.bf16.mxu0 %v7320
        %10596 = vmatpush1.bf16.msra.mxu0 %v7319
        %10597 = vmatprep.subr.bf16.mxu0 %v8520
        %10598 = vmatpush2.bf16.msra.mxu0 %v8519
        %10599 = vmatprep.subr.bf16.mxu0 %v8440
        %10600 = vmatpush2.bf16.msra.mxu0 %v8439
        %10601 = vmatprep.subr.bf16.mxu0 %v8360
        %10602 = vmatpush2.bf16.msra.mxu0 %v8359
        %10603 = vmatprep.subr.bf16.mxu0 %v8280
        %10604 = vmatpush2.bf16.msra.mxu0 %v8279
        %10605 = vmatprep.subr.bf16.mxu0 %v8200
        %10606 = vmatpush2.bf16.msra.mxu0 %v8199
        %10607 = vmatprep.subr.bf16.mxu0 %v8120
        %10608 = vmatpush2.bf16.msra.mxu0 %v8119
        %10609 = vmatprep.subr.bf16.mxu0 %v8040
        %10610 = vmatpush2.bf16.msra.mxu0 %v8039
        %10611 = vmatprep.subr.bf16.mxu0 %v7960
        %10612 = vmatpush2.bf16.msra.mxu0 %v7959
        %10613 = vmatprep.mubr.bf16.mxu0 %v1742
        %10614 = vmatmul.mubr.bf16.gmra.mxu0 %v1741
        %v10615 = vpop.f32.mrf.mxu0
        %v10616 = vadd.f32 %v3190, %v10615
        %v10617 = vpop.f32.mrf.mxu0
        %v10618 = vadd.f32 %v3194, %v10617
        %v10619 = vpop.f32.mrf.mxu0
        %v10620 = vpop.f32.mrf.mxu0
        %10621 = vdwg.mxu0
        %10622 = vmatprep.subr.bf16.mxu0 %v7882
        %10623 = vmatpush1.bf16.msra.mxu0 %v7881
        %10624 = vmatprep.subr.bf16.mxu0 %v7802
        %10625 = vmatpush1.bf16.msra.mxu0 %v7801
        %10626 = vmatprep.subr.bf16.mxu0 %v7722
        %10627 = vmatpush1.bf16.msra.mxu0 %v7721
        %10628 = vmatprep.subr.bf16.mxu0 %v7642
        %10629 = vmatpush1.bf16.msra.mxu0 %v7641
        %10630 = vmatprep.subr.bf16.mxu0 %v7562
        %10631 = vmatpush1.bf16.msra.mxu0 %v7561
        %10632 = vmatprep.subr.bf16.mxu0 %v7482
        %10633 = vmatpush1.bf16.msra.mxu0 %v7481
        %10634 = vmatprep.subr.bf16.mxu0 %v7402
        %10635 = vmatpush1.bf16.msra.mxu0 %v7401
        %10636 = vmatprep.subr.bf16.mxu0 %v7322
        %10637 = vmatpush1.bf16.msra.mxu0 %v7321
        %10638 = vmatprep.subr.bf16.mxu0 %v8522
        %10639 = vmatpush2.bf16.msra.mxu0 %v8521
        %10640 = vmatprep.subr.bf16.mxu0 %v8442
        %10641 = vmatpush2.bf16.msra.mxu0 %v8441
        %10642 = vmatprep.subr.bf16.mxu0 %v8362
        %10643 = vmatpush2.bf16.msra.mxu0 %v8361
        %10644 = vmatprep.subr.bf16.mxu0 %v8282
        %10645 = vmatpush2.bf16.msra.mxu0 %v8281
        %10646 = vmatprep.subr.bf16.mxu0 %v8202
        %10647 = vmatpush2.bf16.msra.mxu0 %v8201
        %10648 = vmatprep.subr.bf16.mxu0 %v8122
        %10649 = vmatpush2.bf16.msra.mxu0 %v8121
        %10650 = vmatprep.subr.bf16.mxu0 %v8042
        %10651 = vmatpush2.bf16.msra.mxu0 %v8041
        %10652 = vmatprep.subr.bf16.mxu0 %v7962
        %10653 = vmatpush2.bf16.msra.mxu0 %v7961
        %10654 = vmatprep.mubr.bf16.mxu0 %v1742
        %10655 = vmatmul.mubr.bf16.gmra.mxu0 %v1741
        %v10656 = vpop.f32.mrf.mxu0
        %v10657 = vadd.f32 %v3198, %v10656
        %v10658 = vpop.f32.mrf.mxu0
        %v10659 = vadd.f32 %v3202, %v10658
        %v10660 = vpop.f32.mrf.mxu0
        %v10661 = vpop.f32.mrf.mxu0
        %10662 = vdwg.mxu0
        %10663 = vmatprep.subr.bf16.mxu0 %v7884
        %10664 = vmatpush1.bf16.msra.mxu0 %v7883
        %10665 = vmatprep.subr.bf16.mxu0 %v7804
        %10666 = vmatpush1.bf16.msra.mxu0 %v7803
        %10667 = vmatprep.subr.bf16.mxu0 %v7724
        %10668 = vmatpush1.bf16.msra.mxu0 %v7723
        %10669 = vmatprep.subr.bf16.mxu0 %v7644
        %10670 = vmatpush1.bf16.msra.mxu0 %v7643
        %10671 = vmatprep.subr.bf16.mxu0 %v7564
        %10672 = vmatpush1.bf16.msra.mxu0 %v7563
        %10673 = vmatprep.subr.bf16.mxu0 %v7484
        %10674 = vmatpush1.bf16.msra.mxu0 %v7483
        %10675 = vmatprep.subr.bf16.mxu0 %v7404
        %10676 = vmatpush1.bf16.msra.mxu0 %v7403
        %10677 = vmatprep.subr.bf16.mxu0 %v7324
        %10678 = vmatpush1.bf16.msra.mxu0 %v7323
        %10679 = vmatprep.subr.bf16.mxu0 %v8524
        %10680 = vmatpush2.bf16.msra.mxu0 %v8523
        %10681 = vmatprep.subr.bf16.mxu0 %v8444
        %10682 = vmatpush2.bf16.msra.mxu0 %v8443
        %10683 = vmatprep.subr.bf16.mxu0 %v8364
        %10684 = vmatpush2.bf16.msra.mxu0 %v8363
        %10685 = vmatprep.subr.bf16.mxu0 %v8284
        %10686 = vmatpush2.bf16.msra.mxu0 %v8283
        %10687 = vmatprep.subr.bf16.mxu0 %v8204
        %10688 = vmatpush2.bf16.msra.mxu0 %v8203
        %10689 = vmatprep.subr.bf16.mxu0 %v8124
        %10690 = vmatpush2.bf16.msra.mxu0 %v8123
        %10691 = vmatprep.subr.bf16.mxu0 %v8044
        %10692 = vmatpush2.bf16.msra.mxu0 %v8043
        %10693 = vmatprep.subr.bf16.mxu0 %v7964
        %10694 = vmatpush2.bf16.msra.mxu0 %v7963
        %10695 = vmatprep.mubr.bf16.mxu0 %v1742
        %10696 = vmatmul.mubr.bf16.gmra.mxu0 %v1741
        %v10697 = vpop.f32.mrf.mxu0
        %v10698 = vadd.f32 %v3206, %v10697
        %v10699 = vpop.f32.mrf.mxu0
        %v10700 = vadd.f32 %v3210, %v10699
        %v10701 = vpop.f32.mrf.mxu0
        %v10702 = vpop.f32.mrf.mxu0
        %10703 = vdwg.mxu0
        %10704 = vmatprep.subr.bf16.mxu0 %v7886
        %10705 = vmatpush1.bf16.msra.mxu0 %v7885
        %10706 = vmatprep.subr.bf16.mxu0 %v7806
        %10707 = vmatpush1.bf16.msra.mxu0 %v7805
        %10708 = vmatprep.subr.bf16.mxu0 %v7726
        %10709 = vmatpush1.bf16.msra.mxu0 %v7725
        %10710 = vmatprep.subr.bf16.mxu0 %v7646
        %10711 = vmatpush1.bf16.msra.mxu0 %v7645
        %10712 = vmatprep.subr.bf16.mxu0 %v7566
        %10713 = vmatpush1.bf16.msra.mxu0 %v7565
        %10714 = vmatprep.subr.bf16.mxu0 %v7486
        %10715 = vmatpush1.bf16.msra.mxu0 %v7485
        %10716 = vmatprep.subr.bf16.mxu0 %v7406
        %10717 = vmatpush1.bf16.msra.mxu0 %v7405
        %10718 = vmatprep.subr.bf16.mxu0 %v7326
        %10719 = vmatpush1.bf16.msra.mxu0 %v7325
        %10720 = vmatprep.subr.bf16.mxu0 %v8526
        %10721 = vmatpush2.bf16.msra.mxu0 %v8525
        %10722 = vmatprep.subr.bf16.mxu0 %v8446
        %10723 = vmatpush2.bf16.msra.mxu0 %v8445
        %10724 = vmatprep.subr.bf16.mxu0 %v8366
        %10725 = vmatpush2.bf16.msra.mxu0 %v8365
        %10726 = vmatprep.subr.bf16.mxu0 %v8286
        %10727 = vmatpush2.bf16.msra.mxu0 %v8285
        %10728 = vmatprep.subr.bf16.mxu0 %v8206
        %10729 = vmatpush2.bf16.msra.mxu0 %v8205
        %10730 = vmatprep.subr.bf16.mxu0 %v8126
        %10731 = vmatpush2.bf16.msra.mxu0 %v8125
        %10732 = vmatprep.subr.bf16.mxu0 %v8046
        %10733 = vmatpush2.bf16.msra.mxu0 %v8045
        %10734 = vmatprep.subr.bf16.mxu0 %v7966
        %10735 = vmatpush2.bf16.msra.mxu0 %v7965
        %10736 = vmatprep.mubr.bf16.mxu0 %v1742
        %10737 = vmatmul.mubr.bf16.gmra.mxu0 %v1741
        %v10738 = vpop.f32.mrf.mxu0
        %v10739 = vadd.f32 %v3214, %v10738
        %v10740 = vpop.f32.mrf.mxu0
        %v10741 = vadd.f32 %v3218, %v10740
        %v10742 = vpop.f32.mrf.mxu0
        %v10743 = vpop.f32.mrf.mxu0
        %10744 = vdwg.mxu0
        %10745 = vmatprep.subr.bf16.mxu0 %v7888
        %10746 = vmatpush1.bf16.msra.mxu0 %v7887
        %10747 = vmatprep.subr.bf16.mxu0 %v7808
        %10748 = vmatpush1.bf16.msra.mxu0 %v7807
        %10749 = vmatprep.subr.bf16.mxu0 %v7728
        %10750 = vmatpush1.bf16.msra.mxu0 %v7727
        %10751 = vmatprep.subr.bf16.mxu0 %v7648
        %10752 = vmatpush1.bf16.msra.mxu0 %v7647
        %10753 = vmatprep.subr.bf16.mxu0 %v7568
        %10754 = vmatpush1.bf16.msra.mxu0 %v7567
        %10755 = vmatprep.subr.bf16.mxu0 %v7488
        %10756 = vmatpush1.bf16.msra.mxu0 %v7487
        %10757 = vmatprep.subr.bf16.mxu0 %v7408
        %10758 = vmatpush1.bf16.msra.mxu0 %v7407
        %10759 = vmatprep.subr.bf16.mxu0 %v7328
        %10760 = vmatpush1.bf16.msra.mxu0 %v7327
        %10761 = vmatprep.subr.bf16.mxu0 %v8528
        %10762 = vmatpush2.bf16.msra.mxu0 %v8527
        %10763 = vmatprep.subr.bf16.mxu0 %v8448
        %10764 = vmatpush2.bf16.msra.mxu0 %v8447
        %10765 = vmatprep.subr.bf16.mxu0 %v8368
        %10766 = vmatpush2.bf16.msra.mxu0 %v8367
        %10767 = vmatprep.subr.bf16.mxu0 %v8288
        %10768 = vmatpush2.bf16.msra.mxu0 %v8287
        %10769 = vmatprep.subr.bf16.mxu0 %v8208
        %10770 = vmatpush2.bf16.msra.mxu0 %v8207
        %10771 = vmatprep.subr.bf16.mxu0 %v8128
        %10772 = vmatpush2.bf16.msra.mxu0 %v8127
        %10773 = vmatprep.subr.bf16.mxu0 %v8048
        %10774 = vmatpush2.bf16.msra.mxu0 %v8047
        %10775 = vmatprep.subr.bf16.mxu0 %v7968
        %10776 = vmatpush2.bf16.msra.mxu0 %v7967
        %10777 = vmatprep.mubr.bf16.mxu0 %v1742
        %10778 = vmatmul.mubr.bf16.gmra.mxu0 %v1741
        %v10779 = vpop.f32.mrf.mxu0
        %v10780 = vadd.f32 %v3222, %v10779
        %v10781 = vpop.f32.mrf.mxu0
        %v10782 = vadd.f32 %v3226, %v10781
        %v10783 = vpop.f32.mrf.mxu0
        %v10784 = vpop.f32.mrf.mxu0
        %10785 = vdwg.mxu0
        %10786 = vmatprep.subr.bf16.mxu0 %v7890
        %10787 = vmatpush1.bf16.msra.mxu0 %v7889
        %10788 = vmatprep.subr.bf16.mxu0 %v7810
        %10789 = vmatpush1.bf16.msra.mxu0 %v7809
        %10790 = vmatprep.subr.bf16.mxu0 %v7730
        %10791 = vmatpush1.bf16.msra.mxu0 %v7729
        %10792 = vmatprep.subr.bf16.mxu0 %v7650
        %10793 = vmatpush1.bf16.msra.mxu0 %v7649
        %10794 = vmatprep.subr.bf16.mxu0 %v7570
        %10795 = vmatpush1.bf16.msra.mxu0 %v7569
        %10796 = vmatprep.subr.bf16.mxu0 %v7490
        %10797 = vmatpush1.bf16.msra.mxu0 %v7489
        %10798 = vmatprep.subr.bf16.mxu0 %v7410
        %10799 = vmatpush1.bf16.msra.mxu0 %v7409
        %10800 = vmatprep.subr.bf16.mxu0 %v7330
        %10801 = vmatpush1.bf16.msra.mxu0 %v7329
        %10802 = vmatprep.subr.bf16.mxu0 %v8530
        %10803 = vmatpush2.bf16.msra.mxu0 %v8529
        %10804 = vmatprep.subr.bf16.mxu0 %v8450
        %10805 = vmatpush2.bf16.msra.mxu0 %v8449
        %10806 = vmatprep.subr.bf16.mxu0 %v8370
        %10807 = vmatpush2.bf16.msra.mxu0 %v8369
        %10808 = vmatprep.subr.bf16.mxu0 %v8290
        %10809 = vmatpush2.bf16.msra.mxu0 %v8289
        %10810 = vmatprep.subr.bf16.mxu0 %v8210
        %10811 = vmatpush2.bf16.msra.mxu0 %v8209
        %10812 = vmatprep.subr.bf16.mxu0 %v8130
        %10813 = vmatpush2.bf16.msra.mxu0 %v8129
        %10814 = vmatprep.subr.bf16.mxu0 %v8050
        %10815 = vmatpush2.bf16.msra.mxu0 %v8049
        %10816 = vmatprep.subr.bf16.mxu0 %v7970
        %10817 = vmatpush2.bf16.msra.mxu0 %v7969
        %10818 = vmatprep.mubr.bf16.mxu0 %v1742
        %10819 = vmatmul.mubr.bf16.gmra.mxu0 %v1741
        %v10820 = vpop.f32.mrf.mxu0
        %v10821 = vadd.f32 %v3230, %v10820
        %v10822 = vpop.f32.mrf.mxu0
        %v10823 = vadd.f32 %v3234, %v10822
        %v10824 = vpop.f32.mrf.mxu0
        %v10825 = vpop.f32.mrf.mxu0
        %10826 = vdwg.mxu0
        %10827 = vmatprep.subr.bf16.mxu0 %v7892
        %10828 = vmatpush1.bf16.msra.mxu0 %v7891
        %10829 = vmatprep.subr.bf16.mxu0 %v7812
        %10830 = vmatpush1.bf16.msra.mxu0 %v7811
        %10831 = vmatprep.subr.bf16.mxu0 %v7732
        %10832 = vmatpush1.bf16.msra.mxu0 %v7731
        %10833 = vmatprep.subr.bf16.mxu0 %v7652
        %10834 = vmatpush1.bf16.msra.mxu0 %v7651
        %10835 = vmatprep.subr.bf16.mxu0 %v7572
        %10836 = vmatpush1.bf16.msra.mxu0 %v7571
        %10837 = vmatprep.subr.bf16.mxu0 %v7492
        %10838 = vmatpush1.bf16.msra.mxu0 %v7491
        %10839 = vmatprep.subr.bf16.mxu0 %v7412
        %10840 = vmatpush1.bf16.msra.mxu0 %v7411
        %10841 = vmatprep.subr.bf16.mxu0 %v7332
        %10842 = vmatpush1.bf16.msra.mxu0 %v7331
        %10843 = vmatprep.subr.bf16.mxu0 %v8532
        %10844 = vmatpush2.bf16.msra.mxu0 %v8531
        %10845 = vmatprep.subr.bf16.mxu0 %v8452
        %10846 = vmatpush2.bf16.msra.mxu0 %v8451
        %10847 = vmatprep.subr.bf16.mxu0 %v8372
        %10848 = vmatpush2.bf16.msra.mxu0 %v8371
        %10849 = vmatprep.subr.bf16.mxu0 %v8292
        %10850 = vmatpush2.bf16.msra.mxu0 %v8291
        %10851 = vmatprep.subr.bf16.mxu0 %v8212
        %10852 = vmatpush2.bf16.msra.mxu0 %v8211
        %10853 = vmatprep.subr.bf16.mxu0 %v8132
        %10854 = vmatpush2.bf16.msra.mxu0 %v8131
        %10855 = vmatprep.subr.bf16.mxu0 %v8052
        %10856 = vmatpush2.bf16.msra.mxu0 %v8051
        %10857 = vmatprep.subr.bf16.mxu0 %v7972
        %10858 = vmatpush2.bf16.msra.mxu0 %v7971
        %10859 = vmatprep.mubr.bf16.mxu0 %v1742
        %10860 = vmatmul.mubr.bf16.gmra.mxu0 %v1741
        %v10861 = vpop.f32.mrf.mxu0
        %v10862 = vadd.f32 %v3238, %v10861
        %v10863 = vpop.f32.mrf.mxu0
        %v10864 = vadd.f32 %v3242, %v10863
        %v10865 = vpop.f32.mrf.mxu0
        %v10866 = vpop.f32.mrf.mxu0
        %10867 = vdwg.mxu0
        %10868 = vmatprep.subr.bf16.mxu0 %v7894
        %10869 = vmatpush1.bf16.msra.mxu0 %v7893
        %10870 = vmatprep.subr.bf16.mxu0 %v7814
        %10871 = vmatpush1.bf16.msra.mxu0 %v7813
        %10872 = vmatprep.subr.bf16.mxu0 %v7734
        %10873 = vmatpush1.bf16.msra.mxu0 %v7733
        %10874 = vmatprep.subr.bf16.mxu0 %v7654
        %10875 = vmatpush1.bf16.msra.mxu0 %v7653
        %10876 = vmatprep.subr.bf16.mxu0 %v7574
        %10877 = vmatpush1.bf16.msra.mxu0 %v7573
        %10878 = vmatprep.subr.bf16.mxu0 %v7494
        %10879 = vmatpush1.bf16.msra.mxu0 %v7493
        %10880 = vmatprep.subr.bf16.mxu0 %v7414
        %10881 = vmatpush1.bf16.msra.mxu0 %v7413
        %10882 = vmatprep.subr.bf16.mxu0 %v7334
        %10883 = vmatpush1.bf16.msra.mxu0 %v7333
        %10884 = vmatprep.subr.bf16.mxu0 %v8534
        %10885 = vmatpush2.bf16.msra.mxu0 %v8533
        %10886 = vmatprep.subr.bf16.mxu0 %v8454
        %10887 = vmatpush2.bf16.msra.mxu0 %v8453
        %10888 = vmatprep.subr.bf16.mxu0 %v8374
        %10889 = vmatpush2.bf16.msra.mxu0 %v8373
        %10890 = vmatprep.subr.bf16.mxu0 %v8294
        %10891 = vmatpush2.bf16.msra.mxu0 %v8293
        %10892 = vmatprep.subr.bf16.mxu0 %v8214
        %10893 = vmatpush2.bf16.msra.mxu0 %v8213
        %10894 = vmatprep.subr.bf16.mxu0 %v8134
        %10895 = vmatpush2.bf16.msra.mxu0 %v8133
        %10896 = vmatprep.subr.bf16.mxu0 %v8054
        %10897 = vmatpush2.bf16.msra.mxu0 %v8053
        %10898 = vmatprep.subr.bf16.mxu0 %v7974
        %10899 = vmatpush2.bf16.msra.mxu0 %v7973
        %10900 = vmatprep.mubr.bf16.mxu0 %v1742
        %10901 = vmatmul.mubr.bf16.gmra.mxu0 %v1741
        %v10902 = vpop.f32.mrf.mxu0
        %v10903 = vadd.f32 %v3246, %v10902
        %v10904 = vpop.f32.mrf.mxu0
        %v10905 = vadd.f32 %v3250, %v10904
        %v10906 = vpop.f32.mrf.mxu0
        %v10907 = vpop.f32.mrf.mxu0
        %10908 = vdwg.mxu0
        %10909 = vmatprep.subr.bf16.mxu0 %v7896
        %10910 = vmatpush1.bf16.msra.mxu0 %v7895
        %10911 = vmatprep.subr.bf16.mxu0 %v7816
        %10912 = vmatpush1.bf16.msra.mxu0 %v7815
        %10913 = vmatprep.subr.bf16.mxu0 %v7736
        %10914 = vmatpush1.bf16.msra.mxu0 %v7735
        %10915 = vmatprep.subr.bf16.mxu0 %v7656
        %10916 = vmatpush1.bf16.msra.mxu0 %v7655
        %10917 = vmatprep.subr.bf16.mxu0 %v7576
        %10918 = vmatpush1.bf16.msra.mxu0 %v7575
        %10919 = vmatprep.subr.bf16.mxu0 %v7496
        %10920 = vmatpush1.bf16.msra.mxu0 %v7495
        %10921 = vmatprep.subr.bf16.mxu0 %v7416
        %10922 = vmatpush1.bf16.msra.mxu0 %v7415
        %10923 = vmatprep.subr.bf16.mxu0 %v7336
        %10924 = vmatpush1.bf16.msra.mxu0 %v7335
        %10925 = vmatprep.subr.bf16.mxu0 %v8536
        %10926 = vmatpush2.bf16.msra.mxu0 %v8535
        %10927 = vmatprep.subr.bf16.mxu0 %v8456
        %10928 = vmatpush2.bf16.msra.mxu0 %v8455
        %10929 = vmatprep.subr.bf16.mxu0 %v8376
        %10930 = vmatpush2.bf16.msra.mxu0 %v8375
        %10931 = vmatprep.subr.bf16.mxu0 %v8296
        %10932 = vmatpush2.bf16.msra.mxu0 %v8295
        %10933 = vmatprep.subr.bf16.mxu0 %v8216
        %10934 = vmatpush2.bf16.msra.mxu0 %v8215
        %10935 = vmatprep.subr.bf16.mxu0 %v8136
        %10936 = vmatpush2.bf16.msra.mxu0 %v8135
        %10937 = vmatprep.subr.bf16.mxu0 %v8056
        %10938 = vmatpush2.bf16.msra.mxu0 %v8055
        %10939 = vmatprep.subr.bf16.mxu0 %v7976
        %10940 = vmatpush2.bf16.msra.mxu0 %v7975
        %10941 = vmatprep.mubr.bf16.mxu0 %v1742
        %10942 = vmatmul.mubr.bf16.gmra.mxu0 %v1741
        %v10943 = vpop.f32.mrf.mxu0
        %v10944 = vadd.f32 %v3254, %v10943
        %v10945 = vpop.f32.mrf.mxu0
        %v10946 = vadd.f32 %v3258, %v10945
        %v10947 = vpop.f32.mrf.mxu0
        %v10948 = vpop.f32.mrf.mxu0
        %10949 = vdwg.mxu0
        %10950 = vmatprep.subr.bf16.mxu0 %v7898
        %10951 = vmatpush1.bf16.msra.mxu0 %v7897
        %10952 = vmatprep.subr.bf16.mxu0 %v7818
        %10953 = vmatpush1.bf16.msra.mxu0 %v7817
        %10954 = vmatprep.subr.bf16.mxu0 %v7738
        %10955 = vmatpush1.bf16.msra.mxu0 %v7737
        %10956 = vmatprep.subr.bf16.mxu0 %v7658
        %10957 = vmatpush1.bf16.msra.mxu0 %v7657
        %10958 = vmatprep.subr.bf16.mxu0 %v7578
        %10959 = vmatpush1.bf16.msra.mxu0 %v7577
        %10960 = vmatprep.subr.bf16.mxu0 %v7498
        %10961 = vmatpush1.bf16.msra.mxu0 %v7497
        %10962 = vmatprep.subr.bf16.mxu0 %v7418
        %10963 = vmatpush1.bf16.msra.mxu0 %v7417
        %10964 = vmatprep.subr.bf16.mxu0 %v7338
        %10965 = vmatpush1.bf16.msra.mxu0 %v7337
        %10966 = vmatprep.subr.bf16.mxu0 %v8538
        %10967 = vmatpush2.bf16.msra.mxu0 %v8537
        %10968 = vmatprep.subr.bf16.mxu0 %v8458
        %10969 = vmatpush2.bf16.msra.mxu0 %v8457
        %10970 = vmatprep.subr.bf16.mxu0 %v8378
        %10971 = vmatpush2.bf16.msra.mxu0 %v8377
        %10972 = vmatprep.subr.bf16.mxu0 %v8298
        %10973 = vmatpush2.bf16.msra.mxu0 %v8297
        %10974 = vmatprep.subr.bf16.mxu0 %v8218
        %10975 = vmatpush2.bf16.msra.mxu0 %v8217
        %10976 = vmatprep.subr.bf16.mxu0 %v8138
        %10977 = vmatpush2.bf16.msra.mxu0 %v8137
        %10978 = vmatprep.subr.bf16.mxu0 %v8058
        %10979 = vmatpush2.bf16.msra.mxu0 %v8057
        %10980 = vmatprep.subr.bf16.mxu0 %v7978
        %10981 = vmatpush2.bf16.msra.mxu0 %v7977
        %10982 = vmatprep.mubr.bf16.mxu0 %v1742
        %10983 = vmatmul.mubr.bf16.gmra.mxu0 %v1741
        %v10984 = vpop.f32.mrf.mxu0
        %v10985 = vadd.f32 %v3262, %v10984
        %v10986 = vpop.f32.mrf.mxu0
        %v10987 = vadd.f32 %v3266, %v10986
        %v10988 = vpop.f32.mrf.mxu0
        %v10989 = vpop.f32.mrf.mxu0
        %10990 = vdwg.mxu0
        %10991 = vmatprep.subr.bf16.mxu0 %v7900
        %10992 = vmatpush1.bf16.msra.mxu0 %v7899
        %10993 = vmatprep.subr.bf16.mxu0 %v7820
        %10994 = vmatpush1.bf16.msra.mxu0 %v7819
        %10995 = vmatprep.subr.bf16.mxu0 %v7740
        %10996 = vmatpush1.bf16.msra.mxu0 %v7739
        %10997 = vmatprep.subr.bf16.mxu0 %v7660
        %10998 = vmatpush1.bf16.msra.mxu0 %v7659
        %10999 = vmatprep.subr.bf16.mxu0 %v7580
        %11000 = vmatpush1.bf16.msra.mxu0 %v7579
        %11001 = vmatprep.subr.bf16.mxu0 %v7500
        %11002 = vmatpush1.bf16.msra.mxu0 %v7499
        %11003 = vmatprep.subr.bf16.mxu0 %v7420
        %11004 = vmatpush1.bf16.msra.mxu0 %v7419
        %11005 = vmatprep.subr.bf16.mxu0 %v7340
        %11006 = vmatpush1.bf16.msra.mxu0 %v7339
        %11007 = vmatprep.subr.bf16.mxu0 %v8540
        %11008 = vmatpush2.bf16.msra.mxu0 %v8539
        %11009 = vmatprep.subr.bf16.mxu0 %v8460
        %11010 = vmatpush2.bf16.msra.mxu0 %v8459
        %11011 = vmatprep.subr.bf16.mxu0 %v8380
        %11012 = vmatpush2.bf16.msra.mxu0 %v8379
        %11013 = vmatprep.subr.bf16.mxu0 %v8300
        %11014 = vmatpush2.bf16.msra.mxu0 %v8299
        %11015 = vmatprep.subr.bf16.mxu0 %v8220
        %11016 = vmatpush2.bf16.msra.mxu0 %v8219
        %11017 = vmatprep.subr.bf16.mxu0 %v8140
        %11018 = vmatpush2.bf16.msra.mxu0 %v8139
        %11019 = vmatprep.subr.bf16.mxu0 %v8060
        %11020 = vmatpush2.bf16.msra.mxu0 %v8059
        %11021 = vmatprep.subr.bf16.mxu0 %v7980
        %11022 = vmatpush2.bf16.msra.mxu0 %v7979
        %11023 = vmatprep.mubr.bf16.mxu0 %v1742
        %11024 = vmatmul.mubr.bf16.gmra.mxu0 %v1741
        %v11025 = vpop.f32.mrf.mxu0
        %v11026 = vadd.f32 %v3270, %v11025
        %v11027 = vpop.f32.mrf.mxu0
        %v11028 = vadd.f32 %v3274, %v11027
        %v11029 = vpop.f32.mrf.mxu0
        %v11030 = vpop.f32.mrf.mxu0
        %11031 = vdwg.mxu0
        %11032 = vmatprep.subr.bf16.mxu0 %v7902
        %11033 = vmatpush1.bf16.msra.mxu0 %v7901
        %11034 = vmatprep.subr.bf16.mxu0 %v7822
        %11035 = vmatpush1.bf16.msra.mxu0 %v7821
        %11036 = vmatprep.subr.bf16.mxu0 %v7742
        %11037 = vmatpush1.bf16.msra.mxu0 %v7741
        %11038 = vmatprep.subr.bf16.mxu0 %v7662
        %11039 = vmatpush1.bf16.msra.mxu0 %v7661
        %11040 = vmatprep.subr.bf16.mxu0 %v7582
        %11041 = vmatpush1.bf16.msra.mxu0 %v7581
        %11042 = vmatprep.subr.bf16.mxu0 %v7502
        %11043 = vmatpush1.bf16.msra.mxu0 %v7501
        %11044 = vmatprep.subr.bf16.mxu0 %v7422
        %11045 = vmatpush1.bf16.msra.mxu0 %v7421
        %11046 = vmatprep.subr.bf16.mxu0 %v7342
        %11047 = vmatpush1.bf16.msra.mxu0 %v7341
        %11048 = vmatprep.subr.bf16.mxu0 %v8542
        %11049 = vmatpush2.bf16.msra.mxu0 %v8541
        %11050 = vmatprep.subr.bf16.mxu0 %v8462
        %11051 = vmatpush2.bf16.msra.mxu0 %v8461
        %11052 = vmatprep.subr.bf16.mxu0 %v8382
        %11053 = vmatpush2.bf16.msra.mxu0 %v8381
        %11054 = vmatprep.subr.bf16.mxu0 %v8302
        %11055 = vmatpush2.bf16.msra.mxu0 %v8301
        %11056 = vmatprep.subr.bf16.mxu0 %v8222
        %11057 = vmatpush2.bf16.msra.mxu0 %v8221
        %11058 = vmatprep.subr.bf16.mxu0 %v8142
        %11059 = vmatpush2.bf16.msra.mxu0 %v8141
        %11060 = vmatprep.subr.bf16.mxu0 %v8062
        %11061 = vmatpush2.bf16.msra.mxu0 %v8061
        %11062 = vmatprep.subr.bf16.mxu0 %v7982
        %11063 = vmatpush2.bf16.msra.mxu0 %v7981
        %11064 = vmatprep.mubr.bf16.mxu0 %v1742
        %11065 = vmatmul.mubr.bf16.gmra.mxu0 %v1741
        %v11066 = vpop.f32.mrf.mxu0
        %v11067 = vadd.f32 %v3278, %v11066
        %v11068 = vpop.f32.mrf.mxu0
        %v11069 = vadd.f32 %v3282, %v11068
        %v11070 = vpop.f32.mrf.mxu0
        %v11071 = vpop.f32.mrf.mxu0
        %11072 = vdwg.mxu0
        %11073 = vmatprep.subr.bf16.mxu0 %v7904
        %11074 = vmatpush1.bf16.msra.mxu0 %v7903
        %11075 = vmatprep.subr.bf16.mxu0 %v7824
        %11076 = vmatpush1.bf16.msra.mxu0 %v7823
        %11077 = vmatprep.subr.bf16.mxu0 %v7744
        %11078 = vmatpush1.bf16.msra.mxu0 %v7743
        %11079 = vmatprep.subr.bf16.mxu0 %v7664
        %11080 = vmatpush1.bf16.msra.mxu0 %v7663
        %11081 = vmatprep.subr.bf16.mxu0 %v7584
        %11082 = vmatpush1.bf16.msra.mxu0 %v7583
        %11083 = vmatprep.subr.bf16.mxu0 %v7504
        %11084 = vmatpush1.bf16.msra.mxu0 %v7503
        %11085 = vmatprep.subr.bf16.mxu0 %v7424
        %11086 = vmatpush1.bf16.msra.mxu0 %v7423
        %11087 = vmatprep.subr.bf16.mxu0 %v7344
        %11088 = vmatpush1.bf16.msra.mxu0 %v7343
        %11089 = vmatprep.subr.bf16.mxu0 %v8544
        %11090 = vmatpush2.bf16.msra.mxu0 %v8543
        %11091 = vmatprep.subr.bf16.mxu0 %v8464
        %11092 = vmatpush2.bf16.msra.mxu0 %v8463
        %11093 = vmatprep.subr.bf16.mxu0 %v8384
        %11094 = vmatpush2.bf16.msra.mxu0 %v8383
        %11095 = vmatprep.subr.bf16.mxu0 %v8304
        %11096 = vmatpush2.bf16.msra.mxu0 %v8303
        %11097 = vmatprep.subr.bf16.mxu0 %v8224
        %11098 = vmatpush2.bf16.msra.mxu0 %v8223
        %11099 = vmatprep.subr.bf16.mxu0 %v8144
        %11100 = vmatpush2.bf16.msra.mxu0 %v8143
        %11101 = vmatprep.subr.bf16.mxu0 %v8064
        %11102 = vmatpush2.bf16.msra.mxu0 %v8063
        %11103 = vmatprep.subr.bf16.mxu0 %v7984
        %11104 = vmatpush2.bf16.msra.mxu0 %v7983
        %11105 = vmatprep.mubr.bf16.mxu0 %v1742
        %11106 = vmatmul.mubr.bf16.gmra.mxu0 %v1741
        %v11107 = vpop.f32.mrf.mxu0
        %v11108 = vadd.f32 %v3286, %v11107
        %v11109 = vpop.f32.mrf.mxu0
        %v11110 = vadd.f32 %v3290, %v11109
        %v11111 = vpop.f32.mrf.mxu0
        %v11112 = vpop.f32.mrf.mxu0
        %11113 = vdwg.mxu0
        %11114 = vmatprep.subr.bf16.mxu0 %v7906
        %11115 = vmatpush1.bf16.msra.mxu0 %v7905
        %11116 = vmatprep.subr.bf16.mxu0 %v7826
        %11117 = vmatpush1.bf16.msra.mxu0 %v7825
        %11118 = vmatprep.subr.bf16.mxu0 %v7746
        %11119 = vmatpush1.bf16.msra.mxu0 %v7745
        %11120 = vmatprep.subr.bf16.mxu0 %v7666
        %11121 = vmatpush1.bf16.msra.mxu0 %v7665
        %11122 = vmatprep.subr.bf16.mxu0 %v7586
        %11123 = vmatpush1.bf16.msra.mxu0 %v7585
        %11124 = vmatprep.subr.bf16.mxu0 %v7506
        %11125 = vmatpush1.bf16.msra.mxu0 %v7505
        %11126 = vmatprep.subr.bf16.mxu0 %v7426
        %11127 = vmatpush1.bf16.msra.mxu0 %v7425
        %11128 = vmatprep.subr.bf16.mxu0 %v7346
        %11129 = vmatpush1.bf16.msra.mxu0 %v7345
        %11130 = vmatprep.subr.bf16.mxu0 %v8546
        %11131 = vmatpush2.bf16.msra.mxu0 %v8545
        %11132 = vmatprep.subr.bf16.mxu0 %v8466
        %11133 = vmatpush2.bf16.msra.mxu0 %v8465
        %11134 = vmatprep.subr.bf16.mxu0 %v8386
        %11135 = vmatpush2.bf16.msra.mxu0 %v8385
        %11136 = vmatprep.subr.bf16.mxu0 %v8306
        %11137 = vmatpush2.bf16.msra.mxu0 %v8305
        %11138 = vmatprep.subr.bf16.mxu0 %v8226
        %11139 = vmatpush2.bf16.msra.mxu0 %v8225
        %11140 = vmatprep.subr.bf16.mxu0 %v8146
        %11141 = vmatpush2.bf16.msra.mxu0 %v8145
        %11142 = vmatprep.subr.bf16.mxu0 %v8066
        %11143 = vmatpush2.bf16.msra.mxu0 %v8065
        %11144 = vmatprep.subr.bf16.mxu0 %v7986
        %11145 = vmatpush2.bf16.msra.mxu0 %v7985
        %11146 = vmatprep.mubr.bf16.mxu0 %v1742
        %11147 = vmatmul.mubr.bf16.gmra.mxu0 %v1741
        %v11148 = vpop.f32.mrf.mxu0
        %v11149 = vadd.f32 %v3294, %v11148
        %v11150 = vpop.f32.mrf.mxu0
        %v11151 = vadd.f32 %v3298, %v11150
        %v11152 = vpop.f32.mrf.mxu0
        %v11153 = vpop.f32.mrf.mxu0
        %11154 = vdwg.mxu0
        %11155 = vmatprep.subr.bf16.mxu0 %v7908
        %11156 = vmatpush1.bf16.msra.mxu0 %v7907
        %11157 = vmatprep.subr.bf16.mxu0 %v7828
        %11158 = vmatpush1.bf16.msra.mxu0 %v7827
        %11159 = vmatprep.subr.bf16.mxu0 %v7748
        %11160 = vmatpush1.bf16.msra.mxu0 %v7747
        %11161 = vmatprep.subr.bf16.mxu0 %v7668
        %11162 = vmatpush1.bf16.msra.mxu0 %v7667
        %11163 = vmatprep.subr.bf16.mxu0 %v7588
        %11164 = vmatpush1.bf16.msra.mxu0 %v7587
        %11165 = vmatprep.subr.bf16.mxu0 %v7508
        %11166 = vmatpush1.bf16.msra.mxu0 %v7507
        %11167 = vmatprep.subr.bf16.mxu0 %v7428
        %11168 = vmatpush1.bf16.msra.mxu0 %v7427
        %11169 = vmatprep.subr.bf16.mxu0 %v7348
        %11170 = vmatpush1.bf16.msra.mxu0 %v7347
        %11171 = vmatprep.subr.bf16.mxu0 %v8548
        %11172 = vmatpush2.bf16.msra.mxu0 %v8547
        %11173 = vmatprep.subr.bf16.mxu0 %v8468
        %11174 = vmatpush2.bf16.msra.mxu0 %v8467
        %11175 = vmatprep.subr.bf16.mxu0 %v8388
        %11176 = vmatpush2.bf16.msra.mxu0 %v8387
        %11177 = vmatprep.subr.bf16.mxu0 %v8308
        %11178 = vmatpush2.bf16.msra.mxu0 %v8307
        %11179 = vmatprep.subr.bf16.mxu0 %v8228
        %11180 = vmatpush2.bf16.msra.mxu0 %v8227
        %11181 = vmatprep.subr.bf16.mxu0 %v8148
        %11182 = vmatpush2.bf16.msra.mxu0 %v8147
        %11183 = vmatprep.subr.bf16.mxu0 %v8068
        %11184 = vmatpush2.bf16.msra.mxu0 %v8067
        %11185 = vmatprep.subr.bf16.mxu0 %v7988
        %11186 = vmatpush2.bf16.msra.mxu0 %v7987
        %11187 = vmatprep.mubr.bf16.mxu0 %v1742
        %11188 = vmatmul.mubr.bf16.gmra.mxu0 %v1741
        %v11189 = vpop.f32.mrf.mxu0
        %v11190 = vadd.f32 %v3302, %v11189
        %v11191 = vpop.f32.mrf.mxu0
        %v11192 = vadd.f32 %v3306, %v11191
        %v11193 = vpop.f32.mrf.mxu0
        %v11194 = vpop.f32.mrf.mxu0
        %11195 = vdwg.mxu0
        %11196 = vmatprep.subr.bf16.mxu0 %v7910
        %11197 = vmatpush1.bf16.msra.mxu0 %v7909
        %11198 = vmatprep.subr.bf16.mxu0 %v7830
        %11199 = vmatpush1.bf16.msra.mxu0 %v7829
        %11200 = vmatprep.subr.bf16.mxu0 %v7750
        %11201 = vmatpush1.bf16.msra.mxu0 %v7749
        %11202 = vmatprep.subr.bf16.mxu0 %v7670
        %11203 = vmatpush1.bf16.msra.mxu0 %v7669
        %11204 = vmatprep.subr.bf16.mxu0 %v7590
        %11205 = vmatpush1.bf16.msra.mxu0 %v7589
        %11206 = vmatprep.subr.bf16.mxu0 %v7510
        %11207 = vmatpush1.bf16.msra.mxu0 %v7509
        %11208 = vmatprep.subr.bf16.mxu0 %v7430
        %11209 = vmatpush1.bf16.msra.mxu0 %v7429
        %11210 = vmatprep.subr.bf16.mxu0 %v7350
        %11211 = vmatpush1.bf16.msra.mxu0 %v7349
        %11212 = vmatprep.subr.bf16.mxu0 %v8550
        %11213 = vmatpush2.bf16.msra.mxu0 %v8549
        %11214 = vmatprep.subr.bf16.mxu0 %v8470
        %11215 = vmatpush2.bf16.msra.mxu0 %v8469
        %11216 = vmatprep.subr.bf16.mxu0 %v8390
        %11217 = vmatpush2.bf16.msra.mxu0 %v8389
        %11218 = vmatprep.subr.bf16.mxu0 %v8310
        %11219 = vmatpush2.bf16.msra.mxu0 %v8309
        %11220 = vmatprep.subr.bf16.mxu0 %v8230
        %11221 = vmatpush2.bf16.msra.mxu0 %v8229
        %11222 = vmatprep.subr.bf16.mxu0 %v8150
        %11223 = vmatpush2.bf16.msra.mxu0 %v8149
        %11224 = vmatprep.subr.bf16.mxu0 %v8070
        %11225 = vmatpush2.bf16.msra.mxu0 %v8069
        %11226 = vmatprep.subr.bf16.mxu0 %v7990
        %11227 = vmatpush2.bf16.msra.mxu0 %v7989
        %11228 = vmatprep.mubr.bf16.mxu0 %v1742
        %11229 = vmatmul.mubr.bf16.gmra.mxu0 %v1741
        %v11230 = vpop.f32.mrf.mxu0
        %v11231 = vadd.f32 %v3310, %v11230
        %v11232 = vpop.f32.mrf.mxu0
        %v11233 = vadd.f32 %v3314, %v11232
        %v11234 = vpop.f32.mrf.mxu0
        %v11235 = vpop.f32.mrf.mxu0
        %11236 = vdwg.mxu0
        %11237 = vmatprep.subr.bf16.mxu0 %v7912
        %11238 = vmatpush1.bf16.msra.mxu0 %v7911
        %11239 = vmatprep.subr.bf16.mxu0 %v7832
        %11240 = vmatpush1.bf16.msra.mxu0 %v7831
        %11241 = vmatprep.subr.bf16.mxu0 %v7752
        %11242 = vmatpush1.bf16.msra.mxu0 %v7751
        %11243 = vmatprep.subr.bf16.mxu0 %v7672
        %11244 = vmatpush1.bf16.msra.mxu0 %v7671
        %11245 = vmatprep.subr.bf16.mxu0 %v7592
        %11246 = vmatpush1.bf16.msra.mxu0 %v7591
        %11247 = vmatprep.subr.bf16.mxu0 %v7512
        %11248 = vmatpush1.bf16.msra.mxu0 %v7511
        %11249 = vmatprep.subr.bf16.mxu0 %v7432
        %11250 = vmatpush1.bf16.msra.mxu0 %v7431
        %11251 = vmatprep.subr.bf16.mxu0 %v7352
        %11252 = vmatpush1.bf16.msra.mxu0 %v7351
        %11253 = vmatprep.subr.bf16.mxu0 %v8552
        %11254 = vmatpush2.bf16.msra.mxu0 %v8551
        %11255 = vmatprep.subr.bf16.mxu0 %v8472
        %11256 = vmatpush2.bf16.msra.mxu0 %v8471
        %11257 = vmatprep.subr.bf16.mxu0 %v8392
        %11258 = vmatpush2.bf16.msra.mxu0 %v8391
        %11259 = vmatprep.subr.bf16.mxu0 %v8312
        %11260 = vmatpush2.bf16.msra.mxu0 %v8311
        %11261 = vmatprep.subr.bf16.mxu0 %v8232
        %11262 = vmatpush2.bf16.msra.mxu0 %v8231
        %11263 = vmatprep.subr.bf16.mxu0 %v8152
        %11264 = vmatpush2.bf16.msra.mxu0 %v8151
        %11265 = vmatprep.subr.bf16.mxu0 %v8072
        %11266 = vmatpush2.bf16.msra.mxu0 %v8071
        %11267 = vmatprep.subr.bf16.mxu0 %v7992
        %11268 = vmatpush2.bf16.msra.mxu0 %v7991
        %11269 = vmatprep.mubr.bf16.mxu0 %v1742
        %11270 = vmatmul.mubr.bf16.gmra.mxu0 %v1741
        %v11271 = vpop.f32.mrf.mxu0
        %v11272 = vadd.f32 %v3318, %v11271
        %v11273 = vpop.f32.mrf.mxu0
        %v11274 = vadd.f32 %v3322, %v11273
        %v11275 = vpop.f32.mrf.mxu0
        %v11276 = vpop.f32.mrf.mxu0
        %11277 = vdwg.mxu0
        %11278 = vmatprep.subr.bf16.mxu0 %v7914
        %11279 = vmatpush1.bf16.msra.mxu0 %v7913
        %11280 = vmatprep.subr.bf16.mxu0 %v7834
        %11281 = vmatpush1.bf16.msra.mxu0 %v7833
        %11282 = vmatprep.subr.bf16.mxu0 %v7754
        %11283 = vmatpush1.bf16.msra.mxu0 %v7753
        %11284 = vmatprep.subr.bf16.mxu0 %v7674
        %11285 = vmatpush1.bf16.msra.mxu0 %v7673
        %11286 = vmatprep.subr.bf16.mxu0 %v7594
        %11287 = vmatpush1.bf16.msra.mxu0 %v7593
        %11288 = vmatprep.subr.bf16.mxu0 %v7514
        %11289 = vmatpush1.bf16.msra.mxu0 %v7513
        %11290 = vmatprep.subr.bf16.mxu0 %v7434
        %11291 = vmatpush1.bf16.msra.mxu0 %v7433
        %11292 = vmatprep.subr.bf16.mxu0 %v7354
        %11293 = vmatpush1.bf16.msra.mxu0 %v7353
        %11294 = vmatprep.subr.bf16.mxu0 %v8554
        %11295 = vmatpush2.bf16.msra.mxu0 %v8553
        %11296 = vmatprep.subr.bf16.mxu0 %v8474
        %11297 = vmatpush2.bf16.msra.mxu0 %v8473
        %11298 = vmatprep.subr.bf16.mxu0 %v8394
        %11299 = vmatpush2.bf16.msra.mxu0 %v8393
        %11300 = vmatprep.subr.bf16.mxu0 %v8314
        %11301 = vmatpush2.bf16.msra.mxu0 %v8313
        %11302 = vmatprep.subr.bf16.mxu0 %v8234
        %11303 = vmatpush2.bf16.msra.mxu0 %v8233
        %11304 = vmatprep.subr.bf16.mxu0 %v8154
        %11305 = vmatpush2.bf16.msra.mxu0 %v8153
        %11306 = vmatprep.subr.bf16.mxu0 %v8074
        %11307 = vmatpush2.bf16.msra.mxu0 %v8073
        %11308 = vmatprep.subr.bf16.mxu0 %v7994
        %11309 = vmatpush2.bf16.msra.mxu0 %v7993
        %11310 = vmatprep.mubr.bf16.mxu0 %v1742
        %11311 = vmatmul.mubr.bf16.gmra.mxu0 %v1741
        %v11312 = vpop.f32.mrf.mxu0
        %v11313 = vadd.f32 %v3326, %v11312
        %v11314 = vpop.f32.mrf.mxu0
        %v11315 = vadd.f32 %v3330, %v11314
        %v11316 = vpop.f32.mrf.mxu0
        %v11317 = vpop.f32.mrf.mxu0
        %11318 = vdwg.mxu0
        %11319 = vmatprep.subr.bf16.mxu0 %v7916
        %11320 = vmatpush1.bf16.msra.mxu0 %v7915
        %11321 = vmatprep.subr.bf16.mxu0 %v7836
        %11322 = vmatpush1.bf16.msra.mxu0 %v7835
        %11323 = vmatprep.subr.bf16.mxu0 %v7756
        %11324 = vmatpush1.bf16.msra.mxu0 %v7755
        %11325 = vmatprep.subr.bf16.mxu0 %v7676
        %11326 = vmatpush1.bf16.msra.mxu0 %v7675
        %11327 = vmatprep.subr.bf16.mxu0 %v7596
        %11328 = vmatpush1.bf16.msra.mxu0 %v7595
        %11329 = vmatprep.subr.bf16.mxu0 %v7516
        %11330 = vmatpush1.bf16.msra.mxu0 %v7515
        %11331 = vmatprep.subr.bf16.mxu0 %v7436
        %11332 = vmatpush1.bf16.msra.mxu0 %v7435
        %11333 = vmatprep.subr.bf16.mxu0 %v7356
        %11334 = vmatpush1.bf16.msra.mxu0 %v7355
        %11335 = vmatprep.subr.bf16.mxu0 %v8556
        %11336 = vmatpush2.bf16.msra.mxu0 %v8555
        %11337 = vmatprep.subr.bf16.mxu0 %v8476
        %11338 = vmatpush2.bf16.msra.mxu0 %v8475
        %11339 = vmatprep.subr.bf16.mxu0 %v8396
        %11340 = vmatpush2.bf16.msra.mxu0 %v8395
        %11341 = vmatprep.subr.bf16.mxu0 %v8316
        %11342 = vmatpush2.bf16.msra.mxu0 %v8315
        %11343 = vmatprep.subr.bf16.mxu0 %v8236
        %11344 = vmatpush2.bf16.msra.mxu0 %v8235
        %11345 = vmatprep.subr.bf16.mxu0 %v8156
        %11346 = vmatpush2.bf16.msra.mxu0 %v8155
        %11347 = vmatprep.subr.bf16.mxu0 %v8076
        %11348 = vmatpush2.bf16.msra.mxu0 %v8075
        %11349 = vmatprep.subr.bf16.mxu0 %v7996
        %11350 = vmatpush2.bf16.msra.mxu0 %v7995
        %11351 = vmatprep.mubr.bf16.mxu0 %v1742
        %11352 = vmatmul.mubr.bf16.gmra.mxu0 %v1741
        %v11353 = vpop.f32.mrf.mxu0
        %v11354 = vadd.f32 %v3334, %v11353
        %v11355 = vpop.f32.mrf.mxu0
        %v11356 = vadd.f32 %v3338, %v11355
        %v11357 = vpop.f32.mrf.mxu0
        %v11358 = vpop.f32.mrf.mxu0
        %11359 = vdwg.mxu0
        %11360 = vmatprep.subr.bf16.mxu0 %v7918
        %11361 = vmatpush1.bf16.msra.mxu0 %v7917
        %11362 = vmatprep.subr.bf16.mxu0 %v7838
        %11363 = vmatpush1.bf16.msra.mxu0 %v7837
        %11364 = vmatprep.subr.bf16.mxu0 %v7758
        %11365 = vmatpush1.bf16.msra.mxu0 %v7757
        %11366 = vmatprep.subr.bf16.mxu0 %v7678
        %11367 = vmatpush1.bf16.msra.mxu0 %v7677
        %11368 = vmatprep.subr.bf16.mxu0 %v7598
        %11369 = vmatpush1.bf16.msra.mxu0 %v7597
        %11370 = vmatprep.subr.bf16.mxu0 %v7518
        %11371 = vmatpush1.bf16.msra.mxu0 %v7517
        %11372 = vmatprep.subr.bf16.mxu0 %v7438
        %11373 = vmatpush1.bf16.msra.mxu0 %v7437
        %11374 = vmatprep.subr.bf16.mxu0 %v7358
        %11375 = vmatpush1.bf16.msra.mxu0 %v7357
        %11376 = vmatprep.subr.bf16.mxu0 %v8558
        %11377 = vmatpush2.bf16.msra.mxu0 %v8557
        %11378 = vmatprep.subr.bf16.mxu0 %v8478
        %11379 = vmatpush2.bf16.msra.mxu0 %v8477
        %11380 = vmatprep.subr.bf16.mxu0 %v8398
        %11381 = vmatpush2.bf16.msra.mxu0 %v8397
        %11382 = vmatprep.subr.bf16.mxu0 %v8318
        %11383 = vmatpush2.bf16.msra.mxu0 %v8317
        %11384 = vmatprep.subr.bf16.mxu0 %v8238
        %11385 = vmatpush2.bf16.msra.mxu0 %v8237
        %11386 = vmatprep.subr.bf16.mxu0 %v8158
        %11387 = vmatpush2.bf16.msra.mxu0 %v8157
        %11388 = vmatprep.subr.bf16.mxu0 %v8078
        %11389 = vmatpush2.bf16.msra.mxu0 %v8077
        %11390 = vmatprep.subr.bf16.mxu0 %v7998
        %11391 = vmatpush2.bf16.msra.mxu0 %v7997
        %11392 = vmatprep.mubr.bf16.mxu0 %v1742
        %11393 = vmatmul.mubr.bf16.gmra.mxu0 %v1741
        %v11394 = vpop.f32.mrf.mxu0
        %v11395 = vadd.f32 %v3342, %v11394
        %v11396 = vpop.f32.mrf.mxu0
        %v11397 = vadd.f32 %v3346, %v11396
        %v11398 = vpop.f32.mrf.mxu0
        %v11399 = vpop.f32.mrf.mxu0
        %11400 = vdwg.mxu0
        %11401 = vmatprep.subr.bf16.mxu0 %v7920
        %11402 = vmatpush1.bf16.msra.mxu0 %v7919
        %11403 = vmatprep.subr.bf16.mxu0 %v7840
        %11404 = vmatpush1.bf16.msra.mxu0 %v7839
        %11405 = vmatprep.subr.bf16.mxu0 %v7760
        %11406 = vmatpush1.bf16.msra.mxu0 %v7759
        %11407 = vmatprep.subr.bf16.mxu0 %v7680
        %11408 = vmatpush1.bf16.msra.mxu0 %v7679
        %11409 = vmatprep.subr.bf16.mxu0 %v7600
        %11410 = vmatpush1.bf16.msra.mxu0 %v7599
        %11411 = vmatprep.subr.bf16.mxu0 %v7520
        %11412 = vmatpush1.bf16.msra.mxu0 %v7519
        %11413 = vmatprep.subr.bf16.mxu0 %v7440
        %11414 = vmatpush1.bf16.msra.mxu0 %v7439
        %11415 = vmatprep.subr.bf16.mxu0 %v7360
        %11416 = vmatpush1.bf16.msra.mxu0 %v7359
        %11417 = vmatprep.subr.bf16.mxu0 %v8560
        %11418 = vmatpush2.bf16.msra.mxu0 %v8559
        %11419 = vmatprep.subr.bf16.mxu0 %v8480
        %11420 = vmatpush2.bf16.msra.mxu0 %v8479
        %11421 = vmatprep.subr.bf16.mxu0 %v8400
        %11422 = vmatpush2.bf16.msra.mxu0 %v8399
        %11423 = vmatprep.subr.bf16.mxu0 %v8320
        %11424 = vmatpush2.bf16.msra.mxu0 %v8319
        %11425 = vmatprep.subr.bf16.mxu0 %v8240
        %11426 = vmatpush2.bf16.msra.mxu0 %v8239
        %11427 = vmatprep.subr.bf16.mxu0 %v8160
        %11428 = vmatpush2.bf16.msra.mxu0 %v8159
        %11429 = vmatprep.subr.bf16.mxu0 %v8080
        %11430 = vmatpush2.bf16.msra.mxu0 %v8079
        %11431 = vmatprep.subr.bf16.mxu0 %v8000
        %11432 = vmatpush2.bf16.msra.mxu0 %v7999
        %11433 = vmatprep.mubr.bf16.mxu0 %v1742
        %11434 = vmatmul.mubr.bf16.gmra.mxu0 %v1741
        %v11435 = vpop.f32.mrf.mxu0
        %v11436 = vadd.f32 %v3350, %v11435
        %v11437 = vpop.f32.mrf.mxu0
        %v11438 = vadd.f32 %v3354, %v11437
        %v11439 = vpop.f32.mrf.mxu0
        %v11440 = vpop.f32.mrf.mxu0
        %11441 = vdwg.mxu0
        %11442 = vmatprep.subr.bf16.mxu0 %v7922
        %11443 = vmatpush1.bf16.msra.mxu0 %v7921
        %11444 = vmatprep.subr.bf16.mxu0 %v7842
        %11445 = vmatpush1.bf16.msra.mxu0 %v7841
        %11446 = vmatprep.subr.bf16.mxu0 %v7762
        %11447 = vmatpush1.bf16.msra.mxu0 %v7761
        %11448 = vmatprep.subr.bf16.mxu0 %v7682
        %11449 = vmatpush1.bf16.msra.mxu0 %v7681
        %11450 = vmatprep.subr.bf16.mxu0 %v7602
        %11451 = vmatpush1.bf16.msra.mxu0 %v7601
        %11452 = vmatprep.subr.bf16.mxu0 %v7522
        %11453 = vmatpush1.bf16.msra.mxu0 %v7521
        %11454 = vmatprep.subr.bf16.mxu0 %v7442
        %11455 = vmatpush1.bf16.msra.mxu0 %v7441
        %11456 = vmatprep.subr.bf16.mxu0 %v7362
        %11457 = vmatpush1.bf16.msra.mxu0 %v7361
        %11458 = vmatprep.subr.bf16.mxu0 %v8562
        %11459 = vmatpush2.bf16.msra.mxu0 %v8561
        %11460 = vmatprep.subr.bf16.mxu0 %v8482
        %11461 = vmatpush2.bf16.msra.mxu0 %v8481
        %11462 = vmatprep.subr.bf16.mxu0 %v8402
        %11463 = vmatpush2.bf16.msra.mxu0 %v8401
        %11464 = vmatprep.subr.bf16.mxu0 %v8322
        %11465 = vmatpush2.bf16.msra.mxu0 %v8321
        %11466 = vmatprep.subr.bf16.mxu0 %v8242
        %11467 = vmatpush2.bf16.msra.mxu0 %v8241
        %11468 = vmatprep.subr.bf16.mxu0 %v8162
        %11469 = vmatpush2.bf16.msra.mxu0 %v8161
        %11470 = vmatprep.subr.bf16.mxu0 %v8082
        %11471 = vmatpush2.bf16.msra.mxu0 %v8081
        %11472 = vmatprep.subr.bf16.mxu0 %v8002
        %11473 = vmatpush2.bf16.msra.mxu0 %v8001
        %11474 = vmatprep.mubr.bf16.mxu0 %v1742
        %11475 = vmatmul.mubr.bf16.gmra.mxu0 %v1741
        %v11476 = vpop.f32.mrf.mxu0
        %v11477 = vadd.f32 %v3358, %v11476
        %v11478 = vpop.f32.mrf.mxu0
        %v11479 = vadd.f32 %v3362, %v11478
        %v11480 = vpop.f32.mrf.mxu0
        %v11481 = vpop.f32.mrf.mxu0
        %11482 = vdwg.mxu0
        %v11563 = vcombine.low %v9878, %v9880
        %v11564 = vcombine.low %v9919, %v9921
        %v11566 = vunpack.c.l.s4 1983009808
        %v11567 = vunpack.c.0.s8 %v11566
        %v11568 = vlaneseq
        %v11569 = vshrl.u32 %v11568, 7
        %v11570 = vsub.s32 %v11567, %v11569
        %v11571 = vrot.slane %v11563, %v11570
        %v11573 = vunpack.c.l.s4 1983009808
        %v11574 = vunpack.c.0.s8 %v11573
        %v11575 = vlaneseq
        %v11576 = vshrl.u32 %v11575, 7
        %v11577 = vsub.s32 %v11574, %v11576
        %v11578 = vrot.slane %v11564, %v11577
        %v11579 = vcombine.low %v11571, %v11578
        %v11580 = vcombine.low %v9960, %v9962
        %v11581 = vcombine.low %v10001, %v10003
        %v11583 = vunpack.c.l.s4 1983009808
        %v11584 = vunpack.c.0.s8 %v11583
        %v11585 = vlaneseq
        %v11586 = vshrl.u32 %v11585, 7
        %v11587 = vsub.s32 %v11584, %v11586
        %v11588 = vrot.slane %v11580, %v11587
        %v11590 = vunpack.c.l.s4 1983009808
        %v11591 = vunpack.c.0.s8 %v11590
        %v11592 = vlaneseq
        %v11593 = vshrl.u32 %v11592, 7
        %v11594 = vsub.s32 %v11591, %v11593
        %v11595 = vrot.slane %v11581, %v11594
        %v11596 = vcombine.low %v11588, %v11595
        %v11597 = vcombine.low %v10042, %v10044
        %v11598 = vcombine.low %v10083, %v10085
        %v11600 = vunpack.c.l.s4 1983009808
        %v11601 = vunpack.c.0.s8 %v11600
        %v11602 = vlaneseq
        %v11603 = vshrl.u32 %v11602, 7
        %v11604 = vsub.s32 %v11601, %v11603
        %v11605 = vrot.slane %v11597, %v11604
        %v11607 = vunpack.c.l.s4 1983009808
        %v11608 = vunpack.c.0.s8 %v11607
        %v11609 = vlaneseq
        %v11610 = vshrl.u32 %v11609, 7
        %v11611 = vsub.s32 %v11608, %v11610
        %v11612 = vrot.slane %v11598, %v11611
        %v11613 = vcombine.low %v11605, %v11612
        %v11614 = vcombine.low %v10124, %v10126
        %v11615 = vcombine.low %v10165, %v10167
        %v11617 = vunpack.c.l.s4 1983009808
        %v11618 = vunpack.c.0.s8 %v11617
        %v11619 = vlaneseq
        %v11620 = vshrl.u32 %v11619, 7
        %v11621 = vsub.s32 %v11618, %v11620
        %v11622 = vrot.slane %v11614, %v11621
        %v11624 = vunpack.c.l.s4 1983009808
        %v11625 = vunpack.c.0.s8 %v11624
        %v11626 = vlaneseq
        %v11627 = vshrl.u32 %v11626, 7
        %v11628 = vsub.s32 %v11625, %v11627
        %v11629 = vrot.slane %v11615, %v11628
        %v11630 = vcombine.low %v11622, %v11629
        %v11631 = vcombine.low %v10206, %v10208
        %v11632 = vcombine.low %v10247, %v10249
        %v11634 = vunpack.c.l.s4 1983009808
        %v11635 = vunpack.c.0.s8 %v11634
        %v11636 = vlaneseq
        %v11637 = vshrl.u32 %v11636, 7
        %v11638 = vsub.s32 %v11635, %v11637
        %v11639 = vrot.slane %v11631, %v11638
        %v11641 = vunpack.c.l.s4 1983009808
        %v11642 = vunpack.c.0.s8 %v11641
        %v11643 = vlaneseq
        %v11644 = vshrl.u32 %v11643, 7
        %v11645 = vsub.s32 %v11642, %v11644
        %v11646 = vrot.slane %v11632, %v11645
        %v11647 = vcombine.low %v11639, %v11646
        %v11648 = vcombine.low %v10288, %v10290
        %v11649 = vcombine.low %v10329, %v10331
        %v11651 = vunpack.c.l.s4 1983009808
        %v11652 = vunpack.c.0.s8 %v11651
        %v11653 = vlaneseq
        %v11654 = vshrl.u32 %v11653, 7
        %v11655 = vsub.s32 %v11652, %v11654
        %v11656 = vrot.slane %v11648, %v11655
        %v11658 = vunpack.c.l.s4 1983009808
        %v11659 = vunpack.c.0.s8 %v11658
        %v11660 = vlaneseq
        %v11661 = vshrl.u32 %v11660, 7
        %v11662 = vsub.s32 %v11659, %v11661
        %v11663 = vrot.slane %v11649, %v11662
        %v11664 = vcombine.low %v11656, %v11663
        %v11665 = vcombine.low %v10370, %v10372
        %v11666 = vcombine.low %v10411, %v10413
        %v11668 = vunpack.c.l.s4 1983009808
        %v11669 = vunpack.c.0.s8 %v11668
        %v11670 = vlaneseq
        %v11671 = vshrl.u32 %v11670, 7
        %v11672 = vsub.s32 %v11669, %v11671
        %v11673 = vrot.slane %v11665, %v11672
        %v11675 = vunpack.c.l.s4 1983009808
        %v11676 = vunpack.c.0.s8 %v11675
        %v11677 = vlaneseq
        %v11678 = vshrl.u32 %v11677, 7
        %v11679 = vsub.s32 %v11676, %v11678
        %v11680 = vrot.slane %v11666, %v11679
        %v11681 = vcombine.low %v11673, %v11680
        %v11682 = vcombine.low %v10452, %v10454
        %v11683 = vcombine.low %v10493, %v10495
        %v11685 = vunpack.c.l.s4 1983009808
        %v11686 = vunpack.c.0.s8 %v11685
        %v11687 = vlaneseq
        %v11688 = vshrl.u32 %v11687, 7
        %v11689 = vsub.s32 %v11686, %v11688
        %v11690 = vrot.slane %v11682, %v11689
        %v11692 = vunpack.c.l.s4 1983009808
        %v11693 = vunpack.c.0.s8 %v11692
        %v11694 = vlaneseq
        %v11695 = vshrl.u32 %v11694, 7
        %v11696 = vsub.s32 %v11693, %v11695
        %v11697 = vrot.slane %v11683, %v11696
        %v11698 = vcombine.low %v11690, %v11697
        %v11699 = vcombine.low %v10534, %v10536
        %v11700 = vcombine.low %v10575, %v10577
        %v11702 = vunpack.c.l.s4 1983009808
        %v11703 = vunpack.c.0.s8 %v11702
        %v11704 = vlaneseq
        %v11705 = vshrl.u32 %v11704, 7
        %v11706 = vsub.s32 %v11703, %v11705
        %v11707 = vrot.slane %v11699, %v11706
        %v11709 = vunpack.c.l.s4 1983009808
        %v11710 = vunpack.c.0.s8 %v11709
        %v11711 = vlaneseq
        %v11712 = vshrl.u32 %v11711, 7
        %v11713 = vsub.s32 %v11710, %v11712
        %v11714 = vrot.slane %v11700, %v11713
        %v11715 = vcombine.low %v11707, %v11714
        %v11716 = vcombine.low %v10616, %v10618
        %v11717 = vcombine.low %v10657, %v10659
        %v11719 = vunpack.c.l.s4 1983009808
        %v11720 = vunpack.c.0.s8 %v11719
        %v11721 = vlaneseq
        %v11722 = vshrl.u32 %v11721, 7
        %v11723 = vsub.s32 %v11720, %v11722
        %v11724 = vrot.slane %v11716, %v11723
        %v11726 = vunpack.c.l.s4 1983009808
        %v11727 = vunpack.c.0.s8 %v11726
        %v11728 = vlaneseq
        %v11729 = vshrl.u32 %v11728, 7
        %v11730 = vsub.s32 %v11727, %v11729
        %v11731 = vrot.slane %v11717, %v11730
        %v11732 = vcombine.low %v11724, %v11731
        %v11733 = vcombine.low %v10698, %v10700
        %v11734 = vcombine.low %v10739, %v10741
        %v11736 = vunpack.c.l.s4 1983009808
        %v11737 = vunpack.c.0.s8 %v11736
        %v11738 = vlaneseq
        %v11739 = vshrl.u32 %v11738, 7
        %v11740 = vsub.s32 %v11737, %v11739
        %v11741 = vrot.slane %v11733, %v11740
        %v11743 = vunpack.c.l.s4 1983009808
        %v11744 = vunpack.c.0.s8 %v11743
        %v11745 = vlaneseq
        %v11746 = vshrl.u32 %v11745, 7
        %v11747 = vsub.s32 %v11744, %v11746
        %v11748 = vrot.slane %v11734, %v11747
        %v11749 = vcombine.low %v11741, %v11748
        %v11750 = vcombine.low %v10780, %v10782
        %v11751 = vcombine.low %v10821, %v10823
        %v11753 = vunpack.c.l.s4 1983009808
        %v11754 = vunpack.c.0.s8 %v11753
        %v11755 = vlaneseq
        %v11756 = vshrl.u32 %v11755, 7
        %v11757 = vsub.s32 %v11754, %v11756
        %v11758 = vrot.slane %v11750, %v11757
        %v11760 = vunpack.c.l.s4 1983009808
        %v11761 = vunpack.c.0.s8 %v11760
        %v11762 = vlaneseq
        %v11763 = vshrl.u32 %v11762, 7
        %v11764 = vsub.s32 %v11761, %v11763
        %v11765 = vrot.slane %v11751, %v11764
        %v11766 = vcombine.low %v11758, %v11765
        %v11767 = vcombine.low %v10862, %v10864
        %v11768 = vcombine.low %v10903, %v10905
        %v11770 = vunpack.c.l.s4 1983009808
        %v11771 = vunpack.c.0.s8 %v11770
        %v11772 = vlaneseq
        %v11773 = vshrl.u32 %v11772, 7
        %v11774 = vsub.s32 %v11771, %v11773
        %v11775 = vrot.slane %v11767, %v11774
        %v11777 = vunpack.c.l.s4 1983009808
        %v11778 = vunpack.c.0.s8 %v11777
        %v11779 = vlaneseq
        %v11780 = vshrl.u32 %v11779, 7
        %v11781 = vsub.s32 %v11778, %v11780
        %v11782 = vrot.slane %v11768, %v11781
        %v11783 = vcombine.low %v11775, %v11782
        %v11784 = vcombine.low %v10944, %v10946
        %v11785 = vcombine.low %v10985, %v10987
        %v11787 = vunpack.c.l.s4 1983009808
        %v11788 = vunpack.c.0.s8 %v11787
        %v11789 = vlaneseq
        %v11790 = vshrl.u32 %v11789, 7
        %v11791 = vsub.s32 %v11788, %v11790
        %v11792 = vrot.slane %v11784, %v11791
        %v11794 = vunpack.c.l.s4 1983009808
        %v11795 = vunpack.c.0.s8 %v11794
        %v11796 = vlaneseq
        %v11797 = vshrl.u32 %v11796, 7
        %v11798 = vsub.s32 %v11795, %v11797
        %v11799 = vrot.slane %v11785, %v11798
        %v11800 = vcombine.low %v11792, %v11799
        %v11801 = vcombine.low %v11026, %v11028
        %v11802 = vcombine.low %v11067, %v11069
        %v11804 = vunpack.c.l.s4 1983009808
        %v11805 = vunpack.c.0.s8 %v11804
        %v11806 = vlaneseq
        %v11807 = vshrl.u32 %v11806, 7
        %v11808 = vsub.s32 %v11805, %v11807
        %v11809 = vrot.slane %v11801, %v11808
        %v11811 = vunpack.c.l.s4 1983009808
        %v11812 = vunpack.c.0.s8 %v11811
        %v11813 = vlaneseq
        %v11814 = vshrl.u32 %v11813, 7
        %v11815 = vsub.s32 %v11812, %v11814
        %v11816 = vrot.slane %v11802, %v11815
        %v11817 = vcombine.low %v11809, %v11816
        %v11818 = vcombine.low %v11108, %v11110
        %v11819 = vcombine.low %v11149, %v11151
        %v11821 = vunpack.c.l.s4 1983009808
        %v11822 = vunpack.c.0.s8 %v11821
        %v11823 = vlaneseq
        %v11824 = vshrl.u32 %v11823, 7
        %v11825 = vsub.s32 %v11822, %v11824
        %v11826 = vrot.slane %v11818, %v11825
        %v11828 = vunpack.c.l.s4 1983009808
        %v11829 = vunpack.c.0.s8 %v11828
        %v11830 = vlaneseq
        %v11831 = vshrl.u32 %v11830, 7
        %v11832 = vsub.s32 %v11829, %v11831
        %v11833 = vrot.slane %v11819, %v11832
        %v11834 = vcombine.low %v11826, %v11833
        %v11835 = vcombine.low %v11190, %v11192
        %v11836 = vcombine.low %v11231, %v11233
        %v11838 = vunpack.c.l.s4 1983009808
        %v11839 = vunpack.c.0.s8 %v11838
        %v11840 = vlaneseq
        %v11841 = vshrl.u32 %v11840, 7
        %v11842 = vsub.s32 %v11839, %v11841
        %v11843 = vrot.slane %v11835, %v11842
        %v11845 = vunpack.c.l.s4 1983009808
        %v11846 = vunpack.c.0.s8 %v11845
        %v11847 = vlaneseq
        %v11848 = vshrl.u32 %v11847, 7
        %v11849 = vsub.s32 %v11846, %v11848
        %v11850 = vrot.slane %v11836, %v11849
        %v11851 = vcombine.low %v11843, %v11850
        %v11852 = vcombine.low %v11272, %v11274
        %v11853 = vcombine.low %v11313, %v11315
        %v11855 = vunpack.c.l.s4 1983009808
        %v11856 = vunpack.c.0.s8 %v11855
        %v11857 = vlaneseq
        %v11858 = vshrl.u32 %v11857, 7
        %v11859 = vsub.s32 %v11856, %v11858
        %v11860 = vrot.slane %v11852, %v11859
        %v11862 = vunpack.c.l.s4 1983009808
        %v11863 = vunpack.c.0.s8 %v11862
        %v11864 = vlaneseq
        %v11865 = vshrl.u32 %v11864, 7
        %v11866 = vsub.s32 %v11863, %v11865
        %v11867 = vrot.slane %v11853, %v11866
        %v11868 = vcombine.low %v11860, %v11867
        %v11869 = vcombine.low %v11354, %v11356
        %v11870 = vcombine.low %v11395, %v11397
        %v11872 = vunpack.c.l.s4 1983009808
        %v11873 = vunpack.c.0.s8 %v11872
        %v11874 = vlaneseq
        %v11875 = vshrl.u32 %v11874, 7
        %v11876 = vsub.s32 %v11873, %v11875
        %v11877 = vrot.slane %v11869, %v11876
        %v11879 = vunpack.c.l.s4 1983009808
        %v11880 = vunpack.c.0.s8 %v11879
        %v11881 = vlaneseq
        %v11882 = vshrl.u32 %v11881, 7
        %v11883 = vsub.s32 %v11880, %v11882
        %v11884 = vrot.slane %v11870, %v11883
        %v11885 = vcombine.low %v11877, %v11884
        %v11886 = vcombine.low %v11436, %v11438
        %v11887 = vcombine.low %v11477, %v11479
        %v11889 = vunpack.c.l.s4 1983009808
        %v11890 = vunpack.c.0.s8 %v11889
        %v11891 = vlaneseq
        %v11892 = vshrl.u32 %v11891, 7
        %v11893 = vsub.s32 %v11890, %v11892
        %v11894 = vrot.slane %v11886, %v11893
        %v11896 = vunpack.c.l.s4 1983009808
        %v11897 = vunpack.c.0.s8 %v11896
        %v11898 = vlaneseq
        %v11899 = vshrl.u32 %v11898, 7
        %v11900 = vsub.s32 %v11897, %v11899
        %v11901 = vrot.slane %v11887, %v11900
        %v11902 = vcombine.low %v11894, %v11901
        %11923 = vst [vmem:[%s398] sm:$0xff] %v11579
        %11924 = vst [vmem:[%s398 + $0x8] sm:$0xff] %v11596
        %11925 = vst [vmem:[%s398 + $0x10] sm:$0xff] %v11613
        %11926 = vst [vmem:[%s398 + $0x18] sm:$0xff] %v11630
        %11927 = vst [vmem:[%s398 + $0x20] sm:$0xff] %v11647
        %11928 = vst [vmem:[%s398 + $0x28] sm:$0xff] %v11664
        %11929 = vst [vmem:[%s398 + $0x30] sm:$0xff] %v11681
        %11930 = vst [vmem:[%s398 + $0x38] sm:$0xff] %v11698
        %11931 = vst [vmem:[%s398 + $0x40] sm:$0xff] %v11715
        %11932 = vst [vmem:[%s398 + $0x48] sm:$0xff] %v11732
        %11933 = vst [vmem:[%s398 + $0x50] sm:$0xff] %v11749
        %11934 = vst [vmem:[%s398 + $0x58] sm:$0xff] %v11766
        %11935 = vst [vmem:[%s398 + $0x60] sm:$0xff] %v11783
        %11936 = vst [vmem:[%s398 + $0x68] sm:$0xff] %v11800
        %11937 = vst [vmem:[%s398 + $0x70] sm:$0xff] %v11817
        %11938 = vst [vmem:[%s398 + $0x78] sm:$0xff] %v11834
        %11939 = vst [vmem:[%s398 + $0x80] sm:$0xff] %v11851
        %11940 = vst [vmem:[%s398 + $0x88] sm:$0xff] %v11868
        %11941 = vst [vmem:[%s398 + $0x90] sm:$0xff] %v11885
        %11942 = vst [vmem:[%s398 + $0x98] sm:$0xff] %v11902
        %s11943 = sand.u32 %s192, 1
        %s11944 = scalar_lea.sflag [#allocation4], %s11943
        %s11945 = sand.u32 %s192, 1
        %s11946 = smul.addr %s11945, 160
        %s11947 = scalar_lea.vmem [#allocation14], %s11946
        // Predicated region
        $region77: #{qnetwork_forward.1} parent=47 // pred_check
          %p11948 = pneg %p202
        $region78: #{qnetwork_forward.1} parent=47 // pred_check_branch
          %11950 = sbr.rel (%p11948) target = $region80
        $region79: #{qnetwork_forward.1} parent=47 // pred_region
          %s11951 = smul.u32 80, %s27
          %s11953 = ssub.s32 2560, 2560
          %11954 = vsyncadd %s11944, %s11953
          %s11955 = smul.addr %s11951, 32
          %s11956 = scalar_lea.hbm %s7, %s11955
          %s11958 = sshll.u32 %s11947, 4
          %s11959 = int_to_ptr.vmem [resolvable:$true] %s11958
          %11961 = dma.vmem_to_hbm [thread:$0]  %s11959, 2560, %s11956, %s11944
        $region80: #{qnetwork_forward.1} parent=47 // pred_fallthru
          _
      $region48: #{qnetwork_forward.1} parent=5 // pred_fallthru
        _
      %p11962 = scmp.le.s32.totalorder 2, %s22
      // Predicated region
      $region81: #{qnetwork_forward.1} parent=5 // pred_check
        %p11963 = pneg %p11962
      $region82: #{qnetwork_forward.1} parent=5 // pred_check_branch
        %11965 = sbr.rel (%p11963) target = $region84
      $region83: #{qnetwork_forward.1} parent=5 // pred_region
        %s11966 = ssub.s32 %s22, 2
        // Predicated region
        $region85: #{qnetwork_forward.1} parent=83 // pred_check
          %p11967 = pneg %p208
        $region86: #{qnetwork_forward.1} parent=83 // pred_check_branch
          %11969 = sbr.rel (%p11967) target = $region88
        $region87: #{qnetwork_forward.1} parent=83 // pred_region
          %s11970 = sand.u32 %s193, 1
          %s11971 = scalar_lea.sflag [#allocation4], %s11970
          %s11972 = sand.u32 %s193, 1
          %s11973 = smul.addr %s11972, 160
          %s11974 = scalar_lea.vmem [#allocation14], %s11973
          %11975 = dma.done %s11971, 2560
        $region88: #{qnetwork_forward.1} parent=83 // pred_fallthru
          _
      $region84: #{qnetwork_forward.1} parent=5 // pred_fallthru
        _
    $region6: #{qnetwork_forward.1} parent=1 // loop_footer
      %s26 = sadd.s32 1, %s22
    $region7: #{qnetwork_forward.1} parent=1 // loop_footer_branch
      %21 = sbr.rel target = $region3
    $region8: #{qnetwork_forward.1} parent=1 // loop_exit
      _
    %11976 = vsyncpa [#allocation3], 1
    %s11977 = scalar_lea.sflag [#allocation3], 1
    %11978 = vsyncpa %s11977, 1
    %11979 = vsyncpa [#allocation6], 1
    %11980 = vsyncpa [#allocation9], 1
    %11981 = vsyncpa [#allocation12], 1
    %s11982 = scalar_lea.sflag [#allocation12], 1
    %11983 = vsyncpa %s11982, 1
    %11984 = vsyncpa [#allocation4], 1
    %s11985 = scalar_lea.sflag [#allocation4], 1
    %11986 = vsyncpa %s11985, 1

</llo_original>
